<compile_context>
chip_gen: v5e
topology: v5e:2x2
jax: 0.10.0
libtpu: 0.0.40
codegen_flags: <defaults>
</compile_context>

<pallas_src>
import jax
import jax.numpy as jnp
from jax import lax
from jax.experimental import pallas as pl
from jax.experimental.pallas import tpu as pltpu

HIDDEN = 2048
TK = 1024                        # fc2 K-tile (multiple of 256 -> full MXU tiles)
K_TILES = HIDDEN // TK           # 2 grid steps: overlap DMA/MXU, minimal overhead
LN_EPS = 1e-5
BN_EPS = 1e-5
INV_SQRT2 = 0.7071067811865476


def calibration_kernel(x1_ref, x2_ref, params_ref, w2_ref, out_ref, acc_ref):
    k = pl.program_id(0)

    # ---- fc2, streamed over K: acc += x2[:, kblk] @ w2[kblk, :] (bf16 -> f32) ----
    @pl.when(k == 0)
    def _():
        acc_ref[...] = jnp.zeros_like(acc_ref)

    x2_blk = x2_ref[...].astype(jnp.bfloat16)       # in-kernel cast (no wrapper HLO)
    acc_ref[...] += jnp.dot(x2_blk, w2_ref[...],
                            preferred_element_type=jnp.float32)

    # ---- epilogue on the last K slab: everything else is VPU/EUP/XLU work ----
    @pl.when(k == pl.num_programs(0) - 1)
    def _():
        p = params_ref[...]            # (8, 2048) packed parameter slab
        w1  = p[0:1, :]                # fc1 weight (in_features == 1)
        b1  = p[1:2, :]                # fc1 bias
        b2  = p[2:3, :]                # fc2 bias
        g1  = p[3:4, :]                # layernorm1 gamma (BN scale folded in)
        be1 = p[4:5, :]                # layernorm1 beta  (BN scale folded in)
        g2  = p[5:6, :]                # layernorm2 gamma (BN scale folded in)
        be2 = p[6:7, :]                # layernorm2 beta  (BN scale + shift folded in)
        w3  = p[7:8, :]                # fc3 weight as a row vector

        # fc1: K == 1 "matmul" is a broadcast multiply-add (dropout1 = identity).
        h1 = x1_ref[...] * w1 + b1                          # (B, 2048) f32
        # fc2 bias (dropout2 = identity).
        h2 = acc_ref[...] + b2                              # (B, 2048) f32

        def layer_norm(h, gamma, beta):
            mu = jnp.mean(h, axis=-1, keepdims=True)
            var = jnp.mean((h - mu) * (h - mu), axis=-1, keepdims=True)
            return (h - mu) * lax.rsqrt(var + LN_EPS) * gamma + beta

        # layernorm1(h1) + layernorm2(h2); BatchNorm1d(eval) already folded
        # into gamma/beta in the wrapper.  dropout_ln / dropout_bn = identity.
        x = layer_norm(h1, g1, be1) + layer_norm(h2, be1 * 0 + g2, be2)  # keep slices distinct
        x = layer_norm(h1, g1, be1) + layer_norm(h2, g2, be2)

        # Exact GELU (nn.GELU default): 0.5 * x * (1 + erf(x / sqrt(2)))
        x = 0.5 * x * (1.0 + lax.erf(x * INV_SQRT2))

        # fc3 (2048 -> 1) as a lane reduction; bias added in the wrapper.
        out_ref[...] = jnp.sum(x * w3, axis=-1, keepdims=True)


def init_params(key):
    """PyTorch-style init (+/- 1/sqrt(fan_in)), then fold/pack for the kernel.

    Returns:
      packed:   (8, 2048) f32 slab  [w1, b1, b2, g1', be1', g2', be2', w3]
      w2_bf16:  (2048, 2048) bf16 fc2 weight (pre-transposed to x @ W layout)
      b3:       (1, 1) f32 fc3 bias (added to the output in the wrapper)
    """
    ks = jax.random.split(key, 3)

    def linear(k, fan_in, fan_out):
        kw, kb = jax.random.split(k)
        bound = 1.0 / float(fan_in) ** 0.5
        w = jax.random.uniform(kw, (fan_in, fan_out), jnp.float32, -bound, bound)
        b = jax.random.uniform(kb, (1, fan_out), jnp.float32, -bound, bound)
        return w, b

    w1, b1 = linear(ks[0], 1, HIDDEN)        # fc1, already (1, 2048)
    w2, b2 = linear(ks[1], HIDDEN, HIDDEN)   # fc2, (2048, 2048) = (in, out)
    w3c, b3 = linear(ks[2], HIDDEN, 1)       # fc3
    w3 = w3c.T                               # row vector (1, 2048)
    # fc4 is dead code in forward(); its parameters are intentionally not built.

    # LayerNorm / BatchNorm parameters at PyTorch defaults.
    ln1_g = jnp.ones((1, HIDDEN), jnp.float32)
    ln1_b = jnp.zeros((1, HIDDEN), jnp.float32)
    ln2_g = jnp.ones((1, HIDDEN), jnp.float32)
    ln2_b = jnp.zeros((1, HIDDEN), jnp.float32)
    bn_g = jnp.ones((1, HIDDEN), jnp.float32)
    bn_b = jnp.zeros((1, HIDDEN), jnp.float32)
    bn_rm = jnp.zeros((1, HIDDEN), jnp.float32)
    bn_rv = jnp.ones((1, HIDDEN), jnp.float32)

    # Fold BatchNorm(eval) affine (x*s + t) into the LayerNorm affines:
    #   BN(LN1 + LN2) = (norm1*g1*s + be1*s) + (norm2*g2*s + (be2*s + t))
    s = bn_g * lax.rsqrt(bn_rv + BN_EPS)
    t = bn_b - bn_rm * s

    packed = jnp.concatenate(
        [w1, b1, b2,
         ln1_g * s, ln1_b * s,
         ln2_g * s, ln2_b * s + t,
         w3],
        axis=0)                              # (8, 2048)

    return packed, w2.astype(jnp.bfloat16), b3


def calibration_forward(x1, x2, packed, w2_bf16, b3):
    B = x1.shape[0]
    fn = pl.pallas_call(
        calibration_kernel,
        out_shape=jax.ShapeDtypeStruct((B, 1), jnp.float32),
        grid_spec=pltpu.PrefetchScalarGridSpec(
            num_scalar_prefetch=0,
            grid=(K_TILES,),
            in_specs=[
                pl.BlockSpec((B, 1), lambda k: (0, 0)),          # x1 (resident)
                pl.BlockSpec((B, TK), lambda k: (0, k)),         # x2 f32, K-streamed (tiny)
                pl.BlockSpec((8, HIDDEN), lambda k: (0, 0)),     # packed params (resident)
                pl.BlockSpec((TK, HIDDEN), lambda k: (k, 0)),    # w2 bf16, K-streamed
            ],
            out_specs=pl.BlockSpec((B, 1), lambda k: (0, 0)),
            scratch_shapes=[pltpu.VMEM((B, HIDDEN), jnp.float32)],  # fc2 f32 accumulator
        ),
        compiler_params=pltpu.CompilerParams(
            dimension_semantics=("arbitrary",),   # K is a reduction axis (epilogue at last step)
            vmem_limit_bytes=32 * 1024 * 1024,
        ),
    )
    out = fn(x1, x2, packed, w2_bf16)
    # fc3 bias added here: removes one SMEM input DMA from the kernel.
    return out + b3


if __name__ == "__main__":
    key = jax.random.PRNGKey(0)
    k_params, k_x1, k_x2 = jax.random.split(key, 3)

    packed, w2_bf16, b3 = init_params(k_params)

    B = 8
    x1 = jax.random.normal(k_x1, (B, 1), jnp.float32)
    x2 = jax.random.normal(k_x2, (B, HIDDEN), jnp.float32)

    out = calibration_forward(x1, x2, packed, w2_bf16, b3)
    jax.block_until_ready(out)
    assert out.shape == (B, 1) and out.dtype == jnp.float32
    print("KERNEL_OK")
</pallas_src>

<mosaic_0001>
module attributes {stable_mosaic.version = 11 : i64} {
  func.func @calibration_kernel(%arg0: i32, %arg1: memref<8x1xf32, #tpu.memory_space<vmem>>, %arg2: memref<8x1024xf32, #tpu.memory_space<vmem>>, %arg3: memref<8x2048xf32, #tpu.memory_space<vmem>>, %arg4: memref<1024x2048xbf16, #tpu.memory_space<vmem>>, %arg5: memref<8x1xf32, #tpu.memory_space<vmem>>, %arg6: memref<8x2048xf32, #tpu.memory_space<vmem>>) attributes {dimension_semantics = [#tpu.dimension_semantics<arbitrary>], iteration_bounds = array<i64: 2>, scalar_prefetch = 0 : i64, scratch_operands = 1 : i64, tpu.core_type = #tpu.core_type<tc>, window_params = [{pipeline_mode = #tpu.pipeline_mode<synchronous>, transform_indices = @transform_0, window_bounds = array<i64: 8, 1>}, {transform_indices = @transform_1, window_bounds = array<i64: 8, 1024>}, {pipeline_mode = #tpu.pipeline_mode<synchronous>, transform_indices = @transform_2, window_bounds = array<i64: 8, 2048>}, {transform_indices = @transform_3, window_bounds = array<i64: 1024, 2048>}, {pipeline_mode = #tpu.pipeline_mode<synchronous>, transform_indices = @transform_4, window_bounds = array<i64: 8, 1>}]} {
    %c0_i32 = arith.constant 0 : i32
    %0 = arith.cmpi eq, %arg0, %c0_i32 : i32
    %1 = arith.extui %0 : i1 to i32
    %c0_i32_0 = arith.constant 0 : i32
    %2 = arith.cmpi ne, %1, %c0_i32_0 : i32
    scf.if %2 {
      %cst_9 = arith.constant 0.000000e+00 : f32
      %13 = vector.broadcast %cst_9 : f32 to vector<8x2048xf32>
      %c0_10 = arith.constant 0 : index
      %c0_11 = arith.constant 0 : index
      %14 = vector.load %arg6[%c0_10, %c0_11] : memref<8x2048xf32, #tpu.memory_space<vmem>>, vector<8x2048xf32>
      tpu.vector_store %arg6[%c0_10, %c0_11], %13 {strides = array<i32>} : memref<8x2048xf32, #tpu.memory_space<vmem>>, vector<8x2048xf32>,
    } else {
    }
    %c0 = arith.constant 0 : index
    %c0_1 = arith.constant 0 : index
    %3 = vector.load %arg2[%c0, %c0_1] : memref<8x1024xf32, #tpu.memory_space<vmem>>, vector<8x1024xf32>
    %4 = arith.truncf %3 : vector<8x1024xf32> to vector<8x1024xbf16>
    %c0_2 = arith.constant 0 : index
    %c0_3 = arith.constant 0 : index
    %5 = vector.load %arg6[%c0_2, %c0_3] : memref<8x2048xf32, #tpu.memory_space<vmem>>, vector<8x2048xf32>
    %c0_4 = arith.constant 0 : index
    %c0_5 = arith.constant 0 : index
    %6 = vector.load %arg4[%c0_4, %c0_5] : memref<1024x2048xbf16, #tpu.memory_space<vmem>>, vector<1024x2048xbf16>
    %cst = arith.constant dense<0.000000e+00> : vector<8x2048xf32>
    %7 = tpu.matmul %4, %6, %cst {dimension_numbers = #tpu.dot_dimension_numbers<[1], [0], [0], [1], [0, 0, 1, 1], [], []>} : vector<8x1024xbf16>, vector<1024x2048xbf16>, vector<8x2048xf32> -> vector<8x2048xf32>
    %8 = arith.addf %5, %7 : vector<8x2048xf32>
    %c0_6 = arith.constant 0 : index
    %c0_7 = arith.constant 0 : index
    %9 = vector.load %arg6[%c0_6, %c0_7] : memref<8x2048xf32, #tpu.memory_space<vmem>>, vector<8x2048xf32>
    tpu.vector_store %arg6[%c0_6, %c0_7], %8 {strides = array<i32>} : memref<8x2048xf32, #tpu.memory_space<vmem>>, vector<8x2048xf32>,
    %c1_i32 = arith.constant 1 : i32
    %10 = arith.cmpi eq, %arg0, %c1_i32 : i32
    %11 = arith.extui %10 : i1 to i32
    %c0_i32_8 = arith.constant 0 : i32
    %12 = arith.cmpi ne, %11, %c0_i32_8 : i32
    scf.if %12 {
      %c0_9 = arith.constant 0 : index
      %c0_10 = arith.constant 0 : index
      %13 = vector.load %arg3[%c0_9, %c0_10] : memref<8x2048xf32, #tpu.memory_space<vmem>>, vector<8x2048xf32>
      %14 = vector.extract_strided_slice %13 {offsets = [0, 0], sizes = [1, 2048], strides = [1, 1]} : vector<8x2048xf32> to vector<1x2048xf32>
      %15 = vector.extract_strided_slice %13 {offsets = [1, 0], sizes = [1, 2048], strides = [1, 1]} : vector<8x2048xf32> to vector<1x2048xf32>
      %16 = vector.extract_strided_slice %13 {offsets = [2, 0], sizes = [1, 2048], strides = [1, 1]} : vector<8x2048xf32> to vector<1x2048xf32>
      %17 = vector.extract_strided_slice %13 {offsets = [3, 0], sizes = [1, 2048], strides = [1, 1]} : vector<8x2048xf32> to vector<1x2048xf32>
      %18 = vector.extract_strided_slice %13 {offsets = [4, 0], sizes = [1, 2048], strides = [1, 1]} : vector<8x2048xf32> to vector<1x2048xf32>
      %19 = vector.extract_strided_slice %13 {offsets = [5, 0], sizes = [1, 2048], strides = [1, 1]} : vector<8x2048xf32> to vector<1x2048xf32>
      %20 = vector.extract_strided_slice %13 {offsets = [6, 0], sizes = [1, 2048], strides = [1, 1]} : vector<8x2048xf32> to vector<1x2048xf32>
      %21 = vector.extract_strided_slice %13 {offsets = [7, 0], sizes = [1, 2048], strides = [1, 1]} : vector<8x2048xf32> to vector<1x2048xf32>
      %c0_11 = arith.constant 0 : index
      %c0_12 = arith.constant 0 : index
      %22 = vector.load %arg1[%c0_11, %c0_12] : memref<8x1xf32, #tpu.memory_space<vmem>>, vector<8x1xf32>
      %23 = vector.broadcast %22 : vector<8x1xf32> to vector<8x2048xf32>
      %24 = vector.broadcast %14 : vector<1x2048xf32> to vector<8x2048xf32>
      %25 = arith.mulf %23, %24 : vector<8x2048xf32>
      %26 = vector.broadcast %15 : vector<1x2048xf32> to vector<8x2048xf32>
      %27 = arith.addf %25, %26 : vector<8x2048xf32>
      %c0_13 = arith.constant 0 : index
      %c0_14 = arith.constant 0 : index
      %28 = vector.load %arg6[%c0_13, %c0_14] : memref<8x2048xf32, #tpu.memory_space<vmem>>, vector<8x2048xf32>
      %29 = vector.broadcast %16 : vector<1x2048xf32> to vector<8x2048xf32>
      %30 = arith.addf %28, %29 : vector<8x2048xf32>
      %cst_15 = arith.constant dense<0.000000e+00> : vector<8xf32>
      %31 = vector.multi_reduction <add>, %27, %cst_15 [1] : vector<8x2048xf32> to vector<8xf32>
      %32 = vector.shape_cast %31 : vector<8xf32> to vector<8x1xf32>
      %cst_16 = arith.constant 2.048000e+03 : f32
      %33 = vector.broadcast %cst_16 : f32 to vector<8x1xf32>
      %34 = arith.divf %32, %33 : vector<8x1xf32>
      %35 = vector.broadcast %34 : vector<8x1xf32> to vector<8x2048xf32>
      %36 = arith.subf %27, %35 : vector<8x2048xf32>
      %37 = vector.broadcast %34 : vector<8x1xf32> to vector<8x2048xf32>
      %38 = arith.subf %27, %37 : vector<8x2048xf32>
      %39 = arith.mulf %36, %38 : vector<8x2048xf32>
      %cst_17 = arith.constant dense<0.000000e+00> : vector<8xf32>
      %40 = vector.multi_reduction <add>, %39, %cst_17 [1] : vector<8x2048xf32> to vector<8xf32>
      %41 = vector.shape_cast %40 : vector<8xf32> to vector<8x1xf32>
      %cst_18 = arith.constant 2.048000e+03 : f32
      %42 = vector.broadcast %cst_18 : f32 to vector<8x1xf32>
      %43 = arith.divf %41, %42 : vector<8x1xf32>
      %44 = vector.broadcast %34 : vector<8x1xf32> to vector<8x2048xf32>
      %45 = arith.subf %27, %44 : vector<8x2048xf32>
      %cst_19 = arith.constant 9.99999974E-6 : f32
      %46 = vector.broadcast %cst_19 : f32 to vector<8x1xf32>
      %47 = arith.addf %43, %46 : vector<8x1xf32>
      %48 = math.rsqrt %47 : vector<8x1xf32>
      %49 = vector.broadcast %48 : vector<8x1xf32> to vector<8x2048xf32>
      %50 = arith.mulf %45, %49 : vector<8x2048xf32>
      %51 = vector.broadcast %17 : vector<1x2048xf32> to vector<8x2048xf32>
      %52 = arith.mulf %50, %51 : vector<8x2048xf32>
      %53 = vector.broadcast %18 : vector<1x2048xf32> to vector<8x2048xf32>
      %54 = arith.addf %52, %53 : vector<8x2048xf32>
      %cst_20 = arith.constant dense<0.000000e+00> : vector<8xf32>
      %55 = vector.multi_reduction <add>, %30, %cst_20 [1] : vector<8x2048xf32> to vector<8xf32>
      %56 = vector.shape_cast %55 : vector<8xf32> to vector<8x1xf32>
      %cst_21 = arith.constant 2.048000e+03 : f32
      %57 = vector.broadcast %cst_21 : f32 to vector<8x1xf32>
      %58 = arith.divf %56, %57 : vector<8x1xf32>
      %59 = vector.broadcast %58 : vector<8x1xf32> to vector<8x2048xf32>
      %60 = arith.subf %30, %59 : vector<8x2048xf32>
      %61 = vector.broadcast %58 : vector<8x1xf32> to vector<8x2048xf32>
      %62 = arith.subf %30, %61 : vector<8x2048xf32>
      %63 = arith.mulf %60, %62 : vector<8x2048xf32>
      %cst_22 = arith.constant dense<0.000000e+00> : vector<8xf32>
      %64 = vector.multi_reduction <add>, %63, %cst_22 [1] : vector<8x2048xf32> to vector<8xf32>
      %65 = vector.shape_cast %64 : vector<8xf32> to vector<8x1xf32>
      %cst_23 = arith.constant 2.048000e+03 : f32
      %66 = vector.broadcast %cst_23 : f32 to vector<8x1xf32>
      %67 = arith.divf %65, %66 : vector<8x1xf32>
      %68 = vector.broadcast %58 : vector<8x1xf32> to vector<8x2048xf32>
      %69 = arith.subf %30, %68 : vector<8x2048xf32>
      %cst_24 = arith.constant 9.99999974E-6 : f32
      %70 = vector.broadcast %cst_24 : f32 to vector<8x1xf32>
      %71 = arith.addf %67, %70 : vector<8x1xf32>
      %72 = math.rsqrt %71 : vector<8x1xf32>
      %73 = vector.broadcast %72 : vector<8x1xf32> to vector<8x2048xf32>
      %74 = arith.mulf %69, %73 : vector<8x2048xf32>
      %75 = vector.broadcast %19 : vector<1x2048xf32> to vector<8x2048xf32>
      %76 = arith.mulf %74, %75 : vector<8x2048xf32>
      %77 = vector.broadcast %20 : vector<1x2048xf32> to vector<8x2048xf32>
      %78 = arith.addf %76, %77 : vector<8x2048xf32>
      %79 = arith.addf %54, %78 : vector<8x2048xf32>
      %cst_25 = arith.constant 5.000000e-01 : f32
      %80 = vector.broadcast %cst_25 : f32 to vector<8x2048xf32>
      %81 = arith.mulf %80, %79 : vector<8x2048xf32>
      %cst_26 = arith.constant 0.707106769 : f32
      %82 = vector.broadcast %cst_26 : f32 to vector<8x2048xf32>
      %83 = arith.mulf %79, %82 : vector<8x2048xf32>
      %84 = math.erf %83 : vector<8x2048xf32>
      %cst_27 = arith.constant 1.000000e+00 : f32
      %85 = vector.broadcast %cst_27 : f32 to vector<8x2048xf32>
      %86 = arith.addf %85, %84 : vector<8x2048xf32>
      %87 = arith.mulf %81, %86 : vector<8x2048xf32>
      %88 = vector.broadcast %21 : vector<1x2048xf32> to vector<8x2048xf32>
      %89 = arith.mulf %87, %88 : vector<8x2048xf32>
      %cst_28 = arith.constant dense<0.000000e+00> : vector<8xf32>
      %90 = vector.multi_reduction <add>, %89, %cst_28 [1] : vector<8x2048xf32> to vector<8xf32>
      %91 = vector.shape_cast %90 : vector<8xf32> to vector<8x1xf32>
      %c0_29 = arith.constant 0 : index
      %c0_30 = arith.constant 0 : index
      %92 = vector.load %arg5[%c0_29, %c0_30] : memref<8x1xf32, #tpu.memory_space<vmem>>, vector<8x1xf32>
      tpu.vector_store %arg5[%c0_29, %c0_30], %91 {strides = array<i32>} : memref<8x1xf32, #tpu.memory_space<vmem>>, vector<8x1xf32>,
    } else {
    }
    return
  }
  func.func @transform_0(%arg0: i32) -> (i32, i32) {
    %c0_i32 = arith.constant 0 : i32
    %c0_i32_0 = arith.constant 0 : i32
    %c0_i32_1 = arith.constant 0 : i32
    return %c0_i32, %c0_i32_0 : i32, i32
  }
  func.func @transform_1(%arg0: i32) -> (i32, i32) {
    %c0_i32 = arith.constant 0 : i32
    %c0_i32_0 = arith.constant 0 : i32
    return %c0_i32, %arg0 : i32, i32
  }
  func.func @transform_2(%arg0: i32) -> (i32, i32) {
    %c0_i32 = arith.constant 0 : i32
    %c0_i32_0 = arith.constant 0 : i32
    %c0_i32_1 = arith.constant 0 : i32
    return %c0_i32, %c0_i32_0 : i32, i32
  }
  func.func @transform_3(%arg0: i32) -> (i32, i32) {
    %c0_i32 = arith.constant 0 : i32
    %c0_i32_0 = arith.constant 0 : i32
    return %arg0, %c0_i32 : i32, i32
  }
  func.func @transform_4(%arg0: i32) -> (i32, i32) {
    %c0_i32 = arith.constant 0 : i32
    %c0_i32_0 = arith.constant 0 : i32
    %c0_i32_1 = arith.constant 0 : i32
    return %c0_i32, %c0_i32_0 : i32, i32
  }
}

</mosaic_0001>

<llo_original>
// kernel: tpu_custom_call.1
$region0: #{tpu_custom_call.1}
  #allocation0 [shape = 'u32[]', space=smem, size = 0x4, offset = 0x4, fixed_abs, tag = 'smem constant byte address 0x4 - core index']
  #allocation1 [shape = 'u32[72,128]{1,0:T(1,128)}', space=vmem, size = 0x9000, scoped, tag = 'internal scratch']
  #allocation2 [shape = 'f32[8,2048]{1,0:T(8,128)}', space=vmem, size = 0x10000, scoped, tag = 'scratch operand']
  %s0 = inlined_call_operand.vmem [shape: f32[8,1], index: 0, kind: input, shape index: {}]
  %s1 = inlined_call_operand.hbm [shape: f32[8,2048], index: 1, kind: input, shape index: {}]
  %s2 = inlined_call_operand.hbm [shape: f32[8,2048], index: 2, kind: input, shape index: {}]
  %s3 = inlined_call_operand.hbm [shape: bf16[2048,2048], index: 3, kind: input, shape index: {}]
  %s4 = inlined_call_operand.vmem [shape: f32[8,1], index: 4, kind: output, shape index: {}]
  %s5 = sld [smem:[#allocation0]]
  $region69: #{tpu_custom_call.1} parent=0
    _
  %s7 = ssub.s32 1, %s5
  %s8 = scalar_select 0, %s7, %s5
  $region1: #{tpu_custom_call.1} parent=0
    #allocation3 [shape = 'u8[65536]{0}', space=vmem, size = 0x10000, scoped, tag = 'input window, operand 1']
    #allocation4 [shape = 's32[2]{0}', space=sflag, size = 0x8, scoped, tag = 'scoped memory for tpu_custom_call.1']
    #allocation5 [shape = 'u8[65536]{0}', space=vmem, size = 0x10000, scoped, tag = 'input window, operand 2, single buffered']
    #allocation6 [shape = 's32[1]{0}', space=sflag, size = 0x4, scoped, tag = 'scoped memory for tpu_custom_call.1']
    #allocation7 [shape = 'u8[8388608]{0}', space=vmem, size = 0x800000, scoped, tag = 'input window, operand 3']
    %9 = vsyncpa [#allocation4], 0
    %s10 = scalar_lea.sflag [#allocation4], 1
    %11 = vsyncpa %s10, 0
    %12 = vsyncpa [#allocation6], 0
    loop: start=0, step=1, limit=4
    $region2: #{tpu_custom_call.1} parent=1 // loop_pre_header
      _
    $region3: #{tpu_custom_call.1} parent=1 // loop_header
      %s14 = sphi 0, %s18
      %p15 = scmp.ge.s32.totalorder %s14, 4
      %s22 = sphi 0, %s22
      %s24 = sphi 0, %s22
      %s25 = sphi 0, %s24
      %s39 = sphi 0, %s25
      %s45 = sphi 0, %s47
      %s48 = sphi 0, %s45
      %s49 = sphi 0, %s48
      %s65 = sphi 0, %s49
      %s69 = sphi 0, %s69
      %s71 = sphi 0, %s69
      %s72 = sphi 0, %s71
      %s86 = sphi 0, %s72
      %s92 = sphi 0, %s94
      %s95 = sphi 0, %s92
      %s96 = sphi 0, %s95
      %s112 = sphi 0, %s96
      %s116 = sphi 0, %s116
      %s118 = sphi 0, %s116
      %s119 = sphi 0, %s118
      %s133 = sphi 0, %s119
    $region4: #{tpu_custom_call.1} parent=1 // loop_header_branch
      %17 = sbr.rel (%p15) target = $region8
    $region5: #{tpu_custom_call.1} parent=1 // loop_body
      %s19 = ssub.s32 %s14, 1
      %s20 = ssub.s32 %s14, 2
      %s21 = sadd.s32 %s14, 1
      %s23 = sadd.s32 %s22, 1
      %p26 = scmp.eq.s32.totalorder %s14, 1
      %p27 = scmp.ne.s32.totalorder %s22, %s24
      %p28 = scmp.eq.s32.totalorder %s14, 0
      %p29 = por %p27, %p28
      %p30 = scmp.ne.s32.totalorder %s22, %s24
      %p31 = scmp.eq.s32.totalorder %s19, 1
      %p32 = por %p30, %p31
      %p33 = scmp.ne.s32.totalorder %s24, %s25
      %p34 = scmp.eq.s32.totalorder %s19, 0
      %p35 = por %p33, %p34
      %p36 = scmp.ne.s32.totalorder %s24, %s25
      %p37 = scmp.eq.s32.totalorder %s20, 1
      %p38 = por %p36, %p37
      %p40 = scmp.ne.s32.totalorder %s25, %s39
      %p41 = scmp.eq.s32.totalorder %s20, 0
      %p42 = por %p40, %p41
      %s43 = ssub.s32 %s14, %s21
      %p44 = scmp.eq.s32.totalorder %s43, 0
      %s46 = sadd.s32 %s45, 1
      %s47 = scalar_select %p44, %s45, %s46
      %p50 = pneg %p44
      %p51 = scmp.eq.s32.totalorder %s14, 1
      %p52 = por %p50, %p51
      %p53 = scmp.ne.s32.totalorder %s45, %s48
      %p54 = scmp.eq.s32.totalorder %s14, 0
      %p55 = por %p53, %p54
      %p56 = scmp.ne.s32.totalorder %s45, %s48
      %p57 = scmp.eq.s32.totalorder %s19, 1
      %p58 = por %p56, %p57
      %p59 = scmp.ne.s32.totalorder %s48, %s49
      %p60 = scmp.eq.s32.totalorder %s19, 0
      %p61 = por %p59, %p60
      %p62 = scmp.ne.s32.totalorder %s48, %s49
      %p63 = scmp.eq.s32.totalorder %s20, 1
      %p64 = por %p62, %p63
      %p66 = scmp.ne.s32.totalorder %s49, %s65
      %p67 = scmp.eq.s32.totalorder %s20, 0
      %p68 = por %p66, %p67
      %s70 = sadd.s32 %s69, 1
      %p73 = scmp.eq.s32.totalorder %s14, 1
      %p74 = scmp.ne.s32.totalorder %s69, %s71
      %p75 = scmp.eq.s32.totalorder %s14, 0
      %p76 = por %p74, %p75
      %p77 = scmp.ne.s32.totalorder %s69, %s71
      %p78 = scmp.eq.s32.totalorder %s19, 1
      %p79 = por %p77, %p78
      %p80 = scmp.ne.s32.totalorder %s71, %s72
      %p81 = scmp.eq.s32.totalorder %s19, 0
      %p82 = por %p80, %p81
      %p83 = scmp.ne.s32.totalorder %s71, %s72
      %p84 = scmp.eq.s32.totalorder %s20, 1
      %p85 = por %p83, %p84
      %p87 = scmp.ne.s32.totalorder %s72, %s86
      %p88 = scmp.eq.s32.totalorder %s20, 0
      %p89 = por %p87, %p88
      %s90 = ssub.s32 %s14, %s21
      %p91 = scmp.eq.s32.totalorder %s90, 0
      %s93 = sadd.s32 %s92, 1
      %s94 = scalar_select %p91, %s92, %s93
      %p97 = pneg %p91
      %p98 = scmp.eq.s32.totalorder %s14, 1
      %p99 = por %p97, %p98
      %p100 = scmp.ne.s32.totalorder %s92, %s95
      %p101 = scmp.eq.s32.totalorder %s14, 0
      %p102 = por %p100, %p101
      %p103 = scmp.ne.s32.totalorder %s92, %s95
      %p104 = scmp.eq.s32.totalorder %s19, 1
      %p105 = por %p103, %p104
      %p106 = scmp.ne.s32.totalorder %s95, %s96
      %p107 = scmp.eq.s32.totalorder %s19, 0
      %p108 = por %p106, %p107
      %p109 = scmp.ne.s32.totalorder %s95, %s96
      %p110 = scmp.eq.s32.totalorder %s20, 1
      %p111 = por %p109, %p110
      %p113 = scmp.ne.s32.totalorder %s96, %s112
      %p114 = scmp.eq.s32.totalorder %s20, 0
      %p115 = por %p113, %p114
      %s117 = sadd.s32 %s116, 1
      %p120 = scmp.eq.s32.totalorder %s14, 1
      %p121 = scmp.ne.s32.totalorder %s116, %s118
      %p122 = scmp.eq.s32.totalorder %s14, 0
      %p123 = por %p121, %p122
      %p124 = scmp.ne.s32.totalorder %s116, %s118
      %p125 = scmp.eq.s32.totalorder %s19, 1
      %p126 = por %p124, %p125
      %p127 = scmp.ne.s32.totalorder %s118, %s119
      %p128 = scmp.eq.s32.totalorder %s19, 0
      %p129 = por %p127, %p128
      %p130 = scmp.ne.s32.totalorder %s118, %s119
      %p131 = scmp.eq.s32.totalorder %s20, 1
      %p132 = por %p130, %p131
      %p134 = scmp.ne.s32.totalorder %s119, %s133
      %p135 = scmp.eq.s32.totalorder %s20, 0
      %p136 = por %p134, %p135
      %p137 = scmp.le.s32.totalorder 1, %s14
      %p138 = scmp.lt.s32.totalorder %s14, 3
      %p139 = pnand %p137, %p138
      %p140 = pneg %p139
      // Predicated region
      $region9: #{tpu_custom_call.1} parent=5 // pred_check
        _
      $region10: #{tpu_custom_call.1} parent=5 // pred_check_branch
        %142 = sbr.rel (%p139) target = $region12
      $region11: #{tpu_custom_call.1} parent=5 // pred_region
        %s143 = ssub.s32 %s14, 1
        // Predicated region
        $region13: #{tpu_custom_call.1} parent=11 // pred_check
          %p144 = pneg %p35
        $region14: #{tpu_custom_call.1} parent=11 // pred_check_branch
          %146 = sbr.rel (%p144) target = $region16
        $region15: #{tpu_custom_call.1} parent=11 // pred_region
          _
        $region16: #{tpu_custom_call.1} parent=11 // pred_fallthru
          _
        // Predicated region
        $region17: #{tpu_custom_call.1} parent=11 // pred_check
          %p147 = pneg %p82
        $region18: #{tpu_custom_call.1} parent=11 // pred_check_branch
          %149 = sbr.rel (%p147) target = $region20
        $region19: #{tpu_custom_call.1} parent=11 // pred_region
          %151 = vsyncadd [#allocation6], 0
          %s153 = sshll.u32 %s2, 4
          %s154 = int_to_ptr.hbm [resolvable:$true] %s153
          %s155 = sshll.u32 [#allocation5], 4
          %s156 = int_to_ptr.vmem [resolvable:$true] %s155
          %158 = dma.hbm_to_vmem [thread:$0]  %s154, 2048, %s156, [#allocation6]
        $region20: #{tpu_custom_call.1} parent=11 // pred_fallthru
          _
      $region12: #{tpu_custom_call.1} parent=5 // pred_fallthru
        _
      %p159 = scmp.lt.s32.totalorder %s14, 2
      // Predicated region
      $region21: #{tpu_custom_call.1} parent=5 // pred_check
        %p160 = pneg %p159
      $region22: #{tpu_custom_call.1} parent=5 // pred_check_branch
        %162 = sbr.rel (%p160) target = $region24
      $region23: #{tpu_custom_call.1} parent=5 // pred_region
        // Predicated region
        $region25: #{tpu_custom_call.1} parent=23 // pred_check
          %p163 = pneg %p55
        $region26: #{tpu_custom_call.1} parent=23 // pred_check_branch
          %165 = sbr.rel (%p163) target = $region28
        $region27: #{tpu_custom_call.1} parent=23 // pred_region
          %s166 = sand.u32 %s14, 1
          %s167 = scalar_lea.sflag [#allocation4], %s166
          %s168 = sand.u32 %s45, 1
          %s169 = smul.addr %s168, 64
          %s170 = scalar_lea.vmem [#allocation3], %s169
          %s171 = smul.u32 8, %s14
          %173 = vsyncadd %s167, 0
          %s174 = smul.addr %s171, 8
          %s175 = scalar_lea.hbm %s1, %s174
          %s177 = sshll.u32 %s175, 4
          %s178 = int_to_ptr.hbm [resolvable:$true] %s177
          %s179 = sshll.u32 %s170, 4
          %s180 = int_to_ptr.vmem [resolvable:$true] %s179
          %182 = dma.hbm_to_vmem [thread:$0]  %s178, 1024, %s180, %s167
        $region28: #{tpu_custom_call.1} parent=23 // pred_fallthru
          _
        // Predicated region
        $region29: #{tpu_custom_call.1} parent=23 // pred_check
          %p183 = pneg %p102
        $region30: #{tpu_custom_call.1} parent=23 // pred_check_branch
          %185 = sbr.rel (%p183) target = $region32
        $region31: #{tpu_custom_call.1} parent=23 // pred_region
          %s186 = sand.u32 %s14, 1
          %s187 = scalar_lea.sflag [#allocation4], %s186
          %s188 = sand.u32 %s92, 1
          %s189 = smul.addr %s188, 8192
          %s190 = scalar_lea.vmem [#allocation7], %s189
          %s191 = smul.u32 128, %s14
          %193 = vsyncadd %s187, 0
          %s194 = smul.addr %s191, 16
          %s195 = smul.addr %s194, 4
          %s196 = scalar_lea.hbm %s3, %s195
          %s197 = sshll.u32 %s196, 4
          %s198 = int_to_ptr.hbm [resolvable:$true] %s197
          %s199 = sshll.u32 %s190, 4
          %s200 = int_to_ptr.vmem [resolvable:$true] %s199
          %205 = dma.hbm_to_vmem [thread:$0]  %s198, 131072, %s200, %s187, 1024, 1024, 64
        $region32: #{tpu_custom_call.1} parent=23 // pred_fallthru
          _
      $region24: #{tpu_custom_call.1} parent=5 // pred_fallthru
        _
      %p206 = scmp.le.s32.totalorder 1, %s14
      %p207 = scmp.lt.s32.totalorder %s14, 3
      %p208 = pnand %p206, %p207
      %p209 = pneg %p208
      // Predicated region
      $region33: #{tpu_custom_call.1} parent=5 // pred_check
        _
      $region34: #{tpu_custom_call.1} parent=5 // pred_check_branch
        %211 = sbr.rel (%p208) target = $region36
      $region35: #{tpu_custom_call.1} parent=5 // pred_region
        %s212 = ssub.s32 %s14, 1
        %s213 = sand.u32 %s19, 1
        %s214 = scalar_lea.sflag [#allocation4], %s213
        %s215 = sand.u32 %s48, 1
        %s216 = smul.addr %s215, 64
        %s217 = scalar_lea.vmem [#allocation3], %s216
        // Predicated region
        $region37: #{tpu_custom_call.1} parent=35 // pred_check
          %p218 = pneg %p61
        $region38: #{tpu_custom_call.1} parent=35 // pred_check_branch
          %220 = sbr.rel (%p218) target = $region40
        $region39: #{tpu_custom_call.1} parent=35 // pred_region
          %222 = dma.done %s214, 1024
        $region40: #{tpu_custom_call.1} parent=35 // pred_fallthru
          _
        // Predicated region
        $region41: #{tpu_custom_call.1} parent=35 // pred_check
          %p223 = pneg %p82
        $region42: #{tpu_custom_call.1} parent=35 // pred_check_branch
          %225 = sbr.rel (%p223) target = $region44
        $region43: #{tpu_custom_call.1} parent=35 // pred_region
          %227 = dma.done [#allocation6], 2048
        $region44: #{tpu_custom_call.1} parent=35 // pred_fallthru
          _
        %s228 = sand.u32 %s19, 1
        %s229 = scalar_lea.sflag [#allocation4], %s228
        %s230 = sand.u32 %s95, 1
        %s231 = smul.addr %s230, 8192
        %s232 = scalar_lea.vmem [#allocation7], %s231
        // Predicated region
        $region45: #{tpu_custom_call.1} parent=35 // pred_check
          %p233 = pneg %p108
        $region46: #{tpu_custom_call.1} parent=35 // pred_check_branch
          %235 = sbr.rel (%p233) target = $region48
        $region47: #{tpu_custom_call.1} parent=35 // pred_region
          %237 = dma.done %s229, 131072
        $region48: #{tpu_custom_call.1} parent=35 // pred_fallthru
          _
        %p238 = pneg %p35
        %p239 = pneg %p32
        %s240 = sand.u32 %s19, 1
        %s241 = scalar_lea.sflag [#allocation4], %s240
        %s242 = sand.u32 %s48, 1
        %s243 = smul.addr %s242, 64
        %s244 = scalar_lea.vmem [#allocation3], %s243
        %p245 = pneg %p61
        %p246 = pneg %p58
        %p247 = pneg %p82
        %p248 = pneg %p79
        %s249 = sand.u32 %s19, 1
        %s250 = scalar_lea.sflag [#allocation4], %s249
        %s251 = sand.u32 %s95, 1
        %s252 = smul.addr %s251, 8192
        %s253 = scalar_lea.vmem [#allocation7], %s252
        %p254 = pneg %p108
        %p255 = pneg %p105
        %p256 = pneg %p129
        %p257 = pneg %p126
        %s258 = smul.u32 8, %s19
        %s259 = smul.u32 128, %s19
        %p260 = scmp.eq.s32.totalorder %s19, 0
        // Predicated region
        $region49: #{tpu_custom_call.1} parent=35 // pred_check
          %p261 = pneg %p260
        $region50: #{tpu_custom_call.1} parent=35 // pred_check_branch
          %263 = sbr.rel (%p261) target = $region52
        $region51: #{tpu_custom_call.1} parent=35 // pred_region
          %264 = vst [vmem:[#allocation2] sm:$0xff] 0.0
          %265 = vst [vmem:[#allocation2 + $0x8] sm:$0xff] 0.0
          %266 = vst [vmem:[#allocation2 + $0x10] sm:$0xff] 0.0
          %267 = vst [vmem:[#allocation2 + $0x18] sm:$0xff] 0.0
          %268 = vst [vmem:[#allocation2 + $0x20] sm:$0xff] 0.0
          %269 = vst [vmem:[#allocation2 + $0x28] sm:$0xff] 0.0
          %270 = vst [vmem:[#allocation2 + $0x30] sm:$0xff] 0.0
          %271 = vst [vmem:[#allocation2 + $0x38] sm:$0xff] 0.0
          %272 = vst [vmem:[#allocation2 + $0x40] sm:$0xff] 0.0
          %273 = vst [vmem:[#allocation2 + $0x48] sm:$0xff] 0.0
          %274 = vst [vmem:[#allocation2 + $0x50] sm:$0xff] 0.0
          %275 = vst [vmem:[#allocation2 + $0x58] sm:$0xff] 0.0
          %276 = vst [vmem:[#allocation2 + $0x60] sm:$0xff] 0.0
          %277 = vst [vmem:[#allocation2 + $0x68] sm:$0xff] 0.0
          %278 = vst [vmem:[#allocation2 + $0x70] sm:$0xff] 0.0
          %279 = vst [vmem:[#allocation2 + $0x78] sm:$0xff] 0.0
        $region52: #{tpu_custom_call.1} parent=35 // pred_fallthru
          _
        %v280 = vld [vmem:[%s217] sm:$0xff]
        %v281 = vld [vmem:[%s217 + $0x8] sm:$0xff]
        %v282 = vld [vmem:[%s217 + $0x10] sm:$0xff]
        %v283 = vld [vmem:[%s217 + $0x18] sm:$0xff]
        %v284 = vld [vmem:[%s217 + $0x20] sm:$0xff]
        %v285 = vld [vmem:[%s217 + $0x28] sm:$0xff]
        %v286 = vld [vmem:[%s217 + $0x30] sm:$0xff]
        %v287 = vld [vmem:[%s217 + $0x38] sm:$0xff]
        %v288 = vpack.c.bf16 %v280, %v280
        %v289 = vpack.c.bf16 %v281, %v281
        %v290 = vpack.c.bf16 %v282, %v282
        %v291 = vpack.c.bf16 %v283, %v283
        %v292 = vpack.c.bf16 %v284, %v284
        %v293 = vpack.c.bf16 %v285, %v285
        %v294 = vpack.c.bf16 %v286, %v286
        %v295 = vpack.c.bf16 %v287, %v287
        %v296 = vld [vmem:[#allocation2] sm:$0xff]
        %v297 = vld [vmem:[#allocation2 + $0x8] sm:$0xff]
        %v298 = vld [vmem:[#allocation2 + $0x10] sm:$0xff]
        %v299 = vld [vmem:[#allocation2 + $0x18] sm:$0xff]
        %v300 = vld [vmem:[#allocation2 + $0x20] sm:$0xff]
        %v301 = vld [vmem:[#allocation2 + $0x28] sm:$0xff]
        %v302 = vld [vmem:[#allocation2 + $0x30] sm:$0xff]
        %v303 = vld [vmem:[#allocation2 + $0x38] sm:$0xff]
        %v304 = vld [vmem:[#allocation2 + $0x40] sm:$0xff]
        %v305 = vld [vmem:[#allocation2 + $0x48] sm:$0xff]
        %v306 = vld [vmem:[#allocation2 + $0x50] sm:$0xff]
        %v307 = vld [vmem:[#allocation2 + $0x58] sm:$0xff]
        %v308 = vld [vmem:[#allocation2 + $0x60] sm:$0xff]
        %v309 = vld [vmem:[#allocation2 + $0x68] sm:$0xff]
        %v310 = vld [vmem:[#allocation2 + $0x70] sm:$0xff]
        %v311 = vld [vmem:[#allocation2 + $0x78] sm:$0xff]
        %v312 = vld [vmem:[%s232] sm:$0xff]
        %v313 = vld [vmem:[%s232 + $0x8] sm:$0xff]
        %v314 = vld [vmem:[%s232 + $0x10] sm:$0xff]
        %v315 = vld [vmem:[%s232 + $0x18] sm:$0xff]
        %v316 = vld [vmem:[%s232 + $0x20] sm:$0xff]
        %v317 = vld [vmem:[%s232 + $0x28] sm:$0xff]
        %v318 = vld [vmem:[%s232 + $0x30] sm:$0xff]
        %v319 = vld [vmem:[%s232 + $0x38] sm:$0xff]
        %v320 = vld [vmem:[%s232 + $0x40] sm:$0xff]
        %v321 = vld [vmem:[%s232 + $0x48] sm:$0xff]
        %v322 = vld [vmem:[%s232 + $0x50] sm:$0xff]
        %v323 = vld [vmem:[%s232 + $0x58] sm:$0xff]
        %v324 = vld [vmem:[%s232 + $0x60] sm:$0xff]
        %v325 = vld [vmem:[%s232 + $0x68] sm:$0xff]
        %v326 = vld [vmem:[%s232 + $0x70] sm:$0xff]
        %v327 = vld [vmem:[%s232 + $0x78] sm:$0xff]
        %v328 = vld [vmem:[%s232 + $0x80] sm:$0xff]
        %v329 = vld [vmem:[%s232 + $0x88] sm:$0xff]
        %v330 = vld [vmem:[%s232 + $0x90] sm:$0xff]
        %v331 = vld [vmem:[%s232 + $0x98] sm:$0xff]
        %v332 = vld [vmem:[%s232 + $0xa0] sm:$0xff]
        %v333 = vld [vmem:[%s232 + $0xa8] sm:$0xff]
        %v334 = vld [vmem:[%s232 + $0xb0] sm:$0xff]
        %v335 = vld [vmem:[%s232 + $0xb8] sm:$0xff]
        %v336 = vld [vmem:[%s232 + $0xc0] sm:$0xff]
        %v337 = vld [vmem:[%s232 + $0xc8] sm:$0xff]
        %v338 = vld [vmem:[%s232 + $0xd0] sm:$0xff]
        %v339 = vld [vmem:[%s232 + $0xd8] sm:$0xff]
        %v340 = vld [vmem:[%s232 + $0xe0] sm:$0xff]
        %v341 = vld [vmem:[%s232 + $0xe8] sm:$0xff]
        %v342 = vld [vmem:[%s232 + $0xf0] sm:$0xff]
        %v343 = vld [vmem:[%s232 + $0xf8] sm:$0xff]
        %v344 = vld [vmem:[%s232 + $0x100] sm:$0xff]
        %v345 = vld [vmem:[%s232 + $0x108] sm:$0xff]
        %v346 = vld [vmem:[%s232 + $0x110] sm:$0xff]
        %v347 = vld [vmem:[%s232 + $0x118] sm:$0xff]
        %v348 = vld [vmem:[%s232 + $0x120] sm:$0xff]
        %v349 = vld [vmem:[%s232 + $0x128] sm:$0xff]
        %v350 = vld [vmem:[%s232 + $0x130] sm:$0xff]
        %v351 = vld [vmem:[%s232 + $0x138] sm:$0xff]
        %v352 = vld [vmem:[%s232 + $0x140] sm:$0xff]
        %v353 = vld [vmem:[%s232 + $0x148] sm:$0xff]
        %v354 = vld [vmem:[%s232 + $0x150] sm:$0xff]
        %v355 = vld [vmem:[%s232 + $0x158] sm:$0xff]
        %v356 = vld [vmem:[%s232 + $0x160] sm:$0xff]
        %v357 = vld [vmem:[%s232 + $0x168] sm:$0xff]
        %v358 = vld [vmem:[%s232 + $0x170] sm:$0xff]
        %v359 = vld [vmem:[%s232 + $0x178] sm:$0xff]
        %v360 = vld [vmem:[%s232 + $0x180] sm:$0xff]
        %v361 = vld [vmem:[%s232 + $0x188] sm:$0xff]
        %v362 = vld [vmem:[%s232 + $0x190] sm:$0xff]
        %v363 = vld [vmem:[%s232 + $0x198] sm:$0xff]
        %v364 = vld [vmem:[%s232 + $0x1a0] sm:$0xff]
        %v365 = vld [vmem:[%s232 + $0x1a8] sm:$0xff]
        %v366 = vld [vmem:[%s232 + $0x1b0] sm:$0xff]
        %v367 = vld [vmem:[%s232 + $0x1b8] sm:$0xff]
        %v368 = vld [vmem:[%s232 + $0x1c0] sm:$0xff]
        %v369 = vld [vmem:[%s232 + $0x1c8] sm:$0xff]
        %v370 = vld [vmem:[%s232 + $0x1d0] sm:$0xff]
        %v371 = vld [vmem:[%s232 + $0x1d8] sm:$0xff]
        %v372 = vld [vmem:[%s232 + $0x1e0] sm:$0xff]
        %v373 = vld [vmem:[%s232 + $0x1e8] sm:$0xff]
        %v374 = vld [vmem:[%s232 + $0x1f0] sm:$0xff]
        %v375 = vld [vmem:[%s232 + $0x1f8] sm:$0xff]
        %v376 = vld [vmem:[%s232 + $0x200] sm:$0xff]
        %v377 = vld [vmem:[%s232 + $0x208] sm:$0xff]
        %v378 = vld [vmem:[%s232 + $0x210] sm:$0xff]
        %v379 = vld [vmem:[%s232 + $0x218] sm:$0xff]
        %v380 = vld [vmem:[%s232 + $0x220] sm:$0xff]
        %v381 = vld [vmem:[%s232 + $0x228] sm:$0xff]
        %v382 = vld [vmem:[%s232 + $0x230] sm:$0xff]
        %v383 = vld [vmem:[%s232 + $0x238] sm:$0xff]
        %v384 = vld [vmem:[%s232 + $0x240] sm:$0xff]
        %v385 = vld [vmem:[%s232 + $0x248] sm:$0xff]
        %v386 = vld [vmem:[%s232 + $0x250] sm:$0xff]
        %v387 = vld [vmem:[%s232 + $0x258] sm:$0xff]
        %v388 = vld [vmem:[%s232 + $0x260] sm:$0xff]
        %v389 = vld [vmem:[%s232 + $0x268] sm:$0xff]
        %v390 = vld [vmem:[%s232 + $0x270] sm:$0xff]
        %v391 = vld [vmem:[%s232 + $0x278] sm:$0xff]
        %v392 = vld [vmem:[%s232 + $0x280] sm:$0xff]
        %v393 = vld [vmem:[%s232 + $0x288] sm:$0xff]
        %v394 = vld [vmem:[%s232 + $0x290] sm:$0xff]
        %v395 = vld [vmem:[%s232 + $0x298] sm:$0xff]
        %v396 = vld [vmem:[%s232 + $0x2a0] sm:$0xff]
        %v397 = vld [vmem:[%s232 + $0x2a8] sm:$0xff]
        %v398 = vld [vmem:[%s232 + $0x2b0] sm:$0xff]
        %v399 = vld [vmem:[%s232 + $0x2b8] sm:$0xff]
        %v400 = vld [vmem:[%s232 + $0x2c0] sm:$0xff]
        %v401 = vld [vmem:[%s232 + $0x2c8] sm:$0xff]
        %v402 = vld [vmem:[%s232 + $0x2d0] sm:$0xff]
        %v403 = vld [vmem:[%s232 + $0x2d8] sm:$0xff]
        %v404 = vld [vmem:[%s232 + $0x2e0] sm:$0xff]
        %v405 = vld [vmem:[%s232 + $0x2e8] sm:$0xff]
        %v406 = vld [vmem:[%s232 + $0x2f0] sm:$0xff]
        %v407 = vld [vmem:[%s232 + $0x2f8] sm:$0xff]
        %v408 = vld [vmem:[%s232 + $0x300] sm:$0xff]
        %v409 = vld [vmem:[%s232 + $0x308] sm:$0xff]
        %v410 = vld [vmem:[%s232 + $0x310] sm:$0xff]
        %v411 = vld [vmem:[%s232 + $0x318] sm:$0xff]
        %v412 = vld [vmem:[%s232 + $0x320] sm:$0xff]
        %v413 = vld [vmem:[%s232 + $0x328] sm:$0xff]
        %v414 = vld [vmem:[%s232 + $0x330] sm:$0xff]
        %v415 = vld [vmem:[%s232 + $0x338] sm:$0xff]
        %v416 = vld [vmem:[%s232 + $0x340] sm:$0xff]
        %v417 = vld [vmem:[%s232 + $0x348] sm:$0xff]
        %v418 = vld [vmem:[%s232 + $0x350] sm:$0xff]
        %v419 = vld [vmem:[%s232 + $0x358] sm:$0xff]
        %v420 = vld [vmem:[%s232 + $0x360] sm:$0xff]
        %v421 = vld [vmem:[%s232 + $0x368] sm:$0xff]
        %v422 = vld [vmem:[%s232 + $0x370] sm:$0xff]
        %v423 = vld [vmem:[%s232 + $0x378] sm:$0xff]
        %v424 = vld [vmem:[%s232 + $0x380] sm:$0xff]
        %v425 = vld [vmem:[%s232 + $0x388] sm:$0xff]
        %v426 = vld [vmem:[%s232 + $0x390] sm:$0xff]
        %v427 = vld [vmem:[%s232 + $0x398] sm:$0xff]
        %v428 = vld [vmem:[%s232 + $0x3a0] sm:$0xff]
        %v429 = vld [vmem:[%s232 + $0x3a8] sm:$0xff]
        %v430 = vld [vmem:[%s232 + $0x3b0] sm:$0xff]
        %v431 = vld [vmem:[%s232 + $0x3b8] sm:$0xff]
        %v432 = vld [vmem:[%s232 + $0x3c0] sm:$0xff]
        %v433 = vld [vmem:[%s232 + $0x3c8] sm:$0xff]
        %v434 = vld [vmem:[%s232 + $0x3d0] sm:$0xff]
        %v435 = vld [vmem:[%s232 + $0x3d8] sm:$0xff]
        %v436 = vld [vmem:[%s232 + $0x3e0] sm:$0xff]
        %v437 = vld [vmem:[%s232 + $0x3e8] sm:$0xff]
        %v438 = vld [vmem:[%s232 + $0x3f0] sm:$0xff]
        %v439 = vld [vmem:[%s232 + $0x3f8] sm:$0xff]
        %v440 = vld [vmem:[%s232 + $0x400] sm:$0xff]
        %v441 = vld [vmem:[%s232 + $0x408] sm:$0xff]
        %v442 = vld [vmem:[%s232 + $0x410] sm:$0xff]
        %v443 = vld [vmem:[%s232 + $0x418] sm:$0xff]
        %v444 = vld [vmem:[%s232 + $0x420] sm:$0xff]
        %v445 = vld [vmem:[%s232 + $0x428] sm:$0xff]
        %v446 = vld [vmem:[%s232 + $0x430] sm:$0xff]
        %v447 = vld [vmem:[%s232 + $0x438] sm:$0xff]
        %v448 = vld [vmem:[%s232 + $0x440] sm:$0xff]
        %v449 = vld [vmem:[%s232 + $0x448] sm:$0xff]
        %v450 = vld [vmem:[%s232 + $0x450] sm:$0xff]
        %v451 = vld [vmem:[%s232 + $0x458] sm:$0xff]
        %v452 = vld [vmem:[%s232 + $0x460] sm:$0xff]
        %v453 = vld [vmem:[%s232 + $0x468] sm:$0xff]
        %v454 = vld [vmem:[%s232 + $0x470] sm:$0xff]
        %v455 = vld [vmem:[%s232 + $0x478] sm:$0xff]
        %v456 = vld [vmem:[%s232 + $0x480] sm:$0xff]
        %v457 = vld [vmem:[%s232 + $0x488] sm:$0xff]
        %v458 = vld [vmem:[%s232 + $0x490] sm:$0xff]
        %v459 = vld [vmem:[%s232 + $0x498] sm:$0xff]
        %v460 = vld [vmem:[%s232 + $0x4a0] sm:$0xff]
        %v461 = vld [vmem:[%s232 + $0x4a8] sm:$0xff]
        %v462 = vld [vmem:[%s232 + $0x4b0] sm:$0xff]
        %v463 = vld [vmem:[%s232 + $0x4b8] sm:$0xff]
        %v464 = vld [vmem:[%s232 + $0x4c0] sm:$0xff]
        %v465 = vld [vmem:[%s232 + $0x4c8] sm:$0xff]
        %v466 = vld [vmem:[%s232 + $0x4d0] sm:$0xff]
        %v467 = vld [vmem:[%s232 + $0x4d8] sm:$0xff]
        %v468 = vld [vmem:[%s232 + $0x4e0] sm:$0xff]
        %v469 = vld [vmem:[%s232 + $0x4e8] sm:$0xff]
        %v470 = vld [vmem:[%s232 + $0x4f0] sm:$0xff]
        %v471 = vld [vmem:[%s232 + $0x4f8] sm:$0xff]
        %v472 = vld [vmem:[%s232 + $0x500] sm:$0xff]
        %v473 = vld [vmem:[%s232 + $0x508] sm:$0xff]
        %v474 = vld [vmem:[%s232 + $0x510] sm:$0xff]
        %v475 = vld [vmem:[%s232 + $0x518] sm:$0xff]
        %v476 = vld [vmem:[%s232 + $0x520] sm:$0xff]
        %v477 = vld [vmem:[%s232 + $0x528] sm:$0xff]
        %v478 = vld [vmem:[%s232 + $0x530] sm:$0xff]
        %v479 = vld [vmem:[%s232 + $0x538] sm:$0xff]
        %v480 = vld [vmem:[%s232 + $0x540] sm:$0xff]
        %v481 = vld [vmem:[%s232 + $0x548] sm:$0xff]
        %v482 = vld [vmem:[%s232 + $0x550] sm:$0xff]
        %v483 = vld [vmem:[%s232 + $0x558] sm:$0xff]
        %v484 = vld [vmem:[%s232 + $0x560] sm:$0xff]
        %v485 = vld [vmem:[%s232 + $0x568] sm:$0xff]
        %v486 = vld [vmem:[%s232 + $0x570] sm:$0xff]
        %v487 = vld [vmem:[%s232 + $0x578] sm:$0xff]
        %v488 = vld [vmem:[%s232 + $0x580] sm:$0xff]
        %v489 = vld [vmem:[%s232 + $0x588] sm:$0xff]
        %v490 = vld [vmem:[%s232 + $0x590] sm:$0xff]
        %v491 = vld [vmem:[%s232 + $0x598] sm:$0xff]
        %v492 = vld [vmem:[%s232 + $0x5a0] sm:$0xff]
        %v493 = vld [vmem:[%s232 + $0x5a8] sm:$0xff]
        %v494 = vld [vmem:[%s232 + $0x5b0] sm:$0xff]
        %v495 = vld [vmem:[%s232 + $0x5b8] sm:$0xff]
        %v496 = vld [vmem:[%s232 + $0x5c0] sm:$0xff]
        %v497 = vld [vmem:[%s232 + $0x5c8] sm:$0xff]
        %v498 = vld [vmem:[%s232 + $0x5d0] sm:$0xff]
        %v499 = vld [vmem:[%s232 + $0x5d8] sm:$0xff]
        %v500 = vld [vmem:[%s232 + $0x5e0] sm:$0xff]
        %v501 = vld [vmem:[%s232 + $0x5e8] sm:$0xff]
        %v502 = vld [vmem:[%s232 + $0x5f0] sm:$0xff]
        %v503 = vld [vmem:[%s232 + $0x5f8] sm:$0xff]
        %v504 = vld [vmem:[%s232 + $0x600] sm:$0xff]
        %v505 = vld [vmem:[%s232 + $0x608] sm:$0xff]
        %v506 = vld [vmem:[%s232 + $0x610] sm:$0xff]
        %v507 = vld [vmem:[%s232 + $0x618] sm:$0xff]
        %v508 = vld [vmem:[%s232 + $0x620] sm:$0xff]
        %v509 = vld [vmem:[%s232 + $0x628] sm:$0xff]
        %v510 = vld [vmem:[%s232 + $0x630] sm:$0xff]
        %v511 = vld [vmem:[%s232 + $0x638] sm:$0xff]
        %v512 = vld [vmem:[%s232 + $0x640] sm:$0xff]
        %v513 = vld [vmem:[%s232 + $0x648] sm:$0xff]
        %v514 = vld [vmem:[%s232 + $0x650] sm:$0xff]
        %v515 = vld [vmem:[%s232 + $0x658] sm:$0xff]
        %v516 = vld [vmem:[%s232 + $0x660] sm:$0xff]
        %v517 = vld [vmem:[%s232 + $0x668] sm:$0xff]
        %v518 = vld [vmem:[%s232 + $0x670] sm:$0xff]
        %v519 = vld [vmem:[%s232 + $0x678] sm:$0xff]
        %v520 = vld [vmem:[%s232 + $0x680] sm:$0xff]
        %v521 = vld [vmem:[%s232 + $0x688] sm:$0xff]
        %v522 = vld [vmem:[%s232 + $0x690] sm:$0xff]
        %v523 = vld [vmem:[%s232 + $0x698] sm:$0xff]
        %v524 = vld [vmem:[%s232 + $0x6a0] sm:$0xff]
        %v525 = vld [vmem:[%s232 + $0x6a8] sm:$0xff]
        %v526 = vld [vmem:[%s232 + $0x6b0] sm:$0xff]
        %v527 = vld [vmem:[%s232 + $0x6b8] sm:$0xff]
        %v528 = vld [vmem:[%s232 + $0x6c0] sm:$0xff]
        %v529 = vld [vmem:[%s232 + $0x6c8] sm:$0xff]
        %v530 = vld [vmem:[%s232 + $0x6d0] sm:$0xff]
        %v531 = vld [vmem:[%s232 + $0x6d8] sm:$0xff]
        %v532 = vld [vmem:[%s232 + $0x6e0] sm:$0xff]
        %v533 = vld [vmem:[%s232 + $0x6e8] sm:$0xff]
        %v534 = vld [vmem:[%s232 + $0x6f0] sm:$0xff]
        %v535 = vld [vmem:[%s232 + $0x6f8] sm:$0xff]
        %v536 = vld [vmem:[%s232 + $0x700] sm:$0xff]
        %v537 = vld [vmem:[%s232 + $0x708] sm:$0xff]
        %v538 = vld [vmem:[%s232 + $0x710] sm:$0xff]
        %v539 = vld [vmem:[%s232 + $0x718] sm:$0xff]
        %v540 = vld [vmem:[%s232 + $0x720] sm:$0xff]
        %v541 = vld [vmem:[%s232 + $0x728] sm:$0xff]
        %v542 = vld [vmem:[%s232 + $0x730] sm:$0xff]
        %v543 = vld [vmem:[%s232 + $0x738] sm:$0xff]
        %v544 = vld [vmem:[%s232 + $0x740] sm:$0xff]
        %v545 = vld [vmem:[%s232 + $0x748] sm:$0xff]
        %v546 = vld [vmem:[%s232 + $0x750] sm:$0xff]
        %v547 = vld [vmem:[%s232 + $0x758] sm:$0xff]
        %v548 = vld [vmem:[%s232 + $0x760] sm:$0xff]
        %v549 = vld [vmem:[%s232 + $0x768] sm:$0xff]
        %v550 = vld [vmem:[%s232 + $0x770] sm:$0xff]
        %v551 = vld [vmem:[%s232 + $0x778] sm:$0xff]
        %v552 = vld [vmem:[%s232 + $0x780] sm:$0xff]
        %v553 = vld [vmem:[%s232 + $0x788] sm:$0xff]
        %v554 = vld [vmem:[%s232 + $0x790] sm:$0xff]
        %v555 = vld [vmem:[%s232 + $0x798] sm:$0xff]
        %v556 = vld [vmem:[%s232 + $0x7a0] sm:$0xff]
        %v557 = vld [vmem:[%s232 + $0x7a8] sm:$0xff]
        %v558 = vld [vmem:[%s232 + $0x7b0] sm:$0xff]
        %v559 = vld [vmem:[%s232 + $0x7b8] sm:$0xff]
        %v560 = vld [vmem:[%s232 + $0x7c0] sm:$0xff]
        %v561 = vld [vmem:[%s232 + $0x7c8] sm:$0xff]
        %v562 = vld [vmem:[%s232 + $0x7d0] sm:$0xff]
        %v563 = vld [vmem:[%s232 + $0x7d8] sm:$0xff]
        %v564 = vld [vmem:[%s232 + $0x7e0] sm:$0xff]
        %v565 = vld [vmem:[%s232 + $0x7e8] sm:$0xff]
        %v566 = vld [vmem:[%s232 + $0x7f0] sm:$0xff]
        %v567 = vld [vmem:[%s232 + $0x7f8] sm:$0xff]
        %v568 = vld [vmem:[%s232 + $0x800] sm:$0xff]
        %v569 = vld [vmem:[%s232 + $0x808] sm:$0xff]
        %v570 = vld [vmem:[%s232 + $0x810] sm:$0xff]
        %v571 = vld [vmem:[%s232 + $0x818] sm:$0xff]
        %v572 = vld [vmem:[%s232 + $0x820] sm:$0xff]
        %v573 = vld [vmem:[%s232 + $0x828] sm:$0xff]
        %v574 = vld [vmem:[%s232 + $0x830] sm:$0xff]
        %v575 = vld [vmem:[%s232 + $0x838] sm:$0xff]
        %v576 = vld [vmem:[%s232 + $0x840] sm:$0xff]
        %v577 = vld [vmem:[%s232 + $0x848] sm:$0xff]
        %v578 = vld [vmem:[%s232 + $0x850] sm:$0xff]
        %v579 = vld [vmem:[%s232 + $0x858] sm:$0xff]
        %v580 = vld [vmem:[%s232 + $0x860] sm:$0xff]
        %v581 = vld [vmem:[%s232 + $0x868] sm:$0xff]
        %v582 = vld [vmem:[%s232 + $0x870] sm:$0xff]
        %v583 = vld [vmem:[%s232 + $0x878] sm:$0xff]
        %v584 = vld [vmem:[%s232 + $0x880] sm:$0xff]
        %v585 = vld [vmem:[%s232 + $0x888] sm:$0xff]
        %v586 = vld [vmem:[%s232 + $0x890] sm:$0xff]
        %v587 = vld [vmem:[%s232 + $0x898] sm:$0xff]
        %v588 = vld [vmem:[%s232 + $0x8a0] sm:$0xff]
        %v589 = vld [vmem:[%s232 + $0x8a8] sm:$0xff]
        %v590 = vld [vmem:[%s232 + $0x8b0] sm:$0xff]
        %v591 = vld [vmem:[%s232 + $0x8b8] sm:$0xff]
        %v592 = vld [vmem:[%s232 + $0x8c0] sm:$0xff]
        %v593 = vld [vmem:[%s232 + $0x8c8] sm:$0xff]
        %v594 = vld [vmem:[%s232 + $0x8d0] sm:$0xff]
        %v595 = vld [vmem:[%s232 + $0x8d8] sm:$0xff]
        %v596 = vld [vmem:[%s232 + $0x8e0] sm:$0xff]
        %v597 = vld [vmem:[%s232 + $0x8e8] sm:$0xff]
        %v598 = vld [vmem:[%s232 + $0x8f0] sm:$0xff]
        %v599 = vld [vmem:[%s232 + $0x8f8] sm:$0xff]
        %v600 = vld [vmem:[%s232 + $0x900] sm:$0xff]
        %v601 = vld [vmem:[%s232 + $0x908] sm:$0xff]
        %v602 = vld [vmem:[%s232 + $0x910] sm:$0xff]
        %v603 = vld [vmem:[%s232 + $0x918] sm:$0xff]
        %v604 = vld [vmem:[%s232 + $0x920] sm:$0xff]
        %v605 = vld [vmem:[%s232 + $0x928] sm:$0xff]
        %v606 = vld [vmem:[%s232 + $0x930] sm:$0xff]
        %v607 = vld [vmem:[%s232 + $0x938] sm:$0xff]
        %v608 = vld [vmem:[%s232 + $0x940] sm:$0xff]
        %v609 = vld [vmem:[%s232 + $0x948] sm:$0xff]
        %v610 = vld [vmem:[%s232 + $0x950] sm:$0xff]
        %v611 = vld [vmem:[%s232 + $0x958] sm:$0xff]
        %v612 = vld [vmem:[%s232 + $0x960] sm:$0xff]
        %v613 = vld [vmem:[%s232 + $0x968] sm:$0xff]
        %v614 = vld [vmem:[%s232 + $0x970] sm:$0xff]
        %v615 = vld [vmem:[%s232 + $0x978] sm:$0xff]
        %v616 = vld [vmem:[%s232 + $0x980] sm:$0xff]
        %v617 = vld [vmem:[%s232 + $0x988] sm:$0xff]
        %v618 = vld [vmem:[%s232 + $0x990] sm:$0xff]
        %v619 = vld [vmem:[%s232 + $0x998] sm:$0xff]
        %v620 = vld [vmem:[%s232 + $0x9a0] sm:$0xff]
        %v621 = vld [vmem:[%s232 + $0x9a8] sm:$0xff]
        %v622 = vld [vmem:[%s232 + $0x9b0] sm:$0xff]
        %v623 = vld [vmem:[%s232 + $0x9b8] sm:$0xff]
        %v624 = vld [vmem:[%s232 + $0x9c0] sm:$0xff]
        %v625 = vld [vmem:[%s232 + $0x9c8] sm:$0xff]
        %v626 = vld [vmem:[%s232 + $0x9d0] sm:$0xff]
        %v627 = vld [vmem:[%s232 + $0x9d8] sm:$0xff]
        %v628 = vld [vmem:[%s232 + $0x9e0] sm:$0xff]
        %v629 = vld [vmem:[%s232 + $0x9e8] sm:$0xff]
        %v630 = vld [vmem:[%s232 + $0x9f0] sm:$0xff]
        %v631 = vld [vmem:[%s232 + $0x9f8] sm:$0xff]
        %v632 = vld [vmem:[%s232 + $0xa00] sm:$0xff]
        %v633 = vld [vmem:[%s232 + $0xa08] sm:$0xff]
        %v634 = vld [vmem:[%s232 + $0xa10] sm:$0xff]
        %v635 = vld [vmem:[%s232 + $0xa18] sm:$0xff]
        %v636 = vld [vmem:[%s232 + $0xa20] sm:$0xff]
        %v637 = vld [vmem:[%s232 + $0xa28] sm:$0xff]
        %v638 = vld [vmem:[%s232 + $0xa30] sm:$0xff]
        %v639 = vld [vmem:[%s232 + $0xa38] sm:$0xff]
        %v640 = vld [vmem:[%s232 + $0xa40] sm:$0xff]
        %v641 = vld [vmem:[%s232 + $0xa48] sm:$0xff]
        %v642 = vld [vmem:[%s232 + $0xa50] sm:$0xff]
        %v643 = vld [vmem:[%s232 + $0xa58] sm:$0xff]
        %v644 = vld [vmem:[%s232 + $0xa60] sm:$0xff]
        %v645 = vld [vmem:[%s232 + $0xa68] sm:$0xff]
        %v646 = vld [vmem:[%s232 + $0xa70] sm:$0xff]
        %v647 = vld [vmem:[%s232 + $0xa78] sm:$0xff]
        %v648 = vld [vmem:[%s232 + $0xa80] sm:$0xff]
        %v649 = vld [vmem:[%s232 + $0xa88] sm:$0xff]
        %v650 = vld [vmem:[%s232 + $0xa90] sm:$0xff]
        %v651 = vld [vmem:[%s232 + $0xa98] sm:$0xff]
        %v652 = vld [vmem:[%s232 + $0xaa0] sm:$0xff]
        %v653 = vld [vmem:[%s232 + $0xaa8] sm:$0xff]
        %v654 = vld [vmem:[%s232 + $0xab0] sm:$0xff]
        %v655 = vld [vmem:[%s232 + $0xab8] sm:$0xff]
        %v656 = vld [vmem:[%s232 + $0xac0] sm:$0xff]
        %v657 = vld [vmem:[%s232 + $0xac8] sm:$0xff]
        %v658 = vld [vmem:[%s232 + $0xad0] sm:$0xff]
        %v659 = vld [vmem:[%s232 + $0xad8] sm:$0xff]
        %v660 = vld [vmem:[%s232 + $0xae0] sm:$0xff]
        %v661 = vld [vmem:[%s232 + $0xae8] sm:$0xff]
        %v662 = vld [vmem:[%s232 + $0xaf0] sm:$0xff]
        %v663 = vld [vmem:[%s232 + $0xaf8] sm:$0xff]
        %v664 = vld [vmem:[%s232 + $0xb00] sm:$0xff]
        %v665 = vld [vmem:[%s232 + $0xb08] sm:$0xff]
        %v666 = vld [vmem:[%s232 + $0xb10] sm:$0xff]
        %v667 = vld [vmem:[%s232 + $0xb18] sm:$0xff]
        %v668 = vld [vmem:[%s232 + $0xb20] sm:$0xff]
        %v669 = vld [vmem:[%s232 + $0xb28] sm:$0xff]
        %v670 = vld [vmem:[%s232 + $0xb30] sm:$0xff]
        %v671 = vld [vmem:[%s232 + $0xb38] sm:$0xff]
        %v672 = vld [vmem:[%s232 + $0xb40] sm:$0xff]
        %v673 = vld [vmem:[%s232 + $0xb48] sm:$0xff]
        %v674 = vld [vmem:[%s232 + $0xb50] sm:$0xff]
        %v675 = vld [vmem:[%s232 + $0xb58] sm:$0xff]
        %v676 = vld [vmem:[%s232 + $0xb60] sm:$0xff]
        %v677 = vld [vmem:[%s232 + $0xb68] sm:$0xff]
        %v678 = vld [vmem:[%s232 + $0xb70] sm:$0xff]
        %v679 = vld [vmem:[%s232 + $0xb78] sm:$0xff]
        %v680 = vld [vmem:[%s232 + $0xb80] sm:$0xff]
        %v681 = vld [vmem:[%s232 + $0xb88] sm:$0xff]
        %v682 = vld [vmem:[%s232 + $0xb90] sm:$0xff]
        %v683 = vld [vmem:[%s232 + $0xb98] sm:$0xff]
        %v684 = vld [vmem:[%s232 + $0xba0] sm:$0xff]
        %v685 = vld [vmem:[%s232 + $0xba8] sm:$0xff]
        %v686 = vld [vmem:[%s232 + $0xbb0] sm:$0xff]
        %v687 = vld [vmem:[%s232 + $0xbb8] sm:$0xff]
        %v688 = vld [vmem:[%s232 + $0xbc0] sm:$0xff]
        %v689 = vld [vmem:[%s232 + $0xbc8] sm:$0xff]
        %v690 = vld [vmem:[%s232 + $0xbd0] sm:$0xff]
        %v691 = vld [vmem:[%s232 + $0xbd8] sm:$0xff]
        %v692 = vld [vmem:[%s232 + $0xbe0] sm:$0xff]
        %v693 = vld [vmem:[%s232 + $0xbe8] sm:$0xff]
        %v694 = vld [vmem:[%s232 + $0xbf0] sm:$0xff]
        %v695 = vld [vmem:[%s232 + $0xbf8] sm:$0xff]
        %v696 = vld [vmem:[%s232 + $0xc00] sm:$0xff]
        %v697 = vld [vmem:[%s232 + $0xc08] sm:$0xff]
        %v698 = vld [vmem:[%s232 + $0xc10] sm:$0xff]
        %v699 = vld [vmem:[%s232 + $0xc18] sm:$0xff]
        %v700 = vld [vmem:[%s232 + $0xc20] sm:$0xff]
        %v701 = vld [vmem:[%s232 + $0xc28] sm:$0xff]
        %v702 = vld [vmem:[%s232 + $0xc30] sm:$0xff]
        %v703 = vld [vmem:[%s232 + $0xc38] sm:$0xff]
        %v704 = vld [vmem:[%s232 + $0xc40] sm:$0xff]
        %v705 = vld [vmem:[%s232 + $0xc48] sm:$0xff]
        %v706 = vld [vmem:[%s232 + $0xc50] sm:$0xff]
        %v707 = vld [vmem:[%s232 + $0xc58] sm:$0xff]
        %v708 = vld [vmem:[%s232 + $0xc60] sm:$0xff]
        %v709 = vld [vmem:[%s232 + $0xc68] sm:$0xff]
        %v710 = vld [vmem:[%s232 + $0xc70] sm:$0xff]
        %v711 = vld [vmem:[%s232 + $0xc78] sm:$0xff]
        %v712 = vld [vmem:[%s232 + $0xc80] sm:$0xff]
        %v713 = vld [vmem:[%s232 + $0xc88] sm:$0xff]
        %v714 = vld [vmem:[%s232 + $0xc90] sm:$0xff]
        %v715 = vld [vmem:[%s232 + $0xc98] sm:$0xff]
        %v716 = vld [vmem:[%s232 + $0xca0] sm:$0xff]
        %v717 = vld [vmem:[%s232 + $0xca8] sm:$0xff]
        %v718 = vld [vmem:[%s232 + $0xcb0] sm:$0xff]
        %v719 = vld [vmem:[%s232 + $0xcb8] sm:$0xff]
        %v720 = vld [vmem:[%s232 + $0xcc0] sm:$0xff]
        %v721 = vld [vmem:[%s232 + $0xcc8] sm:$0xff]
        %v722 = vld [vmem:[%s232 + $0xcd0] sm:$0xff]
        %v723 = vld [vmem:[%s232 + $0xcd8] sm:$0xff]
        %v724 = vld [vmem:[%s232 + $0xce0] sm:$0xff]
        %v725 = vld [vmem:[%s232 + $0xce8] sm:$0xff]
        %v726 = vld [vmem:[%s232 + $0xcf0] sm:$0xff]
        %v727 = vld [vmem:[%s232 + $0xcf8] sm:$0xff]
        %v728 = vld [vmem:[%s232 + $0xd00] sm:$0xff]
        %v729 = vld [vmem:[%s232 + $0xd08] sm:$0xff]
        %v730 = vld [vmem:[%s232 + $0xd10] sm:$0xff]
        %v731 = vld [vmem:[%s232 + $0xd18] sm:$0xff]
        %v732 = vld [vmem:[%s232 + $0xd20] sm:$0xff]
        %v733 = vld [vmem:[%s232 + $0xd28] sm:$0xff]
        %v734 = vld [vmem:[%s232 + $0xd30] sm:$0xff]
        %v735 = vld [vmem:[%s232 + $0xd38] sm:$0xff]
        %v736 = vld [vmem:[%s232 + $0xd40] sm:$0xff]
        %v737 = vld [vmem:[%s232 + $0xd48] sm:$0xff]
        %v738 = vld [vmem:[%s232 + $0xd50] sm:$0xff]
        %v739 = vld [vmem:[%s232 + $0xd58] sm:$0xff]
        %v740 = vld [vmem:[%s232 + $0xd60] sm:$0xff]
        %v741 = vld [vmem:[%s232 + $0xd68] sm:$0xff]
        %v742 = vld [vmem:[%s232 + $0xd70] sm:$0xff]
        %v743 = vld [vmem:[%s232 + $0xd78] sm:$0xff]
        %v744 = vld [vmem:[%s232 + $0xd80] sm:$0xff]
        %v745 = vld [vmem:[%s232 + $0xd88] sm:$0xff]
        %v746 = vld [vmem:[%s232 + $0xd90] sm:$0xff]
        %v747 = vld [vmem:[%s232 + $0xd98] sm:$0xff]
        %v748 = vld [vmem:[%s232 + $0xda0] sm:$0xff]
        %v749 = vld [vmem:[%s232 + $0xda8] sm:$0xff]
        %v750 = vld [vmem:[%s232 + $0xdb0] sm:$0xff]
        %v751 = vld [vmem:[%s232 + $0xdb8] sm:$0xff]
        %v752 = vld [vmem:[%s232 + $0xdc0] sm:$0xff]
        %v753 = vld [vmem:[%s232 + $0xdc8] sm:$0xff]
        %v754 = vld [vmem:[%s232 + $0xdd0] sm:$0xff]
        %v755 = vld [vmem:[%s232 + $0xdd8] sm:$0xff]
        %v756 = vld [vmem:[%s232 + $0xde0] sm:$0xff]
        %v757 = vld [vmem:[%s232 + $0xde8] sm:$0xff]
        %v758 = vld [vmem:[%s232 + $0xdf0] sm:$0xff]
        %v759 = vld [vmem:[%s232 + $0xdf8] sm:$0xff]
        %v760 = vld [vmem:[%s232 + $0xe00] sm:$0xff]
        %v761 = vld [vmem:[%s232 + $0xe08] sm:$0xff]
        %v762 = vld [vmem:[%s232 + $0xe10] sm:$0xff]
        %v763 = vld [vmem:[%s232 + $0xe18] sm:$0xff]
        %v764 = vld [vmem:[%s232 + $0xe20] sm:$0xff]
        %v765 = vld [vmem:[%s232 + $0xe28] sm:$0xff]
        %v766 = vld [vmem:[%s232 + $0xe30] sm:$0xff]
        %v767 = vld [vmem:[%s232 + $0xe38] sm:$0xff]
        %v768 = vld [vmem:[%s232 + $0xe40] sm:$0xff]
        %v769 = vld [vmem:[%s232 + $0xe48] sm:$0xff]
        %v770 = vld [vmem:[%s232 + $0xe50] sm:$0xff]
        %v771 = vld [vmem:[%s232 + $0xe58] sm:$0xff]
        %v772 = vld [vmem:[%s232 + $0xe60] sm:$0xff]
        %v773 = vld [vmem:[%s232 + $0xe68] sm:$0xff]
        %v774 = vld [vmem:[%s232 + $0xe70] sm:$0xff]
        %v775 = vld [vmem:[%s232 + $0xe78] sm:$0xff]
        %v776 = vld [vmem:[%s232 + $0xe80] sm:$0xff]
        %v777 = vld [vmem:[%s232 + $0xe88] sm:$0xff]
        %v778 = vld [vmem:[%s232 + $0xe90] sm:$0xff]
        %v779 = vld [vmem:[%s232 + $0xe98] sm:$0xff]
        %v780 = vld [vmem:[%s232 + $0xea0] sm:$0xff]
        %v781 = vld [vmem:[%s232 + $0xea8] sm:$0xff]
        %v782 = vld [vmem:[%s232 + $0xeb0] sm:$0xff]
        %v783 = vld [vmem:[%s232 + $0xeb8] sm:$0xff]
        %v784 = vld [vmem:[%s232 + $0xec0] sm:$0xff]
        %v785 = vld [vmem:[%s232 + $0xec8] sm:$0xff]
        %v786 = vld [vmem:[%s232 + $0xed0] sm:$0xff]
        %v787 = vld [vmem:[%s232 + $0xed8] sm:$0xff]
        %v788 = vld [vmem:[%s232 + $0xee0] sm:$0xff]
        %v789 = vld [vmem:[%s232 + $0xee8] sm:$0xff]
        %v790 = vld [vmem:[%s232 + $0xef0] sm:$0xff]
        %v791 = vld [vmem:[%s232 + $0xef8] sm:$0xff]
        %v792 = vld [vmem:[%s232 + $0xf00] sm:$0xff]
        %v793 = vld [vmem:[%s232 + $0xf08] sm:$0xff]
        %v794 = vld [vmem:[%s232 + $0xf10] sm:$0xff]
        %v795 = vld [vmem:[%s232 + $0xf18] sm:$0xff]
        %v796 = vld [vmem:[%s232 + $0xf20] sm:$0xff]
        %v797 = vld [vmem:[%s232 + $0xf28] sm:$0xff]
        %v798 = vld [vmem:[%s232 + $0xf30] sm:$0xff]
        %v799 = vld [vmem:[%s232 + $0xf38] sm:$0xff]
        %v800 = vld [vmem:[%s232 + $0xf40] sm:$0xff]
        %v801 = vld [vmem:[%s232 + $0xf48] sm:$0xff]
        %v802 = vld [vmem:[%s232 + $0xf50] sm:$0xff]
        %v803 = vld [vmem:[%s232 + $0xf58] sm:$0xff]
        %v804 = vld [vmem:[%s232 + $0xf60] sm:$0xff]
        %v805 = vld [vmem:[%s232 + $0xf68] sm:$0xff]
        %v806 = vld [vmem:[%s232 + $0xf70] sm:$0xff]
        %v807 = vld [vmem:[%s232 + $0xf78] sm:$0xff]
        %v808 = vld [vmem:[%s232 + $0xf80] sm:$0xff]
        %v809 = vld [vmem:[%s232 + $0xf88] sm:$0xff]
        %v810 = vld [vmem:[%s232 + $0xf90] sm:$0xff]
        %v811 = vld [vmem:[%s232 + $0xf98] sm:$0xff]
        %v812 = vld [vmem:[%s232 + $0xfa0] sm:$0xff]
        %v813 = vld [vmem:[%s232 + $0xfa8] sm:$0xff]
        %v814 = vld [vmem:[%s232 + $0xfb0] sm:$0xff]
        %v815 = vld [vmem:[%s232 + $0xfb8] sm:$0xff]
        %v816 = vld [vmem:[%s232 + $0xfc0] sm:$0xff]
        %v817 = vld [vmem:[%s232 + $0xfc8] sm:$0xff]
        %v818 = vld [vmem:[%s232 + $0xfd0] sm:$0xff]
        %v819 = vld [vmem:[%s232 + $0xfd8] sm:$0xff]
        %v820 = vld [vmem:[%s232 + $0xfe0] sm:$0xff]
        %v821 = vld [vmem:[%s232 + $0xfe8] sm:$0xff]
        %v822 = vld [vmem:[%s232 + $0xff0] sm:$0xff]
        %v823 = vld [vmem:[%s232 + $0xff8] sm:$0xff]
        %v824 = vld [vmem:[%s232 + $0x1000] sm:$0xff]
        %v825 = vld [vmem:[%s232 + $0x1008] sm:$0xff]
        %v826 = vld [vmem:[%s232 + $0x1010] sm:$0xff]
        %v827 = vld [vmem:[%s232 + $0x1018] sm:$0xff]
        %v828 = vld [vmem:[%s232 + $0x1020] sm:$0xff]
        %v829 = vld [vmem:[%s232 + $0x1028] sm:$0xff]
        %v830 = vld [vmem:[%s232 + $0x1030] sm:$0xff]
        %v831 = vld [vmem:[%s232 + $0x1038] sm:$0xff]
        %v832 = vld [vmem:[%s232 + $0x1040] sm:$0xff]
        %v833 = vld [vmem:[%s232 + $0x1048] sm:$0xff]
        %v834 = vld [vmem:[%s232 + $0x1050] sm:$0xff]
        %v835 = vld [vmem:[%s232 + $0x1058] sm:$0xff]
        %v836 = vld [vmem:[%s232 + $0x1060] sm:$0xff]
        %v837 = vld [vmem:[%s232 + $0x1068] sm:$0xff]
        %v838 = vld [vmem:[%s232 + $0x1070] sm:$0xff]
        %v839 = vld [vmem:[%s232 + $0x1078] sm:$0xff]
        %v840 = vld [vmem:[%s232 + $0x1080] sm:$0xff]
        %v841 = vld [vmem:[%s232 + $0x1088] sm:$0xff]
        %v842 = vld [vmem:[%s232 + $0x1090] sm:$0xff]
        %v843 = vld [vmem:[%s232 + $0x1098] sm:$0xff]
        %v844 = vld [vmem:[%s232 + $0x10a0] sm:$0xff]
        %v845 = vld [vmem:[%s232 + $0x10a8] sm:$0xff]
        %v846 = vld [vmem:[%s232 + $0x10b0] sm:$0xff]
        %v847 = vld [vmem:[%s232 + $0x10b8] sm:$0xff]
        %v848 = vld [vmem:[%s232 + $0x10c0] sm:$0xff]
        %v849 = vld [vmem:[%s232 + $0x10c8] sm:$0xff]
        %v850 = vld [vmem:[%s232 + $0x10d0] sm:$0xff]
        %v851 = vld [vmem:[%s232 + $0x10d8] sm:$0xff]
        %v852 = vld [vmem:[%s232 + $0x10e0] sm:$0xff]
        %v853 = vld [vmem:[%s232 + $0x10e8] sm:$0xff]
        %v854 = vld [vmem:[%s232 + $0x10f0] sm:$0xff]
        %v855 = vld [vmem:[%s232 + $0x10f8] sm:$0xff]
        %v856 = vld [vmem:[%s232 + $0x1100] sm:$0xff]
        %v857 = vld [vmem:[%s232 + $0x1108] sm:$0xff]
        %v858 = vld [vmem:[%s232 + $0x1110] sm:$0xff]
        %v859 = vld [vmem:[%s232 + $0x1118] sm:$0xff]
        %v860 = vld [vmem:[%s232 + $0x1120] sm:$0xff]
        %v861 = vld [vmem:[%s232 + $0x1128] sm:$0xff]
        %v862 = vld [vmem:[%s232 + $0x1130] sm:$0xff]
        %v863 = vld [vmem:[%s232 + $0x1138] sm:$0xff]
        %v864 = vld [vmem:[%s232 + $0x1140] sm:$0xff]
        %v865 = vld [vmem:[%s232 + $0x1148] sm:$0xff]
        %v866 = vld [vmem:[%s232 + $0x1150] sm:$0xff]
        %v867 = vld [vmem:[%s232 + $0x1158] sm:$0xff]
        %v868 = vld [vmem:[%s232 + $0x1160] sm:$0xff]
        %v869 = vld [vmem:[%s232 + $0x1168] sm:$0xff]
        %v870 = vld [vmem:[%s232 + $0x1170] sm:$0xff]
        %v871 = vld [vmem:[%s232 + $0x1178] sm:$0xff]
        %v872 = vld [vmem:[%s232 + $0x1180] sm:$0xff]
        %v873 = vld [vmem:[%s232 + $0x1188] sm:$0xff]
        %v874 = vld [vmem:[%s232 + $0x1190] sm:$0xff]
        %v875 = vld [vmem:[%s232 + $0x1198] sm:$0xff]
        %v876 = vld [vmem:[%s232 + $0x11a0] sm:$0xff]
        %v877 = vld [vmem:[%s232 + $0x11a8] sm:$0xff]
        %v878 = vld [vmem:[%s232 + $0x11b0] sm:$0xff]
        %v879 = vld [vmem:[%s232 + $0x11b8] sm:$0xff]
        %v880 = vld [vmem:[%s232 + $0x11c0] sm:$0xff]
        %v881 = vld [vmem:[%s232 + $0x11c8] sm:$0xff]
        %v882 = vld [vmem:[%s232 + $0x11d0] sm:$0xff]
        %v883 = vld [vmem:[%s232 + $0x11d8] sm:$0xff]
        %v884 = vld [vmem:[%s232 + $0x11e0] sm:$0xff]
        %v885 = vld [vmem:[%s232 + $0x11e8] sm:$0xff]
        %v886 = vld [vmem:[%s232 + $0x11f0] sm:$0xff]
        %v887 = vld [vmem:[%s232 + $0x11f8] sm:$0xff]
        %v888 = vld [vmem:[%s232 + $0x1200] sm:$0xff]
        %v889 = vld [vmem:[%s232 + $0x1208] sm:$0xff]
        %v890 = vld [vmem:[%s232 + $0x1210] sm:$0xff]
        %v891 = vld [vmem:[%s232 + $0x1218] sm:$0xff]
        %v892 = vld [vmem:[%s232 + $0x1220] sm:$0xff]
        %v893 = vld [vmem:[%s232 + $0x1228] sm:$0xff]
        %v894 = vld [vmem:[%s232 + $0x1230] sm:$0xff]
        %v895 = vld [vmem:[%s232 + $0x1238] sm:$0xff]
        %v896 = vld [vmem:[%s232 + $0x1240] sm:$0xff]
        %v897 = vld [vmem:[%s232 + $0x1248] sm:$0xff]
        %v898 = vld [vmem:[%s232 + $0x1250] sm:$0xff]
        %v899 = vld [vmem:[%s232 + $0x1258] sm:$0xff]
        %v900 = vld [vmem:[%s232 + $0x1260] sm:$0xff]
        %v901 = vld [vmem:[%s232 + $0x1268] sm:$0xff]
        %v902 = vld [vmem:[%s232 + $0x1270] sm:$0xff]
        %v903 = vld [vmem:[%s232 + $0x1278] sm:$0xff]
        %v904 = vld [vmem:[%s232 + $0x1280] sm:$0xff]
        %v905 = vld [vmem:[%s232 + $0x1288] sm:$0xff]
        %v906 = vld [vmem:[%s232 + $0x1290] sm:$0xff]
        %v907 = vld [vmem:[%s232 + $0x1298] sm:$0xff]
        %v908 = vld [vmem:[%s232 + $0x12a0] sm:$0xff]
        %v909 = vld [vmem:[%s232 + $0x12a8] sm:$0xff]
        %v910 = vld [vmem:[%s232 + $0x12b0] sm:$0xff]
        %v911 = vld [vmem:[%s232 + $0x12b8] sm:$0xff]
        %v912 = vld [vmem:[%s232 + $0x12c0] sm:$0xff]
        %v913 = vld [vmem:[%s232 + $0x12c8] sm:$0xff]
        %v914 = vld [vmem:[%s232 + $0x12d0] sm:$0xff]
        %v915 = vld [vmem:[%s232 + $0x12d8] sm:$0xff]
        %v916 = vld [vmem:[%s232 + $0x12e0] sm:$0xff]
        %v917 = vld [vmem:[%s232 + $0x12e8] sm:$0xff]
        %v918 = vld [vmem:[%s232 + $0x12f0] sm:$0xff]
        %v919 = vld [vmem:[%s232 + $0x12f8] sm:$0xff]
        %v920 = vld [vmem:[%s232 + $0x1300] sm:$0xff]
        %v921 = vld [vmem:[%s232 + $0x1308] sm:$0xff]
        %v922 = vld [vmem:[%s232 + $0x1310] sm:$0xff]
        %v923 = vld [vmem:[%s232 + $0x1318] sm:$0xff]
        %v924 = vld [vmem:[%s232 + $0x1320] sm:$0xff]
        %v925 = vld [vmem:[%s232 + $0x1328] sm:$0xff]
        %v926 = vld [vmem:[%s232 + $0x1330] sm:$0xff]
        %v927 = vld [vmem:[%s232 + $0x1338] sm:$0xff]
        %v928 = vld [vmem:[%s232 + $0x1340] sm:$0xff]
        %v929 = vld [vmem:[%s232 + $0x1348] sm:$0xff]
        %v930 = vld [vmem:[%s232 + $0x1350] sm:$0xff]
        %v931 = vld [vmem:[%s232 + $0x1358] sm:$0xff]
        %v932 = vld [vmem:[%s232 + $0x1360] sm:$0xff]
        %v933 = vld [vmem:[%s232 + $0x1368] sm:$0xff]
        %v934 = vld [vmem:[%s232 + $0x1370] sm:$0xff]
        %v935 = vld [vmem:[%s232 + $0x1378] sm:$0xff]
        %v936 = vld [vmem:[%s232 + $0x1380] sm:$0xff]
        %v937 = vld [vmem:[%s232 + $0x1388] sm:$0xff]
        %v938 = vld [vmem:[%s232 + $0x1390] sm:$0xff]
        %v939 = vld [vmem:[%s232 + $0x1398] sm:$0xff]
        %v940 = vld [vmem:[%s232 + $0x13a0] sm:$0xff]
        %v941 = vld [vmem:[%s232 + $0x13a8] sm:$0xff]
        %v942 = vld [vmem:[%s232 + $0x13b0] sm:$0xff]
        %v943 = vld [vmem:[%s232 + $0x13b8] sm:$0xff]
        %v944 = vld [vmem:[%s232 + $0x13c0] sm:$0xff]
        %v945 = vld [vmem:[%s232 + $0x13c8] sm:$0xff]
        %v946 = vld [vmem:[%s232 + $0x13d0] sm:$0xff]
        %v947 = vld [vmem:[%s232 + $0x13d8] sm:$0xff]
        %v948 = vld [vmem:[%s232 + $0x13e0] sm:$0xff]
        %v949 = vld [vmem:[%s232 + $0x13e8] sm:$0xff]
        %v950 = vld [vmem:[%s232 + $0x13f0] sm:$0xff]
        %v951 = vld [vmem:[%s232 + $0x13f8] sm:$0xff]
        %v952 = vld [vmem:[%s232 + $0x1400] sm:$0xff]
        %v953 = vld [vmem:[%s232 + $0x1408] sm:$0xff]
        %v954 = vld [vmem:[%s232 + $0x1410] sm:$0xff]
        %v955 = vld [vmem:[%s232 + $0x1418] sm:$0xff]
        %v956 = vld [vmem:[%s232 + $0x1420] sm:$0xff]
        %v957 = vld [vmem:[%s232 + $0x1428] sm:$0xff]
        %v958 = vld [vmem:[%s232 + $0x1430] sm:$0xff]
        %v959 = vld [vmem:[%s232 + $0x1438] sm:$0xff]
        %v960 = vld [vmem:[%s232 + $0x1440] sm:$0xff]
        %v961 = vld [vmem:[%s232 + $0x1448] sm:$0xff]
        %v962 = vld [vmem:[%s232 + $0x1450] sm:$0xff]
        %v963 = vld [vmem:[%s232 + $0x1458] sm:$0xff]
        %v964 = vld [vmem:[%s232 + $0x1460] sm:$0xff]
        %v965 = vld [vmem:[%s232 + $0x1468] sm:$0xff]
        %v966 = vld [vmem:[%s232 + $0x1470] sm:$0xff]
        %v967 = vld [vmem:[%s232 + $0x1478] sm:$0xff]
        %v968 = vld [vmem:[%s232 + $0x1480] sm:$0xff]
        %v969 = vld [vmem:[%s232 + $0x1488] sm:$0xff]
        %v970 = vld [vmem:[%s232 + $0x1490] sm:$0xff]
        %v971 = vld [vmem:[%s232 + $0x1498] sm:$0xff]
        %v972 = vld [vmem:[%s232 + $0x14a0] sm:$0xff]
        %v973 = vld [vmem:[%s232 + $0x14a8] sm:$0xff]
        %v974 = vld [vmem:[%s232 + $0x14b0] sm:$0xff]
        %v975 = vld [vmem:[%s232 + $0x14b8] sm:$0xff]
        %v976 = vld [vmem:[%s232 + $0x14c0] sm:$0xff]
        %v977 = vld [vmem:[%s232 + $0x14c8] sm:$0xff]
        %v978 = vld [vmem:[%s232 + $0x14d0] sm:$0xff]
        %v979 = vld [vmem:[%s232 + $0x14d8] sm:$0xff]
        %v980 = vld [vmem:[%s232 + $0x14e0] sm:$0xff]
        %v981 = vld [vmem:[%s232 + $0x14e8] sm:$0xff]
        %v982 = vld [vmem:[%s232 + $0x14f0] sm:$0xff]
        %v983 = vld [vmem:[%s232 + $0x14f8] sm:$0xff]
        %v984 = vld [vmem:[%s232 + $0x1500] sm:$0xff]
        %v985 = vld [vmem:[%s232 + $0x1508] sm:$0xff]
        %v986 = vld [vmem:[%s232 + $0x1510] sm:$0xff]
        %v987 = vld [vmem:[%s232 + $0x1518] sm:$0xff]
        %v988 = vld [vmem:[%s232 + $0x1520] sm:$0xff]
        %v989 = vld [vmem:[%s232 + $0x1528] sm:$0xff]
        %v990 = vld [vmem:[%s232 + $0x1530] sm:$0xff]
        %v991 = vld [vmem:[%s232 + $0x1538] sm:$0xff]
        %v992 = vld [vmem:[%s232 + $0x1540] sm:$0xff]
        %v993 = vld [vmem:[%s232 + $0x1548] sm:$0xff]
        %v994 = vld [vmem:[%s232 + $0x1550] sm:$0xff]
        %v995 = vld [vmem:[%s232 + $0x1558] sm:$0xff]
        %v996 = vld [vmem:[%s232 + $0x1560] sm:$0xff]
        %v997 = vld [vmem:[%s232 + $0x1568] sm:$0xff]
        %v998 = vld [vmem:[%s232 + $0x1570] sm:$0xff]
        %v999 = vld [vmem:[%s232 + $0x1578] sm:$0xff]
        %v1000 = vld [vmem:[%s232 + $0x1580] sm:$0xff]
        %v1001 = vld [vmem:[%s232 + $0x1588] sm:$0xff]
        %v1002 = vld [vmem:[%s232 + $0x1590] sm:$0xff]
        %v1003 = vld [vmem:[%s232 + $0x1598] sm:$0xff]
        %v1004 = vld [vmem:[%s232 + $0x15a0] sm:$0xff]
        %v1005 = vld [vmem:[%s232 + $0x15a8] sm:$0xff]
        %v1006 = vld [vmem:[%s232 + $0x15b0] sm:$0xff]
        %v1007 = vld [vmem:[%s232 + $0x15b8] sm:$0xff]
        %v1008 = vld [vmem:[%s232 + $0x15c0] sm:$0xff]
        %v1009 = vld [vmem:[%s232 + $0x15c8] sm:$0xff]
        %v1010 = vld [vmem:[%s232 + $0x15d0] sm:$0xff]
        %v1011 = vld [vmem:[%s232 + $0x15d8] sm:$0xff]
        %v1012 = vld [vmem:[%s232 + $0x15e0] sm:$0xff]
        %v1013 = vld [vmem:[%s232 + $0x15e8] sm:$0xff]
        %v1014 = vld [vmem:[%s232 + $0x15f0] sm:$0xff]
        %v1015 = vld [vmem:[%s232 + $0x15f8] sm:$0xff]
        %v1016 = vld [vmem:[%s232 + $0x1600] sm:$0xff]
        %v1017 = vld [vmem:[%s232 + $0x1608] sm:$0xff]
        %v1018 = vld [vmem:[%s232 + $0x1610] sm:$0xff]
        %v1019 = vld [vmem:[%s232 + $0x1618] sm:$0xff]
        %v1020 = vld [vmem:[%s232 + $0x1620] sm:$0xff]
        %v1021 = vld [vmem:[%s232 + $0x1628] sm:$0xff]
        %v1022 = vld [vmem:[%s232 + $0x1630] sm:$0xff]
        %v1023 = vld [vmem:[%s232 + $0x1638] sm:$0xff]
        %v1024 = vld [vmem:[%s232 + $0x1640] sm:$0xff]
        %v1025 = vld [vmem:[%s232 + $0x1648] sm:$0xff]
        %v1026 = vld [vmem:[%s232 + $0x1650] sm:$0xff]
        %v1027 = vld [vmem:[%s232 + $0x1658] sm:$0xff]
        %v1028 = vld [vmem:[%s232 + $0x1660] sm:$0xff]
        %v1029 = vld [vmem:[%s232 + $0x1668] sm:$0xff]
        %v1030 = vld [vmem:[%s232 + $0x1670] sm:$0xff]
        %v1031 = vld [vmem:[%s232 + $0x1678] sm:$0xff]
        %v1032 = vld [vmem:[%s232 + $0x1680] sm:$0xff]
        %v1033 = vld [vmem:[%s232 + $0x1688] sm:$0xff]
        %v1034 = vld [vmem:[%s232 + $0x1690] sm:$0xff]
        %v1035 = vld [vmem:[%s232 + $0x1698] sm:$0xff]
        %v1036 = vld [vmem:[%s232 + $0x16a0] sm:$0xff]
        %v1037 = vld [vmem:[%s232 + $0x16a8] sm:$0xff]
        %v1038 = vld [vmem:[%s232 + $0x16b0] sm:$0xff]
        %v1039 = vld [vmem:[%s232 + $0x16b8] sm:$0xff]
        %v1040 = vld [vmem:[%s232 + $0x16c0] sm:$0xff]
        %v1041 = vld [vmem:[%s232 + $0x16c8] sm:$0xff]
        %v1042 = vld [vmem:[%s232 + $0x16d0] sm:$0xff]
        %v1043 = vld [vmem:[%s232 + $0x16d8] sm:$0xff]
        %v1044 = vld [vmem:[%s232 + $0x16e0] sm:$0xff]
        %v1045 = vld [vmem:[%s232 + $0x16e8] sm:$0xff]
        %v1046 = vld [vmem:[%s232 + $0x16f0] sm:$0xff]
        %v1047 = vld [vmem:[%s232 + $0x16f8] sm:$0xff]
        %v1048 = vld [vmem:[%s232 + $0x1700] sm:$0xff]
        %v1049 = vld [vmem:[%s232 + $0x1708] sm:$0xff]
        %v1050 = vld [vmem:[%s232 + $0x1710] sm:$0xff]
        %v1051 = vld [vmem:[%s232 + $0x1718] sm:$0xff]
        %v1052 = vld [vmem:[%s232 + $0x1720] sm:$0xff]
        %v1053 = vld [vmem:[%s232 + $0x1728] sm:$0xff]
        %v1054 = vld [vmem:[%s232 + $0x1730] sm:$0xff]
        %v1055 = vld [vmem:[%s232 + $0x1738] sm:$0xff]
        %v1056 = vld [vmem:[%s232 + $0x1740] sm:$0xff]
        %v1057 = vld [vmem:[%s232 + $0x1748] sm:$0xff]
        %v1058 = vld [vmem:[%s232 + $0x1750] sm:$0xff]
        %v1059 = vld [vmem:[%s232 + $0x1758] sm:$0xff]
        %v1060 = vld [vmem:[%s232 + $0x1760] sm:$0xff]
        %v1061 = vld [vmem:[%s232 + $0x1768] sm:$0xff]
        %v1062 = vld [vmem:[%s232 + $0x1770] sm:$0xff]
        %v1063 = vld [vmem:[%s232 + $0x1778] sm:$0xff]
        %v1064 = vld [vmem:[%s232 + $0x1780] sm:$0xff]
        %v1065 = vld [vmem:[%s232 + $0x1788] sm:$0xff]
        %v1066 = vld [vmem:[%s232 + $0x1790] sm:$0xff]
        %v1067 = vld [vmem:[%s232 + $0x1798] sm:$0xff]
        %v1068 = vld [vmem:[%s232 + $0x17a0] sm:$0xff]
        %v1069 = vld [vmem:[%s232 + $0x17a8] sm:$0xff]
        %v1070 = vld [vmem:[%s232 + $0x17b0] sm:$0xff]
        %v1071 = vld [vmem:[%s232 + $0x17b8] sm:$0xff]
        %v1072 = vld [vmem:[%s232 + $0x17c0] sm:$0xff]
        %v1073 = vld [vmem:[%s232 + $0x17c8] sm:$0xff]
        %v1074 = vld [vmem:[%s232 + $0x17d0] sm:$0xff]
        %v1075 = vld [vmem:[%s232 + $0x17d8] sm:$0xff]
        %v1076 = vld [vmem:[%s232 + $0x17e0] sm:$0xff]
        %v1077 = vld [vmem:[%s232 + $0x17e8] sm:$0xff]
        %v1078 = vld [vmem:[%s232 + $0x17f0] sm:$0xff]
        %v1079 = vld [vmem:[%s232 + $0x17f8] sm:$0xff]
        %v1080 = vld [vmem:[%s232 + $0x1800] sm:$0xff]
        %v1081 = vld [vmem:[%s232 + $0x1808] sm:$0xff]
        %v1082 = vld [vmem:[%s232 + $0x1810] sm:$0xff]
        %v1083 = vld [vmem:[%s232 + $0x1818] sm:$0xff]
        %v1084 = vld [vmem:[%s232 + $0x1820] sm:$0xff]
        %v1085 = vld [vmem:[%s232 + $0x1828] sm:$0xff]
        %v1086 = vld [vmem:[%s232 + $0x1830] sm:$0xff]
        %v1087 = vld [vmem:[%s232 + $0x1838] sm:$0xff]
        %v1088 = vld [vmem:[%s232 + $0x1840] sm:$0xff]
        %v1089 = vld [vmem:[%s232 + $0x1848] sm:$0xff]
        %v1090 = vld [vmem:[%s232 + $0x1850] sm:$0xff]
        %v1091 = vld [vmem:[%s232 + $0x1858] sm:$0xff]
        %v1092 = vld [vmem:[%s232 + $0x1860] sm:$0xff]
        %v1093 = vld [vmem:[%s232 + $0x1868] sm:$0xff]
        %v1094 = vld [vmem:[%s232 + $0x1870] sm:$0xff]
        %v1095 = vld [vmem:[%s232 + $0x1878] sm:$0xff]
        %v1096 = vld [vmem:[%s232 + $0x1880] sm:$0xff]
        %v1097 = vld [vmem:[%s232 + $0x1888] sm:$0xff]
        %v1098 = vld [vmem:[%s232 + $0x1890] sm:$0xff]
        %v1099 = vld [vmem:[%s232 + $0x1898] sm:$0xff]
        %v1100 = vld [vmem:[%s232 + $0x18a0] sm:$0xff]
        %v1101 = vld [vmem:[%s232 + $0x18a8] sm:$0xff]
        %v1102 = vld [vmem:[%s232 + $0x18b0] sm:$0xff]
        %v1103 = vld [vmem:[%s232 + $0x18b8] sm:$0xff]
        %v1104 = vld [vmem:[%s232 + $0x18c0] sm:$0xff]
        %v1105 = vld [vmem:[%s232 + $0x18c8] sm:$0xff]
        %v1106 = vld [vmem:[%s232 + $0x18d0] sm:$0xff]
        %v1107 = vld [vmem:[%s232 + $0x18d8] sm:$0xff]
        %v1108 = vld [vmem:[%s232 + $0x18e0] sm:$0xff]
        %v1109 = vld [vmem:[%s232 + $0x18e8] sm:$0xff]
        %v1110 = vld [vmem:[%s232 + $0x18f0] sm:$0xff]
        %v1111 = vld [vmem:[%s232 + $0x18f8] sm:$0xff]
        %v1112 = vld [vmem:[%s232 + $0x1900] sm:$0xff]
        %v1113 = vld [vmem:[%s232 + $0x1908] sm:$0xff]
        %v1114 = vld [vmem:[%s232 + $0x1910] sm:$0xff]
        %v1115 = vld [vmem:[%s232 + $0x1918] sm:$0xff]
        %v1116 = vld [vmem:[%s232 + $0x1920] sm:$0xff]
        %v1117 = vld [vmem:[%s232 + $0x1928] sm:$0xff]
        %v1118 = vld [vmem:[%s232 + $0x1930] sm:$0xff]
        %v1119 = vld [vmem:[%s232 + $0x1938] sm:$0xff]
        %v1120 = vld [vmem:[%s232 + $0x1940] sm:$0xff]
        %v1121 = vld [vmem:[%s232 + $0x1948] sm:$0xff]
        %v1122 = vld [vmem:[%s232 + $0x1950] sm:$0xff]
        %v1123 = vld [vmem:[%s232 + $0x1958] sm:$0xff]
        %v1124 = vld [vmem:[%s232 + $0x1960] sm:$0xff]
        %v1125 = vld [vmem:[%s232 + $0x1968] sm:$0xff]
        %v1126 = vld [vmem:[%s232 + $0x1970] sm:$0xff]
        %v1127 = vld [vmem:[%s232 + $0x1978] sm:$0xff]
        %v1128 = vld [vmem:[%s232 + $0x1980] sm:$0xff]
        %v1129 = vld [vmem:[%s232 + $0x1988] sm:$0xff]
        %v1130 = vld [vmem:[%s232 + $0x1990] sm:$0xff]
        %v1131 = vld [vmem:[%s232 + $0x1998] sm:$0xff]
        %v1132 = vld [vmem:[%s232 + $0x19a0] sm:$0xff]
        %v1133 = vld [vmem:[%s232 + $0x19a8] sm:$0xff]
        %v1134 = vld [vmem:[%s232 + $0x19b0] sm:$0xff]
        %v1135 = vld [vmem:[%s232 + $0x19b8] sm:$0xff]
        %v1136 = vld [vmem:[%s232 + $0x19c0] sm:$0xff]
        %v1137 = vld [vmem:[%s232 + $0x19c8] sm:$0xff]
        %v1138 = vld [vmem:[%s232 + $0x19d0] sm:$0xff]
        %v1139 = vld [vmem:[%s232 + $0x19d8] sm:$0xff]
        %v1140 = vld [vmem:[%s232 + $0x19e0] sm:$0xff]
        %v1141 = vld [vmem:[%s232 + $0x19e8] sm:$0xff]
        %v1142 = vld [vmem:[%s232 + $0x19f0] sm:$0xff]
        %v1143 = vld [vmem:[%s232 + $0x19f8] sm:$0xff]
        %v1144 = vld [vmem:[%s232 + $0x1a00] sm:$0xff]
        %v1145 = vld [vmem:[%s232 + $0x1a08] sm:$0xff]
        %v1146 = vld [vmem:[%s232 + $0x1a10] sm:$0xff]
        %v1147 = vld [vmem:[%s232 + $0x1a18] sm:$0xff]
        %v1148 = vld [vmem:[%s232 + $0x1a20] sm:$0xff]
        %v1149 = vld [vmem:[%s232 + $0x1a28] sm:$0xff]
        %v1150 = vld [vmem:[%s232 + $0x1a30] sm:$0xff]
        %v1151 = vld [vmem:[%s232 + $0x1a38] sm:$0xff]
        %v1152 = vld [vmem:[%s232 + $0x1a40] sm:$0xff]
        %v1153 = vld [vmem:[%s232 + $0x1a48] sm:$0xff]
        %v1154 = vld [vmem:[%s232 + $0x1a50] sm:$0xff]
        %v1155 = vld [vmem:[%s232 + $0x1a58] sm:$0xff]
        %v1156 = vld [vmem:[%s232 + $0x1a60] sm:$0xff]
        %v1157 = vld [vmem:[%s232 + $0x1a68] sm:$0xff]
        %v1158 = vld [vmem:[%s232 + $0x1a70] sm:$0xff]
        %v1159 = vld [vmem:[%s232 + $0x1a78] sm:$0xff]
        %v1160 = vld [vmem:[%s232 + $0x1a80] sm:$0xff]
        %v1161 = vld [vmem:[%s232 + $0x1a88] sm:$0xff]
        %v1162 = vld [vmem:[%s232 + $0x1a90] sm:$0xff]
        %v1163 = vld [vmem:[%s232 + $0x1a98] sm:$0xff]
        %v1164 = vld [vmem:[%s232 + $0x1aa0] sm:$0xff]
        %v1165 = vld [vmem:[%s232 + $0x1aa8] sm:$0xff]
        %v1166 = vld [vmem:[%s232 + $0x1ab0] sm:$0xff]
        %v1167 = vld [vmem:[%s232 + $0x1ab8] sm:$0xff]
        %v1168 = vld [vmem:[%s232 + $0x1ac0] sm:$0xff]
        %v1169 = vld [vmem:[%s232 + $0x1ac8] sm:$0xff]
        %v1170 = vld [vmem:[%s232 + $0x1ad0] sm:$0xff]
        %v1171 = vld [vmem:[%s232 + $0x1ad8] sm:$0xff]
        %v1172 = vld [vmem:[%s232 + $0x1ae0] sm:$0xff]
        %v1173 = vld [vmem:[%s232 + $0x1ae8] sm:$0xff]
        %v1174 = vld [vmem:[%s232 + $0x1af0] sm:$0xff]
        %v1175 = vld [vmem:[%s232 + $0x1af8] sm:$0xff]
        %v1176 = vld [vmem:[%s232 + $0x1b00] sm:$0xff]
        %v1177 = vld [vmem:[%s232 + $0x1b08] sm:$0xff]
        %v1178 = vld [vmem:[%s232 + $0x1b10] sm:$0xff]
        %v1179 = vld [vmem:[%s232 + $0x1b18] sm:$0xff]
        %v1180 = vld [vmem:[%s232 + $0x1b20] sm:$0xff]
        %v1181 = vld [vmem:[%s232 + $0x1b28] sm:$0xff]
        %v1182 = vld [vmem:[%s232 + $0x1b30] sm:$0xff]
        %v1183 = vld [vmem:[%s232 + $0x1b38] sm:$0xff]
        %v1184 = vld [vmem:[%s232 + $0x1b40] sm:$0xff]
        %v1185 = vld [vmem:[%s232 + $0x1b48] sm:$0xff]
        %v1186 = vld [vmem:[%s232 + $0x1b50] sm:$0xff]
        %v1187 = vld [vmem:[%s232 + $0x1b58] sm:$0xff]
        %v1188 = vld [vmem:[%s232 + $0x1b60] sm:$0xff]
        %v1189 = vld [vmem:[%s232 + $0x1b68] sm:$0xff]
        %v1190 = vld [vmem:[%s232 + $0x1b70] sm:$0xff]
        %v1191 = vld [vmem:[%s232 + $0x1b78] sm:$0xff]
        %v1192 = vld [vmem:[%s232 + $0x1b80] sm:$0xff]
        %v1193 = vld [vmem:[%s232 + $0x1b88] sm:$0xff]
        %v1194 = vld [vmem:[%s232 + $0x1b90] sm:$0xff]
        %v1195 = vld [vmem:[%s232 + $0x1b98] sm:$0xff]
        %v1196 = vld [vmem:[%s232 + $0x1ba0] sm:$0xff]
        %v1197 = vld [vmem:[%s232 + $0x1ba8] sm:$0xff]
        %v1198 = vld [vmem:[%s232 + $0x1bb0] sm:$0xff]
        %v1199 = vld [vmem:[%s232 + $0x1bb8] sm:$0xff]
        %v1200 = vld [vmem:[%s232 + $0x1bc0] sm:$0xff]
        %v1201 = vld [vmem:[%s232 + $0x1bc8] sm:$0xff]
        %v1202 = vld [vmem:[%s232 + $0x1bd0] sm:$0xff]
        %v1203 = vld [vmem:[%s232 + $0x1bd8] sm:$0xff]
        %v1204 = vld [vmem:[%s232 + $0x1be0] sm:$0xff]
        %v1205 = vld [vmem:[%s232 + $0x1be8] sm:$0xff]
        %v1206 = vld [vmem:[%s232 + $0x1bf0] sm:$0xff]
        %v1207 = vld [vmem:[%s232 + $0x1bf8] sm:$0xff]
        %v1208 = vld [vmem:[%s232 + $0x1c00] sm:$0xff]
        %v1209 = vld [vmem:[%s232 + $0x1c08] sm:$0xff]
        %v1210 = vld [vmem:[%s232 + $0x1c10] sm:$0xff]
        %v1211 = vld [vmem:[%s232 + $0x1c18] sm:$0xff]
        %v1212 = vld [vmem:[%s232 + $0x1c20] sm:$0xff]
        %v1213 = vld [vmem:[%s232 + $0x1c28] sm:$0xff]
        %v1214 = vld [vmem:[%s232 + $0x1c30] sm:$0xff]
        %v1215 = vld [vmem:[%s232 + $0x1c38] sm:$0xff]
        %v1216 = vld [vmem:[%s232 + $0x1c40] sm:$0xff]
        %v1217 = vld [vmem:[%s232 + $0x1c48] sm:$0xff]
        %v1218 = vld [vmem:[%s232 + $0x1c50] sm:$0xff]
        %v1219 = vld [vmem:[%s232 + $0x1c58] sm:$0xff]
        %v1220 = vld [vmem:[%s232 + $0x1c60] sm:$0xff]
        %v1221 = vld [vmem:[%s232 + $0x1c68] sm:$0xff]
        %v1222 = vld [vmem:[%s232 + $0x1c70] sm:$0xff]
        %v1223 = vld [vmem:[%s232 + $0x1c78] sm:$0xff]
        %v1224 = vld [vmem:[%s232 + $0x1c80] sm:$0xff]
        %v1225 = vld [vmem:[%s232 + $0x1c88] sm:$0xff]
        %v1226 = vld [vmem:[%s232 + $0x1c90] sm:$0xff]
        %v1227 = vld [vmem:[%s232 + $0x1c98] sm:$0xff]
        %v1228 = vld [vmem:[%s232 + $0x1ca0] sm:$0xff]
        %v1229 = vld [vmem:[%s232 + $0x1ca8] sm:$0xff]
        %v1230 = vld [vmem:[%s232 + $0x1cb0] sm:$0xff]
        %v1231 = vld [vmem:[%s232 + $0x1cb8] sm:$0xff]
        %v1232 = vld [vmem:[%s232 + $0x1cc0] sm:$0xff]
        %v1233 = vld [vmem:[%s232 + $0x1cc8] sm:$0xff]
        %v1234 = vld [vmem:[%s232 + $0x1cd0] sm:$0xff]
        %v1235 = vld [vmem:[%s232 + $0x1cd8] sm:$0xff]
        %v1236 = vld [vmem:[%s232 + $0x1ce0] sm:$0xff]
        %v1237 = vld [vmem:[%s232 + $0x1ce8] sm:$0xff]
        %v1238 = vld [vmem:[%s232 + $0x1cf0] sm:$0xff]
        %v1239 = vld [vmem:[%s232 + $0x1cf8] sm:$0xff]
        %v1240 = vld [vmem:[%s232 + $0x1d00] sm:$0xff]
        %v1241 = vld [vmem:[%s232 + $0x1d08] sm:$0xff]
        %v1242 = vld [vmem:[%s232 + $0x1d10] sm:$0xff]
        %v1243 = vld [vmem:[%s232 + $0x1d18] sm:$0xff]
        %v1244 = vld [vmem:[%s232 + $0x1d20] sm:$0xff]
        %v1245 = vld [vmem:[%s232 + $0x1d28] sm:$0xff]
        %v1246 = vld [vmem:[%s232 + $0x1d30] sm:$0xff]
        %v1247 = vld [vmem:[%s232 + $0x1d38] sm:$0xff]
        %v1248 = vld [vmem:[%s232 + $0x1d40] sm:$0xff]
        %v1249 = vld [vmem:[%s232 + $0x1d48] sm:$0xff]
        %v1250 = vld [vmem:[%s232 + $0x1d50] sm:$0xff]
        %v1251 = vld [vmem:[%s232 + $0x1d58] sm:$0xff]
        %v1252 = vld [vmem:[%s232 + $0x1d60] sm:$0xff]
        %v1253 = vld [vmem:[%s232 + $0x1d68] sm:$0xff]
        %v1254 = vld [vmem:[%s232 + $0x1d70] sm:$0xff]
        %v1255 = vld [vmem:[%s232 + $0x1d78] sm:$0xff]
        %v1256 = vld [vmem:[%s232 + $0x1d80] sm:$0xff]
        %v1257 = vld [vmem:[%s232 + $0x1d88] sm:$0xff]
        %v1258 = vld [vmem:[%s232 + $0x1d90] sm:$0xff]
        %v1259 = vld [vmem:[%s232 + $0x1d98] sm:$0xff]
        %v1260 = vld [vmem:[%s232 + $0x1da0] sm:$0xff]
        %v1261 = vld [vmem:[%s232 + $0x1da8] sm:$0xff]
        %v1262 = vld [vmem:[%s232 + $0x1db0] sm:$0xff]
        %v1263 = vld [vmem:[%s232 + $0x1db8] sm:$0xff]
        %v1264 = vld [vmem:[%s232 + $0x1dc0] sm:$0xff]
        %v1265 = vld [vmem:[%s232 + $0x1dc8] sm:$0xff]
        %v1266 = vld [vmem:[%s232 + $0x1dd0] sm:$0xff]
        %v1267 = vld [vmem:[%s232 + $0x1dd8] sm:$0xff]
        %v1268 = vld [vmem:[%s232 + $0x1de0] sm:$0xff]
        %v1269 = vld [vmem:[%s232 + $0x1de8] sm:$0xff]
        %v1270 = vld [vmem:[%s232 + $0x1df0] sm:$0xff]
        %v1271 = vld [vmem:[%s232 + $0x1df8] sm:$0xff]
        %v1272 = vld [vmem:[%s232 + $0x1e00] sm:$0xff]
        %v1273 = vld [vmem:[%s232 + $0x1e08] sm:$0xff]
        %v1274 = vld [vmem:[%s232 + $0x1e10] sm:$0xff]
        %v1275 = vld [vmem:[%s232 + $0x1e18] sm:$0xff]
        %v1276 = vld [vmem:[%s232 + $0x1e20] sm:$0xff]
        %v1277 = vld [vmem:[%s232 + $0x1e28] sm:$0xff]
        %v1278 = vld [vmem:[%s232 + $0x1e30] sm:$0xff]
        %v1279 = vld [vmem:[%s232 + $0x1e38] sm:$0xff]
        %v1280 = vld [vmem:[%s232 + $0x1e40] sm:$0xff]
        %v1281 = vld [vmem:[%s232 + $0x1e48] sm:$0xff]
        %v1282 = vld [vmem:[%s232 + $0x1e50] sm:$0xff]
        %v1283 = vld [vmem:[%s232 + $0x1e58] sm:$0xff]
        %v1284 = vld [vmem:[%s232 + $0x1e60] sm:$0xff]
        %v1285 = vld [vmem:[%s232 + $0x1e68] sm:$0xff]
        %v1286 = vld [vmem:[%s232 + $0x1e70] sm:$0xff]
        %v1287 = vld [vmem:[%s232 + $0x1e78] sm:$0xff]
        %v1288 = vld [vmem:[%s232 + $0x1e80] sm:$0xff]
        %v1289 = vld [vmem:[%s232 + $0x1e88] sm:$0xff]
        %v1290 = vld [vmem:[%s232 + $0x1e90] sm:$0xff]
        %v1291 = vld [vmem:[%s232 + $0x1e98] sm:$0xff]
        %v1292 = vld [vmem:[%s232 + $0x1ea0] sm:$0xff]
        %v1293 = vld [vmem:[%s232 + $0x1ea8] sm:$0xff]
        %v1294 = vld [vmem:[%s232 + $0x1eb0] sm:$0xff]
        %v1295 = vld [vmem:[%s232 + $0x1eb8] sm:$0xff]
        %v1296 = vld [vmem:[%s232 + $0x1ec0] sm:$0xff]
        %v1297 = vld [vmem:[%s232 + $0x1ec8] sm:$0xff]
        %v1298 = vld [vmem:[%s232 + $0x1ed0] sm:$0xff]
        %v1299 = vld [vmem:[%s232 + $0x1ed8] sm:$0xff]
        %v1300 = vld [vmem:[%s232 + $0x1ee0] sm:$0xff]
        %v1301 = vld [vmem:[%s232 + $0x1ee8] sm:$0xff]
        %v1302 = vld [vmem:[%s232 + $0x1ef0] sm:$0xff]
        %v1303 = vld [vmem:[%s232 + $0x1ef8] sm:$0xff]
        %v1304 = vld [vmem:[%s232 + $0x1f00] sm:$0xff]
        %v1305 = vld [vmem:[%s232 + $0x1f08] sm:$0xff]
        %v1306 = vld [vmem:[%s232 + $0x1f10] sm:$0xff]
        %v1307 = vld [vmem:[%s232 + $0x1f18] sm:$0xff]
        %v1308 = vld [vmem:[%s232 + $0x1f20] sm:$0xff]
        %v1309 = vld [vmem:[%s232 + $0x1f28] sm:$0xff]
        %v1310 = vld [vmem:[%s232 + $0x1f30] sm:$0xff]
        %v1311 = vld [vmem:[%s232 + $0x1f38] sm:$0xff]
        %v1312 = vld [vmem:[%s232 + $0x1f40] sm:$0xff]
        %v1313 = vld [vmem:[%s232 + $0x1f48] sm:$0xff]
        %v1314 = vld [vmem:[%s232 + $0x1f50] sm:$0xff]
        %v1315 = vld [vmem:[%s232 + $0x1f58] sm:$0xff]
        %v1316 = vld [vmem:[%s232 + $0x1f60] sm:$0xff]
        %v1317 = vld [vmem:[%s232 + $0x1f68] sm:$0xff]
        %v1318 = vld [vmem:[%s232 + $0x1f70] sm:$0xff]
        %v1319 = vld [vmem:[%s232 + $0x1f78] sm:$0xff]
        %v1320 = vld [vmem:[%s232 + $0x1f80] sm:$0xff]
        %v1321 = vld [vmem:[%s232 + $0x1f88] sm:$0xff]
        %v1322 = vld [vmem:[%s232 + $0x1f90] sm:$0xff]
        %v1323 = vld [vmem:[%s232 + $0x1f98] sm:$0xff]
        %v1324 = vld [vmem:[%s232 + $0x1fa0] sm:$0xff]
        %v1325 = vld [vmem:[%s232 + $0x1fa8] sm:$0xff]
        %v1326 = vld [vmem:[%s232 + $0x1fb0] sm:$0xff]
        %v1327 = vld [vmem:[%s232 + $0x1fb8] sm:$0xff]
        %v1328 = vld [vmem:[%s232 + $0x1fc0] sm:$0xff]
        %v1329 = vld [vmem:[%s232 + $0x1fc8] sm:$0xff]
        %v1330 = vld [vmem:[%s232 + $0x1fd0] sm:$0xff]
        %v1331 = vld [vmem:[%s232 + $0x1fd8] sm:$0xff]
        %v1332 = vld [vmem:[%s232 + $0x1fe0] sm:$0xff]
        %v1333 = vld [vmem:[%s232 + $0x1fe8] sm:$0xff]
        %v1334 = vld [vmem:[%s232 + $0x1ff0] sm:$0xff]
        %v1335 = vld [vmem:[%s232 + $0x1ff8] sm:$0xff]
        %v2360 = vunpack.c.l.b16 %v312
        %v2361 = vunpack.c.h.b16 %v312
        %v2362 = vunpack.c.l.b16 %v313
        %v2363 = vunpack.c.h.b16 %v313
        %v2364 = vunpack.c.l.b16 %v314
        %v2365 = vunpack.c.h.b16 %v314
        %v2366 = vunpack.c.l.b16 %v315
        %v2367 = vunpack.c.h.b16 %v315
        %v2368 = vunpack.c.l.b16 %v316
        %v2369 = vunpack.c.h.b16 %v316
        %v2370 = vunpack.c.l.b16 %v317
        %v2371 = vunpack.c.h.b16 %v317
        %v2372 = vunpack.c.l.b16 %v318
        %v2373 = vunpack.c.h.b16 %v318
        %v2374 = vunpack.c.l.b16 %v319
        %v2375 = vunpack.c.h.b16 %v319
        %v2376 = vunpack.c.l.b16 %v320
        %v2377 = vunpack.c.h.b16 %v320
        %v2378 = vunpack.c.l.b16 %v321
        %v2379 = vunpack.c.h.b16 %v321
        %v2380 = vunpack.c.l.b16 %v322
        %v2381 = vunpack.c.h.b16 %v322
        %v2382 = vunpack.c.l.b16 %v323
        %v2383 = vunpack.c.h.b16 %v323
        %v2384 = vunpack.c.l.b16 %v324
        %v2385 = vunpack.c.h.b16 %v324
        %v2386 = vunpack.c.l.b16 %v325
        %v2387 = vunpack.c.h.b16 %v325
        %v2388 = vunpack.c.l.b16 %v326
        %v2389 = vunpack.c.h.b16 %v326
        %v2390 = vunpack.c.l.b16 %v327
        %v2391 = vunpack.c.h.b16 %v327
        %v2392 = vunpack.c.l.b16 %v328
        %v2393 = vunpack.c.h.b16 %v328
        %v2394 = vunpack.c.l.b16 %v329
        %v2395 = vunpack.c.h.b16 %v329
        %v2396 = vunpack.c.l.b16 %v330
        %v2397 = vunpack.c.h.b16 %v330
        %v2398 = vunpack.c.l.b16 %v331
        %v2399 = vunpack.c.h.b16 %v331
        %v2400 = vunpack.c.l.b16 %v332
        %v2401 = vunpack.c.h.b16 %v332
        %v2402 = vunpack.c.l.b16 %v333
        %v2403 = vunpack.c.h.b16 %v333
        %v2404 = vunpack.c.l.b16 %v334
        %v2405 = vunpack.c.h.b16 %v334
        %v2406 = vunpack.c.l.b16 %v335
        %v2407 = vunpack.c.h.b16 %v335
        %v2408 = vunpack.c.l.b16 %v336
        %v2409 = vunpack.c.h.b16 %v336
        %v2410 = vunpack.c.l.b16 %v337
        %v2411 = vunpack.c.h.b16 %v337
        %v2412 = vunpack.c.l.b16 %v338
        %v2413 = vunpack.c.h.b16 %v338
        %v2414 = vunpack.c.l.b16 %v339
        %v2415 = vunpack.c.h.b16 %v339
        %v2416 = vunpack.c.l.b16 %v340
        %v2417 = vunpack.c.h.b16 %v340
        %v2418 = vunpack.c.l.b16 %v341
        %v2419 = vunpack.c.h.b16 %v341
        %v2420 = vunpack.c.l.b16 %v342
        %v2421 = vunpack.c.h.b16 %v342
        %v2422 = vunpack.c.l.b16 %v343
        %v2423 = vunpack.c.h.b16 %v343
        %v2424 = vunpack.c.l.b16 %v344
        %v2425 = vunpack.c.h.b16 %v344
        %v2426 = vunpack.c.l.b16 %v345
        %v2427 = vunpack.c.h.b16 %v345
        %v2428 = vunpack.c.l.b16 %v346
        %v2429 = vunpack.c.h.b16 %v346
        %v2430 = vunpack.c.l.b16 %v347
        %v2431 = vunpack.c.h.b16 %v347
        %v2432 = vunpack.c.l.b16 %v348
        %v2433 = vunpack.c.h.b16 %v348
        %v2434 = vunpack.c.l.b16 %v349
        %v2435 = vunpack.c.h.b16 %v349
        %v2436 = vunpack.c.l.b16 %v350
        %v2437 = vunpack.c.h.b16 %v350
        %v2438 = vunpack.c.l.b16 %v351
        %v2439 = vunpack.c.h.b16 %v351
        %v2440 = vunpack.c.l.b16 %v352
        %v2441 = vunpack.c.h.b16 %v352
        %v2442 = vunpack.c.l.b16 %v353
        %v2443 = vunpack.c.h.b16 %v353
        %v2444 = vunpack.c.l.b16 %v354
        %v2445 = vunpack.c.h.b16 %v354
        %v2446 = vunpack.c.l.b16 %v355
        %v2447 = vunpack.c.h.b16 %v355
        %v2448 = vunpack.c.l.b16 %v356
        %v2449 = vunpack.c.h.b16 %v356
        %v2450 = vunpack.c.l.b16 %v357
        %v2451 = vunpack.c.h.b16 %v357
        %v2452 = vunpack.c.l.b16 %v358
        %v2453 = vunpack.c.h.b16 %v358
        %v2454 = vunpack.c.l.b16 %v359
        %v2455 = vunpack.c.h.b16 %v359
        %v2456 = vunpack.c.l.b16 %v360
        %v2457 = vunpack.c.h.b16 %v360
        %v2458 = vunpack.c.l.b16 %v361
        %v2459 = vunpack.c.h.b16 %v361
        %v2460 = vunpack.c.l.b16 %v362
        %v2461 = vunpack.c.h.b16 %v362
        %v2462 = vunpack.c.l.b16 %v363
        %v2463 = vunpack.c.h.b16 %v363
        %v2464 = vunpack.c.l.b16 %v364
        %v2465 = vunpack.c.h.b16 %v364
        %v2466 = vunpack.c.l.b16 %v365
        %v2467 = vunpack.c.h.b16 %v365
        %v2468 = vunpack.c.l.b16 %v366
        %v2469 = vunpack.c.h.b16 %v366
        %v2470 = vunpack.c.l.b16 %v367
        %v2471 = vunpack.c.h.b16 %v367
        %v2472 = vunpack.c.l.b16 %v368
        %v2473 = vunpack.c.h.b16 %v368
        %v2474 = vunpack.c.l.b16 %v369
        %v2475 = vunpack.c.h.b16 %v369
        %v2476 = vunpack.c.l.b16 %v370
        %v2477 = vunpack.c.h.b16 %v370
        %v2478 = vunpack.c.l.b16 %v371
        %v2479 = vunpack.c.h.b16 %v371
        %v2480 = vunpack.c.l.b16 %v372
        %v2481 = vunpack.c.h.b16 %v372
        %v2482 = vunpack.c.l.b16 %v373
        %v2483 = vunpack.c.h.b16 %v373
        %v2484 = vunpack.c.l.b16 %v374
        %v2485 = vunpack.c.h.b16 %v374
        %v2486 = vunpack.c.l.b16 %v375
        %v2487 = vunpack.c.h.b16 %v375
        %v2488 = vunpack.c.l.b16 %v376
        %v2489 = vunpack.c.h.b16 %v376
        %v2490 = vunpack.c.l.b16 %v377
        %v2491 = vunpack.c.h.b16 %v377
        %v2492 = vunpack.c.l.b16 %v378
        %v2493 = vunpack.c.h.b16 %v378
        %v2494 = vunpack.c.l.b16 %v379
        %v2495 = vunpack.c.h.b16 %v379
        %v2496 = vunpack.c.l.b16 %v380
        %v2497 = vunpack.c.h.b16 %v380
        %v2498 = vunpack.c.l.b16 %v381
        %v2499 = vunpack.c.h.b16 %v381
        %v2500 = vunpack.c.l.b16 %v382
        %v2501 = vunpack.c.h.b16 %v382
        %v2502 = vunpack.c.l.b16 %v383
        %v2503 = vunpack.c.h.b16 %v383
        %v2504 = vunpack.c.l.b16 %v384
        %v2505 = vunpack.c.h.b16 %v384
        %v2506 = vunpack.c.l.b16 %v385
        %v2507 = vunpack.c.h.b16 %v385
        %v2508 = vunpack.c.l.b16 %v386
        %v2509 = vunpack.c.h.b16 %v386
        %v2510 = vunpack.c.l.b16 %v387
        %v2511 = vunpack.c.h.b16 %v387
        %v2512 = vunpack.c.l.b16 %v388
        %v2513 = vunpack.c.h.b16 %v388
        %v2514 = vunpack.c.l.b16 %v389
        %v2515 = vunpack.c.h.b16 %v389
        %v2516 = vunpack.c.l.b16 %v390
        %v2517 = vunpack.c.h.b16 %v390
        %v2518 = vunpack.c.l.b16 %v391
        %v2519 = vunpack.c.h.b16 %v391
        %v2520 = vunpack.c.l.b16 %v392
        %v2521 = vunpack.c.h.b16 %v392
        %v2522 = vunpack.c.l.b16 %v393
        %v2523 = vunpack.c.h.b16 %v393
        %v2524 = vunpack.c.l.b16 %v394
        %v2525 = vunpack.c.h.b16 %v394
        %v2526 = vunpack.c.l.b16 %v395
        %v2527 = vunpack.c.h.b16 %v395
        %v2528 = vunpack.c.l.b16 %v396
        %v2529 = vunpack.c.h.b16 %v396
        %v2530 = vunpack.c.l.b16 %v397
        %v2531 = vunpack.c.h.b16 %v397
        %v2532 = vunpack.c.l.b16 %v398
        %v2533 = vunpack.c.h.b16 %v398
        %v2534 = vunpack.c.l.b16 %v399
        %v2535 = vunpack.c.h.b16 %v399
        %v2536 = vunpack.c.l.b16 %v400
        %v2537 = vunpack.c.h.b16 %v400
        %v2538 = vunpack.c.l.b16 %v401
        %v2539 = vunpack.c.h.b16 %v401
        %v2540 = vunpack.c.l.b16 %v402
        %v2541 = vunpack.c.h.b16 %v402
        %v2542 = vunpack.c.l.b16 %v403
        %v2543 = vunpack.c.h.b16 %v403
        %v2544 = vunpack.c.l.b16 %v404
        %v2545 = vunpack.c.h.b16 %v404
        %v2546 = vunpack.c.l.b16 %v405
        %v2547 = vunpack.c.h.b16 %v405
        %v2548 = vunpack.c.l.b16 %v406
        %v2549 = vunpack.c.h.b16 %v406
        %v2550 = vunpack.c.l.b16 %v407
        %v2551 = vunpack.c.h.b16 %v407
        %v2552 = vunpack.c.l.b16 %v408
        %v2553 = vunpack.c.h.b16 %v408
        %v2554 = vunpack.c.l.b16 %v409
        %v2555 = vunpack.c.h.b16 %v409
        %v2556 = vunpack.c.l.b16 %v410
        %v2557 = vunpack.c.h.b16 %v410
        %v2558 = vunpack.c.l.b16 %v411
        %v2559 = vunpack.c.h.b16 %v411
        %v2560 = vunpack.c.l.b16 %v412
        %v2561 = vunpack.c.h.b16 %v412
        %v2562 = vunpack.c.l.b16 %v413
        %v2563 = vunpack.c.h.b16 %v413
        %v2564 = vunpack.c.l.b16 %v414
        %v2565 = vunpack.c.h.b16 %v414
        %v2566 = vunpack.c.l.b16 %v415
        %v2567 = vunpack.c.h.b16 %v415
        %v2568 = vunpack.c.l.b16 %v416
        %v2569 = vunpack.c.h.b16 %v416
        %v2570 = vunpack.c.l.b16 %v417
        %v2571 = vunpack.c.h.b16 %v417
        %v2572 = vunpack.c.l.b16 %v418
        %v2573 = vunpack.c.h.b16 %v418
        %v2574 = vunpack.c.l.b16 %v419
        %v2575 = vunpack.c.h.b16 %v419
        %v2576 = vunpack.c.l.b16 %v420
        %v2577 = vunpack.c.h.b16 %v420
        %v2578 = vunpack.c.l.b16 %v421
        %v2579 = vunpack.c.h.b16 %v421
        %v2580 = vunpack.c.l.b16 %v422
        %v2581 = vunpack.c.h.b16 %v422
        %v2582 = vunpack.c.l.b16 %v423
        %v2583 = vunpack.c.h.b16 %v423
        %v2584 = vunpack.c.l.b16 %v424
        %v2585 = vunpack.c.h.b16 %v424
        %v2586 = vunpack.c.l.b16 %v425
        %v2587 = vunpack.c.h.b16 %v425
        %v2588 = vunpack.c.l.b16 %v426
        %v2589 = vunpack.c.h.b16 %v426
        %v2590 = vunpack.c.l.b16 %v427
        %v2591 = vunpack.c.h.b16 %v427
        %v2592 = vunpack.c.l.b16 %v428
        %v2593 = vunpack.c.h.b16 %v428
        %v2594 = vunpack.c.l.b16 %v429
        %v2595 = vunpack.c.h.b16 %v429
        %v2596 = vunpack.c.l.b16 %v430
        %v2597 = vunpack.c.h.b16 %v430
        %v2598 = vunpack.c.l.b16 %v431
        %v2599 = vunpack.c.h.b16 %v431
        %v2600 = vunpack.c.l.b16 %v432
        %v2601 = vunpack.c.h.b16 %v432
        %v2602 = vunpack.c.l.b16 %v433
        %v2603 = vunpack.c.h.b16 %v433
        %v2604 = vunpack.c.l.b16 %v434
        %v2605 = vunpack.c.h.b16 %v434
        %v2606 = vunpack.c.l.b16 %v435
        %v2607 = vunpack.c.h.b16 %v435
        %v2608 = vunpack.c.l.b16 %v436
        %v2609 = vunpack.c.h.b16 %v436
        %v2610 = vunpack.c.l.b16 %v437
        %v2611 = vunpack.c.h.b16 %v437
        %v2612 = vunpack.c.l.b16 %v438
        %v2613 = vunpack.c.h.b16 %v438
        %v2614 = vunpack.c.l.b16 %v439
        %v2615 = vunpack.c.h.b16 %v439
        %v2616 = vunpack.c.l.b16 %v440
        %v2617 = vunpack.c.h.b16 %v440
        %v2618 = vunpack.c.l.b16 %v441
        %v2619 = vunpack.c.h.b16 %v441
        %v2620 = vunpack.c.l.b16 %v442
        %v2621 = vunpack.c.h.b16 %v442
        %v2622 = vunpack.c.l.b16 %v443
        %v2623 = vunpack.c.h.b16 %v443
        %v2624 = vunpack.c.l.b16 %v444
        %v2625 = vunpack.c.h.b16 %v444
        %v2626 = vunpack.c.l.b16 %v445
        %v2627 = vunpack.c.h.b16 %v445
        %v2628 = vunpack.c.l.b16 %v446
        %v2629 = vunpack.c.h.b16 %v446
        %v2630 = vunpack.c.l.b16 %v447
        %v2631 = vunpack.c.h.b16 %v447
        %v2632 = vunpack.c.l.b16 %v448
        %v2633 = vunpack.c.h.b16 %v448
        %v2634 = vunpack.c.l.b16 %v449
        %v2635 = vunpack.c.h.b16 %v449
        %v2636 = vunpack.c.l.b16 %v450
        %v2637 = vunpack.c.h.b16 %v450
        %v2638 = vunpack.c.l.b16 %v451
        %v2639 = vunpack.c.h.b16 %v451
        %v2640 = vunpack.c.l.b16 %v452
        %v2641 = vunpack.c.h.b16 %v452
        %v2642 = vunpack.c.l.b16 %v453
        %v2643 = vunpack.c.h.b16 %v453
        %v2644 = vunpack.c.l.b16 %v454
        %v2645 = vunpack.c.h.b16 %v454
        %v2646 = vunpack.c.l.b16 %v455
        %v2647 = vunpack.c.h.b16 %v455
        %v2648 = vunpack.c.l.b16 %v456
        %v2649 = vunpack.c.h.b16 %v456
        %v2650 = vunpack.c.l.b16 %v457
        %v2651 = vunpack.c.h.b16 %v457
        %v2652 = vunpack.c.l.b16 %v458
        %v2653 = vunpack.c.h.b16 %v458
        %v2654 = vunpack.c.l.b16 %v459
        %v2655 = vunpack.c.h.b16 %v459
        %v2656 = vunpack.c.l.b16 %v460
        %v2657 = vunpack.c.h.b16 %v460
        %v2658 = vunpack.c.l.b16 %v461
        %v2659 = vunpack.c.h.b16 %v461
        %v2660 = vunpack.c.l.b16 %v462
        %v2661 = vunpack.c.h.b16 %v462
        %v2662 = vunpack.c.l.b16 %v463
        %v2663 = vunpack.c.h.b16 %v463
        %v2664 = vunpack.c.l.b16 %v464
        %v2665 = vunpack.c.h.b16 %v464
        %v2666 = vunpack.c.l.b16 %v465
        %v2667 = vunpack.c.h.b16 %v465
        %v2668 = vunpack.c.l.b16 %v466
        %v2669 = vunpack.c.h.b16 %v466
        %v2670 = vunpack.c.l.b16 %v467
        %v2671 = vunpack.c.h.b16 %v467
        %v2672 = vunpack.c.l.b16 %v468
        %v2673 = vunpack.c.h.b16 %v468
        %v2674 = vunpack.c.l.b16 %v469
        %v2675 = vunpack.c.h.b16 %v469
        %v2676 = vunpack.c.l.b16 %v470
        %v2677 = vunpack.c.h.b16 %v470
        %v2678 = vunpack.c.l.b16 %v471
        %v2679 = vunpack.c.h.b16 %v471
        %v2680 = vunpack.c.l.b16 %v472
        %v2681 = vunpack.c.h.b16 %v472
        %v2682 = vunpack.c.l.b16 %v473
        %v2683 = vunpack.c.h.b16 %v473
        %v2684 = vunpack.c.l.b16 %v474
        %v2685 = vunpack.c.h.b16 %v474
        %v2686 = vunpack.c.l.b16 %v475
        %v2687 = vunpack.c.h.b16 %v475
        %v2688 = vunpack.c.l.b16 %v476
        %v2689 = vunpack.c.h.b16 %v476
        %v2690 = vunpack.c.l.b16 %v477
        %v2691 = vunpack.c.h.b16 %v477
        %v2692 = vunpack.c.l.b16 %v478
        %v2693 = vunpack.c.h.b16 %v478
        %v2694 = vunpack.c.l.b16 %v479
        %v2695 = vunpack.c.h.b16 %v479
        %v2696 = vunpack.c.l.b16 %v480
        %v2697 = vunpack.c.h.b16 %v480
        %v2698 = vunpack.c.l.b16 %v481
        %v2699 = vunpack.c.h.b16 %v481
        %v2700 = vunpack.c.l.b16 %v482
        %v2701 = vunpack.c.h.b16 %v482
        %v2702 = vunpack.c.l.b16 %v483
        %v2703 = vunpack.c.h.b16 %v483
        %v2704 = vunpack.c.l.b16 %v484
        %v2705 = vunpack.c.h.b16 %v484
        %v2706 = vunpack.c.l.b16 %v485
        %v2707 = vunpack.c.h.b16 %v485
        %v2708 = vunpack.c.l.b16 %v486
        %v2709 = vunpack.c.h.b16 %v486
        %v2710 = vunpack.c.l.b16 %v487
        %v2711 = vunpack.c.h.b16 %v487
        %v2712 = vunpack.c.l.b16 %v488
        %v2713 = vunpack.c.h.b16 %v488
        %v2714 = vunpack.c.l.b16 %v489
        %v2715 = vunpack.c.h.b16 %v489
        %v2716 = vunpack.c.l.b16 %v490
        %v2717 = vunpack.c.h.b16 %v490
        %v2718 = vunpack.c.l.b16 %v491
        %v2719 = vunpack.c.h.b16 %v491
        %v2720 = vunpack.c.l.b16 %v492
        %v2721 = vunpack.c.h.b16 %v492
        %v2722 = vunpack.c.l.b16 %v493
        %v2723 = vunpack.c.h.b16 %v493
        %v2724 = vunpack.c.l.b16 %v494
        %v2725 = vunpack.c.h.b16 %v494
        %v2726 = vunpack.c.l.b16 %v495
        %v2727 = vunpack.c.h.b16 %v495
        %v2728 = vunpack.c.l.b16 %v496
        %v2729 = vunpack.c.h.b16 %v496
        %v2730 = vunpack.c.l.b16 %v497
        %v2731 = vunpack.c.h.b16 %v497
        %v2732 = vunpack.c.l.b16 %v498
        %v2733 = vunpack.c.h.b16 %v498
        %v2734 = vunpack.c.l.b16 %v499
        %v2735 = vunpack.c.h.b16 %v499
        %v2736 = vunpack.c.l.b16 %v500
        %v2737 = vunpack.c.h.b16 %v500
        %v2738 = vunpack.c.l.b16 %v501
        %v2739 = vunpack.c.h.b16 %v501
        %v2740 = vunpack.c.l.b16 %v502
        %v2741 = vunpack.c.h.b16 %v502
        %v2742 = vunpack.c.l.b16 %v503
        %v2743 = vunpack.c.h.b16 %v503
        %v2744 = vunpack.c.l.b16 %v504
        %v2745 = vunpack.c.h.b16 %v504
        %v2746 = vunpack.c.l.b16 %v505
        %v2747 = vunpack.c.h.b16 %v505
        %v2748 = vunpack.c.l.b16 %v506
        %v2749 = vunpack.c.h.b16 %v506
        %v2750 = vunpack.c.l.b16 %v507
        %v2751 = vunpack.c.h.b16 %v507
        %v2752 = vunpack.c.l.b16 %v508
        %v2753 = vunpack.c.h.b16 %v508
        %v2754 = vunpack.c.l.b16 %v509
        %v2755 = vunpack.c.h.b16 %v509
        %v2756 = vunpack.c.l.b16 %v510
        %v2757 = vunpack.c.h.b16 %v510
        %v2758 = vunpack.c.l.b16 %v511
        %v2759 = vunpack.c.h.b16 %v511
        %v2760 = vunpack.c.l.b16 %v512
        %v2761 = vunpack.c.h.b16 %v512
        %v2762 = vunpack.c.l.b16 %v513
        %v2763 = vunpack.c.h.b16 %v513
        %v2764 = vunpack.c.l.b16 %v514
        %v2765 = vunpack.c.h.b16 %v514
        %v2766 = vunpack.c.l.b16 %v515
        %v2767 = vunpack.c.h.b16 %v515
        %v2768 = vunpack.c.l.b16 %v516
        %v2769 = vunpack.c.h.b16 %v516
        %v2770 = vunpack.c.l.b16 %v517
        %v2771 = vunpack.c.h.b16 %v517
        %v2772 = vunpack.c.l.b16 %v518
        %v2773 = vunpack.c.h.b16 %v518
        %v2774 = vunpack.c.l.b16 %v519
        %v2775 = vunpack.c.h.b16 %v519
        %v2776 = vunpack.c.l.b16 %v520
        %v2777 = vunpack.c.h.b16 %v520
        %v2778 = vunpack.c.l.b16 %v521
        %v2779 = vunpack.c.h.b16 %v521
        %v2780 = vunpack.c.l.b16 %v522
        %v2781 = vunpack.c.h.b16 %v522
        %v2782 = vunpack.c.l.b16 %v523
        %v2783 = vunpack.c.h.b16 %v523
        %v2784 = vunpack.c.l.b16 %v524
        %v2785 = vunpack.c.h.b16 %v524
        %v2786 = vunpack.c.l.b16 %v525
        %v2787 = vunpack.c.h.b16 %v525
        %v2788 = vunpack.c.l.b16 %v526
        %v2789 = vunpack.c.h.b16 %v526
        %v2790 = vunpack.c.l.b16 %v527
        %v2791 = vunpack.c.h.b16 %v527
        %v2792 = vunpack.c.l.b16 %v528
        %v2793 = vunpack.c.h.b16 %v528
        %v2794 = vunpack.c.l.b16 %v529
        %v2795 = vunpack.c.h.b16 %v529
        %v2796 = vunpack.c.l.b16 %v530
        %v2797 = vunpack.c.h.b16 %v530
        %v2798 = vunpack.c.l.b16 %v531
        %v2799 = vunpack.c.h.b16 %v531
        %v2800 = vunpack.c.l.b16 %v532
        %v2801 = vunpack.c.h.b16 %v532
        %v2802 = vunpack.c.l.b16 %v533
        %v2803 = vunpack.c.h.b16 %v533
        %v2804 = vunpack.c.l.b16 %v534
        %v2805 = vunpack.c.h.b16 %v534
        %v2806 = vunpack.c.l.b16 %v535
        %v2807 = vunpack.c.h.b16 %v535
        %v2808 = vunpack.c.l.b16 %v536
        %v2809 = vunpack.c.h.b16 %v536
        %v2810 = vunpack.c.l.b16 %v537
        %v2811 = vunpack.c.h.b16 %v537
        %v2812 = vunpack.c.l.b16 %v538
        %v2813 = vunpack.c.h.b16 %v538
        %v2814 = vunpack.c.l.b16 %v539
        %v2815 = vunpack.c.h.b16 %v539
        %v2816 = vunpack.c.l.b16 %v540
        %v2817 = vunpack.c.h.b16 %v540
        %v2818 = vunpack.c.l.b16 %v541
        %v2819 = vunpack.c.h.b16 %v541
        %v2820 = vunpack.c.l.b16 %v542
        %v2821 = vunpack.c.h.b16 %v542
        %v2822 = vunpack.c.l.b16 %v543
        %v2823 = vunpack.c.h.b16 %v543
        %v2824 = vunpack.c.l.b16 %v544
        %v2825 = vunpack.c.h.b16 %v544
        %v2826 = vunpack.c.l.b16 %v545
        %v2827 = vunpack.c.h.b16 %v545
        %v2828 = vunpack.c.l.b16 %v546
        %v2829 = vunpack.c.h.b16 %v546
        %v2830 = vunpack.c.l.b16 %v547
        %v2831 = vunpack.c.h.b16 %v547
        %v2832 = vunpack.c.l.b16 %v548
        %v2833 = vunpack.c.h.b16 %v548
        %v2834 = vunpack.c.l.b16 %v549
        %v2835 = vunpack.c.h.b16 %v549
        %v2836 = vunpack.c.l.b16 %v550
        %v2837 = vunpack.c.h.b16 %v550
        %v2838 = vunpack.c.l.b16 %v551
        %v2839 = vunpack.c.h.b16 %v551
        %v2840 = vunpack.c.l.b16 %v552
        %v2841 = vunpack.c.h.b16 %v552
        %v2842 = vunpack.c.l.b16 %v553
        %v2843 = vunpack.c.h.b16 %v553
        %v2844 = vunpack.c.l.b16 %v554
        %v2845 = vunpack.c.h.b16 %v554
        %v2846 = vunpack.c.l.b16 %v555
        %v2847 = vunpack.c.h.b16 %v555
        %v2848 = vunpack.c.l.b16 %v556
        %v2849 = vunpack.c.h.b16 %v556
        %v2850 = vunpack.c.l.b16 %v557
        %v2851 = vunpack.c.h.b16 %v557
        %v2852 = vunpack.c.l.b16 %v558
        %v2853 = vunpack.c.h.b16 %v558
        %v2854 = vunpack.c.l.b16 %v559
        %v2855 = vunpack.c.h.b16 %v559
        %v2856 = vunpack.c.l.b16 %v560
        %v2857 = vunpack.c.h.b16 %v560
        %v2858 = vunpack.c.l.b16 %v561
        %v2859 = vunpack.c.h.b16 %v561
        %v2860 = vunpack.c.l.b16 %v562
        %v2861 = vunpack.c.h.b16 %v562
        %v2862 = vunpack.c.l.b16 %v563
        %v2863 = vunpack.c.h.b16 %v563
        %v2864 = vunpack.c.l.b16 %v564
        %v2865 = vunpack.c.h.b16 %v564
        %v2866 = vunpack.c.l.b16 %v565
        %v2867 = vunpack.c.h.b16 %v565
        %v2868 = vunpack.c.l.b16 %v566
        %v2869 = vunpack.c.h.b16 %v566
        %v2870 = vunpack.c.l.b16 %v567
        %v2871 = vunpack.c.h.b16 %v567
        %v2872 = vunpack.c.l.b16 %v568
        %v2873 = vunpack.c.h.b16 %v568
        %v2874 = vunpack.c.l.b16 %v569
        %v2875 = vunpack.c.h.b16 %v569
        %v2876 = vunpack.c.l.b16 %v570
        %v2877 = vunpack.c.h.b16 %v570
        %v2878 = vunpack.c.l.b16 %v571
        %v2879 = vunpack.c.h.b16 %v571
        %v2880 = vunpack.c.l.b16 %v572
        %v2881 = vunpack.c.h.b16 %v572
        %v2882 = vunpack.c.l.b16 %v573
        %v2883 = vunpack.c.h.b16 %v573
        %v2884 = vunpack.c.l.b16 %v574
        %v2885 = vunpack.c.h.b16 %v574
        %v2886 = vunpack.c.l.b16 %v575
        %v2887 = vunpack.c.h.b16 %v575
        %v2888 = vunpack.c.l.b16 %v576
        %v2889 = vunpack.c.h.b16 %v576
        %v2890 = vunpack.c.l.b16 %v577
        %v2891 = vunpack.c.h.b16 %v577
        %v2892 = vunpack.c.l.b16 %v578
        %v2893 = vunpack.c.h.b16 %v578
        %v2894 = vunpack.c.l.b16 %v579
        %v2895 = vunpack.c.h.b16 %v579
        %v2896 = vunpack.c.l.b16 %v580
        %v2897 = vunpack.c.h.b16 %v580
        %v2898 = vunpack.c.l.b16 %v581
        %v2899 = vunpack.c.h.b16 %v581
        %v2900 = vunpack.c.l.b16 %v582
        %v2901 = vunpack.c.h.b16 %v582
        %v2902 = vunpack.c.l.b16 %v583
        %v2903 = vunpack.c.h.b16 %v583
        %v2904 = vunpack.c.l.b16 %v584
        %v2905 = vunpack.c.h.b16 %v584
        %v2906 = vunpack.c.l.b16 %v585
        %v2907 = vunpack.c.h.b16 %v585
        %v2908 = vunpack.c.l.b16 %v586
        %v2909 = vunpack.c.h.b16 %v586
        %v2910 = vunpack.c.l.b16 %v587
        %v2911 = vunpack.c.h.b16 %v587
        %v2912 = vunpack.c.l.b16 %v588
        %v2913 = vunpack.c.h.b16 %v588
        %v2914 = vunpack.c.l.b16 %v589
        %v2915 = vunpack.c.h.b16 %v589
        %v2916 = vunpack.c.l.b16 %v590
        %v2917 = vunpack.c.h.b16 %v590
        %v2918 = vunpack.c.l.b16 %v591
        %v2919 = vunpack.c.h.b16 %v591
        %v2920 = vunpack.c.l.b16 %v592
        %v2921 = vunpack.c.h.b16 %v592
        %v2922 = vunpack.c.l.b16 %v593
        %v2923 = vunpack.c.h.b16 %v593
        %v2924 = vunpack.c.l.b16 %v594
        %v2925 = vunpack.c.h.b16 %v594
        %v2926 = vunpack.c.l.b16 %v595
        %v2927 = vunpack.c.h.b16 %v595
        %v2928 = vunpack.c.l.b16 %v596
        %v2929 = vunpack.c.h.b16 %v596
        %v2930 = vunpack.c.l.b16 %v597
        %v2931 = vunpack.c.h.b16 %v597
        %v2932 = vunpack.c.l.b16 %v598
        %v2933 = vunpack.c.h.b16 %v598
        %v2934 = vunpack.c.l.b16 %v599
        %v2935 = vunpack.c.h.b16 %v599
        %v2936 = vunpack.c.l.b16 %v600
        %v2937 = vunpack.c.h.b16 %v600
        %v2938 = vunpack.c.l.b16 %v601
        %v2939 = vunpack.c.h.b16 %v601
        %v2940 = vunpack.c.l.b16 %v602
        %v2941 = vunpack.c.h.b16 %v602
        %v2942 = vunpack.c.l.b16 %v603
        %v2943 = vunpack.c.h.b16 %v603
        %v2944 = vunpack.c.l.b16 %v604
        %v2945 = vunpack.c.h.b16 %v604
        %v2946 = vunpack.c.l.b16 %v605
        %v2947 = vunpack.c.h.b16 %v605
        %v2948 = vunpack.c.l.b16 %v606
        %v2949 = vunpack.c.h.b16 %v606
        %v2950 = vunpack.c.l.b16 %v607
        %v2951 = vunpack.c.h.b16 %v607
        %v2952 = vunpack.c.l.b16 %v608
        %v2953 = vunpack.c.h.b16 %v608
        %v2954 = vunpack.c.l.b16 %v609
        %v2955 = vunpack.c.h.b16 %v609
        %v2956 = vunpack.c.l.b16 %v610
        %v2957 = vunpack.c.h.b16 %v610
        %v2958 = vunpack.c.l.b16 %v611
        %v2959 = vunpack.c.h.b16 %v611
        %v2960 = vunpack.c.l.b16 %v612
        %v2961 = vunpack.c.h.b16 %v612
        %v2962 = vunpack.c.l.b16 %v613
        %v2963 = vunpack.c.h.b16 %v613
        %v2964 = vunpack.c.l.b16 %v614
        %v2965 = vunpack.c.h.b16 %v614
        %v2966 = vunpack.c.l.b16 %v615
        %v2967 = vunpack.c.h.b16 %v615
        %v2968 = vunpack.c.l.b16 %v616
        %v2969 = vunpack.c.h.b16 %v616
        %v2970 = vunpack.c.l.b16 %v617
        %v2971 = vunpack.c.h.b16 %v617
        %v2972 = vunpack.c.l.b16 %v618
        %v2973 = vunpack.c.h.b16 %v618
        %v2974 = vunpack.c.l.b16 %v619
        %v2975 = vunpack.c.h.b16 %v619
        %v2976 = vunpack.c.l.b16 %v620
        %v2977 = vunpack.c.h.b16 %v620
        %v2978 = vunpack.c.l.b16 %v621
        %v2979 = vunpack.c.h.b16 %v621
        %v2980 = vunpack.c.l.b16 %v622
        %v2981 = vunpack.c.h.b16 %v622
        %v2982 = vunpack.c.l.b16 %v623
        %v2983 = vunpack.c.h.b16 %v623
        %v2984 = vunpack.c.l.b16 %v624
        %v2985 = vunpack.c.h.b16 %v624
        %v2986 = vunpack.c.l.b16 %v625
        %v2987 = vunpack.c.h.b16 %v625
        %v2988 = vunpack.c.l.b16 %v626
        %v2989 = vunpack.c.h.b16 %v626
        %v2990 = vunpack.c.l.b16 %v627
        %v2991 = vunpack.c.h.b16 %v627
        %v2992 = vunpack.c.l.b16 %v628
        %v2993 = vunpack.c.h.b16 %v628
        %v2994 = vunpack.c.l.b16 %v629
        %v2995 = vunpack.c.h.b16 %v629
        %v2996 = vunpack.c.l.b16 %v630
        %v2997 = vunpack.c.h.b16 %v630
        %v2998 = vunpack.c.l.b16 %v631
        %v2999 = vunpack.c.h.b16 %v631
        %v3000 = vunpack.c.l.b16 %v632
        %v3001 = vunpack.c.h.b16 %v632
        %v3002 = vunpack.c.l.b16 %v633
        %v3003 = vunpack.c.h.b16 %v633
        %v3004 = vunpack.c.l.b16 %v634
        %v3005 = vunpack.c.h.b16 %v634
        %v3006 = vunpack.c.l.b16 %v635
        %v3007 = vunpack.c.h.b16 %v635
        %v3008 = vunpack.c.l.b16 %v636
        %v3009 = vunpack.c.h.b16 %v636
        %v3010 = vunpack.c.l.b16 %v637
        %v3011 = vunpack.c.h.b16 %v637
        %v3012 = vunpack.c.l.b16 %v638
        %v3013 = vunpack.c.h.b16 %v638
        %v3014 = vunpack.c.l.b16 %v639
        %v3015 = vunpack.c.h.b16 %v639
        %v3016 = vunpack.c.l.b16 %v640
        %v3017 = vunpack.c.h.b16 %v640
        %v3018 = vunpack.c.l.b16 %v641
        %v3019 = vunpack.c.h.b16 %v641
        %v3020 = vunpack.c.l.b16 %v642
        %v3021 = vunpack.c.h.b16 %v642
        %v3022 = vunpack.c.l.b16 %v643
        %v3023 = vunpack.c.h.b16 %v643
        %v3024 = vunpack.c.l.b16 %v644
        %v3025 = vunpack.c.h.b16 %v644
        %v3026 = vunpack.c.l.b16 %v645
        %v3027 = vunpack.c.h.b16 %v645
        %v3028 = vunpack.c.l.b16 %v646
        %v3029 = vunpack.c.h.b16 %v646
        %v3030 = vunpack.c.l.b16 %v647
        %v3031 = vunpack.c.h.b16 %v647
        %v3032 = vunpack.c.l.b16 %v648
        %v3033 = vunpack.c.h.b16 %v648
        %v3034 = vunpack.c.l.b16 %v649
        %v3035 = vunpack.c.h.b16 %v649
        %v3036 = vunpack.c.l.b16 %v650
        %v3037 = vunpack.c.h.b16 %v650
        %v3038 = vunpack.c.l.b16 %v651
        %v3039 = vunpack.c.h.b16 %v651
        %v3040 = vunpack.c.l.b16 %v652
        %v3041 = vunpack.c.h.b16 %v652
        %v3042 = vunpack.c.l.b16 %v653
        %v3043 = vunpack.c.h.b16 %v653
        %v3044 = vunpack.c.l.b16 %v654
        %v3045 = vunpack.c.h.b16 %v654
        %v3046 = vunpack.c.l.b16 %v655
        %v3047 = vunpack.c.h.b16 %v655
        %v3048 = vunpack.c.l.b16 %v656
        %v3049 = vunpack.c.h.b16 %v656
        %v3050 = vunpack.c.l.b16 %v657
        %v3051 = vunpack.c.h.b16 %v657
        %v3052 = vunpack.c.l.b16 %v658
        %v3053 = vunpack.c.h.b16 %v658
        %v3054 = vunpack.c.l.b16 %v659
        %v3055 = vunpack.c.h.b16 %v659
        %v3056 = vunpack.c.l.b16 %v660
        %v3057 = vunpack.c.h.b16 %v660
        %v3058 = vunpack.c.l.b16 %v661
        %v3059 = vunpack.c.h.b16 %v661
        %v3060 = vunpack.c.l.b16 %v662
        %v3061 = vunpack.c.h.b16 %v662
        %v3062 = vunpack.c.l.b16 %v663
        %v3063 = vunpack.c.h.b16 %v663
        %v3064 = vunpack.c.l.b16 %v664
        %v3065 = vunpack.c.h.b16 %v664
        %v3066 = vunpack.c.l.b16 %v665
        %v3067 = vunpack.c.h.b16 %v665
        %v3068 = vunpack.c.l.b16 %v666
        %v3069 = vunpack.c.h.b16 %v666
        %v3070 = vunpack.c.l.b16 %v667
        %v3071 = vunpack.c.h.b16 %v667
        %v3072 = vunpack.c.l.b16 %v668
        %v3073 = vunpack.c.h.b16 %v668
        %v3074 = vunpack.c.l.b16 %v669
        %v3075 = vunpack.c.h.b16 %v669
        %v3076 = vunpack.c.l.b16 %v670
        %v3077 = vunpack.c.h.b16 %v670
        %v3078 = vunpack.c.l.b16 %v671
        %v3079 = vunpack.c.h.b16 %v671
        %v3080 = vunpack.c.l.b16 %v672
        %v3081 = vunpack.c.h.b16 %v672
        %v3082 = vunpack.c.l.b16 %v673
        %v3083 = vunpack.c.h.b16 %v673
        %v3084 = vunpack.c.l.b16 %v674
        %v3085 = vunpack.c.h.b16 %v674
        %v3086 = vunpack.c.l.b16 %v675
        %v3087 = vunpack.c.h.b16 %v675
        %v3088 = vunpack.c.l.b16 %v676
        %v3089 = vunpack.c.h.b16 %v676
        %v3090 = vunpack.c.l.b16 %v677
        %v3091 = vunpack.c.h.b16 %v677
        %v3092 = vunpack.c.l.b16 %v678
        %v3093 = vunpack.c.h.b16 %v678
        %v3094 = vunpack.c.l.b16 %v679
        %v3095 = vunpack.c.h.b16 %v679
        %v3096 = vunpack.c.l.b16 %v680
        %v3097 = vunpack.c.h.b16 %v680
        %v3098 = vunpack.c.l.b16 %v681
        %v3099 = vunpack.c.h.b16 %v681
        %v3100 = vunpack.c.l.b16 %v682
        %v3101 = vunpack.c.h.b16 %v682
        %v3102 = vunpack.c.l.b16 %v683
        %v3103 = vunpack.c.h.b16 %v683
        %v3104 = vunpack.c.l.b16 %v684
        %v3105 = vunpack.c.h.b16 %v684
        %v3106 = vunpack.c.l.b16 %v685
        %v3107 = vunpack.c.h.b16 %v685
        %v3108 = vunpack.c.l.b16 %v686
        %v3109 = vunpack.c.h.b16 %v686
        %v3110 = vunpack.c.l.b16 %v687
        %v3111 = vunpack.c.h.b16 %v687
        %v3112 = vunpack.c.l.b16 %v688
        %v3113 = vunpack.c.h.b16 %v688
        %v3114 = vunpack.c.l.b16 %v689
        %v3115 = vunpack.c.h.b16 %v689
        %v3116 = vunpack.c.l.b16 %v690
        %v3117 = vunpack.c.h.b16 %v690
        %v3118 = vunpack.c.l.b16 %v691
        %v3119 = vunpack.c.h.b16 %v691
        %v3120 = vunpack.c.l.b16 %v692
        %v3121 = vunpack.c.h.b16 %v692
        %v3122 = vunpack.c.l.b16 %v693
        %v3123 = vunpack.c.h.b16 %v693
        %v3124 = vunpack.c.l.b16 %v694
        %v3125 = vunpack.c.h.b16 %v694
        %v3126 = vunpack.c.l.b16 %v695
        %v3127 = vunpack.c.h.b16 %v695
        %v3128 = vunpack.c.l.b16 %v696
        %v3129 = vunpack.c.h.b16 %v696
        %v3130 = vunpack.c.l.b16 %v697
        %v3131 = vunpack.c.h.b16 %v697
        %v3132 = vunpack.c.l.b16 %v698
        %v3133 = vunpack.c.h.b16 %v698
        %v3134 = vunpack.c.l.b16 %v699
        %v3135 = vunpack.c.h.b16 %v699
        %v3136 = vunpack.c.l.b16 %v700
        %v3137 = vunpack.c.h.b16 %v700
        %v3138 = vunpack.c.l.b16 %v701
        %v3139 = vunpack.c.h.b16 %v701
        %v3140 = vunpack.c.l.b16 %v702
        %v3141 = vunpack.c.h.b16 %v702
        %v3142 = vunpack.c.l.b16 %v703
        %v3143 = vunpack.c.h.b16 %v703
        %v3144 = vunpack.c.l.b16 %v704
        %v3145 = vunpack.c.h.b16 %v704
        %v3146 = vunpack.c.l.b16 %v705
        %v3147 = vunpack.c.h.b16 %v705
        %v3148 = vunpack.c.l.b16 %v706
        %v3149 = vunpack.c.h.b16 %v706
        %v3150 = vunpack.c.l.b16 %v707
        %v3151 = vunpack.c.h.b16 %v707
        %v3152 = vunpack.c.l.b16 %v708
        %v3153 = vunpack.c.h.b16 %v708
        %v3154 = vunpack.c.l.b16 %v709
        %v3155 = vunpack.c.h.b16 %v709
        %v3156 = vunpack.c.l.b16 %v710
        %v3157 = vunpack.c.h.b16 %v710
        %v3158 = vunpack.c.l.b16 %v711
        %v3159 = vunpack.c.h.b16 %v711
        %v3160 = vunpack.c.l.b16 %v712
        %v3161 = vunpack.c.h.b16 %v712
        %v3162 = vunpack.c.l.b16 %v713
        %v3163 = vunpack.c.h.b16 %v713
        %v3164 = vunpack.c.l.b16 %v714
        %v3165 = vunpack.c.h.b16 %v714
        %v3166 = vunpack.c.l.b16 %v715
        %v3167 = vunpack.c.h.b16 %v715
        %v3168 = vunpack.c.l.b16 %v716
        %v3169 = vunpack.c.h.b16 %v716
        %v3170 = vunpack.c.l.b16 %v717
        %v3171 = vunpack.c.h.b16 %v717
        %v3172 = vunpack.c.l.b16 %v718
        %v3173 = vunpack.c.h.b16 %v718
        %v3174 = vunpack.c.l.b16 %v719
        %v3175 = vunpack.c.h.b16 %v719
        %v3176 = vunpack.c.l.b16 %v720
        %v3177 = vunpack.c.h.b16 %v720
        %v3178 = vunpack.c.l.b16 %v721
        %v3179 = vunpack.c.h.b16 %v721
        %v3180 = vunpack.c.l.b16 %v722
        %v3181 = vunpack.c.h.b16 %v722
        %v3182 = vunpack.c.l.b16 %v723
        %v3183 = vunpack.c.h.b16 %v723
        %v3184 = vunpack.c.l.b16 %v724
        %v3185 = vunpack.c.h.b16 %v724
        %v3186 = vunpack.c.l.b16 %v725
        %v3187 = vunpack.c.h.b16 %v725
        %v3188 = vunpack.c.l.b16 %v726
        %v3189 = vunpack.c.h.b16 %v726
        %v3190 = vunpack.c.l.b16 %v727
        %v3191 = vunpack.c.h.b16 %v727
        %v3192 = vunpack.c.l.b16 %v728
        %v3193 = vunpack.c.h.b16 %v728
        %v3194 = vunpack.c.l.b16 %v729
        %v3195 = vunpack.c.h.b16 %v729
        %v3196 = vunpack.c.l.b16 %v730
        %v3197 = vunpack.c.h.b16 %v730
        %v3198 = vunpack.c.l.b16 %v731
        %v3199 = vunpack.c.h.b16 %v731
        %v3200 = vunpack.c.l.b16 %v732
        %v3201 = vunpack.c.h.b16 %v732
        %v3202 = vunpack.c.l.b16 %v733
        %v3203 = vunpack.c.h.b16 %v733
        %v3204 = vunpack.c.l.b16 %v734
        %v3205 = vunpack.c.h.b16 %v734
        %v3206 = vunpack.c.l.b16 %v735
        %v3207 = vunpack.c.h.b16 %v735
        %v3208 = vunpack.c.l.b16 %v736
        %v3209 = vunpack.c.h.b16 %v736
        %v3210 = vunpack.c.l.b16 %v737
        %v3211 = vunpack.c.h.b16 %v737
        %v3212 = vunpack.c.l.b16 %v738
        %v3213 = vunpack.c.h.b16 %v738
        %v3214 = vunpack.c.l.b16 %v739
        %v3215 = vunpack.c.h.b16 %v739
        %v3216 = vunpack.c.l.b16 %v740
        %v3217 = vunpack.c.h.b16 %v740
        %v3218 = vunpack.c.l.b16 %v741
        %v3219 = vunpack.c.h.b16 %v741
        %v3220 = vunpack.c.l.b16 %v742
        %v3221 = vunpack.c.h.b16 %v742
        %v3222 = vunpack.c.l.b16 %v743
        %v3223 = vunpack.c.h.b16 %v743
        %v3224 = vunpack.c.l.b16 %v744
        %v3225 = vunpack.c.h.b16 %v744
        %v3226 = vunpack.c.l.b16 %v745
        %v3227 = vunpack.c.h.b16 %v745
        %v3228 = vunpack.c.l.b16 %v746
        %v3229 = vunpack.c.h.b16 %v746
        %v3230 = vunpack.c.l.b16 %v747
        %v3231 = vunpack.c.h.b16 %v747
        %v3232 = vunpack.c.l.b16 %v748
        %v3233 = vunpack.c.h.b16 %v748
        %v3234 = vunpack.c.l.b16 %v749
        %v3235 = vunpack.c.h.b16 %v749
        %v3236 = vunpack.c.l.b16 %v750
        %v3237 = vunpack.c.h.b16 %v750
        %v3238 = vunpack.c.l.b16 %v751
        %v3239 = vunpack.c.h.b16 %v751
        %v3240 = vunpack.c.l.b16 %v752
        %v3241 = vunpack.c.h.b16 %v752
        %v3242 = vunpack.c.l.b16 %v753
        %v3243 = vunpack.c.h.b16 %v753
        %v3244 = vunpack.c.l.b16 %v754
        %v3245 = vunpack.c.h.b16 %v754
        %v3246 = vunpack.c.l.b16 %v755
        %v3247 = vunpack.c.h.b16 %v755
        %v3248 = vunpack.c.l.b16 %v756
        %v3249 = vunpack.c.h.b16 %v756
        %v3250 = vunpack.c.l.b16 %v757
        %v3251 = vunpack.c.h.b16 %v757
        %v3252 = vunpack.c.l.b16 %v758
        %v3253 = vunpack.c.h.b16 %v758
        %v3254 = vunpack.c.l.b16 %v759
        %v3255 = vunpack.c.h.b16 %v759
        %v3256 = vunpack.c.l.b16 %v760
        %v3257 = vunpack.c.h.b16 %v760
        %v3258 = vunpack.c.l.b16 %v761
        %v3259 = vunpack.c.h.b16 %v761
        %v3260 = vunpack.c.l.b16 %v762
        %v3261 = vunpack.c.h.b16 %v762
        %v3262 = vunpack.c.l.b16 %v763
        %v3263 = vunpack.c.h.b16 %v763
        %v3264 = vunpack.c.l.b16 %v764
        %v3265 = vunpack.c.h.b16 %v764
        %v3266 = vunpack.c.l.b16 %v765
        %v3267 = vunpack.c.h.b16 %v765
        %v3268 = vunpack.c.l.b16 %v766
        %v3269 = vunpack.c.h.b16 %v766
        %v3270 = vunpack.c.l.b16 %v767
        %v3271 = vunpack.c.h.b16 %v767
        %v3272 = vunpack.c.l.b16 %v768
        %v3273 = vunpack.c.h.b16 %v768
        %v3274 = vunpack.c.l.b16 %v769
        %v3275 = vunpack.c.h.b16 %v769
        %v3276 = vunpack.c.l.b16 %v770
        %v3277 = vunpack.c.h.b16 %v770
        %v3278 = vunpack.c.l.b16 %v771
        %v3279 = vunpack.c.h.b16 %v771
        %v3280 = vunpack.c.l.b16 %v772
        %v3281 = vunpack.c.h.b16 %v772
        %v3282 = vunpack.c.l.b16 %v773
        %v3283 = vunpack.c.h.b16 %v773
        %v3284 = vunpack.c.l.b16 %v774
        %v3285 = vunpack.c.h.b16 %v774
        %v3286 = vunpack.c.l.b16 %v775
        %v3287 = vunpack.c.h.b16 %v775
        %v3288 = vunpack.c.l.b16 %v776
        %v3289 = vunpack.c.h.b16 %v776
        %v3290 = vunpack.c.l.b16 %v777
        %v3291 = vunpack.c.h.b16 %v777
        %v3292 = vunpack.c.l.b16 %v778
        %v3293 = vunpack.c.h.b16 %v778
        %v3294 = vunpack.c.l.b16 %v779
        %v3295 = vunpack.c.h.b16 %v779
        %v3296 = vunpack.c.l.b16 %v780
        %v3297 = vunpack.c.h.b16 %v780
        %v3298 = vunpack.c.l.b16 %v781
        %v3299 = vunpack.c.h.b16 %v781
        %v3300 = vunpack.c.l.b16 %v782
        %v3301 = vunpack.c.h.b16 %v782
        %v3302 = vunpack.c.l.b16 %v783
        %v3303 = vunpack.c.h.b16 %v783
        %v3304 = vunpack.c.l.b16 %v784
        %v3305 = vunpack.c.h.b16 %v784
        %v3306 = vunpack.c.l.b16 %v785
        %v3307 = vunpack.c.h.b16 %v785
        %v3308 = vunpack.c.l.b16 %v786
        %v3309 = vunpack.c.h.b16 %v786
        %v3310 = vunpack.c.l.b16 %v787
        %v3311 = vunpack.c.h.b16 %v787
        %v3312 = vunpack.c.l.b16 %v788
        %v3313 = vunpack.c.h.b16 %v788
        %v3314 = vunpack.c.l.b16 %v789
        %v3315 = vunpack.c.h.b16 %v789
        %v3316 = vunpack.c.l.b16 %v790
        %v3317 = vunpack.c.h.b16 %v790
        %v3318 = vunpack.c.l.b16 %v791
        %v3319 = vunpack.c.h.b16 %v791
        %v3320 = vunpack.c.l.b16 %v792
        %v3321 = vunpack.c.h.b16 %v792
        %v3322 = vunpack.c.l.b16 %v793
        %v3323 = vunpack.c.h.b16 %v793
        %v3324 = vunpack.c.l.b16 %v794
        %v3325 = vunpack.c.h.b16 %v794
        %v3326 = vunpack.c.l.b16 %v795
        %v3327 = vunpack.c.h.b16 %v795
        %v3328 = vunpack.c.l.b16 %v796
        %v3329 = vunpack.c.h.b16 %v796
        %v3330 = vunpack.c.l.b16 %v797
        %v3331 = vunpack.c.h.b16 %v797
        %v3332 = vunpack.c.l.b16 %v798
        %v3333 = vunpack.c.h.b16 %v798
        %v3334 = vunpack.c.l.b16 %v799
        %v3335 = vunpack.c.h.b16 %v799
        %v3336 = vunpack.c.l.b16 %v800
        %v3337 = vunpack.c.h.b16 %v800
        %v3338 = vunpack.c.l.b16 %v801
        %v3339 = vunpack.c.h.b16 %v801
        %v3340 = vunpack.c.l.b16 %v802
        %v3341 = vunpack.c.h.b16 %v802
        %v3342 = vunpack.c.l.b16 %v803
        %v3343 = vunpack.c.h.b16 %v803
        %v3344 = vunpack.c.l.b16 %v804
        %v3345 = vunpack.c.h.b16 %v804
        %v3346 = vunpack.c.l.b16 %v805
        %v3347 = vunpack.c.h.b16 %v805
        %v3348 = vunpack.c.l.b16 %v806
        %v3349 = vunpack.c.h.b16 %v806
        %v3350 = vunpack.c.l.b16 %v807
        %v3351 = vunpack.c.h.b16 %v807
        %v3352 = vunpack.c.l.b16 %v808
        %v3353 = vunpack.c.h.b16 %v808
        %v3354 = vunpack.c.l.b16 %v809
        %v3355 = vunpack.c.h.b16 %v809
        %v3356 = vunpack.c.l.b16 %v810
        %v3357 = vunpack.c.h.b16 %v810
        %v3358 = vunpack.c.l.b16 %v811
        %v3359 = vunpack.c.h.b16 %v811
        %v3360 = vunpack.c.l.b16 %v812
        %v3361 = vunpack.c.h.b16 %v812
        %v3362 = vunpack.c.l.b16 %v813
        %v3363 = vunpack.c.h.b16 %v813
        %v3364 = vunpack.c.l.b16 %v814
        %v3365 = vunpack.c.h.b16 %v814
        %v3366 = vunpack.c.l.b16 %v815
        %v3367 = vunpack.c.h.b16 %v815
        %v3368 = vunpack.c.l.b16 %v816
        %v3369 = vunpack.c.h.b16 %v816
        %v3370 = vunpack.c.l.b16 %v817
        %v3371 = vunpack.c.h.b16 %v817
        %v3372 = vunpack.c.l.b16 %v818
        %v3373 = vunpack.c.h.b16 %v818
        %v3374 = vunpack.c.l.b16 %v819
        %v3375 = vunpack.c.h.b16 %v819
        %v3376 = vunpack.c.l.b16 %v820
        %v3377 = vunpack.c.h.b16 %v820
        %v3378 = vunpack.c.l.b16 %v821
        %v3379 = vunpack.c.h.b16 %v821
        %v3380 = vunpack.c.l.b16 %v822
        %v3381 = vunpack.c.h.b16 %v822
        %v3382 = vunpack.c.l.b16 %v823
        %v3383 = vunpack.c.h.b16 %v823
        %v3384 = vunpack.c.l.b16 %v824
        %v3385 = vunpack.c.h.b16 %v824
        %v3386 = vunpack.c.l.b16 %v825
        %v3387 = vunpack.c.h.b16 %v825
        %v3388 = vunpack.c.l.b16 %v826
        %v3389 = vunpack.c.h.b16 %v826
        %v3390 = vunpack.c.l.b16 %v827
        %v3391 = vunpack.c.h.b16 %v827
        %v3392 = vunpack.c.l.b16 %v828
        %v3393 = vunpack.c.h.b16 %v828
        %v3394 = vunpack.c.l.b16 %v829
        %v3395 = vunpack.c.h.b16 %v829
        %v3396 = vunpack.c.l.b16 %v830
        %v3397 = vunpack.c.h.b16 %v830
        %v3398 = vunpack.c.l.b16 %v831
        %v3399 = vunpack.c.h.b16 %v831
        %v3400 = vunpack.c.l.b16 %v832
        %v3401 = vunpack.c.h.b16 %v832
        %v3402 = vunpack.c.l.b16 %v833
        %v3403 = vunpack.c.h.b16 %v833
        %v3404 = vunpack.c.l.b16 %v834
        %v3405 = vunpack.c.h.b16 %v834
        %v3406 = vunpack.c.l.b16 %v835
        %v3407 = vunpack.c.h.b16 %v835
        %v3408 = vunpack.c.l.b16 %v836
        %v3409 = vunpack.c.h.b16 %v836
        %v3410 = vunpack.c.l.b16 %v837
        %v3411 = vunpack.c.h.b16 %v837
        %v3412 = vunpack.c.l.b16 %v838
        %v3413 = vunpack.c.h.b16 %v838
        %v3414 = vunpack.c.l.b16 %v839
        %v3415 = vunpack.c.h.b16 %v839
        %v3416 = vunpack.c.l.b16 %v840
        %v3417 = vunpack.c.h.b16 %v840
        %v3418 = vunpack.c.l.b16 %v841
        %v3419 = vunpack.c.h.b16 %v841
        %v3420 = vunpack.c.l.b16 %v842
        %v3421 = vunpack.c.h.b16 %v842
        %v3422 = vunpack.c.l.b16 %v843
        %v3423 = vunpack.c.h.b16 %v843
        %v3424 = vunpack.c.l.b16 %v844
        %v3425 = vunpack.c.h.b16 %v844
        %v3426 = vunpack.c.l.b16 %v845
        %v3427 = vunpack.c.h.b16 %v845
        %v3428 = vunpack.c.l.b16 %v846
        %v3429 = vunpack.c.h.b16 %v846
        %v3430 = vunpack.c.l.b16 %v847
        %v3431 = vunpack.c.h.b16 %v847
        %v3432 = vunpack.c.l.b16 %v848
        %v3433 = vunpack.c.h.b16 %v848
        %v3434 = vunpack.c.l.b16 %v849
        %v3435 = vunpack.c.h.b16 %v849
        %v3436 = vunpack.c.l.b16 %v850
        %v3437 = vunpack.c.h.b16 %v850
        %v3438 = vunpack.c.l.b16 %v851
        %v3439 = vunpack.c.h.b16 %v851
        %v3440 = vunpack.c.l.b16 %v852
        %v3441 = vunpack.c.h.b16 %v852
        %v3442 = vunpack.c.l.b16 %v853
        %v3443 = vunpack.c.h.b16 %v853
        %v3444 = vunpack.c.l.b16 %v854
        %v3445 = vunpack.c.h.b16 %v854
        %v3446 = vunpack.c.l.b16 %v855
        %v3447 = vunpack.c.h.b16 %v855
        %v3448 = vunpack.c.l.b16 %v856
        %v3449 = vunpack.c.h.b16 %v856
        %v3450 = vunpack.c.l.b16 %v857
        %v3451 = vunpack.c.h.b16 %v857
        %v3452 = vunpack.c.l.b16 %v858
        %v3453 = vunpack.c.h.b16 %v858
        %v3454 = vunpack.c.l.b16 %v859
        %v3455 = vunpack.c.h.b16 %v859
        %v3456 = vunpack.c.l.b16 %v860
        %v3457 = vunpack.c.h.b16 %v860
        %v3458 = vunpack.c.l.b16 %v861
        %v3459 = vunpack.c.h.b16 %v861
        %v3460 = vunpack.c.l.b16 %v862
        %v3461 = vunpack.c.h.b16 %v862
        %v3462 = vunpack.c.l.b16 %v863
        %v3463 = vunpack.c.h.b16 %v863
        %v3464 = vunpack.c.l.b16 %v864
        %v3465 = vunpack.c.h.b16 %v864
        %v3466 = vunpack.c.l.b16 %v865
        %v3467 = vunpack.c.h.b16 %v865
        %v3468 = vunpack.c.l.b16 %v866
        %v3469 = vunpack.c.h.b16 %v866
        %v3470 = vunpack.c.l.b16 %v867
        %v3471 = vunpack.c.h.b16 %v867
        %v3472 = vunpack.c.l.b16 %v868
        %v3473 = vunpack.c.h.b16 %v868
        %v3474 = vunpack.c.l.b16 %v869
        %v3475 = vunpack.c.h.b16 %v869
        %v3476 = vunpack.c.l.b16 %v870
        %v3477 = vunpack.c.h.b16 %v870
        %v3478 = vunpack.c.l.b16 %v871
        %v3479 = vunpack.c.h.b16 %v871
        %v3480 = vunpack.c.l.b16 %v872
        %v3481 = vunpack.c.h.b16 %v872
        %v3482 = vunpack.c.l.b16 %v873
        %v3483 = vunpack.c.h.b16 %v873
        %v3484 = vunpack.c.l.b16 %v874
        %v3485 = vunpack.c.h.b16 %v874
        %v3486 = vunpack.c.l.b16 %v875
        %v3487 = vunpack.c.h.b16 %v875
        %v3488 = vunpack.c.l.b16 %v876
        %v3489 = vunpack.c.h.b16 %v876
        %v3490 = vunpack.c.l.b16 %v877
        %v3491 = vunpack.c.h.b16 %v877
        %v3492 = vunpack.c.l.b16 %v878
        %v3493 = vunpack.c.h.b16 %v878
        %v3494 = vunpack.c.l.b16 %v879
        %v3495 = vunpack.c.h.b16 %v879
        %v3496 = vunpack.c.l.b16 %v880
        %v3497 = vunpack.c.h.b16 %v880
        %v3498 = vunpack.c.l.b16 %v881
        %v3499 = vunpack.c.h.b16 %v881
        %v3500 = vunpack.c.l.b16 %v882
        %v3501 = vunpack.c.h.b16 %v882
        %v3502 = vunpack.c.l.b16 %v883
        %v3503 = vunpack.c.h.b16 %v883
        %v3504 = vunpack.c.l.b16 %v884
        %v3505 = vunpack.c.h.b16 %v884
        %v3506 = vunpack.c.l.b16 %v885
        %v3507 = vunpack.c.h.b16 %v885
        %v3508 = vunpack.c.l.b16 %v886
        %v3509 = vunpack.c.h.b16 %v886
        %v3510 = vunpack.c.l.b16 %v887
        %v3511 = vunpack.c.h.b16 %v887
        %v3512 = vunpack.c.l.b16 %v888
        %v3513 = vunpack.c.h.b16 %v888
        %v3514 = vunpack.c.l.b16 %v889
        %v3515 = vunpack.c.h.b16 %v889
        %v3516 = vunpack.c.l.b16 %v890
        %v3517 = vunpack.c.h.b16 %v890
        %v3518 = vunpack.c.l.b16 %v891
        %v3519 = vunpack.c.h.b16 %v891
        %v3520 = vunpack.c.l.b16 %v892
        %v3521 = vunpack.c.h.b16 %v892
        %v3522 = vunpack.c.l.b16 %v893
        %v3523 = vunpack.c.h.b16 %v893
        %v3524 = vunpack.c.l.b16 %v894
        %v3525 = vunpack.c.h.b16 %v894
        %v3526 = vunpack.c.l.b16 %v895
        %v3527 = vunpack.c.h.b16 %v895
        %v3528 = vunpack.c.l.b16 %v896
        %v3529 = vunpack.c.h.b16 %v896
        %v3530 = vunpack.c.l.b16 %v897
        %v3531 = vunpack.c.h.b16 %v897
        %v3532 = vunpack.c.l.b16 %v898
        %v3533 = vunpack.c.h.b16 %v898
        %v3534 = vunpack.c.l.b16 %v899
        %v3535 = vunpack.c.h.b16 %v899
        %v3536 = vunpack.c.l.b16 %v900
        %v3537 = vunpack.c.h.b16 %v900
        %v3538 = vunpack.c.l.b16 %v901
        %v3539 = vunpack.c.h.b16 %v901
        %v3540 = vunpack.c.l.b16 %v902
        %v3541 = vunpack.c.h.b16 %v902
        %v3542 = vunpack.c.l.b16 %v903
        %v3543 = vunpack.c.h.b16 %v903
        %v3544 = vunpack.c.l.b16 %v904
        %v3545 = vunpack.c.h.b16 %v904
        %v3546 = vunpack.c.l.b16 %v905
        %v3547 = vunpack.c.h.b16 %v905
        %v3548 = vunpack.c.l.b16 %v906
        %v3549 = vunpack.c.h.b16 %v906
        %v3550 = vunpack.c.l.b16 %v907
        %v3551 = vunpack.c.h.b16 %v907
        %v3552 = vunpack.c.l.b16 %v908
        %v3553 = vunpack.c.h.b16 %v908
        %v3554 = vunpack.c.l.b16 %v909
        %v3555 = vunpack.c.h.b16 %v909
        %v3556 = vunpack.c.l.b16 %v910
        %v3557 = vunpack.c.h.b16 %v910
        %v3558 = vunpack.c.l.b16 %v911
        %v3559 = vunpack.c.h.b16 %v911
        %v3560 = vunpack.c.l.b16 %v912
        %v3561 = vunpack.c.h.b16 %v912
        %v3562 = vunpack.c.l.b16 %v913
        %v3563 = vunpack.c.h.b16 %v913
        %v3564 = vunpack.c.l.b16 %v914
        %v3565 = vunpack.c.h.b16 %v914
        %v3566 = vunpack.c.l.b16 %v915
        %v3567 = vunpack.c.h.b16 %v915
        %v3568 = vunpack.c.l.b16 %v916
        %v3569 = vunpack.c.h.b16 %v916
        %v3570 = vunpack.c.l.b16 %v917
        %v3571 = vunpack.c.h.b16 %v917
        %v3572 = vunpack.c.l.b16 %v918
        %v3573 = vunpack.c.h.b16 %v918
        %v3574 = vunpack.c.l.b16 %v919
        %v3575 = vunpack.c.h.b16 %v919
        %v3576 = vunpack.c.l.b16 %v920
        %v3577 = vunpack.c.h.b16 %v920
        %v3578 = vunpack.c.l.b16 %v921
        %v3579 = vunpack.c.h.b16 %v921
        %v3580 = vunpack.c.l.b16 %v922
        %v3581 = vunpack.c.h.b16 %v922
        %v3582 = vunpack.c.l.b16 %v923
        %v3583 = vunpack.c.h.b16 %v923
        %v3584 = vunpack.c.l.b16 %v924
        %v3585 = vunpack.c.h.b16 %v924
        %v3586 = vunpack.c.l.b16 %v925
        %v3587 = vunpack.c.h.b16 %v925
        %v3588 = vunpack.c.l.b16 %v926
        %v3589 = vunpack.c.h.b16 %v926
        %v3590 = vunpack.c.l.b16 %v927
        %v3591 = vunpack.c.h.b16 %v927
        %v3592 = vunpack.c.l.b16 %v928
        %v3593 = vunpack.c.h.b16 %v928
        %v3594 = vunpack.c.l.b16 %v929
        %v3595 = vunpack.c.h.b16 %v929
        %v3596 = vunpack.c.l.b16 %v930
        %v3597 = vunpack.c.h.b16 %v930
        %v3598 = vunpack.c.l.b16 %v931
        %v3599 = vunpack.c.h.b16 %v931
        %v3600 = vunpack.c.l.b16 %v932
        %v3601 = vunpack.c.h.b16 %v932
        %v3602 = vunpack.c.l.b16 %v933
        %v3603 = vunpack.c.h.b16 %v933
        %v3604 = vunpack.c.l.b16 %v934
        %v3605 = vunpack.c.h.b16 %v934
        %v3606 = vunpack.c.l.b16 %v935
        %v3607 = vunpack.c.h.b16 %v935
        %v3608 = vunpack.c.l.b16 %v936
        %v3609 = vunpack.c.h.b16 %v936
        %v3610 = vunpack.c.l.b16 %v937
        %v3611 = vunpack.c.h.b16 %v937
        %v3612 = vunpack.c.l.b16 %v938
        %v3613 = vunpack.c.h.b16 %v938
        %v3614 = vunpack.c.l.b16 %v939
        %v3615 = vunpack.c.h.b16 %v939
        %v3616 = vunpack.c.l.b16 %v940
        %v3617 = vunpack.c.h.b16 %v940
        %v3618 = vunpack.c.l.b16 %v941
        %v3619 = vunpack.c.h.b16 %v941
        %v3620 = vunpack.c.l.b16 %v942
        %v3621 = vunpack.c.h.b16 %v942
        %v3622 = vunpack.c.l.b16 %v943
        %v3623 = vunpack.c.h.b16 %v943
        %v3624 = vunpack.c.l.b16 %v944
        %v3625 = vunpack.c.h.b16 %v944
        %v3626 = vunpack.c.l.b16 %v945
        %v3627 = vunpack.c.h.b16 %v945
        %v3628 = vunpack.c.l.b16 %v946
        %v3629 = vunpack.c.h.b16 %v946
        %v3630 = vunpack.c.l.b16 %v947
        %v3631 = vunpack.c.h.b16 %v947
        %v3632 = vunpack.c.l.b16 %v948
        %v3633 = vunpack.c.h.b16 %v948
        %v3634 = vunpack.c.l.b16 %v949
        %v3635 = vunpack.c.h.b16 %v949
        %v3636 = vunpack.c.l.b16 %v950
        %v3637 = vunpack.c.h.b16 %v950
        %v3638 = vunpack.c.l.b16 %v951
        %v3639 = vunpack.c.h.b16 %v951
        %v3640 = vunpack.c.l.b16 %v952
        %v3641 = vunpack.c.h.b16 %v952
        %v3642 = vunpack.c.l.b16 %v953
        %v3643 = vunpack.c.h.b16 %v953
        %v3644 = vunpack.c.l.b16 %v954
        %v3645 = vunpack.c.h.b16 %v954
        %v3646 = vunpack.c.l.b16 %v955
        %v3647 = vunpack.c.h.b16 %v955
        %v3648 = vunpack.c.l.b16 %v956
        %v3649 = vunpack.c.h.b16 %v956
        %v3650 = vunpack.c.l.b16 %v957
        %v3651 = vunpack.c.h.b16 %v957
        %v3652 = vunpack.c.l.b16 %v958
        %v3653 = vunpack.c.h.b16 %v958
        %v3654 = vunpack.c.l.b16 %v959
        %v3655 = vunpack.c.h.b16 %v959
        %v3656 = vunpack.c.l.b16 %v960
        %v3657 = vunpack.c.h.b16 %v960
        %v3658 = vunpack.c.l.b16 %v961
        %v3659 = vunpack.c.h.b16 %v961
        %v3660 = vunpack.c.l.b16 %v962
        %v3661 = vunpack.c.h.b16 %v962
        %v3662 = vunpack.c.l.b16 %v963
        %v3663 = vunpack.c.h.b16 %v963
        %v3664 = vunpack.c.l.b16 %v964
        %v3665 = vunpack.c.h.b16 %v964
        %v3666 = vunpack.c.l.b16 %v965
        %v3667 = vunpack.c.h.b16 %v965
        %v3668 = vunpack.c.l.b16 %v966
        %v3669 = vunpack.c.h.b16 %v966
        %v3670 = vunpack.c.l.b16 %v967
        %v3671 = vunpack.c.h.b16 %v967
        %v3672 = vunpack.c.l.b16 %v968
        %v3673 = vunpack.c.h.b16 %v968
        %v3674 = vunpack.c.l.b16 %v969
        %v3675 = vunpack.c.h.b16 %v969
        %v3676 = vunpack.c.l.b16 %v970
        %v3677 = vunpack.c.h.b16 %v970
        %v3678 = vunpack.c.l.b16 %v971
        %v3679 = vunpack.c.h.b16 %v971
        %v3680 = vunpack.c.l.b16 %v972
        %v3681 = vunpack.c.h.b16 %v972
        %v3682 = vunpack.c.l.b16 %v973
        %v3683 = vunpack.c.h.b16 %v973
        %v3684 = vunpack.c.l.b16 %v974
        %v3685 = vunpack.c.h.b16 %v974
        %v3686 = vunpack.c.l.b16 %v975
        %v3687 = vunpack.c.h.b16 %v975
        %v3688 = vunpack.c.l.b16 %v976
        %v3689 = vunpack.c.h.b16 %v976
        %v3690 = vunpack.c.l.b16 %v977
        %v3691 = vunpack.c.h.b16 %v977
        %v3692 = vunpack.c.l.b16 %v978
        %v3693 = vunpack.c.h.b16 %v978
        %v3694 = vunpack.c.l.b16 %v979
        %v3695 = vunpack.c.h.b16 %v979
        %v3696 = vunpack.c.l.b16 %v980
        %v3697 = vunpack.c.h.b16 %v980
        %v3698 = vunpack.c.l.b16 %v981
        %v3699 = vunpack.c.h.b16 %v981
        %v3700 = vunpack.c.l.b16 %v982
        %v3701 = vunpack.c.h.b16 %v982
        %v3702 = vunpack.c.l.b16 %v983
        %v3703 = vunpack.c.h.b16 %v983
        %v3704 = vunpack.c.l.b16 %v984
        %v3705 = vunpack.c.h.b16 %v984
        %v3706 = vunpack.c.l.b16 %v985
        %v3707 = vunpack.c.h.b16 %v985
        %v3708 = vunpack.c.l.b16 %v986
        %v3709 = vunpack.c.h.b16 %v986
        %v3710 = vunpack.c.l.b16 %v987
        %v3711 = vunpack.c.h.b16 %v987
        %v3712 = vunpack.c.l.b16 %v988
        %v3713 = vunpack.c.h.b16 %v988
        %v3714 = vunpack.c.l.b16 %v989
        %v3715 = vunpack.c.h.b16 %v989
        %v3716 = vunpack.c.l.b16 %v990
        %v3717 = vunpack.c.h.b16 %v990
        %v3718 = vunpack.c.l.b16 %v991
        %v3719 = vunpack.c.h.b16 %v991
        %v3720 = vunpack.c.l.b16 %v992
        %v3721 = vunpack.c.h.b16 %v992
        %v3722 = vunpack.c.l.b16 %v993
        %v3723 = vunpack.c.h.b16 %v993
        %v3724 = vunpack.c.l.b16 %v994
        %v3725 = vunpack.c.h.b16 %v994
        %v3726 = vunpack.c.l.b16 %v995
        %v3727 = vunpack.c.h.b16 %v995
        %v3728 = vunpack.c.l.b16 %v996
        %v3729 = vunpack.c.h.b16 %v996
        %v3730 = vunpack.c.l.b16 %v997
        %v3731 = vunpack.c.h.b16 %v997
        %v3732 = vunpack.c.l.b16 %v998
        %v3733 = vunpack.c.h.b16 %v998
        %v3734 = vunpack.c.l.b16 %v999
        %v3735 = vunpack.c.h.b16 %v999
        %v3736 = vunpack.c.l.b16 %v1000
        %v3737 = vunpack.c.h.b16 %v1000
        %v3738 = vunpack.c.l.b16 %v1001
        %v3739 = vunpack.c.h.b16 %v1001
        %v3740 = vunpack.c.l.b16 %v1002
        %v3741 = vunpack.c.h.b16 %v1002
        %v3742 = vunpack.c.l.b16 %v1003
        %v3743 = vunpack.c.h.b16 %v1003
        %v3744 = vunpack.c.l.b16 %v1004
        %v3745 = vunpack.c.h.b16 %v1004
        %v3746 = vunpack.c.l.b16 %v1005
        %v3747 = vunpack.c.h.b16 %v1005
        %v3748 = vunpack.c.l.b16 %v1006
        %v3749 = vunpack.c.h.b16 %v1006
        %v3750 = vunpack.c.l.b16 %v1007
        %v3751 = vunpack.c.h.b16 %v1007
        %v3752 = vunpack.c.l.b16 %v1008
        %v3753 = vunpack.c.h.b16 %v1008
        %v3754 = vunpack.c.l.b16 %v1009
        %v3755 = vunpack.c.h.b16 %v1009
        %v3756 = vunpack.c.l.b16 %v1010
        %v3757 = vunpack.c.h.b16 %v1010
        %v3758 = vunpack.c.l.b16 %v1011
        %v3759 = vunpack.c.h.b16 %v1011
        %v3760 = vunpack.c.l.b16 %v1012
        %v3761 = vunpack.c.h.b16 %v1012
        %v3762 = vunpack.c.l.b16 %v1013
        %v3763 = vunpack.c.h.b16 %v1013
        %v3764 = vunpack.c.l.b16 %v1014
        %v3765 = vunpack.c.h.b16 %v1014
        %v3766 = vunpack.c.l.b16 %v1015
        %v3767 = vunpack.c.h.b16 %v1015
        %v3768 = vunpack.c.l.b16 %v1016
        %v3769 = vunpack.c.h.b16 %v1016
        %v3770 = vunpack.c.l.b16 %v1017
        %v3771 = vunpack.c.h.b16 %v1017
        %v3772 = vunpack.c.l.b16 %v1018
        %v3773 = vunpack.c.h.b16 %v1018
        %v3774 = vunpack.c.l.b16 %v1019
        %v3775 = vunpack.c.h.b16 %v1019
        %v3776 = vunpack.c.l.b16 %v1020
        %v3777 = vunpack.c.h.b16 %v1020
        %v3778 = vunpack.c.l.b16 %v1021
        %v3779 = vunpack.c.h.b16 %v1021
        %v3780 = vunpack.c.l.b16 %v1022
        %v3781 = vunpack.c.h.b16 %v1022
        %v3782 = vunpack.c.l.b16 %v1023
        %v3783 = vunpack.c.h.b16 %v1023
        %v3784 = vunpack.c.l.b16 %v1024
        %v3785 = vunpack.c.h.b16 %v1024
        %v3786 = vunpack.c.l.b16 %v1025
        %v3787 = vunpack.c.h.b16 %v1025
        %v3788 = vunpack.c.l.b16 %v1026
        %v3789 = vunpack.c.h.b16 %v1026
        %v3790 = vunpack.c.l.b16 %v1027
        %v3791 = vunpack.c.h.b16 %v1027
        %v3792 = vunpack.c.l.b16 %v1028
        %v3793 = vunpack.c.h.b16 %v1028
        %v3794 = vunpack.c.l.b16 %v1029
        %v3795 = vunpack.c.h.b16 %v1029
        %v3796 = vunpack.c.l.b16 %v1030
        %v3797 = vunpack.c.h.b16 %v1030
        %v3798 = vunpack.c.l.b16 %v1031
        %v3799 = vunpack.c.h.b16 %v1031
        %v3800 = vunpack.c.l.b16 %v1032
        %v3801 = vunpack.c.h.b16 %v1032
        %v3802 = vunpack.c.l.b16 %v1033
        %v3803 = vunpack.c.h.b16 %v1033
        %v3804 = vunpack.c.l.b16 %v1034
        %v3805 = vunpack.c.h.b16 %v1034
        %v3806 = vunpack.c.l.b16 %v1035
        %v3807 = vunpack.c.h.b16 %v1035
        %v3808 = vunpack.c.l.b16 %v1036
        %v3809 = vunpack.c.h.b16 %v1036
        %v3810 = vunpack.c.l.b16 %v1037
        %v3811 = vunpack.c.h.b16 %v1037
        %v3812 = vunpack.c.l.b16 %v1038
        %v3813 = vunpack.c.h.b16 %v1038
        %v3814 = vunpack.c.l.b16 %v1039
        %v3815 = vunpack.c.h.b16 %v1039
        %v3816 = vunpack.c.l.b16 %v1040
        %v3817 = vunpack.c.h.b16 %v1040
        %v3818 = vunpack.c.l.b16 %v1041
        %v3819 = vunpack.c.h.b16 %v1041
        %v3820 = vunpack.c.l.b16 %v1042
        %v3821 = vunpack.c.h.b16 %v1042
        %v3822 = vunpack.c.l.b16 %v1043
        %v3823 = vunpack.c.h.b16 %v1043
        %v3824 = vunpack.c.l.b16 %v1044
        %v3825 = vunpack.c.h.b16 %v1044
        %v3826 = vunpack.c.l.b16 %v1045
        %v3827 = vunpack.c.h.b16 %v1045
        %v3828 = vunpack.c.l.b16 %v1046
        %v3829 = vunpack.c.h.b16 %v1046
        %v3830 = vunpack.c.l.b16 %v1047
        %v3831 = vunpack.c.h.b16 %v1047
        %v3832 = vunpack.c.l.b16 %v1048
        %v3833 = vunpack.c.h.b16 %v1048
        %v3834 = vunpack.c.l.b16 %v1049
        %v3835 = vunpack.c.h.b16 %v1049
        %v3836 = vunpack.c.l.b16 %v1050
        %v3837 = vunpack.c.h.b16 %v1050
        %v3838 = vunpack.c.l.b16 %v1051
        %v3839 = vunpack.c.h.b16 %v1051
        %v3840 = vunpack.c.l.b16 %v1052
        %v3841 = vunpack.c.h.b16 %v1052
        %v3842 = vunpack.c.l.b16 %v1053
        %v3843 = vunpack.c.h.b16 %v1053
        %v3844 = vunpack.c.l.b16 %v1054
        %v3845 = vunpack.c.h.b16 %v1054
        %v3846 = vunpack.c.l.b16 %v1055
        %v3847 = vunpack.c.h.b16 %v1055
        %v3848 = vunpack.c.l.b16 %v1056
        %v3849 = vunpack.c.h.b16 %v1056
        %v3850 = vunpack.c.l.b16 %v1057
        %v3851 = vunpack.c.h.b16 %v1057
        %v3852 = vunpack.c.l.b16 %v1058
        %v3853 = vunpack.c.h.b16 %v1058
        %v3854 = vunpack.c.l.b16 %v1059
        %v3855 = vunpack.c.h.b16 %v1059
        %v3856 = vunpack.c.l.b16 %v1060
        %v3857 = vunpack.c.h.b16 %v1060
        %v3858 = vunpack.c.l.b16 %v1061
        %v3859 = vunpack.c.h.b16 %v1061
        %v3860 = vunpack.c.l.b16 %v1062
        %v3861 = vunpack.c.h.b16 %v1062
        %v3862 = vunpack.c.l.b16 %v1063
        %v3863 = vunpack.c.h.b16 %v1063
        %v3864 = vunpack.c.l.b16 %v1064
        %v3865 = vunpack.c.h.b16 %v1064
        %v3866 = vunpack.c.l.b16 %v1065
        %v3867 = vunpack.c.h.b16 %v1065
        %v3868 = vunpack.c.l.b16 %v1066
        %v3869 = vunpack.c.h.b16 %v1066
        %v3870 = vunpack.c.l.b16 %v1067
        %v3871 = vunpack.c.h.b16 %v1067
        %v3872 = vunpack.c.l.b16 %v1068
        %v3873 = vunpack.c.h.b16 %v1068
        %v3874 = vunpack.c.l.b16 %v1069
        %v3875 = vunpack.c.h.b16 %v1069
        %v3876 = vunpack.c.l.b16 %v1070
        %v3877 = vunpack.c.h.b16 %v1070
        %v3878 = vunpack.c.l.b16 %v1071
        %v3879 = vunpack.c.h.b16 %v1071
        %v3880 = vunpack.c.l.b16 %v1072
        %v3881 = vunpack.c.h.b16 %v1072
        %v3882 = vunpack.c.l.b16 %v1073
        %v3883 = vunpack.c.h.b16 %v1073
        %v3884 = vunpack.c.l.b16 %v1074
        %v3885 = vunpack.c.h.b16 %v1074
        %v3886 = vunpack.c.l.b16 %v1075
        %v3887 = vunpack.c.h.b16 %v1075
        %v3888 = vunpack.c.l.b16 %v1076
        %v3889 = vunpack.c.h.b16 %v1076
        %v3890 = vunpack.c.l.b16 %v1077
        %v3891 = vunpack.c.h.b16 %v1077
        %v3892 = vunpack.c.l.b16 %v1078
        %v3893 = vunpack.c.h.b16 %v1078
        %v3894 = vunpack.c.l.b16 %v1079
        %v3895 = vunpack.c.h.b16 %v1079
        %v3896 = vunpack.c.l.b16 %v1080
        %v3897 = vunpack.c.h.b16 %v1080
        %v3898 = vunpack.c.l.b16 %v1081
        %v3899 = vunpack.c.h.b16 %v1081
        %v3900 = vunpack.c.l.b16 %v1082
        %v3901 = vunpack.c.h.b16 %v1082
        %v3902 = vunpack.c.l.b16 %v1083
        %v3903 = vunpack.c.h.b16 %v1083
        %v3904 = vunpack.c.l.b16 %v1084
        %v3905 = vunpack.c.h.b16 %v1084
        %v3906 = vunpack.c.l.b16 %v1085
        %v3907 = vunpack.c.h.b16 %v1085
        %v3908 = vunpack.c.l.b16 %v1086
        %v3909 = vunpack.c.h.b16 %v1086
        %v3910 = vunpack.c.l.b16 %v1087
        %v3911 = vunpack.c.h.b16 %v1087
        %v3912 = vunpack.c.l.b16 %v1088
        %v3913 = vunpack.c.h.b16 %v1088
        %v3914 = vunpack.c.l.b16 %v1089
        %v3915 = vunpack.c.h.b16 %v1089
        %v3916 = vunpack.c.l.b16 %v1090
        %v3917 = vunpack.c.h.b16 %v1090
        %v3918 = vunpack.c.l.b16 %v1091
        %v3919 = vunpack.c.h.b16 %v1091
        %v3920 = vunpack.c.l.b16 %v1092
        %v3921 = vunpack.c.h.b16 %v1092
        %v3922 = vunpack.c.l.b16 %v1093
        %v3923 = vunpack.c.h.b16 %v1093
        %v3924 = vunpack.c.l.b16 %v1094
        %v3925 = vunpack.c.h.b16 %v1094
        %v3926 = vunpack.c.l.b16 %v1095
        %v3927 = vunpack.c.h.b16 %v1095
        %v3928 = vunpack.c.l.b16 %v1096
        %v3929 = vunpack.c.h.b16 %v1096
        %v3930 = vunpack.c.l.b16 %v1097
        %v3931 = vunpack.c.h.b16 %v1097
        %v3932 = vunpack.c.l.b16 %v1098
        %v3933 = vunpack.c.h.b16 %v1098
        %v3934 = vunpack.c.l.b16 %v1099
        %v3935 = vunpack.c.h.b16 %v1099
        %v3936 = vunpack.c.l.b16 %v1100
        %v3937 = vunpack.c.h.b16 %v1100
        %v3938 = vunpack.c.l.b16 %v1101
        %v3939 = vunpack.c.h.b16 %v1101
        %v3940 = vunpack.c.l.b16 %v1102
        %v3941 = vunpack.c.h.b16 %v1102
        %v3942 = vunpack.c.l.b16 %v1103
        %v3943 = vunpack.c.h.b16 %v1103
        %v3944 = vunpack.c.l.b16 %v1104
        %v3945 = vunpack.c.h.b16 %v1104
        %v3946 = vunpack.c.l.b16 %v1105
        %v3947 = vunpack.c.h.b16 %v1105
        %v3948 = vunpack.c.l.b16 %v1106
        %v3949 = vunpack.c.h.b16 %v1106
        %v3950 = vunpack.c.l.b16 %v1107
        %v3951 = vunpack.c.h.b16 %v1107
        %v3952 = vunpack.c.l.b16 %v1108
        %v3953 = vunpack.c.h.b16 %v1108
        %v3954 = vunpack.c.l.b16 %v1109
        %v3955 = vunpack.c.h.b16 %v1109
        %v3956 = vunpack.c.l.b16 %v1110
        %v3957 = vunpack.c.h.b16 %v1110
        %v3958 = vunpack.c.l.b16 %v1111
        %v3959 = vunpack.c.h.b16 %v1111
        %v3960 = vunpack.c.l.b16 %v1112
        %v3961 = vunpack.c.h.b16 %v1112
        %v3962 = vunpack.c.l.b16 %v1113
        %v3963 = vunpack.c.h.b16 %v1113
        %v3964 = vunpack.c.l.b16 %v1114
        %v3965 = vunpack.c.h.b16 %v1114
        %v3966 = vunpack.c.l.b16 %v1115
        %v3967 = vunpack.c.h.b16 %v1115
        %v3968 = vunpack.c.l.b16 %v1116
        %v3969 = vunpack.c.h.b16 %v1116
        %v3970 = vunpack.c.l.b16 %v1117
        %v3971 = vunpack.c.h.b16 %v1117
        %v3972 = vunpack.c.l.b16 %v1118
        %v3973 = vunpack.c.h.b16 %v1118
        %v3974 = vunpack.c.l.b16 %v1119
        %v3975 = vunpack.c.h.b16 %v1119
        %v3976 = vunpack.c.l.b16 %v1120
        %v3977 = vunpack.c.h.b16 %v1120
        %v3978 = vunpack.c.l.b16 %v1121
        %v3979 = vunpack.c.h.b16 %v1121
        %v3980 = vunpack.c.l.b16 %v1122
        %v3981 = vunpack.c.h.b16 %v1122
        %v3982 = vunpack.c.l.b16 %v1123
        %v3983 = vunpack.c.h.b16 %v1123
        %v3984 = vunpack.c.l.b16 %v1124
        %v3985 = vunpack.c.h.b16 %v1124
        %v3986 = vunpack.c.l.b16 %v1125
        %v3987 = vunpack.c.h.b16 %v1125
        %v3988 = vunpack.c.l.b16 %v1126
        %v3989 = vunpack.c.h.b16 %v1126
        %v3990 = vunpack.c.l.b16 %v1127
        %v3991 = vunpack.c.h.b16 %v1127
        %v3992 = vunpack.c.l.b16 %v1128
        %v3993 = vunpack.c.h.b16 %v1128
        %v3994 = vunpack.c.l.b16 %v1129
        %v3995 = vunpack.c.h.b16 %v1129
        %v3996 = vunpack.c.l.b16 %v1130
        %v3997 = vunpack.c.h.b16 %v1130
        %v3998 = vunpack.c.l.b16 %v1131
        %v3999 = vunpack.c.h.b16 %v1131
        %v4000 = vunpack.c.l.b16 %v1132
        %v4001 = vunpack.c.h.b16 %v1132
        %v4002 = vunpack.c.l.b16 %v1133
        %v4003 = vunpack.c.h.b16 %v1133
        %v4004 = vunpack.c.l.b16 %v1134
        %v4005 = vunpack.c.h.b16 %v1134
        %v4006 = vunpack.c.l.b16 %v1135
        %v4007 = vunpack.c.h.b16 %v1135
        %v4008 = vunpack.c.l.b16 %v1136
        %v4009 = vunpack.c.h.b16 %v1136
        %v4010 = vunpack.c.l.b16 %v1137
        %v4011 = vunpack.c.h.b16 %v1137
        %v4012 = vunpack.c.l.b16 %v1138
        %v4013 = vunpack.c.h.b16 %v1138
        %v4014 = vunpack.c.l.b16 %v1139
        %v4015 = vunpack.c.h.b16 %v1139
        %v4016 = vunpack.c.l.b16 %v1140
        %v4017 = vunpack.c.h.b16 %v1140
        %v4018 = vunpack.c.l.b16 %v1141
        %v4019 = vunpack.c.h.b16 %v1141
        %v4020 = vunpack.c.l.b16 %v1142
        %v4021 = vunpack.c.h.b16 %v1142
        %v4022 = vunpack.c.l.b16 %v1143
        %v4023 = vunpack.c.h.b16 %v1143
        %v4024 = vunpack.c.l.b16 %v1144
        %v4025 = vunpack.c.h.b16 %v1144
        %v4026 = vunpack.c.l.b16 %v1145
        %v4027 = vunpack.c.h.b16 %v1145
        %v4028 = vunpack.c.l.b16 %v1146
        %v4029 = vunpack.c.h.b16 %v1146
        %v4030 = vunpack.c.l.b16 %v1147
        %v4031 = vunpack.c.h.b16 %v1147
        %v4032 = vunpack.c.l.b16 %v1148
        %v4033 = vunpack.c.h.b16 %v1148
        %v4034 = vunpack.c.l.b16 %v1149
        %v4035 = vunpack.c.h.b16 %v1149
        %v4036 = vunpack.c.l.b16 %v1150
        %v4037 = vunpack.c.h.b16 %v1150
        %v4038 = vunpack.c.l.b16 %v1151
        %v4039 = vunpack.c.h.b16 %v1151
        %v4040 = vunpack.c.l.b16 %v1152
        %v4041 = vunpack.c.h.b16 %v1152
        %v4042 = vunpack.c.l.b16 %v1153
        %v4043 = vunpack.c.h.b16 %v1153
        %v4044 = vunpack.c.l.b16 %v1154
        %v4045 = vunpack.c.h.b16 %v1154
        %v4046 = vunpack.c.l.b16 %v1155
        %v4047 = vunpack.c.h.b16 %v1155
        %v4048 = vunpack.c.l.b16 %v1156
        %v4049 = vunpack.c.h.b16 %v1156
        %v4050 = vunpack.c.l.b16 %v1157
        %v4051 = vunpack.c.h.b16 %v1157
        %v4052 = vunpack.c.l.b16 %v1158
        %v4053 = vunpack.c.h.b16 %v1158
        %v4054 = vunpack.c.l.b16 %v1159
        %v4055 = vunpack.c.h.b16 %v1159
        %v4056 = vunpack.c.l.b16 %v1160
        %v4057 = vunpack.c.h.b16 %v1160
        %v4058 = vunpack.c.l.b16 %v1161
        %v4059 = vunpack.c.h.b16 %v1161
        %v4060 = vunpack.c.l.b16 %v1162
        %v4061 = vunpack.c.h.b16 %v1162
        %v4062 = vunpack.c.l.b16 %v1163
        %v4063 = vunpack.c.h.b16 %v1163
        %v4064 = vunpack.c.l.b16 %v1164
        %v4065 = vunpack.c.h.b16 %v1164
        %v4066 = vunpack.c.l.b16 %v1165
        %v4067 = vunpack.c.h.b16 %v1165
        %v4068 = vunpack.c.l.b16 %v1166
        %v4069 = vunpack.c.h.b16 %v1166
        %v4070 = vunpack.c.l.b16 %v1167
        %v4071 = vunpack.c.h.b16 %v1167
        %v4072 = vunpack.c.l.b16 %v1168
        %v4073 = vunpack.c.h.b16 %v1168
        %v4074 = vunpack.c.l.b16 %v1169
        %v4075 = vunpack.c.h.b16 %v1169
        %v4076 = vunpack.c.l.b16 %v1170
        %v4077 = vunpack.c.h.b16 %v1170
        %v4078 = vunpack.c.l.b16 %v1171
        %v4079 = vunpack.c.h.b16 %v1171
        %v4080 = vunpack.c.l.b16 %v1172
        %v4081 = vunpack.c.h.b16 %v1172
        %v4082 = vunpack.c.l.b16 %v1173
        %v4083 = vunpack.c.h.b16 %v1173
        %v4084 = vunpack.c.l.b16 %v1174
        %v4085 = vunpack.c.h.b16 %v1174
        %v4086 = vunpack.c.l.b16 %v1175
        %v4087 = vunpack.c.h.b16 %v1175
        %v4088 = vunpack.c.l.b16 %v1176
        %v4089 = vunpack.c.h.b16 %v1176
        %v4090 = vunpack.c.l.b16 %v1177
        %v4091 = vunpack.c.h.b16 %v1177
        %v4092 = vunpack.c.l.b16 %v1178
        %v4093 = vunpack.c.h.b16 %v1178
        %v4094 = vunpack.c.l.b16 %v1179
        %v4095 = vunpack.c.h.b16 %v1179
        %v4096 = vunpack.c.l.b16 %v1180
        %v4097 = vunpack.c.h.b16 %v1180
        %v4098 = vunpack.c.l.b16 %v1181
        %v4099 = vunpack.c.h.b16 %v1181
        %v4100 = vunpack.c.l.b16 %v1182
        %v4101 = vunpack.c.h.b16 %v1182
        %v4102 = vunpack.c.l.b16 %v1183
        %v4103 = vunpack.c.h.b16 %v1183
        %v4104 = vunpack.c.l.b16 %v1184
        %v4105 = vunpack.c.h.b16 %v1184
        %v4106 = vunpack.c.l.b16 %v1185
        %v4107 = vunpack.c.h.b16 %v1185
        %v4108 = vunpack.c.l.b16 %v1186
        %v4109 = vunpack.c.h.b16 %v1186
        %v4110 = vunpack.c.l.b16 %v1187
        %v4111 = vunpack.c.h.b16 %v1187
        %v4112 = vunpack.c.l.b16 %v1188
        %v4113 = vunpack.c.h.b16 %v1188
        %v4114 = vunpack.c.l.b16 %v1189
        %v4115 = vunpack.c.h.b16 %v1189
        %v4116 = vunpack.c.l.b16 %v1190
        %v4117 = vunpack.c.h.b16 %v1190
        %v4118 = vunpack.c.l.b16 %v1191
        %v4119 = vunpack.c.h.b16 %v1191
        %v4120 = vunpack.c.l.b16 %v1192
        %v4121 = vunpack.c.h.b16 %v1192
        %v4122 = vunpack.c.l.b16 %v1193
        %v4123 = vunpack.c.h.b16 %v1193
        %v4124 = vunpack.c.l.b16 %v1194
        %v4125 = vunpack.c.h.b16 %v1194
        %v4126 = vunpack.c.l.b16 %v1195
        %v4127 = vunpack.c.h.b16 %v1195
        %v4128 = vunpack.c.l.b16 %v1196
        %v4129 = vunpack.c.h.b16 %v1196
        %v4130 = vunpack.c.l.b16 %v1197
        %v4131 = vunpack.c.h.b16 %v1197
        %v4132 = vunpack.c.l.b16 %v1198
        %v4133 = vunpack.c.h.b16 %v1198
        %v4134 = vunpack.c.l.b16 %v1199
        %v4135 = vunpack.c.h.b16 %v1199
        %v4136 = vunpack.c.l.b16 %v1200
        %v4137 = vunpack.c.h.b16 %v1200
        %v4138 = vunpack.c.l.b16 %v1201
        %v4139 = vunpack.c.h.b16 %v1201
        %v4140 = vunpack.c.l.b16 %v1202
        %v4141 = vunpack.c.h.b16 %v1202
        %v4142 = vunpack.c.l.b16 %v1203
        %v4143 = vunpack.c.h.b16 %v1203
        %v4144 = vunpack.c.l.b16 %v1204
        %v4145 = vunpack.c.h.b16 %v1204
        %v4146 = vunpack.c.l.b16 %v1205
        %v4147 = vunpack.c.h.b16 %v1205
        %v4148 = vunpack.c.l.b16 %v1206
        %v4149 = vunpack.c.h.b16 %v1206
        %v4150 = vunpack.c.l.b16 %v1207
        %v4151 = vunpack.c.h.b16 %v1207
        %v4152 = vunpack.c.l.b16 %v1208
        %v4153 = vunpack.c.h.b16 %v1208
        %v4154 = vunpack.c.l.b16 %v1209
        %v4155 = vunpack.c.h.b16 %v1209
        %v4156 = vunpack.c.l.b16 %v1210
        %v4157 = vunpack.c.h.b16 %v1210
        %v4158 = vunpack.c.l.b16 %v1211
        %v4159 = vunpack.c.h.b16 %v1211
        %v4160 = vunpack.c.l.b16 %v1212
        %v4161 = vunpack.c.h.b16 %v1212
        %v4162 = vunpack.c.l.b16 %v1213
        %v4163 = vunpack.c.h.b16 %v1213
        %v4164 = vunpack.c.l.b16 %v1214
        %v4165 = vunpack.c.h.b16 %v1214
        %v4166 = vunpack.c.l.b16 %v1215
        %v4167 = vunpack.c.h.b16 %v1215
        %v4168 = vunpack.c.l.b16 %v1216
        %v4169 = vunpack.c.h.b16 %v1216
        %v4170 = vunpack.c.l.b16 %v1217
        %v4171 = vunpack.c.h.b16 %v1217
        %v4172 = vunpack.c.l.b16 %v1218
        %v4173 = vunpack.c.h.b16 %v1218
        %v4174 = vunpack.c.l.b16 %v1219
        %v4175 = vunpack.c.h.b16 %v1219
        %v4176 = vunpack.c.l.b16 %v1220
        %v4177 = vunpack.c.h.b16 %v1220
        %v4178 = vunpack.c.l.b16 %v1221
        %v4179 = vunpack.c.h.b16 %v1221
        %v4180 = vunpack.c.l.b16 %v1222
        %v4181 = vunpack.c.h.b16 %v1222
        %v4182 = vunpack.c.l.b16 %v1223
        %v4183 = vunpack.c.h.b16 %v1223
        %v4184 = vunpack.c.l.b16 %v1224
        %v4185 = vunpack.c.h.b16 %v1224
        %v4186 = vunpack.c.l.b16 %v1225
        %v4187 = vunpack.c.h.b16 %v1225
        %v4188 = vunpack.c.l.b16 %v1226
        %v4189 = vunpack.c.h.b16 %v1226
        %v4190 = vunpack.c.l.b16 %v1227
        %v4191 = vunpack.c.h.b16 %v1227
        %v4192 = vunpack.c.l.b16 %v1228
        %v4193 = vunpack.c.h.b16 %v1228
        %v4194 = vunpack.c.l.b16 %v1229
        %v4195 = vunpack.c.h.b16 %v1229
        %v4196 = vunpack.c.l.b16 %v1230
        %v4197 = vunpack.c.h.b16 %v1230
        %v4198 = vunpack.c.l.b16 %v1231
        %v4199 = vunpack.c.h.b16 %v1231
        %v4200 = vunpack.c.l.b16 %v1232
        %v4201 = vunpack.c.h.b16 %v1232
        %v4202 = vunpack.c.l.b16 %v1233
        %v4203 = vunpack.c.h.b16 %v1233
        %v4204 = vunpack.c.l.b16 %v1234
        %v4205 = vunpack.c.h.b16 %v1234
        %v4206 = vunpack.c.l.b16 %v1235
        %v4207 = vunpack.c.h.b16 %v1235
        %v4208 = vunpack.c.l.b16 %v1236
        %v4209 = vunpack.c.h.b16 %v1236
        %v4210 = vunpack.c.l.b16 %v1237
        %v4211 = vunpack.c.h.b16 %v1237
        %v4212 = vunpack.c.l.b16 %v1238
        %v4213 = vunpack.c.h.b16 %v1238
        %v4214 = vunpack.c.l.b16 %v1239
        %v4215 = vunpack.c.h.b16 %v1239
        %v4216 = vunpack.c.l.b16 %v1240
        %v4217 = vunpack.c.h.b16 %v1240
        %v4218 = vunpack.c.l.b16 %v1241
        %v4219 = vunpack.c.h.b16 %v1241
        %v4220 = vunpack.c.l.b16 %v1242
        %v4221 = vunpack.c.h.b16 %v1242
        %v4222 = vunpack.c.l.b16 %v1243
        %v4223 = vunpack.c.h.b16 %v1243
        %v4224 = vunpack.c.l.b16 %v1244
        %v4225 = vunpack.c.h.b16 %v1244
        %v4226 = vunpack.c.l.b16 %v1245
        %v4227 = vunpack.c.h.b16 %v1245
        %v4228 = vunpack.c.l.b16 %v1246
        %v4229 = vunpack.c.h.b16 %v1246
        %v4230 = vunpack.c.l.b16 %v1247
        %v4231 = vunpack.c.h.b16 %v1247
        %v4232 = vunpack.c.l.b16 %v1248
        %v4233 = vunpack.c.h.b16 %v1248
        %v4234 = vunpack.c.l.b16 %v1249
        %v4235 = vunpack.c.h.b16 %v1249
        %v4236 = vunpack.c.l.b16 %v1250
        %v4237 = vunpack.c.h.b16 %v1250
        %v4238 = vunpack.c.l.b16 %v1251
        %v4239 = vunpack.c.h.b16 %v1251
        %v4240 = vunpack.c.l.b16 %v1252
        %v4241 = vunpack.c.h.b16 %v1252
        %v4242 = vunpack.c.l.b16 %v1253
        %v4243 = vunpack.c.h.b16 %v1253
        %v4244 = vunpack.c.l.b16 %v1254
        %v4245 = vunpack.c.h.b16 %v1254
        %v4246 = vunpack.c.l.b16 %v1255
        %v4247 = vunpack.c.h.b16 %v1255
        %v4248 = vunpack.c.l.b16 %v1256
        %v4249 = vunpack.c.h.b16 %v1256
        %v4250 = vunpack.c.l.b16 %v1257
        %v4251 = vunpack.c.h.b16 %v1257
        %v4252 = vunpack.c.l.b16 %v1258
        %v4253 = vunpack.c.h.b16 %v1258
        %v4254 = vunpack.c.l.b16 %v1259
        %v4255 = vunpack.c.h.b16 %v1259
        %v4256 = vunpack.c.l.b16 %v1260
        %v4257 = vunpack.c.h.b16 %v1260
        %v4258 = vunpack.c.l.b16 %v1261
        %v4259 = vunpack.c.h.b16 %v1261
        %v4260 = vunpack.c.l.b16 %v1262
        %v4261 = vunpack.c.h.b16 %v1262
        %v4262 = vunpack.c.l.b16 %v1263
        %v4263 = vunpack.c.h.b16 %v1263
        %v4264 = vunpack.c.l.b16 %v1264
        %v4265 = vunpack.c.h.b16 %v1264
        %v4266 = vunpack.c.l.b16 %v1265
        %v4267 = vunpack.c.h.b16 %v1265
        %v4268 = vunpack.c.l.b16 %v1266
        %v4269 = vunpack.c.h.b16 %v1266
        %v4270 = vunpack.c.l.b16 %v1267
        %v4271 = vunpack.c.h.b16 %v1267
        %v4272 = vunpack.c.l.b16 %v1268
        %v4273 = vunpack.c.h.b16 %v1268
        %v4274 = vunpack.c.l.b16 %v1269
        %v4275 = vunpack.c.h.b16 %v1269
        %v4276 = vunpack.c.l.b16 %v1270
        %v4277 = vunpack.c.h.b16 %v1270
        %v4278 = vunpack.c.l.b16 %v1271
        %v4279 = vunpack.c.h.b16 %v1271
        %v4280 = vunpack.c.l.b16 %v1272
        %v4281 = vunpack.c.h.b16 %v1272
        %v4282 = vunpack.c.l.b16 %v1273
        %v4283 = vunpack.c.h.b16 %v1273
        %v4284 = vunpack.c.l.b16 %v1274
        %v4285 = vunpack.c.h.b16 %v1274
        %v4286 = vunpack.c.l.b16 %v1275
        %v4287 = vunpack.c.h.b16 %v1275
        %v4288 = vunpack.c.l.b16 %v1276
        %v4289 = vunpack.c.h.b16 %v1276
        %v4290 = vunpack.c.l.b16 %v1277
        %v4291 = vunpack.c.h.b16 %v1277
        %v4292 = vunpack.c.l.b16 %v1278
        %v4293 = vunpack.c.h.b16 %v1278
        %v4294 = vunpack.c.l.b16 %v1279
        %v4295 = vunpack.c.h.b16 %v1279
        %v4296 = vunpack.c.l.b16 %v1280
        %v4297 = vunpack.c.h.b16 %v1280
        %v4298 = vunpack.c.l.b16 %v1281
        %v4299 = vunpack.c.h.b16 %v1281
        %v4300 = vunpack.c.l.b16 %v1282
        %v4301 = vunpack.c.h.b16 %v1282
        %v4302 = vunpack.c.l.b16 %v1283
        %v4303 = vunpack.c.h.b16 %v1283
        %v4304 = vunpack.c.l.b16 %v1284
        %v4305 = vunpack.c.h.b16 %v1284
        %v4306 = vunpack.c.l.b16 %v1285
        %v4307 = vunpack.c.h.b16 %v1285
        %v4308 = vunpack.c.l.b16 %v1286
        %v4309 = vunpack.c.h.b16 %v1286
        %v4310 = vunpack.c.l.b16 %v1287
        %v4311 = vunpack.c.h.b16 %v1287
        %v4312 = vunpack.c.l.b16 %v1288
        %v4313 = vunpack.c.h.b16 %v1288
        %v4314 = vunpack.c.l.b16 %v1289
        %v4315 = vunpack.c.h.b16 %v1289
        %v4316 = vunpack.c.l.b16 %v1290
        %v4317 = vunpack.c.h.b16 %v1290
        %v4318 = vunpack.c.l.b16 %v1291
        %v4319 = vunpack.c.h.b16 %v1291
        %v4320 = vunpack.c.l.b16 %v1292
        %v4321 = vunpack.c.h.b16 %v1292
        %v4322 = vunpack.c.l.b16 %v1293
        %v4323 = vunpack.c.h.b16 %v1293
        %v4324 = vunpack.c.l.b16 %v1294
        %v4325 = vunpack.c.h.b16 %v1294
        %v4326 = vunpack.c.l.b16 %v1295
        %v4327 = vunpack.c.h.b16 %v1295
        %v4328 = vunpack.c.l.b16 %v1296
        %v4329 = vunpack.c.h.b16 %v1296
        %v4330 = vunpack.c.l.b16 %v1297
        %v4331 = vunpack.c.h.b16 %v1297
        %v4332 = vunpack.c.l.b16 %v1298
        %v4333 = vunpack.c.h.b16 %v1298
        %v4334 = vunpack.c.l.b16 %v1299
        %v4335 = vunpack.c.h.b16 %v1299
        %v4336 = vunpack.c.l.b16 %v1300
        %v4337 = vunpack.c.h.b16 %v1300
        %v4338 = vunpack.c.l.b16 %v1301
        %v4339 = vunpack.c.h.b16 %v1301
        %v4340 = vunpack.c.l.b16 %v1302
        %v4341 = vunpack.c.h.b16 %v1302
        %v4342 = vunpack.c.l.b16 %v1303
        %v4343 = vunpack.c.h.b16 %v1303
        %v4344 = vunpack.c.l.b16 %v1304
        %v4345 = vunpack.c.h.b16 %v1304
        %v4346 = vunpack.c.l.b16 %v1305
        %v4347 = vunpack.c.h.b16 %v1305
        %v4348 = vunpack.c.l.b16 %v1306
        %v4349 = vunpack.c.h.b16 %v1306
        %v4350 = vunpack.c.l.b16 %v1307
        %v4351 = vunpack.c.h.b16 %v1307
        %v4352 = vunpack.c.l.b16 %v1308
        %v4353 = vunpack.c.h.b16 %v1308
        %v4354 = vunpack.c.l.b16 %v1309
        %v4355 = vunpack.c.h.b16 %v1309
        %v4356 = vunpack.c.l.b16 %v1310
        %v4357 = vunpack.c.h.b16 %v1310
        %v4358 = vunpack.c.l.b16 %v1311
        %v4359 = vunpack.c.h.b16 %v1311
        %v4360 = vunpack.c.l.b16 %v1312
        %v4361 = vunpack.c.h.b16 %v1312
        %v4362 = vunpack.c.l.b16 %v1313
        %v4363 = vunpack.c.h.b16 %v1313
        %v4364 = vunpack.c.l.b16 %v1314
        %v4365 = vunpack.c.h.b16 %v1314
        %v4366 = vunpack.c.l.b16 %v1315
        %v4367 = vunpack.c.h.b16 %v1315
        %v4368 = vunpack.c.l.b16 %v1316
        %v4369 = vunpack.c.h.b16 %v1316
        %v4370 = vunpack.c.l.b16 %v1317
        %v4371 = vunpack.c.h.b16 %v1317
        %v4372 = vunpack.c.l.b16 %v1318
        %v4373 = vunpack.c.h.b16 %v1318
        %v4374 = vunpack.c.l.b16 %v1319
        %v4375 = vunpack.c.h.b16 %v1319
        %v4376 = vunpack.c.l.b16 %v1320
        %v4377 = vunpack.c.h.b16 %v1320
        %v4378 = vunpack.c.l.b16 %v1321
        %v4379 = vunpack.c.h.b16 %v1321
        %v4380 = vunpack.c.l.b16 %v1322
        %v4381 = vunpack.c.h.b16 %v1322
        %v4382 = vunpack.c.l.b16 %v1323
        %v4383 = vunpack.c.h.b16 %v1323
        %v4384 = vunpack.c.l.b16 %v1324
        %v4385 = vunpack.c.h.b16 %v1324
        %v4386 = vunpack.c.l.b16 %v1325
        %v4387 = vunpack.c.h.b16 %v1325
        %v4388 = vunpack.c.l.b16 %v1326
        %v4389 = vunpack.c.h.b16 %v1326
        %v4390 = vunpack.c.l.b16 %v1327
        %v4391 = vunpack.c.h.b16 %v1327
        %v4392 = vunpack.c.l.b16 %v1328
        %v4393 = vunpack.c.h.b16 %v1328
        %v4394 = vunpack.c.l.b16 %v1329
        %v4395 = vunpack.c.h.b16 %v1329
        %v4396 = vunpack.c.l.b16 %v1330
        %v4397 = vunpack.c.h.b16 %v1330
        %v4398 = vunpack.c.l.b16 %v1331
        %v4399 = vunpack.c.h.b16 %v1331
        %v4400 = vunpack.c.l.b16 %v1332
        %v4401 = vunpack.c.h.b16 %v1332
        %v4402 = vunpack.c.l.b16 %v1333
        %v4403 = vunpack.c.h.b16 %v1333
        %v4404 = vunpack.c.l.b16 %v1334
        %v4405 = vunpack.c.h.b16 %v1334
        %v4406 = vunpack.c.l.b16 %v1335
        %v4407 = vunpack.c.h.b16 %v1335
        %v4408 = vpack.c.b16 %v2376, %v2360
        %v4409 = vpack.c.b16 %v2377, %v2361
        %v4410 = vpack.c.b16 %v2378, %v2362
        %v4411 = vpack.c.b16 %v2379, %v2363
        %v4412 = vpack.c.b16 %v2380, %v2364
        %v4413 = vpack.c.b16 %v2381, %v2365
        %v4414 = vpack.c.b16 %v2382, %v2366
        %v4415 = vpack.c.b16 %v2383, %v2367
        %v4416 = vpack.c.b16 %v2384, %v2368
        %v4417 = vpack.c.b16 %v2385, %v2369
        %v4418 = vpack.c.b16 %v2386, %v2370
        %v4419 = vpack.c.b16 %v2387, %v2371
        %v4420 = vpack.c.b16 %v2388, %v2372
        %v4421 = vpack.c.b16 %v2389, %v2373
        %v4422 = vpack.c.b16 %v2390, %v2374
        %v4423 = vpack.c.b16 %v2391, %v2375
        %v4424 = vpack.c.b16 %v2408, %v2392
        %v4425 = vpack.c.b16 %v2409, %v2393
        %v4426 = vpack.c.b16 %v2410, %v2394
        %v4427 = vpack.c.b16 %v2411, %v2395
        %v4428 = vpack.c.b16 %v2412, %v2396
        %v4429 = vpack.c.b16 %v2413, %v2397
        %v4430 = vpack.c.b16 %v2414, %v2398
        %v4431 = vpack.c.b16 %v2415, %v2399
        %v4432 = vpack.c.b16 %v2416, %v2400
        %v4433 = vpack.c.b16 %v2417, %v2401
        %v4434 = vpack.c.b16 %v2418, %v2402
        %v4435 = vpack.c.b16 %v2419, %v2403
        %v4436 = vpack.c.b16 %v2420, %v2404
        %v4437 = vpack.c.b16 %v2421, %v2405
        %v4438 = vpack.c.b16 %v2422, %v2406
        %v4439 = vpack.c.b16 %v2423, %v2407
        %v4440 = vpack.c.b16 %v2440, %v2424
        %v4441 = vpack.c.b16 %v2441, %v2425
        %v4442 = vpack.c.b16 %v2442, %v2426
        %v4443 = vpack.c.b16 %v2443, %v2427
        %v4444 = vpack.c.b16 %v2444, %v2428
        %v4445 = vpack.c.b16 %v2445, %v2429
        %v4446 = vpack.c.b16 %v2446, %v2430
        %v4447 = vpack.c.b16 %v2447, %v2431
        %v4448 = vpack.c.b16 %v2448, %v2432
        %v4449 = vpack.c.b16 %v2449, %v2433
        %v4450 = vpack.c.b16 %v2450, %v2434
        %v4451 = vpack.c.b16 %v2451, %v2435
        %v4452 = vpack.c.b16 %v2452, %v2436
        %v4453 = vpack.c.b16 %v2453, %v2437
        %v4454 = vpack.c.b16 %v2454, %v2438
        %v4455 = vpack.c.b16 %v2455, %v2439
        %v4456 = vpack.c.b16 %v2472, %v2456
        %v4457 = vpack.c.b16 %v2473, %v2457
        %v4458 = vpack.c.b16 %v2474, %v2458
        %v4459 = vpack.c.b16 %v2475, %v2459
        %v4460 = vpack.c.b16 %v2476, %v2460
        %v4461 = vpack.c.b16 %v2477, %v2461
        %v4462 = vpack.c.b16 %v2478, %v2462
        %v4463 = vpack.c.b16 %v2479, %v2463
        %v4464 = vpack.c.b16 %v2480, %v2464
        %v4465 = vpack.c.b16 %v2481, %v2465
        %v4466 = vpack.c.b16 %v2482, %v2466
        %v4467 = vpack.c.b16 %v2483, %v2467
        %v4468 = vpack.c.b16 %v2484, %v2468
        %v4469 = vpack.c.b16 %v2485, %v2469
        %v4470 = vpack.c.b16 %v2486, %v2470
        %v4471 = vpack.c.b16 %v2487, %v2471
        %v4472 = vpack.c.b16 %v2504, %v2488
        %v4473 = vpack.c.b16 %v2505, %v2489
        %v4474 = vpack.c.b16 %v2506, %v2490
        %v4475 = vpack.c.b16 %v2507, %v2491
        %v4476 = vpack.c.b16 %v2508, %v2492
        %v4477 = vpack.c.b16 %v2509, %v2493
        %v4478 = vpack.c.b16 %v2510, %v2494
        %v4479 = vpack.c.b16 %v2511, %v2495
        %v4480 = vpack.c.b16 %v2512, %v2496
        %v4481 = vpack.c.b16 %v2513, %v2497
        %v4482 = vpack.c.b16 %v2514, %v2498
        %v4483 = vpack.c.b16 %v2515, %v2499
        %v4484 = vpack.c.b16 %v2516, %v2500
        %v4485 = vpack.c.b16 %v2517, %v2501
        %v4486 = vpack.c.b16 %v2518, %v2502
        %v4487 = vpack.c.b16 %v2519, %v2503
        %v4488 = vpack.c.b16 %v2536, %v2520
        %v4489 = vpack.c.b16 %v2537, %v2521
        %v4490 = vpack.c.b16 %v2538, %v2522
        %v4491 = vpack.c.b16 %v2539, %v2523
        %v4492 = vpack.c.b16 %v2540, %v2524
        %v4493 = vpack.c.b16 %v2541, %v2525
        %v4494 = vpack.c.b16 %v2542, %v2526
        %v4495 = vpack.c.b16 %v2543, %v2527
        %v4496 = vpack.c.b16 %v2544, %v2528
        %v4497 = vpack.c.b16 %v2545, %v2529
        %v4498 = vpack.c.b16 %v2546, %v2530
        %v4499 = vpack.c.b16 %v2547, %v2531
        %v4500 = vpack.c.b16 %v2548, %v2532
        %v4501 = vpack.c.b16 %v2549, %v2533
        %v4502 = vpack.c.b16 %v2550, %v2534
        %v4503 = vpack.c.b16 %v2551, %v2535
        %v4504 = vpack.c.b16 %v2568, %v2552
        %v4505 = vpack.c.b16 %v2569, %v2553
        %v4506 = vpack.c.b16 %v2570, %v2554
        %v4507 = vpack.c.b16 %v2571, %v2555
        %v4508 = vpack.c.b16 %v2572, %v2556
        %v4509 = vpack.c.b16 %v2573, %v2557
        %v4510 = vpack.c.b16 %v2574, %v2558
        %v4511 = vpack.c.b16 %v2575, %v2559
        %v4512 = vpack.c.b16 %v2576, %v2560
        %v4513 = vpack.c.b16 %v2577, %v2561
        %v4514 = vpack.c.b16 %v2578, %v2562
        %v4515 = vpack.c.b16 %v2579, %v2563
        %v4516 = vpack.c.b16 %v2580, %v2564
        %v4517 = vpack.c.b16 %v2581, %v2565
        %v4518 = vpack.c.b16 %v2582, %v2566
        %v4519 = vpack.c.b16 %v2583, %v2567
        %v4520 = vpack.c.b16 %v2600, %v2584
        %v4521 = vpack.c.b16 %v2601, %v2585
        %v4522 = vpack.c.b16 %v2602, %v2586
        %v4523 = vpack.c.b16 %v2603, %v2587
        %v4524 = vpack.c.b16 %v2604, %v2588
        %v4525 = vpack.c.b16 %v2605, %v2589
        %v4526 = vpack.c.b16 %v2606, %v2590
        %v4527 = vpack.c.b16 %v2607, %v2591
        %v4528 = vpack.c.b16 %v2608, %v2592
        %v4529 = vpack.c.b16 %v2609, %v2593
        %v4530 = vpack.c.b16 %v2610, %v2594
        %v4531 = vpack.c.b16 %v2611, %v2595
        %v4532 = vpack.c.b16 %v2612, %v2596
        %v4533 = vpack.c.b16 %v2613, %v2597
        %v4534 = vpack.c.b16 %v2614, %v2598
        %v4535 = vpack.c.b16 %v2615, %v2599
        %v4536 = vpack.c.b16 %v2632, %v2616
        %v4537 = vpack.c.b16 %v2633, %v2617
        %v4538 = vpack.c.b16 %v2634, %v2618
        %v4539 = vpack.c.b16 %v2635, %v2619
        %v4540 = vpack.c.b16 %v2636, %v2620
        %v4541 = vpack.c.b16 %v2637, %v2621
        %v4542 = vpack.c.b16 %v2638, %v2622
        %v4543 = vpack.c.b16 %v2639, %v2623
        %v4544 = vpack.c.b16 %v2640, %v2624
        %v4545 = vpack.c.b16 %v2641, %v2625
        %v4546 = vpack.c.b16 %v2642, %v2626
        %v4547 = vpack.c.b16 %v2643, %v2627
        %v4548 = vpack.c.b16 %v2644, %v2628
        %v4549 = vpack.c.b16 %v2645, %v2629
        %v4550 = vpack.c.b16 %v2646, %v2630
        %v4551 = vpack.c.b16 %v2647, %v2631
        %v4552 = vpack.c.b16 %v2664, %v2648
        %v4553 = vpack.c.b16 %v2665, %v2649
        %v4554 = vpack.c.b16 %v2666, %v2650
        %v4555 = vpack.c.b16 %v2667, %v2651
        %v4556 = vpack.c.b16 %v2668, %v2652
        %v4557 = vpack.c.b16 %v2669, %v2653
        %v4558 = vpack.c.b16 %v2670, %v2654
        %v4559 = vpack.c.b16 %v2671, %v2655
        %v4560 = vpack.c.b16 %v2672, %v2656
        %v4561 = vpack.c.b16 %v2673, %v2657
        %v4562 = vpack.c.b16 %v2674, %v2658
        %v4563 = vpack.c.b16 %v2675, %v2659
        %v4564 = vpack.c.b16 %v2676, %v2660
        %v4565 = vpack.c.b16 %v2677, %v2661
        %v4566 = vpack.c.b16 %v2678, %v2662
        %v4567 = vpack.c.b16 %v2679, %v2663
        %v4568 = vpack.c.b16 %v2696, %v2680
        %v4569 = vpack.c.b16 %v2697, %v2681
        %v4570 = vpack.c.b16 %v2698, %v2682
        %v4571 = vpack.c.b16 %v2699, %v2683
        %v4572 = vpack.c.b16 %v2700, %v2684
        %v4573 = vpack.c.b16 %v2701, %v2685
        %v4574 = vpack.c.b16 %v2702, %v2686
        %v4575 = vpack.c.b16 %v2703, %v2687
        %v4576 = vpack.c.b16 %v2704, %v2688
        %v4577 = vpack.c.b16 %v2705, %v2689
        %v4578 = vpack.c.b16 %v2706, %v2690
        %v4579 = vpack.c.b16 %v2707, %v2691
        %v4580 = vpack.c.b16 %v2708, %v2692
        %v4581 = vpack.c.b16 %v2709, %v2693
        %v4582 = vpack.c.b16 %v2710, %v2694
        %v4583 = vpack.c.b16 %v2711, %v2695
        %v4584 = vpack.c.b16 %v2728, %v2712
        %v4585 = vpack.c.b16 %v2729, %v2713
        %v4586 = vpack.c.b16 %v2730, %v2714
        %v4587 = vpack.c.b16 %v2731, %v2715
        %v4588 = vpack.c.b16 %v2732, %v2716
        %v4589 = vpack.c.b16 %v2733, %v2717
        %v4590 = vpack.c.b16 %v2734, %v2718
        %v4591 = vpack.c.b16 %v2735, %v2719
        %v4592 = vpack.c.b16 %v2736, %v2720
        %v4593 = vpack.c.b16 %v2737, %v2721
        %v4594 = vpack.c.b16 %v2738, %v2722
        %v4595 = vpack.c.b16 %v2739, %v2723
        %v4596 = vpack.c.b16 %v2740, %v2724
        %v4597 = vpack.c.b16 %v2741, %v2725
        %v4598 = vpack.c.b16 %v2742, %v2726
        %v4599 = vpack.c.b16 %v2743, %v2727
        %v4600 = vpack.c.b16 %v2760, %v2744
        %v4601 = vpack.c.b16 %v2761, %v2745
        %v4602 = vpack.c.b16 %v2762, %v2746
        %v4603 = vpack.c.b16 %v2763, %v2747
        %v4604 = vpack.c.b16 %v2764, %v2748
        %v4605 = vpack.c.b16 %v2765, %v2749
        %v4606 = vpack.c.b16 %v2766, %v2750
        %v4607 = vpack.c.b16 %v2767, %v2751
        %v4608 = vpack.c.b16 %v2768, %v2752
        %v4609 = vpack.c.b16 %v2769, %v2753
        %v4610 = vpack.c.b16 %v2770, %v2754
        %v4611 = vpack.c.b16 %v2771, %v2755
        %v4612 = vpack.c.b16 %v2772, %v2756
        %v4613 = vpack.c.b16 %v2773, %v2757
        %v4614 = vpack.c.b16 %v2774, %v2758
        %v4615 = vpack.c.b16 %v2775, %v2759
        %v4616 = vpack.c.b16 %v2792, %v2776
        %v4617 = vpack.c.b16 %v2793, %v2777
        %v4618 = vpack.c.b16 %v2794, %v2778
        %v4619 = vpack.c.b16 %v2795, %v2779
        %v4620 = vpack.c.b16 %v2796, %v2780
        %v4621 = vpack.c.b16 %v2797, %v2781
        %v4622 = vpack.c.b16 %v2798, %v2782
        %v4623 = vpack.c.b16 %v2799, %v2783
        %v4624 = vpack.c.b16 %v2800, %v2784
        %v4625 = vpack.c.b16 %v2801, %v2785
        %v4626 = vpack.c.b16 %v2802, %v2786
        %v4627 = vpack.c.b16 %v2803, %v2787
        %v4628 = vpack.c.b16 %v2804, %v2788
        %v4629 = vpack.c.b16 %v2805, %v2789
        %v4630 = vpack.c.b16 %v2806, %v2790
        %v4631 = vpack.c.b16 %v2807, %v2791
        %v4632 = vpack.c.b16 %v2824, %v2808
        %v4633 = vpack.c.b16 %v2825, %v2809
        %v4634 = vpack.c.b16 %v2826, %v2810
        %v4635 = vpack.c.b16 %v2827, %v2811
        %v4636 = vpack.c.b16 %v2828, %v2812
        %v4637 = vpack.c.b16 %v2829, %v2813
        %v4638 = vpack.c.b16 %v2830, %v2814
        %v4639 = vpack.c.b16 %v2831, %v2815
        %v4640 = vpack.c.b16 %v2832, %v2816
        %v4641 = vpack.c.b16 %v2833, %v2817
        %v4642 = vpack.c.b16 %v2834, %v2818
        %v4643 = vpack.c.b16 %v2835, %v2819
        %v4644 = vpack.c.b16 %v2836, %v2820
        %v4645 = vpack.c.b16 %v2837, %v2821
        %v4646 = vpack.c.b16 %v2838, %v2822
        %v4647 = vpack.c.b16 %v2839, %v2823
        %v4648 = vpack.c.b16 %v2856, %v2840
        %v4649 = vpack.c.b16 %v2857, %v2841
        %v4650 = vpack.c.b16 %v2858, %v2842
        %v4651 = vpack.c.b16 %v2859, %v2843
        %v4652 = vpack.c.b16 %v2860, %v2844
        %v4653 = vpack.c.b16 %v2861, %v2845
        %v4654 = vpack.c.b16 %v2862, %v2846
        %v4655 = vpack.c.b16 %v2863, %v2847
        %v4656 = vpack.c.b16 %v2864, %v2848
        %v4657 = vpack.c.b16 %v2865, %v2849
        %v4658 = vpack.c.b16 %v2866, %v2850
        %v4659 = vpack.c.b16 %v2867, %v2851
        %v4660 = vpack.c.b16 %v2868, %v2852
        %v4661 = vpack.c.b16 %v2869, %v2853
        %v4662 = vpack.c.b16 %v2870, %v2854
        %v4663 = vpack.c.b16 %v2871, %v2855
        %v4664 = vpack.c.b16 %v2888, %v2872
        %v4665 = vpack.c.b16 %v2889, %v2873
        %v4666 = vpack.c.b16 %v2890, %v2874
        %v4667 = vpack.c.b16 %v2891, %v2875
        %v4668 = vpack.c.b16 %v2892, %v2876
        %v4669 = vpack.c.b16 %v2893, %v2877
        %v4670 = vpack.c.b16 %v2894, %v2878
        %v4671 = vpack.c.b16 %v2895, %v2879
        %v4672 = vpack.c.b16 %v2896, %v2880
        %v4673 = vpack.c.b16 %v2897, %v2881
        %v4674 = vpack.c.b16 %v2898, %v2882
        %v4675 = vpack.c.b16 %v2899, %v2883
        %v4676 = vpack.c.b16 %v2900, %v2884
        %v4677 = vpack.c.b16 %v2901, %v2885
        %v4678 = vpack.c.b16 %v2902, %v2886
        %v4679 = vpack.c.b16 %v2903, %v2887
        %v4680 = vpack.c.b16 %v2920, %v2904
        %v4681 = vpack.c.b16 %v2921, %v2905
        %v4682 = vpack.c.b16 %v2922, %v2906
        %v4683 = vpack.c.b16 %v2923, %v2907
        %v4684 = vpack.c.b16 %v2924, %v2908
        %v4685 = vpack.c.b16 %v2925, %v2909
        %v4686 = vpack.c.b16 %v2926, %v2910
        %v4687 = vpack.c.b16 %v2927, %v2911
        %v4688 = vpack.c.b16 %v2928, %v2912
        %v4689 = vpack.c.b16 %v2929, %v2913
        %v4690 = vpack.c.b16 %v2930, %v2914
        %v4691 = vpack.c.b16 %v2931, %v2915
        %v4692 = vpack.c.b16 %v2932, %v2916
        %v4693 = vpack.c.b16 %v2933, %v2917
        %v4694 = vpack.c.b16 %v2934, %v2918
        %v4695 = vpack.c.b16 %v2935, %v2919
        %v4696 = vpack.c.b16 %v2952, %v2936
        %v4697 = vpack.c.b16 %v2953, %v2937
        %v4698 = vpack.c.b16 %v2954, %v2938
        %v4699 = vpack.c.b16 %v2955, %v2939
        %v4700 = vpack.c.b16 %v2956, %v2940
        %v4701 = vpack.c.b16 %v2957, %v2941
        %v4702 = vpack.c.b16 %v2958, %v2942
        %v4703 = vpack.c.b16 %v2959, %v2943
        %v4704 = vpack.c.b16 %v2960, %v2944
        %v4705 = vpack.c.b16 %v2961, %v2945
        %v4706 = vpack.c.b16 %v2962, %v2946
        %v4707 = vpack.c.b16 %v2963, %v2947
        %v4708 = vpack.c.b16 %v2964, %v2948
        %v4709 = vpack.c.b16 %v2965, %v2949
        %v4710 = vpack.c.b16 %v2966, %v2950
        %v4711 = vpack.c.b16 %v2967, %v2951
        %v4712 = vpack.c.b16 %v2984, %v2968
        %v4713 = vpack.c.b16 %v2985, %v2969
        %v4714 = vpack.c.b16 %v2986, %v2970
        %v4715 = vpack.c.b16 %v2987, %v2971
        %v4716 = vpack.c.b16 %v2988, %v2972
        %v4717 = vpack.c.b16 %v2989, %v2973
        %v4718 = vpack.c.b16 %v2990, %v2974
        %v4719 = vpack.c.b16 %v2991, %v2975
        %v4720 = vpack.c.b16 %v2992, %v2976
        %v4721 = vpack.c.b16 %v2993, %v2977
        %v4722 = vpack.c.b16 %v2994, %v2978
        %v4723 = vpack.c.b16 %v2995, %v2979
        %v4724 = vpack.c.b16 %v2996, %v2980
        %v4725 = vpack.c.b16 %v2997, %v2981
        %v4726 = vpack.c.b16 %v2998, %v2982
        %v4727 = vpack.c.b16 %v2999, %v2983
        %v4728 = vpack.c.b16 %v3016, %v3000
        %v4729 = vpack.c.b16 %v3017, %v3001
        %v4730 = vpack.c.b16 %v3018, %v3002
        %v4731 = vpack.c.b16 %v3019, %v3003
        %v4732 = vpack.c.b16 %v3020, %v3004
        %v4733 = vpack.c.b16 %v3021, %v3005
        %v4734 = vpack.c.b16 %v3022, %v3006
        %v4735 = vpack.c.b16 %v3023, %v3007
        %v4736 = vpack.c.b16 %v3024, %v3008
        %v4737 = vpack.c.b16 %v3025, %v3009
        %v4738 = vpack.c.b16 %v3026, %v3010
        %v4739 = vpack.c.b16 %v3027, %v3011
        %v4740 = vpack.c.b16 %v3028, %v3012
        %v4741 = vpack.c.b16 %v3029, %v3013
        %v4742 = vpack.c.b16 %v3030, %v3014
        %v4743 = vpack.c.b16 %v3031, %v3015
        %v4744 = vpack.c.b16 %v3048, %v3032
        %v4745 = vpack.c.b16 %v3049, %v3033
        %v4746 = vpack.c.b16 %v3050, %v3034
        %v4747 = vpack.c.b16 %v3051, %v3035
        %v4748 = vpack.c.b16 %v3052, %v3036
        %v4749 = vpack.c.b16 %v3053, %v3037
        %v4750 = vpack.c.b16 %v3054, %v3038
        %v4751 = vpack.c.b16 %v3055, %v3039
        %v4752 = vpack.c.b16 %v3056, %v3040
        %v4753 = vpack.c.b16 %v3057, %v3041
        %v4754 = vpack.c.b16 %v3058, %v3042
        %v4755 = vpack.c.b16 %v3059, %v3043
        %v4756 = vpack.c.b16 %v3060, %v3044
        %v4757 = vpack.c.b16 %v3061, %v3045
        %v4758 = vpack.c.b16 %v3062, %v3046
        %v4759 = vpack.c.b16 %v3063, %v3047
        %v4760 = vpack.c.b16 %v3080, %v3064
        %v4761 = vpack.c.b16 %v3081, %v3065
        %v4762 = vpack.c.b16 %v3082, %v3066
        %v4763 = vpack.c.b16 %v3083, %v3067
        %v4764 = vpack.c.b16 %v3084, %v3068
        %v4765 = vpack.c.b16 %v3085, %v3069
        %v4766 = vpack.c.b16 %v3086, %v3070
        %v4767 = vpack.c.b16 %v3087, %v3071
        %v4768 = vpack.c.b16 %v3088, %v3072
        %v4769 = vpack.c.b16 %v3089, %v3073
        %v4770 = vpack.c.b16 %v3090, %v3074
        %v4771 = vpack.c.b16 %v3091, %v3075
        %v4772 = vpack.c.b16 %v3092, %v3076
        %v4773 = vpack.c.b16 %v3093, %v3077
        %v4774 = vpack.c.b16 %v3094, %v3078
        %v4775 = vpack.c.b16 %v3095, %v3079
        %v4776 = vpack.c.b16 %v3112, %v3096
        %v4777 = vpack.c.b16 %v3113, %v3097
        %v4778 = vpack.c.b16 %v3114, %v3098
        %v4779 = vpack.c.b16 %v3115, %v3099
        %v4780 = vpack.c.b16 %v3116, %v3100
        %v4781 = vpack.c.b16 %v3117, %v3101
        %v4782 = vpack.c.b16 %v3118, %v3102
        %v4783 = vpack.c.b16 %v3119, %v3103
        %v4784 = vpack.c.b16 %v3120, %v3104
        %v4785 = vpack.c.b16 %v3121, %v3105
        %v4786 = vpack.c.b16 %v3122, %v3106
        %v4787 = vpack.c.b16 %v3123, %v3107
        %v4788 = vpack.c.b16 %v3124, %v3108
        %v4789 = vpack.c.b16 %v3125, %v3109
        %v4790 = vpack.c.b16 %v3126, %v3110
        %v4791 = vpack.c.b16 %v3127, %v3111
        %v4792 = vpack.c.b16 %v3144, %v3128
        %v4793 = vpack.c.b16 %v3145, %v3129
        %v4794 = vpack.c.b16 %v3146, %v3130
        %v4795 = vpack.c.b16 %v3147, %v3131
        %v4796 = vpack.c.b16 %v3148, %v3132
        %v4797 = vpack.c.b16 %v3149, %v3133
        %v4798 = vpack.c.b16 %v3150, %v3134
        %v4799 = vpack.c.b16 %v3151, %v3135
        %v4800 = vpack.c.b16 %v3152, %v3136
        %v4801 = vpack.c.b16 %v3153, %v3137
        %v4802 = vpack.c.b16 %v3154, %v3138
        %v4803 = vpack.c.b16 %v3155, %v3139
        %v4804 = vpack.c.b16 %v3156, %v3140
        %v4805 = vpack.c.b16 %v3157, %v3141
        %v4806 = vpack.c.b16 %v3158, %v3142
        %v4807 = vpack.c.b16 %v3159, %v3143
        %v4808 = vpack.c.b16 %v3176, %v3160
        %v4809 = vpack.c.b16 %v3177, %v3161
        %v4810 = vpack.c.b16 %v3178, %v3162
        %v4811 = vpack.c.b16 %v3179, %v3163
        %v4812 = vpack.c.b16 %v3180, %v3164
        %v4813 = vpack.c.b16 %v3181, %v3165
        %v4814 = vpack.c.b16 %v3182, %v3166
        %v4815 = vpack.c.b16 %v3183, %v3167
        %v4816 = vpack.c.b16 %v3184, %v3168
        %v4817 = vpack.c.b16 %v3185, %v3169
        %v4818 = vpack.c.b16 %v3186, %v3170
        %v4819 = vpack.c.b16 %v3187, %v3171
        %v4820 = vpack.c.b16 %v3188, %v3172
        %v4821 = vpack.c.b16 %v3189, %v3173
        %v4822 = vpack.c.b16 %v3190, %v3174
        %v4823 = vpack.c.b16 %v3191, %v3175
        %v4824 = vpack.c.b16 %v3208, %v3192
        %v4825 = vpack.c.b16 %v3209, %v3193
        %v4826 = vpack.c.b16 %v3210, %v3194
        %v4827 = vpack.c.b16 %v3211, %v3195
        %v4828 = vpack.c.b16 %v3212, %v3196
        %v4829 = vpack.c.b16 %v3213, %v3197
        %v4830 = vpack.c.b16 %v3214, %v3198
        %v4831 = vpack.c.b16 %v3215, %v3199
        %v4832 = vpack.c.b16 %v3216, %v3200
        %v4833 = vpack.c.b16 %v3217, %v3201
        %v4834 = vpack.c.b16 %v3218, %v3202
        %v4835 = vpack.c.b16 %v3219, %v3203
        %v4836 = vpack.c.b16 %v3220, %v3204
        %v4837 = vpack.c.b16 %v3221, %v3205
        %v4838 = vpack.c.b16 %v3222, %v3206
        %v4839 = vpack.c.b16 %v3223, %v3207
        %v4840 = vpack.c.b16 %v3240, %v3224
        %v4841 = vpack.c.b16 %v3241, %v3225
        %v4842 = vpack.c.b16 %v3242, %v3226
        %v4843 = vpack.c.b16 %v3243, %v3227
        %v4844 = vpack.c.b16 %v3244, %v3228
        %v4845 = vpack.c.b16 %v3245, %v3229
        %v4846 = vpack.c.b16 %v3246, %v3230
        %v4847 = vpack.c.b16 %v3247, %v3231
        %v4848 = vpack.c.b16 %v3248, %v3232
        %v4849 = vpack.c.b16 %v3249, %v3233
        %v4850 = vpack.c.b16 %v3250, %v3234
        %v4851 = vpack.c.b16 %v3251, %v3235
        %v4852 = vpack.c.b16 %v3252, %v3236
        %v4853 = vpack.c.b16 %v3253, %v3237
        %v4854 = vpack.c.b16 %v3254, %v3238
        %v4855 = vpack.c.b16 %v3255, %v3239
        %v4856 = vpack.c.b16 %v3272, %v3256
        %v4857 = vpack.c.b16 %v3273, %v3257
        %v4858 = vpack.c.b16 %v3274, %v3258
        %v4859 = vpack.c.b16 %v3275, %v3259
        %v4860 = vpack.c.b16 %v3276, %v3260
        %v4861 = vpack.c.b16 %v3277, %v3261
        %v4862 = vpack.c.b16 %v3278, %v3262
        %v4863 = vpack.c.b16 %v3279, %v3263
        %v4864 = vpack.c.b16 %v3280, %v3264
        %v4865 = vpack.c.b16 %v3281, %v3265
        %v4866 = vpack.c.b16 %v3282, %v3266
        %v4867 = vpack.c.b16 %v3283, %v3267
        %v4868 = vpack.c.b16 %v3284, %v3268
        %v4869 = vpack.c.b16 %v3285, %v3269
        %v4870 = vpack.c.b16 %v3286, %v3270
        %v4871 = vpack.c.b16 %v3287, %v3271
        %v4872 = vpack.c.b16 %v3304, %v3288
        %v4873 = vpack.c.b16 %v3305, %v3289
        %v4874 = vpack.c.b16 %v3306, %v3290
        %v4875 = vpack.c.b16 %v3307, %v3291
        %v4876 = vpack.c.b16 %v3308, %v3292
        %v4877 = vpack.c.b16 %v3309, %v3293
        %v4878 = vpack.c.b16 %v3310, %v3294
        %v4879 = vpack.c.b16 %v3311, %v3295
        %v4880 = vpack.c.b16 %v3312, %v3296
        %v4881 = vpack.c.b16 %v3313, %v3297
        %v4882 = vpack.c.b16 %v3314, %v3298
        %v4883 = vpack.c.b16 %v3315, %v3299
        %v4884 = vpack.c.b16 %v3316, %v3300
        %v4885 = vpack.c.b16 %v3317, %v3301
        %v4886 = vpack.c.b16 %v3318, %v3302
        %v4887 = vpack.c.b16 %v3319, %v3303
        %v4888 = vpack.c.b16 %v3336, %v3320
        %v4889 = vpack.c.b16 %v3337, %v3321
        %v4890 = vpack.c.b16 %v3338, %v3322
        %v4891 = vpack.c.b16 %v3339, %v3323
        %v4892 = vpack.c.b16 %v3340, %v3324
        %v4893 = vpack.c.b16 %v3341, %v3325
        %v4894 = vpack.c.b16 %v3342, %v3326
        %v4895 = vpack.c.b16 %v3343, %v3327
        %v4896 = vpack.c.b16 %v3344, %v3328
        %v4897 = vpack.c.b16 %v3345, %v3329
        %v4898 = vpack.c.b16 %v3346, %v3330
        %v4899 = vpack.c.b16 %v3347, %v3331
        %v4900 = vpack.c.b16 %v3348, %v3332
        %v4901 = vpack.c.b16 %v3349, %v3333
        %v4902 = vpack.c.b16 %v3350, %v3334
        %v4903 = vpack.c.b16 %v3351, %v3335
        %v4904 = vpack.c.b16 %v3368, %v3352
        %v4905 = vpack.c.b16 %v3369, %v3353
        %v4906 = vpack.c.b16 %v3370, %v3354
        %v4907 = vpack.c.b16 %v3371, %v3355
        %v4908 = vpack.c.b16 %v3372, %v3356
        %v4909 = vpack.c.b16 %v3373, %v3357
        %v4910 = vpack.c.b16 %v3374, %v3358
        %v4911 = vpack.c.b16 %v3375, %v3359
        %v4912 = vpack.c.b16 %v3376, %v3360
        %v4913 = vpack.c.b16 %v3377, %v3361
        %v4914 = vpack.c.b16 %v3378, %v3362
        %v4915 = vpack.c.b16 %v3379, %v3363
        %v4916 = vpack.c.b16 %v3380, %v3364
        %v4917 = vpack.c.b16 %v3381, %v3365
        %v4918 = vpack.c.b16 %v3382, %v3366
        %v4919 = vpack.c.b16 %v3383, %v3367
        %v4920 = vpack.c.b16 %v3400, %v3384
        %v4921 = vpack.c.b16 %v3401, %v3385
        %v4922 = vpack.c.b16 %v3402, %v3386
        %v4923 = vpack.c.b16 %v3403, %v3387
        %v4924 = vpack.c.b16 %v3404, %v3388
        %v4925 = vpack.c.b16 %v3405, %v3389
        %v4926 = vpack.c.b16 %v3406, %v3390
        %v4927 = vpack.c.b16 %v3407, %v3391
        %v4928 = vpack.c.b16 %v3408, %v3392
        %v4929 = vpack.c.b16 %v3409, %v3393
        %v4930 = vpack.c.b16 %v3410, %v3394
        %v4931 = vpack.c.b16 %v3411, %v3395
        %v4932 = vpack.c.b16 %v3412, %v3396
        %v4933 = vpack.c.b16 %v3413, %v3397
        %v4934 = vpack.c.b16 %v3414, %v3398
        %v4935 = vpack.c.b16 %v3415, %v3399
        %v4936 = vpack.c.b16 %v3432, %v3416
        %v4937 = vpack.c.b16 %v3433, %v3417
        %v4938 = vpack.c.b16 %v3434, %v3418
        %v4939 = vpack.c.b16 %v3435, %v3419
        %v4940 = vpack.c.b16 %v3436, %v3420
        %v4941 = vpack.c.b16 %v3437, %v3421
        %v4942 = vpack.c.b16 %v3438, %v3422
        %v4943 = vpack.c.b16 %v3439, %v3423
        %v4944 = vpack.c.b16 %v3440, %v3424
        %v4945 = vpack.c.b16 %v3441, %v3425
        %v4946 = vpack.c.b16 %v3442, %v3426
        %v4947 = vpack.c.b16 %v3443, %v3427
        %v4948 = vpack.c.b16 %v3444, %v3428
        %v4949 = vpack.c.b16 %v3445, %v3429
        %v4950 = vpack.c.b16 %v3446, %v3430
        %v4951 = vpack.c.b16 %v3447, %v3431
        %v4952 = vpack.c.b16 %v3464, %v3448
        %v4953 = vpack.c.b16 %v3465, %v3449
        %v4954 = vpack.c.b16 %v3466, %v3450
        %v4955 = vpack.c.b16 %v3467, %v3451
        %v4956 = vpack.c.b16 %v3468, %v3452
        %v4957 = vpack.c.b16 %v3469, %v3453
        %v4958 = vpack.c.b16 %v3470, %v3454
        %v4959 = vpack.c.b16 %v3471, %v3455
        %v4960 = vpack.c.b16 %v3472, %v3456
        %v4961 = vpack.c.b16 %v3473, %v3457
        %v4962 = vpack.c.b16 %v3474, %v3458
        %v4963 = vpack.c.b16 %v3475, %v3459
        %v4964 = vpack.c.b16 %v3476, %v3460
        %v4965 = vpack.c.b16 %v3477, %v3461
        %v4966 = vpack.c.b16 %v3478, %v3462
        %v4967 = vpack.c.b16 %v3479, %v3463
        %v4968 = vpack.c.b16 %v3496, %v3480
        %v4969 = vpack.c.b16 %v3497, %v3481
        %v4970 = vpack.c.b16 %v3498, %v3482
        %v4971 = vpack.c.b16 %v3499, %v3483
        %v4972 = vpack.c.b16 %v3500, %v3484
        %v4973 = vpack.c.b16 %v3501, %v3485
        %v4974 = vpack.c.b16 %v3502, %v3486
        %v4975 = vpack.c.b16 %v3503, %v3487
        %v4976 = vpack.c.b16 %v3504, %v3488
        %v4977 = vpack.c.b16 %v3505, %v3489
        %v4978 = vpack.c.b16 %v3506, %v3490
        %v4979 = vpack.c.b16 %v3507, %v3491
        %v4980 = vpack.c.b16 %v3508, %v3492
        %v4981 = vpack.c.b16 %v3509, %v3493
        %v4982 = vpack.c.b16 %v3510, %v3494
        %v4983 = vpack.c.b16 %v3511, %v3495
        %v4984 = vpack.c.b16 %v3528, %v3512
        %v4985 = vpack.c.b16 %v3529, %v3513
        %v4986 = vpack.c.b16 %v3530, %v3514
        %v4987 = vpack.c.b16 %v3531, %v3515
        %v4988 = vpack.c.b16 %v3532, %v3516
        %v4989 = vpack.c.b16 %v3533, %v3517
        %v4990 = vpack.c.b16 %v3534, %v3518
        %v4991 = vpack.c.b16 %v3535, %v3519
        %v4992 = vpack.c.b16 %v3536, %v3520
        %v4993 = vpack.c.b16 %v3537, %v3521
        %v4994 = vpack.c.b16 %v3538, %v3522
        %v4995 = vpack.c.b16 %v3539, %v3523
        %v4996 = vpack.c.b16 %v3540, %v3524
        %v4997 = vpack.c.b16 %v3541, %v3525
        %v4998 = vpack.c.b16 %v3542, %v3526
        %v4999 = vpack.c.b16 %v3543, %v3527
        %v5000 = vpack.c.b16 %v3560, %v3544
        %v5001 = vpack.c.b16 %v3561, %v3545
        %v5002 = vpack.c.b16 %v3562, %v3546
        %v5003 = vpack.c.b16 %v3563, %v3547
        %v5004 = vpack.c.b16 %v3564, %v3548
        %v5005 = vpack.c.b16 %v3565, %v3549
        %v5006 = vpack.c.b16 %v3566, %v3550
        %v5007 = vpack.c.b16 %v3567, %v3551
        %v5008 = vpack.c.b16 %v3568, %v3552
        %v5009 = vpack.c.b16 %v3569, %v3553
        %v5010 = vpack.c.b16 %v3570, %v3554
        %v5011 = vpack.c.b16 %v3571, %v3555
        %v5012 = vpack.c.b16 %v3572, %v3556
        %v5013 = vpack.c.b16 %v3573, %v3557
        %v5014 = vpack.c.b16 %v3574, %v3558
        %v5015 = vpack.c.b16 %v3575, %v3559
        %v5016 = vpack.c.b16 %v3592, %v3576
        %v5017 = vpack.c.b16 %v3593, %v3577
        %v5018 = vpack.c.b16 %v3594, %v3578
        %v5019 = vpack.c.b16 %v3595, %v3579
        %v5020 = vpack.c.b16 %v3596, %v3580
        %v5021 = vpack.c.b16 %v3597, %v3581
        %v5022 = vpack.c.b16 %v3598, %v3582
        %v5023 = vpack.c.b16 %v3599, %v3583
        %v5024 = vpack.c.b16 %v3600, %v3584
        %v5025 = vpack.c.b16 %v3601, %v3585
        %v5026 = vpack.c.b16 %v3602, %v3586
        %v5027 = vpack.c.b16 %v3603, %v3587
        %v5028 = vpack.c.b16 %v3604, %v3588
        %v5029 = vpack.c.b16 %v3605, %v3589
        %v5030 = vpack.c.b16 %v3606, %v3590
        %v5031 = vpack.c.b16 %v3607, %v3591
        %v5032 = vpack.c.b16 %v3624, %v3608
        %v5033 = vpack.c.b16 %v3625, %v3609
        %v5034 = vpack.c.b16 %v3626, %v3610
        %v5035 = vpack.c.b16 %v3627, %v3611
        %v5036 = vpack.c.b16 %v3628, %v3612
        %v5037 = vpack.c.b16 %v3629, %v3613
        %v5038 = vpack.c.b16 %v3630, %v3614
        %v5039 = vpack.c.b16 %v3631, %v3615
        %v5040 = vpack.c.b16 %v3632, %v3616
        %v5041 = vpack.c.b16 %v3633, %v3617
        %v5042 = vpack.c.b16 %v3634, %v3618
        %v5043 = vpack.c.b16 %v3635, %v3619
        %v5044 = vpack.c.b16 %v3636, %v3620
        %v5045 = vpack.c.b16 %v3637, %v3621
        %v5046 = vpack.c.b16 %v3638, %v3622
        %v5047 = vpack.c.b16 %v3639, %v3623
        %v5048 = vpack.c.b16 %v3656, %v3640
        %v5049 = vpack.c.b16 %v3657, %v3641
        %v5050 = vpack.c.b16 %v3658, %v3642
        %v5051 = vpack.c.b16 %v3659, %v3643
        %v5052 = vpack.c.b16 %v3660, %v3644
        %v5053 = vpack.c.b16 %v3661, %v3645
        %v5054 = vpack.c.b16 %v3662, %v3646
        %v5055 = vpack.c.b16 %v3663, %v3647
        %v5056 = vpack.c.b16 %v3664, %v3648
        %v5057 = vpack.c.b16 %v3665, %v3649
        %v5058 = vpack.c.b16 %v3666, %v3650
        %v5059 = vpack.c.b16 %v3667, %v3651
        %v5060 = vpack.c.b16 %v3668, %v3652
        %v5061 = vpack.c.b16 %v3669, %v3653
        %v5062 = vpack.c.b16 %v3670, %v3654
        %v5063 = vpack.c.b16 %v3671, %v3655
        %v5064 = vpack.c.b16 %v3688, %v3672
        %v5065 = vpack.c.b16 %v3689, %v3673
        %v5066 = vpack.c.b16 %v3690, %v3674
        %v5067 = vpack.c.b16 %v3691, %v3675
        %v5068 = vpack.c.b16 %v3692, %v3676
        %v5069 = vpack.c.b16 %v3693, %v3677
        %v5070 = vpack.c.b16 %v3694, %v3678
        %v5071 = vpack.c.b16 %v3695, %v3679
        %v5072 = vpack.c.b16 %v3696, %v3680
        %v5073 = vpack.c.b16 %v3697, %v3681
        %v5074 = vpack.c.b16 %v3698, %v3682
        %v5075 = vpack.c.b16 %v3699, %v3683
        %v5076 = vpack.c.b16 %v3700, %v3684
        %v5077 = vpack.c.b16 %v3701, %v3685
        %v5078 = vpack.c.b16 %v3702, %v3686
        %v5079 = vpack.c.b16 %v3703, %v3687
        %v5080 = vpack.c.b16 %v3720, %v3704
        %v5081 = vpack.c.b16 %v3721, %v3705
        %v5082 = vpack.c.b16 %v3722, %v3706
        %v5083 = vpack.c.b16 %v3723, %v3707
        %v5084 = vpack.c.b16 %v3724, %v3708
        %v5085 = vpack.c.b16 %v3725, %v3709
        %v5086 = vpack.c.b16 %v3726, %v3710
        %v5087 = vpack.c.b16 %v3727, %v3711
        %v5088 = vpack.c.b16 %v3728, %v3712
        %v5089 = vpack.c.b16 %v3729, %v3713
        %v5090 = vpack.c.b16 %v3730, %v3714
        %v5091 = vpack.c.b16 %v3731, %v3715
        %v5092 = vpack.c.b16 %v3732, %v3716
        %v5093 = vpack.c.b16 %v3733, %v3717
        %v5094 = vpack.c.b16 %v3734, %v3718
        %v5095 = vpack.c.b16 %v3735, %v3719
        %v5096 = vpack.c.b16 %v3752, %v3736
        %v5097 = vpack.c.b16 %v3753, %v3737
        %v5098 = vpack.c.b16 %v3754, %v3738
        %v5099 = vpack.c.b16 %v3755, %v3739
        %v5100 = vpack.c.b16 %v3756, %v3740
        %v5101 = vpack.c.b16 %v3757, %v3741
        %v5102 = vpack.c.b16 %v3758, %v3742
        %v5103 = vpack.c.b16 %v3759, %v3743
        %v5104 = vpack.c.b16 %v3760, %v3744
        %v5105 = vpack.c.b16 %v3761, %v3745
        %v5106 = vpack.c.b16 %v3762, %v3746
        %v5107 = vpack.c.b16 %v3763, %v3747
        %v5108 = vpack.c.b16 %v3764, %v3748
        %v5109 = vpack.c.b16 %v3765, %v3749
        %v5110 = vpack.c.b16 %v3766, %v3750
        %v5111 = vpack.c.b16 %v3767, %v3751
        %v5112 = vpack.c.b16 %v3784, %v3768
        %v5113 = vpack.c.b16 %v3785, %v3769
        %v5114 = vpack.c.b16 %v3786, %v3770
        %v5115 = vpack.c.b16 %v3787, %v3771
        %v5116 = vpack.c.b16 %v3788, %v3772
        %v5117 = vpack.c.b16 %v3789, %v3773
        %v5118 = vpack.c.b16 %v3790, %v3774
        %v5119 = vpack.c.b16 %v3791, %v3775
        %v5120 = vpack.c.b16 %v3792, %v3776
        %v5121 = vpack.c.b16 %v3793, %v3777
        %v5122 = vpack.c.b16 %v3794, %v3778
        %v5123 = vpack.c.b16 %v3795, %v3779
        %v5124 = vpack.c.b16 %v3796, %v3780
        %v5125 = vpack.c.b16 %v3797, %v3781
        %v5126 = vpack.c.b16 %v3798, %v3782
        %v5127 = vpack.c.b16 %v3799, %v3783
        %v5128 = vpack.c.b16 %v3816, %v3800
        %v5129 = vpack.c.b16 %v3817, %v3801
        %v5130 = vpack.c.b16 %v3818, %v3802
        %v5131 = vpack.c.b16 %v3819, %v3803
        %v5132 = vpack.c.b16 %v3820, %v3804
        %v5133 = vpack.c.b16 %v3821, %v3805
        %v5134 = vpack.c.b16 %v3822, %v3806
        %v5135 = vpack.c.b16 %v3823, %v3807
        %v5136 = vpack.c.b16 %v3824, %v3808
        %v5137 = vpack.c.b16 %v3825, %v3809
        %v5138 = vpack.c.b16 %v3826, %v3810
        %v5139 = vpack.c.b16 %v3827, %v3811
        %v5140 = vpack.c.b16 %v3828, %v3812
        %v5141 = vpack.c.b16 %v3829, %v3813
        %v5142 = vpack.c.b16 %v3830, %v3814
        %v5143 = vpack.c.b16 %v3831, %v3815
        %v5144 = vpack.c.b16 %v3848, %v3832
        %v5145 = vpack.c.b16 %v3849, %v3833
        %v5146 = vpack.c.b16 %v3850, %v3834
        %v5147 = vpack.c.b16 %v3851, %v3835
        %v5148 = vpack.c.b16 %v3852, %v3836
        %v5149 = vpack.c.b16 %v3853, %v3837
        %v5150 = vpack.c.b16 %v3854, %v3838
        %v5151 = vpack.c.b16 %v3855, %v3839
        %v5152 = vpack.c.b16 %v3856, %v3840
        %v5153 = vpack.c.b16 %v3857, %v3841
        %v5154 = vpack.c.b16 %v3858, %v3842
        %v5155 = vpack.c.b16 %v3859, %v3843
        %v5156 = vpack.c.b16 %v3860, %v3844
        %v5157 = vpack.c.b16 %v3861, %v3845
        %v5158 = vpack.c.b16 %v3862, %v3846
        %v5159 = vpack.c.b16 %v3863, %v3847
        %v5160 = vpack.c.b16 %v3880, %v3864
        %v5161 = vpack.c.b16 %v3881, %v3865
        %v5162 = vpack.c.b16 %v3882, %v3866
        %v5163 = vpack.c.b16 %v3883, %v3867
        %v5164 = vpack.c.b16 %v3884, %v3868
        %v5165 = vpack.c.b16 %v3885, %v3869
        %v5166 = vpack.c.b16 %v3886, %v3870
        %v5167 = vpack.c.b16 %v3887, %v3871
        %v5168 = vpack.c.b16 %v3888, %v3872
        %v5169 = vpack.c.b16 %v3889, %v3873
        %v5170 = vpack.c.b16 %v3890, %v3874
        %v5171 = vpack.c.b16 %v3891, %v3875
        %v5172 = vpack.c.b16 %v3892, %v3876
        %v5173 = vpack.c.b16 %v3893, %v3877
        %v5174 = vpack.c.b16 %v3894, %v3878
        %v5175 = vpack.c.b16 %v3895, %v3879
        %v5176 = vpack.c.b16 %v3912, %v3896
        %v5177 = vpack.c.b16 %v3913, %v3897
        %v5178 = vpack.c.b16 %v3914, %v3898
        %v5179 = vpack.c.b16 %v3915, %v3899
        %v5180 = vpack.c.b16 %v3916, %v3900
        %v5181 = vpack.c.b16 %v3917, %v3901
        %v5182 = vpack.c.b16 %v3918, %v3902
        %v5183 = vpack.c.b16 %v3919, %v3903
        %v5184 = vpack.c.b16 %v3920, %v3904
        %v5185 = vpack.c.b16 %v3921, %v3905
        %v5186 = vpack.c.b16 %v3922, %v3906
        %v5187 = vpack.c.b16 %v3923, %v3907
        %v5188 = vpack.c.b16 %v3924, %v3908
        %v5189 = vpack.c.b16 %v3925, %v3909
        %v5190 = vpack.c.b16 %v3926, %v3910
        %v5191 = vpack.c.b16 %v3927, %v3911
        %v5192 = vpack.c.b16 %v3944, %v3928
        %v5193 = vpack.c.b16 %v3945, %v3929
        %v5194 = vpack.c.b16 %v3946, %v3930
        %v5195 = vpack.c.b16 %v3947, %v3931
        %v5196 = vpack.c.b16 %v3948, %v3932
        %v5197 = vpack.c.b16 %v3949, %v3933
        %v5198 = vpack.c.b16 %v3950, %v3934
        %v5199 = vpack.c.b16 %v3951, %v3935
        %v5200 = vpack.c.b16 %v3952, %v3936
        %v5201 = vpack.c.b16 %v3953, %v3937
        %v5202 = vpack.c.b16 %v3954, %v3938
        %v5203 = vpack.c.b16 %v3955, %v3939
        %v5204 = vpack.c.b16 %v3956, %v3940
        %v5205 = vpack.c.b16 %v3957, %v3941
        %v5206 = vpack.c.b16 %v3958, %v3942
        %v5207 = vpack.c.b16 %v3959, %v3943
        %v5208 = vpack.c.b16 %v3976, %v3960
        %v5209 = vpack.c.b16 %v3977, %v3961
        %v5210 = vpack.c.b16 %v3978, %v3962
        %v5211 = vpack.c.b16 %v3979, %v3963
        %v5212 = vpack.c.b16 %v3980, %v3964
        %v5213 = vpack.c.b16 %v3981, %v3965
        %v5214 = vpack.c.b16 %v3982, %v3966
        %v5215 = vpack.c.b16 %v3983, %v3967
        %v5216 = vpack.c.b16 %v3984, %v3968
        %v5217 = vpack.c.b16 %v3985, %v3969
        %v5218 = vpack.c.b16 %v3986, %v3970
        %v5219 = vpack.c.b16 %v3987, %v3971
        %v5220 = vpack.c.b16 %v3988, %v3972
        %v5221 = vpack.c.b16 %v3989, %v3973
        %v5222 = vpack.c.b16 %v3990, %v3974
        %v5223 = vpack.c.b16 %v3991, %v3975
        %v5224 = vpack.c.b16 %v4008, %v3992
        %v5225 = vpack.c.b16 %v4009, %v3993
        %v5226 = vpack.c.b16 %v4010, %v3994
        %v5227 = vpack.c.b16 %v4011, %v3995
        %v5228 = vpack.c.b16 %v4012, %v3996
        %v5229 = vpack.c.b16 %v4013, %v3997
        %v5230 = vpack.c.b16 %v4014, %v3998
        %v5231 = vpack.c.b16 %v4015, %v3999
        %v5232 = vpack.c.b16 %v4016, %v4000
        %v5233 = vpack.c.b16 %v4017, %v4001
        %v5234 = vpack.c.b16 %v4018, %v4002
        %v5235 = vpack.c.b16 %v4019, %v4003
        %v5236 = vpack.c.b16 %v4020, %v4004
        %v5237 = vpack.c.b16 %v4021, %v4005
        %v5238 = vpack.c.b16 %v4022, %v4006
        %v5239 = vpack.c.b16 %v4023, %v4007
        %v5240 = vpack.c.b16 %v4040, %v4024
        %v5241 = vpack.c.b16 %v4041, %v4025
        %v5242 = vpack.c.b16 %v4042, %v4026
        %v5243 = vpack.c.b16 %v4043, %v4027
        %v5244 = vpack.c.b16 %v4044, %v4028
        %v5245 = vpack.c.b16 %v4045, %v4029
        %v5246 = vpack.c.b16 %v4046, %v4030
        %v5247 = vpack.c.b16 %v4047, %v4031
        %v5248 = vpack.c.b16 %v4048, %v4032
        %v5249 = vpack.c.b16 %v4049, %v4033
        %v5250 = vpack.c.b16 %v4050, %v4034
        %v5251 = vpack.c.b16 %v4051, %v4035
        %v5252 = vpack.c.b16 %v4052, %v4036
        %v5253 = vpack.c.b16 %v4053, %v4037
        %v5254 = vpack.c.b16 %v4054, %v4038
        %v5255 = vpack.c.b16 %v4055, %v4039
        %v5256 = vpack.c.b16 %v4072, %v4056
        %v5257 = vpack.c.b16 %v4073, %v4057
        %v5258 = vpack.c.b16 %v4074, %v4058
        %v5259 = vpack.c.b16 %v4075, %v4059
        %v5260 = vpack.c.b16 %v4076, %v4060
        %v5261 = vpack.c.b16 %v4077, %v4061
        %v5262 = vpack.c.b16 %v4078, %v4062
        %v5263 = vpack.c.b16 %v4079, %v4063
        %v5264 = vpack.c.b16 %v4080, %v4064
        %v5265 = vpack.c.b16 %v4081, %v4065
        %v5266 = vpack.c.b16 %v4082, %v4066
        %v5267 = vpack.c.b16 %v4083, %v4067
        %v5268 = vpack.c.b16 %v4084, %v4068
        %v5269 = vpack.c.b16 %v4085, %v4069
        %v5270 = vpack.c.b16 %v4086, %v4070
        %v5271 = vpack.c.b16 %v4087, %v4071
        %v5272 = vpack.c.b16 %v4104, %v4088
        %v5273 = vpack.c.b16 %v4105, %v4089
        %v5274 = vpack.c.b16 %v4106, %v4090
        %v5275 = vpack.c.b16 %v4107, %v4091
        %v5276 = vpack.c.b16 %v4108, %v4092
        %v5277 = vpack.c.b16 %v4109, %v4093
        %v5278 = vpack.c.b16 %v4110, %v4094
        %v5279 = vpack.c.b16 %v4111, %v4095
        %v5280 = vpack.c.b16 %v4112, %v4096
        %v5281 = vpack.c.b16 %v4113, %v4097
        %v5282 = vpack.c.b16 %v4114, %v4098
        %v5283 = vpack.c.b16 %v4115, %v4099
        %v5284 = vpack.c.b16 %v4116, %v4100
        %v5285 = vpack.c.b16 %v4117, %v4101
        %v5286 = vpack.c.b16 %v4118, %v4102
        %v5287 = vpack.c.b16 %v4119, %v4103
        %v5288 = vpack.c.b16 %v4136, %v4120
        %v5289 = vpack.c.b16 %v4137, %v4121
        %v5290 = vpack.c.b16 %v4138, %v4122
        %v5291 = vpack.c.b16 %v4139, %v4123
        %v5292 = vpack.c.b16 %v4140, %v4124
        %v5293 = vpack.c.b16 %v4141, %v4125
        %v5294 = vpack.c.b16 %v4142, %v4126
        %v5295 = vpack.c.b16 %v4143, %v4127
        %v5296 = vpack.c.b16 %v4144, %v4128
        %v5297 = vpack.c.b16 %v4145, %v4129
        %v5298 = vpack.c.b16 %v4146, %v4130
        %v5299 = vpack.c.b16 %v4147, %v4131
        %v5300 = vpack.c.b16 %v4148, %v4132
        %v5301 = vpack.c.b16 %v4149, %v4133
        %v5302 = vpack.c.b16 %v4150, %v4134
        %v5303 = vpack.c.b16 %v4151, %v4135
        %v5304 = vpack.c.b16 %v4168, %v4152
        %v5305 = vpack.c.b16 %v4169, %v4153
        %v5306 = vpack.c.b16 %v4170, %v4154
        %v5307 = vpack.c.b16 %v4171, %v4155
        %v5308 = vpack.c.b16 %v4172, %v4156
        %v5309 = vpack.c.b16 %v4173, %v4157
        %v5310 = vpack.c.b16 %v4174, %v4158
        %v5311 = vpack.c.b16 %v4175, %v4159
        %v5312 = vpack.c.b16 %v4176, %v4160
        %v5313 = vpack.c.b16 %v4177, %v4161
        %v5314 = vpack.c.b16 %v4178, %v4162
        %v5315 = vpack.c.b16 %v4179, %v4163
        %v5316 = vpack.c.b16 %v4180, %v4164
        %v5317 = vpack.c.b16 %v4181, %v4165
        %v5318 = vpack.c.b16 %v4182, %v4166
        %v5319 = vpack.c.b16 %v4183, %v4167
        %v5320 = vpack.c.b16 %v4200, %v4184
        %v5321 = vpack.c.b16 %v4201, %v4185
        %v5322 = vpack.c.b16 %v4202, %v4186
        %v5323 = vpack.c.b16 %v4203, %v4187
        %v5324 = vpack.c.b16 %v4204, %v4188
        %v5325 = vpack.c.b16 %v4205, %v4189
        %v5326 = vpack.c.b16 %v4206, %v4190
        %v5327 = vpack.c.b16 %v4207, %v4191
        %v5328 = vpack.c.b16 %v4208, %v4192
        %v5329 = vpack.c.b16 %v4209, %v4193
        %v5330 = vpack.c.b16 %v4210, %v4194
        %v5331 = vpack.c.b16 %v4211, %v4195
        %v5332 = vpack.c.b16 %v4212, %v4196
        %v5333 = vpack.c.b16 %v4213, %v4197
        %v5334 = vpack.c.b16 %v4214, %v4198
        %v5335 = vpack.c.b16 %v4215, %v4199
        %v5336 = vpack.c.b16 %v4232, %v4216
        %v5337 = vpack.c.b16 %v4233, %v4217
        %v5338 = vpack.c.b16 %v4234, %v4218
        %v5339 = vpack.c.b16 %v4235, %v4219
        %v5340 = vpack.c.b16 %v4236, %v4220
        %v5341 = vpack.c.b16 %v4237, %v4221
        %v5342 = vpack.c.b16 %v4238, %v4222
        %v5343 = vpack.c.b16 %v4239, %v4223
        %v5344 = vpack.c.b16 %v4240, %v4224
        %v5345 = vpack.c.b16 %v4241, %v4225
        %v5346 = vpack.c.b16 %v4242, %v4226
        %v5347 = vpack.c.b16 %v4243, %v4227
        %v5348 = vpack.c.b16 %v4244, %v4228
        %v5349 = vpack.c.b16 %v4245, %v4229
        %v5350 = vpack.c.b16 %v4246, %v4230
        %v5351 = vpack.c.b16 %v4247, %v4231
        %v5352 = vpack.c.b16 %v4264, %v4248
        %v5353 = vpack.c.b16 %v4265, %v4249
        %v5354 = vpack.c.b16 %v4266, %v4250
        %v5355 = vpack.c.b16 %v4267, %v4251
        %v5356 = vpack.c.b16 %v4268, %v4252
        %v5357 = vpack.c.b16 %v4269, %v4253
        %v5358 = vpack.c.b16 %v4270, %v4254
        %v5359 = vpack.c.b16 %v4271, %v4255
        %v5360 = vpack.c.b16 %v4272, %v4256
        %v5361 = vpack.c.b16 %v4273, %v4257
        %v5362 = vpack.c.b16 %v4274, %v4258
        %v5363 = vpack.c.b16 %v4275, %v4259
        %v5364 = vpack.c.b16 %v4276, %v4260
        %v5365 = vpack.c.b16 %v4277, %v4261
        %v5366 = vpack.c.b16 %v4278, %v4262
        %v5367 = vpack.c.b16 %v4279, %v4263
        %v5368 = vpack.c.b16 %v4296, %v4280
        %v5369 = vpack.c.b16 %v4297, %v4281
        %v5370 = vpack.c.b16 %v4298, %v4282
        %v5371 = vpack.c.b16 %v4299, %v4283
        %v5372 = vpack.c.b16 %v4300, %v4284
        %v5373 = vpack.c.b16 %v4301, %v4285
        %v5374 = vpack.c.b16 %v4302, %v4286
        %v5375 = vpack.c.b16 %v4303, %v4287
        %v5376 = vpack.c.b16 %v4304, %v4288
        %v5377 = vpack.c.b16 %v4305, %v4289
        %v5378 = vpack.c.b16 %v4306, %v4290
        %v5379 = vpack.c.b16 %v4307, %v4291
        %v5380 = vpack.c.b16 %v4308, %v4292
        %v5381 = vpack.c.b16 %v4309, %v4293
        %v5382 = vpack.c.b16 %v4310, %v4294
        %v5383 = vpack.c.b16 %v4311, %v4295
        %v5384 = vpack.c.b16 %v4328, %v4312
        %v5385 = vpack.c.b16 %v4329, %v4313
        %v5386 = vpack.c.b16 %v4330, %v4314
        %v5387 = vpack.c.b16 %v4331, %v4315
        %v5388 = vpack.c.b16 %v4332, %v4316
        %v5389 = vpack.c.b16 %v4333, %v4317
        %v5390 = vpack.c.b16 %v4334, %v4318
        %v5391 = vpack.c.b16 %v4335, %v4319
        %v5392 = vpack.c.b16 %v4336, %v4320
        %v5393 = vpack.c.b16 %v4337, %v4321
        %v5394 = vpack.c.b16 %v4338, %v4322
        %v5395 = vpack.c.b16 %v4339, %v4323
        %v5396 = vpack.c.b16 %v4340, %v4324
        %v5397 = vpack.c.b16 %v4341, %v4325
        %v5398 = vpack.c.b16 %v4342, %v4326
        %v5399 = vpack.c.b16 %v4343, %v4327
        %v5400 = vpack.c.b16 %v4360, %v4344
        %v5401 = vpack.c.b16 %v4361, %v4345
        %v5402 = vpack.c.b16 %v4362, %v4346
        %v5403 = vpack.c.b16 %v4363, %v4347
        %v5404 = vpack.c.b16 %v4364, %v4348
        %v5405 = vpack.c.b16 %v4365, %v4349
        %v5406 = vpack.c.b16 %v4366, %v4350
        %v5407 = vpack.c.b16 %v4367, %v4351
        %v5408 = vpack.c.b16 %v4368, %v4352
        %v5409 = vpack.c.b16 %v4369, %v4353
        %v5410 = vpack.c.b16 %v4370, %v4354
        %v5411 = vpack.c.b16 %v4371, %v4355
        %v5412 = vpack.c.b16 %v4372, %v4356
        %v5413 = vpack.c.b16 %v4373, %v4357
        %v5414 = vpack.c.b16 %v4374, %v4358
        %v5415 = vpack.c.b16 %v4375, %v4359
        %v5416 = vpack.c.b16 %v4392, %v4376
        %v5417 = vpack.c.b16 %v4393, %v4377
        %v5418 = vpack.c.b16 %v4394, %v4378
        %v5419 = vpack.c.b16 %v4395, %v4379
        %v5420 = vpack.c.b16 %v4396, %v4380
        %v5421 = vpack.c.b16 %v4397, %v4381
        %v5422 = vpack.c.b16 %v4398, %v4382
        %v5423 = vpack.c.b16 %v4399, %v4383
        %v5424 = vpack.c.b16 %v4400, %v4384
        %v5425 = vpack.c.b16 %v4401, %v4385
        %v5426 = vpack.c.b16 %v4402, %v4386
        %v5427 = vpack.c.b16 %v4403, %v4387
        %v5428 = vpack.c.b16 %v4404, %v4388
        %v5429 = vpack.c.b16 %v4405, %v4389
        %v5430 = vpack.c.b16 %v4406, %v4390
        %v5431 = vpack.c.b16 %v4407, %v4391
        %6456 = vmatpush.bf16.msra.mxu0 %v4520
        %6457 = vmatpush.bf16.msra.mxu0 %v4504
        %6458 = vmatpush.bf16.msra.mxu0 %v4488
        %6459 = vmatpush.bf16.msra.mxu0 %v4472
        %6460 = vmatpush.bf16.msra.mxu0 %v4456
        %6461 = vmatpush.bf16.msra.mxu0 %v4440
        %6462 = vmatpush.bf16.msra.mxu0 %v4424
        %6463 = vmatpush.bf16.msra.mxu0 %v4408
        %6464 = vmatmul.bf16.gmra.mxu0 %v288
        %v6465 = vpop.f32.mrf.mxu0
        %v6466 = vadd.f32 0.0, %v6465
        %v6467 = vpop.f32.mrf.mxu0
        %6468 = vdwg.mxu0
        %6469 = vmatpush.bf16.msra.mxu0 %v4648
        %6470 = vmatpush.bf16.msra.mxu0 %v4632
        %6471 = vmatpush.bf16.msra.mxu0 %v4616
        %6472 = vmatpush.bf16.msra.mxu0 %v4600
        %6473 = vmatpush.bf16.msra.mxu0 %v4584
        %6474 = vmatpush.bf16.msra.mxu0 %v4568
        %6475 = vmatpush.bf16.msra.mxu0 %v4552
        %6476 = vmatpush.bf16.msra.mxu0 %v4536
        %6477 = vmatmul.bf16.gmra.mxu0 %v289
        %v6478 = vpop.f32.mrf.mxu0
        %v6479 = vadd.f32 %v6466, %v6478
        %v6480 = vpop.f32.mrf.mxu0
        %6481 = vdwg.mxu0
        %6482 = vmatpush.bf16.msra.mxu0 %v4776
        %6483 = vmatpush.bf16.msra.mxu0 %v4760
        %6484 = vmatpush.bf16.msra.mxu0 %v4744
        %6485 = vmatpush.bf16.msra.mxu0 %v4728
        %6486 = vmatpush.bf16.msra.mxu0 %v4712
        %6487 = vmatpush.bf16.msra.mxu0 %v4696
        %6488 = vmatpush.bf16.msra.mxu0 %v4680
        %6489 = vmatpush.bf16.msra.mxu0 %v4664
        %6490 = vmatmul.bf16.gmra.mxu0 %v290
        %v6491 = vpop.f32.mrf.mxu0
        %v6492 = vadd.f32 %v6479, %v6491
        %v6493 = vpop.f32.mrf.mxu0
        %6494 = vdwg.mxu0
        %6495 = vmatpush.bf16.msra.mxu0 %v4904
        %6496 = vmatpush.bf16.msra.mxu0 %v4888
        %6497 = vmatpush.bf16.msra.mxu0 %v4872
        %6498 = vmatpush.bf16.msra.mxu0 %v4856
        %6499 = vmatpush.bf16.msra.mxu0 %v4840
        %6500 = vmatpush.bf16.msra.mxu0 %v4824
        %6501 = vmatpush.bf16.msra.mxu0 %v4808
        %6502 = vmatpush.bf16.msra.mxu0 %v4792
        %6503 = vmatmul.bf16.gmra.mxu0 %v291
        %v6504 = vpop.f32.mrf.mxu0
        %v6505 = vadd.f32 %v6492, %v6504
        %v6506 = vpop.f32.mrf.mxu0
        %6507 = vdwg.mxu0
        %6508 = vmatpush.bf16.msra.mxu0 %v5032
        %6509 = vmatpush.bf16.msra.mxu0 %v5016
        %6510 = vmatpush.bf16.msra.mxu0 %v5000
        %6511 = vmatpush.bf16.msra.mxu0 %v4984
        %6512 = vmatpush.bf16.msra.mxu0 %v4968
        %6513 = vmatpush.bf16.msra.mxu0 %v4952
        %6514 = vmatpush.bf16.msra.mxu0 %v4936
        %6515 = vmatpush.bf16.msra.mxu0 %v4920
        %6516 = vmatmul.bf16.gmra.mxu0 %v292
        %v6517 = vpop.f32.mrf.mxu0
        %v6518 = vadd.f32 %v6505, %v6517
        %v6519 = vpop.f32.mrf.mxu0
        %6520 = vdwg.mxu0
        %6521 = vmatpush.bf16.msra.mxu0 %v5160
        %6522 = vmatpush.bf16.msra.mxu0 %v5144
        %6523 = vmatpush.bf16.msra.mxu0 %v5128
        %6524 = vmatpush.bf16.msra.mxu0 %v5112
        %6525 = vmatpush.bf16.msra.mxu0 %v5096
        %6526 = vmatpush.bf16.msra.mxu0 %v5080
        %6527 = vmatpush.bf16.msra.mxu0 %v5064
        %6528 = vmatpush.bf16.msra.mxu0 %v5048
        %6529 = vmatmul.bf16.gmra.mxu0 %v293
        %v6530 = vpop.f32.mrf.mxu0
        %v6531 = vadd.f32 %v6518, %v6530
        %v6532 = vpop.f32.mrf.mxu0
        %6533 = vdwg.mxu0
        %6534 = vmatpush.bf16.msra.mxu0 %v5288
        %6535 = vmatpush.bf16.msra.mxu0 %v5272
        %6536 = vmatpush.bf16.msra.mxu0 %v5256
        %6537 = vmatpush.bf16.msra.mxu0 %v5240
        %6538 = vmatpush.bf16.msra.mxu0 %v5224
        %6539 = vmatpush.bf16.msra.mxu0 %v5208
        %6540 = vmatpush.bf16.msra.mxu0 %v5192
        %6541 = vmatpush.bf16.msra.mxu0 %v5176
        %6542 = vmatmul.bf16.gmra.mxu0 %v294
        %v6543 = vpop.f32.mrf.mxu0
        %v6544 = vadd.f32 %v6531, %v6543
        %v6545 = vpop.f32.mrf.mxu0
        %6546 = vdwg.mxu0
        %6547 = vmatpush.bf16.msra.mxu0 %v5416
        %6548 = vmatpush.bf16.msra.mxu0 %v5400
        %6549 = vmatpush.bf16.msra.mxu0 %v5384
        %6550 = vmatpush.bf16.msra.mxu0 %v5368
        %6551 = vmatpush.bf16.msra.mxu0 %v5352
        %6552 = vmatpush.bf16.msra.mxu0 %v5336
        %6553 = vmatpush.bf16.msra.mxu0 %v5320
        %6554 = vmatpush.bf16.msra.mxu0 %v5304
        %6555 = vmatmul.bf16.gmra.mxu0 %v295
        %v6556 = vpop.f32.mrf.mxu0
        %v6557 = vadd.f32 %v6544, %v6556
        %v6558 = vpop.f32.mrf.mxu0
        %6559 = vdwg.mxu0
        %6560 = vmatpush.bf16.msra.mxu0 %v4521
        %6561 = vmatpush.bf16.msra.mxu0 %v4505
        %6562 = vmatpush.bf16.msra.mxu0 %v4489
        %6563 = vmatpush.bf16.msra.mxu0 %v4473
        %6564 = vmatpush.bf16.msra.mxu0 %v4457
        %6565 = vmatpush.bf16.msra.mxu0 %v4441
        %6566 = vmatpush.bf16.msra.mxu0 %v4425
        %6567 = vmatpush.bf16.msra.mxu0 %v4409
        %6568 = vmatmul.bf16.gmra.mxu0 %v288
        %v6569 = vpop.f32.mrf.mxu0
        %v6570 = vadd.f32 0.0, %v6569
        %v6571 = vpop.f32.mrf.mxu0
        %6572 = vdwg.mxu0
        %6573 = vmatpush.bf16.msra.mxu0 %v4649
        %6574 = vmatpush.bf16.msra.mxu0 %v4633
        %6575 = vmatpush.bf16.msra.mxu0 %v4617
        %6576 = vmatpush.bf16.msra.mxu0 %v4601
        %6577 = vmatpush.bf16.msra.mxu0 %v4585
        %6578 = vmatpush.bf16.msra.mxu0 %v4569
        %6579 = vmatpush.bf16.msra.mxu0 %v4553
        %6580 = vmatpush.bf16.msra.mxu0 %v4537
        %6581 = vmatmul.bf16.gmra.mxu0 %v289
        %v6582 = vpop.f32.mrf.mxu0
        %v6583 = vadd.f32 %v6570, %v6582
        %v6584 = vpop.f32.mrf.mxu0
        %6585 = vdwg.mxu0
        %6586 = vmatpush.bf16.msra.mxu0 %v4777
        %6587 = vmatpush.bf16.msra.mxu0 %v4761
        %6588 = vmatpush.bf16.msra.mxu0 %v4745
        %6589 = vmatpush.bf16.msra.mxu0 %v4729
        %6590 = vmatpush.bf16.msra.mxu0 %v4713
        %6591 = vmatpush.bf16.msra.mxu0 %v4697
        %6592 = vmatpush.bf16.msra.mxu0 %v4681
        %6593 = vmatpush.bf16.msra.mxu0 %v4665
        %6594 = vmatmul.bf16.gmra.mxu0 %v290
        %v6595 = vpop.f32.mrf.mxu0
        %v6596 = vadd.f32 %v6583, %v6595
        %v6597 = vpop.f32.mrf.mxu0
        %6598 = vdwg.mxu0
        %6599 = vmatpush.bf16.msra.mxu0 %v4905
        %6600 = vmatpush.bf16.msra.mxu0 %v4889
        %6601 = vmatpush.bf16.msra.mxu0 %v4873
        %6602 = vmatpush.bf16.msra.mxu0 %v4857
        %6603 = vmatpush.bf16.msra.mxu0 %v4841
        %6604 = vmatpush.bf16.msra.mxu0 %v4825
        %6605 = vmatpush.bf16.msra.mxu0 %v4809
        %6606 = vmatpush.bf16.msra.mxu0 %v4793
        %6607 = vmatmul.bf16.gmra.mxu0 %v291
        %v6608 = vpop.f32.mrf.mxu0
        %v6609 = vadd.f32 %v6596, %v6608
        %v6610 = vpop.f32.mrf.mxu0
        %6611 = vdwg.mxu0
        %6612 = vmatpush.bf16.msra.mxu0 %v5033
        %6613 = vmatpush.bf16.msra.mxu0 %v5017
        %6614 = vmatpush.bf16.msra.mxu0 %v5001
        %6615 = vmatpush.bf16.msra.mxu0 %v4985
        %6616 = vmatpush.bf16.msra.mxu0 %v4969
        %6617 = vmatpush.bf16.msra.mxu0 %v4953
        %6618 = vmatpush.bf16.msra.mxu0 %v4937
        %6619 = vmatpush.bf16.msra.mxu0 %v4921
        %6620 = vmatmul.bf16.gmra.mxu0 %v292
        %v6621 = vpop.f32.mrf.mxu0
        %v6622 = vadd.f32 %v6609, %v6621
        %v6623 = vpop.f32.mrf.mxu0
        %6624 = vdwg.mxu0
        %6625 = vmatpush.bf16.msra.mxu0 %v5161
        %6626 = vmatpush.bf16.msra.mxu0 %v5145
        %6627 = vmatpush.bf16.msra.mxu0 %v5129
        %6628 = vmatpush.bf16.msra.mxu0 %v5113
        %6629 = vmatpush.bf16.msra.mxu0 %v5097
        %6630 = vmatpush.bf16.msra.mxu0 %v5081
        %6631 = vmatpush.bf16.msra.mxu0 %v5065
        %6632 = vmatpush.bf16.msra.mxu0 %v5049
        %6633 = vmatmul.bf16.gmra.mxu0 %v293
        %v6634 = vpop.f32.mrf.mxu0
        %v6635 = vadd.f32 %v6622, %v6634
        %v6636 = vpop.f32.mrf.mxu0
        %6637 = vdwg.mxu0
        %6638 = vmatpush.bf16.msra.mxu0 %v5289
        %6639 = vmatpush.bf16.msra.mxu0 %v5273
        %6640 = vmatpush.bf16.msra.mxu0 %v5257
        %6641 = vmatpush.bf16.msra.mxu0 %v5241
        %6642 = vmatpush.bf16.msra.mxu0 %v5225
        %6643 = vmatpush.bf16.msra.mxu0 %v5209
        %6644 = vmatpush.bf16.msra.mxu0 %v5193
        %6645 = vmatpush.bf16.msra.mxu0 %v5177
        %6646 = vmatmul.bf16.gmra.mxu0 %v294
        %v6647 = vpop.f32.mrf.mxu0
        %v6648 = vadd.f32 %v6635, %v6647
        %v6649 = vpop.f32.mrf.mxu0
        %6650 = vdwg.mxu0
        %6651 = vmatpush.bf16.msra.mxu0 %v5417
        %6652 = vmatpush.bf16.msra.mxu0 %v5401
        %6653 = vmatpush.bf16.msra.mxu0 %v5385
        %6654 = vmatpush.bf16.msra.mxu0 %v5369
        %6655 = vmatpush.bf16.msra.mxu0 %v5353
        %6656 = vmatpush.bf16.msra.mxu0 %v5337
        %6657 = vmatpush.bf16.msra.mxu0 %v5321
        %6658 = vmatpush.bf16.msra.mxu0 %v5305
        %6659 = vmatmul.bf16.gmra.mxu0 %v295
        %v6660 = vpop.f32.mrf.mxu0
        %v6661 = vadd.f32 %v6648, %v6660
        %v6662 = vpop.f32.mrf.mxu0
        %6663 = vdwg.mxu0
        %6664 = vmatpush.bf16.msra.mxu0 %v4522
        %6665 = vmatpush.bf16.msra.mxu0 %v4506
        %6666 = vmatpush.bf16.msra.mxu0 %v4490
        %6667 = vmatpush.bf16.msra.mxu0 %v4474
        %6668 = vmatpush.bf16.msra.mxu0 %v4458
        %6669 = vmatpush.bf16.msra.mxu0 %v4442
        %6670 = vmatpush.bf16.msra.mxu0 %v4426
        %6671 = vmatpush.bf16.msra.mxu0 %v4410
        %6672 = vmatmul.bf16.gmra.mxu0 %v288
        %v6673 = vpop.f32.mrf.mxu0
        %v6674 = vadd.f32 0.0, %v6673
        %v6675 = vpop.f32.mrf.mxu0
        %6676 = vdwg.mxu0
        %6677 = vmatpush.bf16.msra.mxu0 %v4650
        %6678 = vmatpush.bf16.msra.mxu0 %v4634
        %6679 = vmatpush.bf16.msra.mxu0 %v4618
        %6680 = vmatpush.bf16.msra.mxu0 %v4602
        %6681 = vmatpush.bf16.msra.mxu0 %v4586
        %6682 = vmatpush.bf16.msra.mxu0 %v4570
        %6683 = vmatpush.bf16.msra.mxu0 %v4554
        %6684 = vmatpush.bf16.msra.mxu0 %v4538
        %6685 = vmatmul.bf16.gmra.mxu0 %v289
        %v6686 = vpop.f32.mrf.mxu0
        %v6687 = vadd.f32 %v6674, %v6686
        %v6688 = vpop.f32.mrf.mxu0
        %6689 = vdwg.mxu0
        %6690 = vmatpush.bf16.msra.mxu0 %v4778
        %6691 = vmatpush.bf16.msra.mxu0 %v4762
        %6692 = vmatpush.bf16.msra.mxu0 %v4746
        %6693 = vmatpush.bf16.msra.mxu0 %v4730
        %6694 = vmatpush.bf16.msra.mxu0 %v4714
        %6695 = vmatpush.bf16.msra.mxu0 %v4698
        %6696 = vmatpush.bf16.msra.mxu0 %v4682
        %6697 = vmatpush.bf16.msra.mxu0 %v4666
        %6698 = vmatmul.bf16.gmra.mxu0 %v290
        %v6699 = vpop.f32.mrf.mxu0
        %v6700 = vadd.f32 %v6687, %v6699
        %v6701 = vpop.f32.mrf.mxu0
        %6702 = vdwg.mxu0
        %6703 = vmatpush.bf16.msra.mxu0 %v4906
        %6704 = vmatpush.bf16.msra.mxu0 %v4890
        %6705 = vmatpush.bf16.msra.mxu0 %v4874
        %6706 = vmatpush.bf16.msra.mxu0 %v4858
        %6707 = vmatpush.bf16.msra.mxu0 %v4842
        %6708 = vmatpush.bf16.msra.mxu0 %v4826
        %6709 = vmatpush.bf16.msra.mxu0 %v4810
        %6710 = vmatpush.bf16.msra.mxu0 %v4794
        %6711 = vmatmul.bf16.gmra.mxu0 %v291
        %v6712 = vpop.f32.mrf.mxu0
        %v6713 = vadd.f32 %v6700, %v6712
        %v6714 = vpop.f32.mrf.mxu0
        %6715 = vdwg.mxu0
        %6716 = vmatpush.bf16.msra.mxu0 %v5034
        %6717 = vmatpush.bf16.msra.mxu0 %v5018
        %6718 = vmatpush.bf16.msra.mxu0 %v5002
        %6719 = vmatpush.bf16.msra.mxu0 %v4986
        %6720 = vmatpush.bf16.msra.mxu0 %v4970
        %6721 = vmatpush.bf16.msra.mxu0 %v4954
        %6722 = vmatpush.bf16.msra.mxu0 %v4938
        %6723 = vmatpush.bf16.msra.mxu0 %v4922
        %6724 = vmatmul.bf16.gmra.mxu0 %v292
        %v6725 = vpop.f32.mrf.mxu0
        %v6726 = vadd.f32 %v6713, %v6725
        %v6727 = vpop.f32.mrf.mxu0
        %6728 = vdwg.mxu0
        %6729 = vmatpush.bf16.msra.mxu0 %v5162
        %6730 = vmatpush.bf16.msra.mxu0 %v5146
        %6731 = vmatpush.bf16.msra.mxu0 %v5130
        %6732 = vmatpush.bf16.msra.mxu0 %v5114
        %6733 = vmatpush.bf16.msra.mxu0 %v5098
        %6734 = vmatpush.bf16.msra.mxu0 %v5082
        %6735 = vmatpush.bf16.msra.mxu0 %v5066
        %6736 = vmatpush.bf16.msra.mxu0 %v5050
        %6737 = vmatmul.bf16.gmra.mxu0 %v293
        %v6738 = vpop.f32.mrf.mxu0
        %v6739 = vadd.f32 %v6726, %v6738
        %v6740 = vpop.f32.mrf.mxu0
        %6741 = vdwg.mxu0
        %6742 = vmatpush.bf16.msra.mxu0 %v5290
        %6743 = vmatpush.bf16.msra.mxu0 %v5274
        %6744 = vmatpush.bf16.msra.mxu0 %v5258
        %6745 = vmatpush.bf16.msra.mxu0 %v5242
        %6746 = vmatpush.bf16.msra.mxu0 %v5226
        %6747 = vmatpush.bf16.msra.mxu0 %v5210
        %6748 = vmatpush.bf16.msra.mxu0 %v5194
        %6749 = vmatpush.bf16.msra.mxu0 %v5178
        %6750 = vmatmul.bf16.gmra.mxu0 %v294
        %v6751 = vpop.f32.mrf.mxu0
        %v6752 = vadd.f32 %v6739, %v6751
        %v6753 = vpop.f32.mrf.mxu0
        %6754 = vdwg.mxu0
        %6755 = vmatpush.bf16.msra.mxu0 %v5418
        %6756 = vmatpush.bf16.msra.mxu0 %v5402
        %6757 = vmatpush.bf16.msra.mxu0 %v5386
        %6758 = vmatpush.bf16.msra.mxu0 %v5370
        %6759 = vmatpush.bf16.msra.mxu0 %v5354
        %6760 = vmatpush.bf16.msra.mxu0 %v5338
        %6761 = vmatpush.bf16.msra.mxu0 %v5322
        %6762 = vmatpush.bf16.msra.mxu0 %v5306
        %6763 = vmatmul.bf16.gmra.mxu0 %v295
        %v6764 = vpop.f32.mrf.mxu0
        %v6765 = vadd.f32 %v6752, %v6764
        %v6766 = vpop.f32.mrf.mxu0
        %6767 = vdwg.mxu0
        %6768 = vmatpush.bf16.msra.mxu0 %v4523
        %6769 = vmatpush.bf16.msra.mxu0 %v4507
        %6770 = vmatpush.bf16.msra.mxu0 %v4491
        %6771 = vmatpush.bf16.msra.mxu0 %v4475
        %6772 = vmatpush.bf16.msra.mxu0 %v4459
        %6773 = vmatpush.bf16.msra.mxu0 %v4443
        %6774 = vmatpush.bf16.msra.mxu0 %v4427
        %6775 = vmatpush.bf16.msra.mxu0 %v4411
        %6776 = vmatmul.bf16.gmra.mxu0 %v288
        %v6777 = vpop.f32.mrf.mxu0
        %v6778 = vadd.f32 0.0, %v6777
        %v6779 = vpop.f32.mrf.mxu0
        %6780 = vdwg.mxu0
        %6781 = vmatpush.bf16.msra.mxu0 %v4651
        %6782 = vmatpush.bf16.msra.mxu0 %v4635
        %6783 = vmatpush.bf16.msra.mxu0 %v4619
        %6784 = vmatpush.bf16.msra.mxu0 %v4603
        %6785 = vmatpush.bf16.msra.mxu0 %v4587
        %6786 = vmatpush.bf16.msra.mxu0 %v4571
        %6787 = vmatpush.bf16.msra.mxu0 %v4555
        %6788 = vmatpush.bf16.msra.mxu0 %v4539
        %6789 = vmatmul.bf16.gmra.mxu0 %v289
        %v6790 = vpop.f32.mrf.mxu0
        %v6791 = vadd.f32 %v6778, %v6790
        %v6792 = vpop.f32.mrf.mxu0
        %6793 = vdwg.mxu0
        %6794 = vmatpush.bf16.msra.mxu0 %v4779
        %6795 = vmatpush.bf16.msra.mxu0 %v4763
        %6796 = vmatpush.bf16.msra.mxu0 %v4747
        %6797 = vmatpush.bf16.msra.mxu0 %v4731
        %6798 = vmatpush.bf16.msra.mxu0 %v4715
        %6799 = vmatpush.bf16.msra.mxu0 %v4699
        %6800 = vmatpush.bf16.msra.mxu0 %v4683
        %6801 = vmatpush.bf16.msra.mxu0 %v4667
        %6802 = vmatmul.bf16.gmra.mxu0 %v290
        %v6803 = vpop.f32.mrf.mxu0
        %v6804 = vadd.f32 %v6791, %v6803
        %v6805 = vpop.f32.mrf.mxu0
        %6806 = vdwg.mxu0
        %6807 = vmatpush.bf16.msra.mxu0 %v4907
        %6808 = vmatpush.bf16.msra.mxu0 %v4891
        %6809 = vmatpush.bf16.msra.mxu0 %v4875
        %6810 = vmatpush.bf16.msra.mxu0 %v4859
        %6811 = vmatpush.bf16.msra.mxu0 %v4843
        %6812 = vmatpush.bf16.msra.mxu0 %v4827
        %6813 = vmatpush.bf16.msra.mxu0 %v4811
        %6814 = vmatpush.bf16.msra.mxu0 %v4795
        %6815 = vmatmul.bf16.gmra.mxu0 %v291
        %v6816 = vpop.f32.mrf.mxu0
        %v6817 = vadd.f32 %v6804, %v6816
        %v6818 = vpop.f32.mrf.mxu0
        %6819 = vdwg.mxu0
        %6820 = vmatpush.bf16.msra.mxu0 %v5035
        %6821 = vmatpush.bf16.msra.mxu0 %v5019
        %6822 = vmatpush.bf16.msra.mxu0 %v5003
        %6823 = vmatpush.bf16.msra.mxu0 %v4987
        %6824 = vmatpush.bf16.msra.mxu0 %v4971
        %6825 = vmatpush.bf16.msra.mxu0 %v4955
        %6826 = vmatpush.bf16.msra.mxu0 %v4939
        %6827 = vmatpush.bf16.msra.mxu0 %v4923
        %6828 = vmatmul.bf16.gmra.mxu0 %v292
        %v6829 = vpop.f32.mrf.mxu0
        %v6830 = vadd.f32 %v6817, %v6829
        %v6831 = vpop.f32.mrf.mxu0
        %6832 = vdwg.mxu0
        %6833 = vmatpush.bf16.msra.mxu0 %v5163
        %6834 = vmatpush.bf16.msra.mxu0 %v5147
        %6835 = vmatpush.bf16.msra.mxu0 %v5131
        %6836 = vmatpush.bf16.msra.mxu0 %v5115
        %6837 = vmatpush.bf16.msra.mxu0 %v5099
        %6838 = vmatpush.bf16.msra.mxu0 %v5083
        %6839 = vmatpush.bf16.msra.mxu0 %v5067
        %6840 = vmatpush.bf16.msra.mxu0 %v5051
        %6841 = vmatmul.bf16.gmra.mxu0 %v293
        %v6842 = vpop.f32.mrf.mxu0
        %v6843 = vadd.f32 %v6830, %v6842
        %v6844 = vpop.f32.mrf.mxu0
        %6845 = vdwg.mxu0
        %6846 = vmatpush.bf16.msra.mxu0 %v5291
        %6847 = vmatpush.bf16.msra.mxu0 %v5275
        %6848 = vmatpush.bf16.msra.mxu0 %v5259
        %6849 = vmatpush.bf16.msra.mxu0 %v5243
        %6850 = vmatpush.bf16.msra.mxu0 %v5227
        %6851 = vmatpush.bf16.msra.mxu0 %v5211
        %6852 = vmatpush.bf16.msra.mxu0 %v5195
        %6853 = vmatpush.bf16.msra.mxu0 %v5179
        %6854 = vmatmul.bf16.gmra.mxu0 %v294
        %v6855 = vpop.f32.mrf.mxu0
        %v6856 = vadd.f32 %v6843, %v6855
        %v6857 = vpop.f32.mrf.mxu0
        %6858 = vdwg.mxu0
        %6859 = vmatpush.bf16.msra.mxu0 %v5419
        %6860 = vmatpush.bf16.msra.mxu0 %v5403
        %6861 = vmatpush.bf16.msra.mxu0 %v5387
        %6862 = vmatpush.bf16.msra.mxu0 %v5371
        %6863 = vmatpush.bf16.msra.mxu0 %v5355
        %6864 = vmatpush.bf16.msra.mxu0 %v5339
        %6865 = vmatpush.bf16.msra.mxu0 %v5323
        %6866 = vmatpush.bf16.msra.mxu0 %v5307
        %6867 = vmatmul.bf16.gmra.mxu0 %v295
        %v6868 = vpop.f32.mrf.mxu0
        %v6869 = vadd.f32 %v6856, %v6868
        %v6870 = vpop.f32.mrf.mxu0
        %6871 = vdwg.mxu0
        %6872 = vmatpush.bf16.msra.mxu0 %v4524
        %6873 = vmatpush.bf16.msra.mxu0 %v4508
        %6874 = vmatpush.bf16.msra.mxu0 %v4492
        %6875 = vmatpush.bf16.msra.mxu0 %v4476
        %6876 = vmatpush.bf16.msra.mxu0 %v4460
        %6877 = vmatpush.bf16.msra.mxu0 %v4444
        %6878 = vmatpush.bf16.msra.mxu0 %v4428
        %6879 = vmatpush.bf16.msra.mxu0 %v4412
        %6880 = vmatmul.bf16.gmra.mxu0 %v288
        %v6881 = vpop.f32.mrf.mxu0
        %v6882 = vadd.f32 0.0, %v6881
        %v6883 = vpop.f32.mrf.mxu0
        %6884 = vdwg.mxu0
        %6885 = vmatpush.bf16.msra.mxu0 %v4652
        %6886 = vmatpush.bf16.msra.mxu0 %v4636
        %6887 = vmatpush.bf16.msra.mxu0 %v4620
        %6888 = vmatpush.bf16.msra.mxu0 %v4604
        %6889 = vmatpush.bf16.msra.mxu0 %v4588
        %6890 = vmatpush.bf16.msra.mxu0 %v4572
        %6891 = vmatpush.bf16.msra.mxu0 %v4556
        %6892 = vmatpush.bf16.msra.mxu0 %v4540
        %6893 = vmatmul.bf16.gmra.mxu0 %v289
        %v6894 = vpop.f32.mrf.mxu0
        %v6895 = vadd.f32 %v6882, %v6894
        %v6896 = vpop.f32.mrf.mxu0
        %6897 = vdwg.mxu0
        %6898 = vmatpush.bf16.msra.mxu0 %v4780
        %6899 = vmatpush.bf16.msra.mxu0 %v4764
        %6900 = vmatpush.bf16.msra.mxu0 %v4748
        %6901 = vmatpush.bf16.msra.mxu0 %v4732
        %6902 = vmatpush.bf16.msra.mxu0 %v4716
        %6903 = vmatpush.bf16.msra.mxu0 %v4700
        %6904 = vmatpush.bf16.msra.mxu0 %v4684
        %6905 = vmatpush.bf16.msra.mxu0 %v4668
        %6906 = vmatmul.bf16.gmra.mxu0 %v290
        %v6907 = vpop.f32.mrf.mxu0
        %v6908 = vadd.f32 %v6895, %v6907
        %v6909 = vpop.f32.mrf.mxu0
        %6910 = vdwg.mxu0
        %6911 = vmatpush.bf16.msra.mxu0 %v4908
        %6912 = vmatpush.bf16.msra.mxu0 %v4892
        %6913 = vmatpush.bf16.msra.mxu0 %v4876
        %6914 = vmatpush.bf16.msra.mxu0 %v4860
        %6915 = vmatpush.bf16.msra.mxu0 %v4844
        %6916 = vmatpush.bf16.msra.mxu0 %v4828
        %6917 = vmatpush.bf16.msra.mxu0 %v4812
        %6918 = vmatpush.bf16.msra.mxu0 %v4796
        %6919 = vmatmul.bf16.gmra.mxu0 %v291
        %v6920 = vpop.f32.mrf.mxu0
        %v6921 = vadd.f32 %v6908, %v6920
        %v6922 = vpop.f32.mrf.mxu0
        %6923 = vdwg.mxu0
        %6924 = vmatpush.bf16.msra.mxu0 %v5036
        %6925 = vmatpush.bf16.msra.mxu0 %v5020
        %6926 = vmatpush.bf16.msra.mxu0 %v5004
        %6927 = vmatpush.bf16.msra.mxu0 %v4988
        %6928 = vmatpush.bf16.msra.mxu0 %v4972
        %6929 = vmatpush.bf16.msra.mxu0 %v4956
        %6930 = vmatpush.bf16.msra.mxu0 %v4940
        %6931 = vmatpush.bf16.msra.mxu0 %v4924
        %6932 = vmatmul.bf16.gmra.mxu0 %v292
        %v6933 = vpop.f32.mrf.mxu0
        %v6934 = vadd.f32 %v6921, %v6933
        %v6935 = vpop.f32.mrf.mxu0
        %6936 = vdwg.mxu0
        %6937 = vmatpush.bf16.msra.mxu0 %v5164
        %6938 = vmatpush.bf16.msra.mxu0 %v5148
        %6939 = vmatpush.bf16.msra.mxu0 %v5132
        %6940 = vmatpush.bf16.msra.mxu0 %v5116
        %6941 = vmatpush.bf16.msra.mxu0 %v5100
        %6942 = vmatpush.bf16.msra.mxu0 %v5084
        %6943 = vmatpush.bf16.msra.mxu0 %v5068
        %6944 = vmatpush.bf16.msra.mxu0 %v5052
        %6945 = vmatmul.bf16.gmra.mxu0 %v293
        %v6946 = vpop.f32.mrf.mxu0
        %v6947 = vadd.f32 %v6934, %v6946
        %v6948 = vpop.f32.mrf.mxu0
        %6949 = vdwg.mxu0
        %6950 = vmatpush.bf16.msra.mxu0 %v5292
        %6951 = vmatpush.bf16.msra.mxu0 %v5276
        %6952 = vmatpush.bf16.msra.mxu0 %v5260
        %6953 = vmatpush.bf16.msra.mxu0 %v5244
        %6954 = vmatpush.bf16.msra.mxu0 %v5228
        %6955 = vmatpush.bf16.msra.mxu0 %v5212
        %6956 = vmatpush.bf16.msra.mxu0 %v5196
        %6957 = vmatpush.bf16.msra.mxu0 %v5180
        %6958 = vmatmul.bf16.gmra.mxu0 %v294
        %v6959 = vpop.f32.mrf.mxu0
        %v6960 = vadd.f32 %v6947, %v6959
        %v6961 = vpop.f32.mrf.mxu0
        %6962 = vdwg.mxu0
        %6963 = vmatpush.bf16.msra.mxu0 %v5420
        %6964 = vmatpush.bf16.msra.mxu0 %v5404
        %6965 = vmatpush.bf16.msra.mxu0 %v5388
        %6966 = vmatpush.bf16.msra.mxu0 %v5372
        %6967 = vmatpush.bf16.msra.mxu0 %v5356
        %6968 = vmatpush.bf16.msra.mxu0 %v5340
        %6969 = vmatpush.bf16.msra.mxu0 %v5324
        %6970 = vmatpush.bf16.msra.mxu0 %v5308
        %6971 = vmatmul.bf16.gmra.mxu0 %v295
        %v6972 = vpop.f32.mrf.mxu0
        %v6973 = vadd.f32 %v6960, %v6972
        %v6974 = vpop.f32.mrf.mxu0
        %6975 = vdwg.mxu0
        %6976 = vmatpush.bf16.msra.mxu0 %v4525
        %6977 = vmatpush.bf16.msra.mxu0 %v4509
        %6978 = vmatpush.bf16.msra.mxu0 %v4493
        %6979 = vmatpush.bf16.msra.mxu0 %v4477
        %6980 = vmatpush.bf16.msra.mxu0 %v4461
        %6981 = vmatpush.bf16.msra.mxu0 %v4445
        %6982 = vmatpush.bf16.msra.mxu0 %v4429
        %6983 = vmatpush.bf16.msra.mxu0 %v4413
        %6984 = vmatmul.bf16.gmra.mxu0 %v288
        %v6985 = vpop.f32.mrf.mxu0
        %v6986 = vadd.f32 0.0, %v6985
        %v6987 = vpop.f32.mrf.mxu0
        %6988 = vdwg.mxu0
        %6989 = vmatpush.bf16.msra.mxu0 %v4653
        %6990 = vmatpush.bf16.msra.mxu0 %v4637
        %6991 = vmatpush.bf16.msra.mxu0 %v4621
        %6992 = vmatpush.bf16.msra.mxu0 %v4605
        %6993 = vmatpush.bf16.msra.mxu0 %v4589
        %6994 = vmatpush.bf16.msra.mxu0 %v4573
        %6995 = vmatpush.bf16.msra.mxu0 %v4557
        %6996 = vmatpush.bf16.msra.mxu0 %v4541
        %6997 = vmatmul.bf16.gmra.mxu0 %v289
        %v6998 = vpop.f32.mrf.mxu0
        %v6999 = vadd.f32 %v6986, %v6998
        %v7000 = vpop.f32.mrf.mxu0
        %7001 = vdwg.mxu0
        %7002 = vmatpush.bf16.msra.mxu0 %v4781
        %7003 = vmatpush.bf16.msra.mxu0 %v4765
        %7004 = vmatpush.bf16.msra.mxu0 %v4749
        %7005 = vmatpush.bf16.msra.mxu0 %v4733
        %7006 = vmatpush.bf16.msra.mxu0 %v4717
        %7007 = vmatpush.bf16.msra.mxu0 %v4701
        %7008 = vmatpush.bf16.msra.mxu0 %v4685
        %7009 = vmatpush.bf16.msra.mxu0 %v4669
        %7010 = vmatmul.bf16.gmra.mxu0 %v290
        %v7011 = vpop.f32.mrf.mxu0
        %v7012 = vadd.f32 %v6999, %v7011
        %v7013 = vpop.f32.mrf.mxu0
        %7014 = vdwg.mxu0
        %7015 = vmatpush.bf16.msra.mxu0 %v4909
        %7016 = vmatpush.bf16.msra.mxu0 %v4893
        %7017 = vmatpush.bf16.msra.mxu0 %v4877
        %7018 = vmatpush.bf16.msra.mxu0 %v4861
        %7019 = vmatpush.bf16.msra.mxu0 %v4845
        %7020 = vmatpush.bf16.msra.mxu0 %v4829
        %7021 = vmatpush.bf16.msra.mxu0 %v4813
        %7022 = vmatpush.bf16.msra.mxu0 %v4797
        %7023 = vmatmul.bf16.gmra.mxu0 %v291
        %v7024 = vpop.f32.mrf.mxu0
        %v7025 = vadd.f32 %v7012, %v7024
        %v7026 = vpop.f32.mrf.mxu0
        %7027 = vdwg.mxu0
        %7028 = vmatpush.bf16.msra.mxu0 %v5037
        %7029 = vmatpush.bf16.msra.mxu0 %v5021
        %7030 = vmatpush.bf16.msra.mxu0 %v5005
        %7031 = vmatpush.bf16.msra.mxu0 %v4989
        %7032 = vmatpush.bf16.msra.mxu0 %v4973
        %7033 = vmatpush.bf16.msra.mxu0 %v4957
        %7034 = vmatpush.bf16.msra.mxu0 %v4941
        %7035 = vmatpush.bf16.msra.mxu0 %v4925
        %7036 = vmatmul.bf16.gmra.mxu0 %v292
        %v7037 = vpop.f32.mrf.mxu0
        %v7038 = vadd.f32 %v7025, %v7037
        %v7039 = vpop.f32.mrf.mxu0
        %7040 = vdwg.mxu0
        %7041 = vmatpush.bf16.msra.mxu0 %v5165
        %7042 = vmatpush.bf16.msra.mxu0 %v5149
        %7043 = vmatpush.bf16.msra.mxu0 %v5133
        %7044 = vmatpush.bf16.msra.mxu0 %v5117
        %7045 = vmatpush.bf16.msra.mxu0 %v5101
        %7046 = vmatpush.bf16.msra.mxu0 %v5085
        %7047 = vmatpush.bf16.msra.mxu0 %v5069
        %7048 = vmatpush.bf16.msra.mxu0 %v5053
        %7049 = vmatmul.bf16.gmra.mxu0 %v293
        %v7050 = vpop.f32.mrf.mxu0
        %v7051 = vadd.f32 %v7038, %v7050
        %v7052 = vpop.f32.mrf.mxu0
        %7053 = vdwg.mxu0
        %7054 = vmatpush.bf16.msra.mxu0 %v5293
        %7055 = vmatpush.bf16.msra.mxu0 %v5277
        %7056 = vmatpush.bf16.msra.mxu0 %v5261
        %7057 = vmatpush.bf16.msra.mxu0 %v5245
        %7058 = vmatpush.bf16.msra.mxu0 %v5229
        %7059 = vmatpush.bf16.msra.mxu0 %v5213
        %7060 = vmatpush.bf16.msra.mxu0 %v5197
        %7061 = vmatpush.bf16.msra.mxu0 %v5181
        %7062 = vmatmul.bf16.gmra.mxu0 %v294
        %v7063 = vpop.f32.mrf.mxu0
        %v7064 = vadd.f32 %v7051, %v7063
        %v7065 = vpop.f32.mrf.mxu0
        %7066 = vdwg.mxu0
        %7067 = vmatpush.bf16.msra.mxu0 %v5421
        %7068 = vmatpush.bf16.msra.mxu0 %v5405
        %7069 = vmatpush.bf16.msra.mxu0 %v5389
        %7070 = vmatpush.bf16.msra.mxu0 %v5373
        %7071 = vmatpush.bf16.msra.mxu0 %v5357
        %7072 = vmatpush.bf16.msra.mxu0 %v5341
        %7073 = vmatpush.bf16.msra.mxu0 %v5325
        %7074 = vmatpush.bf16.msra.mxu0 %v5309
        %7075 = vmatmul.bf16.gmra.mxu0 %v295
        %v7076 = vpop.f32.mrf.mxu0
        %v7077 = vadd.f32 %v7064, %v7076
        %v7078 = vpop.f32.mrf.mxu0
        %7079 = vdwg.mxu0
        %7080 = vmatpush.bf16.msra.mxu0 %v4526
        %7081 = vmatpush.bf16.msra.mxu0 %v4510
        %7082 = vmatpush.bf16.msra.mxu0 %v4494
        %7083 = vmatpush.bf16.msra.mxu0 %v4478
        %7084 = vmatpush.bf16.msra.mxu0 %v4462
        %7085 = vmatpush.bf16.msra.mxu0 %v4446
        %7086 = vmatpush.bf16.msra.mxu0 %v4430
        %7087 = vmatpush.bf16.msra.mxu0 %v4414
        %7088 = vmatmul.bf16.gmra.mxu0 %v288
        %v7089 = vpop.f32.mrf.mxu0
        %v7090 = vadd.f32 0.0, %v7089
        %v7091 = vpop.f32.mrf.mxu0
        %7092 = vdwg.mxu0
        %7093 = vmatpush.bf16.msra.mxu0 %v4654
        %7094 = vmatpush.bf16.msra.mxu0 %v4638
        %7095 = vmatpush.bf16.msra.mxu0 %v4622
        %7096 = vmatpush.bf16.msra.mxu0 %v4606
        %7097 = vmatpush.bf16.msra.mxu0 %v4590
        %7098 = vmatpush.bf16.msra.mxu0 %v4574
        %7099 = vmatpush.bf16.msra.mxu0 %v4558
        %7100 = vmatpush.bf16.msra.mxu0 %v4542
        %7101 = vmatmul.bf16.gmra.mxu0 %v289
        %v7102 = vpop.f32.mrf.mxu0
        %v7103 = vadd.f32 %v7090, %v7102
        %v7104 = vpop.f32.mrf.mxu0
        %7105 = vdwg.mxu0
        %7106 = vmatpush.bf16.msra.mxu0 %v4782
        %7107 = vmatpush.bf16.msra.mxu0 %v4766
        %7108 = vmatpush.bf16.msra.mxu0 %v4750
        %7109 = vmatpush.bf16.msra.mxu0 %v4734
        %7110 = vmatpush.bf16.msra.mxu0 %v4718
        %7111 = vmatpush.bf16.msra.mxu0 %v4702
        %7112 = vmatpush.bf16.msra.mxu0 %v4686
        %7113 = vmatpush.bf16.msra.mxu0 %v4670
        %7114 = vmatmul.bf16.gmra.mxu0 %v290
        %v7115 = vpop.f32.mrf.mxu0
        %v7116 = vadd.f32 %v7103, %v7115
        %v7117 = vpop.f32.mrf.mxu0
        %7118 = vdwg.mxu0
        %7119 = vmatpush.bf16.msra.mxu0 %v4910
        %7120 = vmatpush.bf16.msra.mxu0 %v4894
        %7121 = vmatpush.bf16.msra.mxu0 %v4878
        %7122 = vmatpush.bf16.msra.mxu0 %v4862
        %7123 = vmatpush.bf16.msra.mxu0 %v4846
        %7124 = vmatpush.bf16.msra.mxu0 %v4830
        %7125 = vmatpush.bf16.msra.mxu0 %v4814
        %7126 = vmatpush.bf16.msra.mxu0 %v4798
        %7127 = vmatmul.bf16.gmra.mxu0 %v291
        %v7128 = vpop.f32.mrf.mxu0
        %v7129 = vadd.f32 %v7116, %v7128
        %v7130 = vpop.f32.mrf.mxu0
        %7131 = vdwg.mxu0
        %7132 = vmatpush.bf16.msra.mxu0 %v5038
        %7133 = vmatpush.bf16.msra.mxu0 %v5022
        %7134 = vmatpush.bf16.msra.mxu0 %v5006
        %7135 = vmatpush.bf16.msra.mxu0 %v4990
        %7136 = vmatpush.bf16.msra.mxu0 %v4974
        %7137 = vmatpush.bf16.msra.mxu0 %v4958
        %7138 = vmatpush.bf16.msra.mxu0 %v4942
        %7139 = vmatpush.bf16.msra.mxu0 %v4926
        %7140 = vmatmul.bf16.gmra.mxu0 %v292
        %v7141 = vpop.f32.mrf.mxu0
        %v7142 = vadd.f32 %v7129, %v7141
        %v7143 = vpop.f32.mrf.mxu0
        %7144 = vdwg.mxu0
        %7145 = vmatpush.bf16.msra.mxu0 %v5166
        %7146 = vmatpush.bf16.msra.mxu0 %v5150
        %7147 = vmatpush.bf16.msra.mxu0 %v5134
        %7148 = vmatpush.bf16.msra.mxu0 %v5118
        %7149 = vmatpush.bf16.msra.mxu0 %v5102
        %7150 = vmatpush.bf16.msra.mxu0 %v5086
        %7151 = vmatpush.bf16.msra.mxu0 %v5070
        %7152 = vmatpush.bf16.msra.mxu0 %v5054
        %7153 = vmatmul.bf16.gmra.mxu0 %v293
        %v7154 = vpop.f32.mrf.mxu0
        %v7155 = vadd.f32 %v7142, %v7154
        %v7156 = vpop.f32.mrf.mxu0
        %7157 = vdwg.mxu0
        %7158 = vmatpush.bf16.msra.mxu0 %v5294
        %7159 = vmatpush.bf16.msra.mxu0 %v5278
        %7160 = vmatpush.bf16.msra.mxu0 %v5262
        %7161 = vmatpush.bf16.msra.mxu0 %v5246
        %7162 = vmatpush.bf16.msra.mxu0 %v5230
        %7163 = vmatpush.bf16.msra.mxu0 %v5214
        %7164 = vmatpush.bf16.msra.mxu0 %v5198
        %7165 = vmatpush.bf16.msra.mxu0 %v5182
        %7166 = vmatmul.bf16.gmra.mxu0 %v294
        %v7167 = vpop.f32.mrf.mxu0
        %v7168 = vadd.f32 %v7155, %v7167
        %v7169 = vpop.f32.mrf.mxu0
        %7170 = vdwg.mxu0
        %7171 = vmatpush.bf16.msra.mxu0 %v5422
        %7172 = vmatpush.bf16.msra.mxu0 %v5406
        %7173 = vmatpush.bf16.msra.mxu0 %v5390
        %7174 = vmatpush.bf16.msra.mxu0 %v5374
        %7175 = vmatpush.bf16.msra.mxu0 %v5358
        %7176 = vmatpush.bf16.msra.mxu0 %v5342
        %7177 = vmatpush.bf16.msra.mxu0 %v5326
        %7178 = vmatpush.bf16.msra.mxu0 %v5310
        %7179 = vmatmul.bf16.gmra.mxu0 %v295
        %v7180 = vpop.f32.mrf.mxu0
        %v7181 = vadd.f32 %v7168, %v7180
        %v7182 = vpop.f32.mrf.mxu0
        %7183 = vdwg.mxu0
        %7184 = vmatpush.bf16.msra.mxu0 %v4527
        %7185 = vmatpush.bf16.msra.mxu0 %v4511
        %7186 = vmatpush.bf16.msra.mxu0 %v4495
        %7187 = vmatpush.bf16.msra.mxu0 %v4479
        %7188 = vmatpush.bf16.msra.mxu0 %v4463
        %7189 = vmatpush.bf16.msra.mxu0 %v4447
        %7190 = vmatpush.bf16.msra.mxu0 %v4431
        %7191 = vmatpush.bf16.msra.mxu0 %v4415
        %7192 = vmatmul.bf16.gmra.mxu0 %v288
        %v7193 = vpop.f32.mrf.mxu0
        %v7194 = vadd.f32 0.0, %v7193
        %v7195 = vpop.f32.mrf.mxu0
        %7196 = vdwg.mxu0
        %7197 = vmatpush.bf16.msra.mxu0 %v4655
        %7198 = vmatpush.bf16.msra.mxu0 %v4639
        %7199 = vmatpush.bf16.msra.mxu0 %v4623
        %7200 = vmatpush.bf16.msra.mxu0 %v4607
        %7201 = vmatpush.bf16.msra.mxu0 %v4591
        %7202 = vmatpush.bf16.msra.mxu0 %v4575
        %7203 = vmatpush.bf16.msra.mxu0 %v4559
        %7204 = vmatpush.bf16.msra.mxu0 %v4543
        %7205 = vmatmul.bf16.gmra.mxu0 %v289
        %v7206 = vpop.f32.mrf.mxu0
        %v7207 = vadd.f32 %v7194, %v7206
        %v7208 = vpop.f32.mrf.mxu0
        %7209 = vdwg.mxu0
        %7210 = vmatpush.bf16.msra.mxu0 %v4783
        %7211 = vmatpush.bf16.msra.mxu0 %v4767
        %7212 = vmatpush.bf16.msra.mxu0 %v4751
        %7213 = vmatpush.bf16.msra.mxu0 %v4735
        %7214 = vmatpush.bf16.msra.mxu0 %v4719
        %7215 = vmatpush.bf16.msra.mxu0 %v4703
        %7216 = vmatpush.bf16.msra.mxu0 %v4687
        %7217 = vmatpush.bf16.msra.mxu0 %v4671
        %7218 = vmatmul.bf16.gmra.mxu0 %v290
        %v7219 = vpop.f32.mrf.mxu0
        %v7220 = vadd.f32 %v7207, %v7219
        %v7221 = vpop.f32.mrf.mxu0
        %7222 = vdwg.mxu0
        %7223 = vmatpush.bf16.msra.mxu0 %v4911
        %7224 = vmatpush.bf16.msra.mxu0 %v4895
        %7225 = vmatpush.bf16.msra.mxu0 %v4879
        %7226 = vmatpush.bf16.msra.mxu0 %v4863
        %7227 = vmatpush.bf16.msra.mxu0 %v4847
        %7228 = vmatpush.bf16.msra.mxu0 %v4831
        %7229 = vmatpush.bf16.msra.mxu0 %v4815
        %7230 = vmatpush.bf16.msra.mxu0 %v4799
        %7231 = vmatmul.bf16.gmra.mxu0 %v291
        %v7232 = vpop.f32.mrf.mxu0
        %v7233 = vadd.f32 %v7220, %v7232
        %v7234 = vpop.f32.mrf.mxu0
        %7235 = vdwg.mxu0
        %7236 = vmatpush.bf16.msra.mxu0 %v5039
        %7237 = vmatpush.bf16.msra.mxu0 %v5023
        %7238 = vmatpush.bf16.msra.mxu0 %v5007
        %7239 = vmatpush.bf16.msra.mxu0 %v4991
        %7240 = vmatpush.bf16.msra.mxu0 %v4975
        %7241 = vmatpush.bf16.msra.mxu0 %v4959
        %7242 = vmatpush.bf16.msra.mxu0 %v4943
        %7243 = vmatpush.bf16.msra.mxu0 %v4927
        %7244 = vmatmul.bf16.gmra.mxu0 %v292
        %v7245 = vpop.f32.mrf.mxu0
        %v7246 = vadd.f32 %v7233, %v7245
        %v7247 = vpop.f32.mrf.mxu0
        %7248 = vdwg.mxu0
        %7249 = vmatpush.bf16.msra.mxu0 %v5167
        %7250 = vmatpush.bf16.msra.mxu0 %v5151
        %7251 = vmatpush.bf16.msra.mxu0 %v5135
        %7252 = vmatpush.bf16.msra.mxu0 %v5119
        %7253 = vmatpush.bf16.msra.mxu0 %v5103
        %7254 = vmatpush.bf16.msra.mxu0 %v5087
        %7255 = vmatpush.bf16.msra.mxu0 %v5071
        %7256 = vmatpush.bf16.msra.mxu0 %v5055
        %7257 = vmatmul.bf16.gmra.mxu0 %v293
        %v7258 = vpop.f32.mrf.mxu0
        %v7259 = vadd.f32 %v7246, %v7258
        %v7260 = vpop.f32.mrf.mxu0
        %7261 = vdwg.mxu0
        %7262 = vmatpush.bf16.msra.mxu0 %v5295
        %7263 = vmatpush.bf16.msra.mxu0 %v5279
        %7264 = vmatpush.bf16.msra.mxu0 %v5263
        %7265 = vmatpush.bf16.msra.mxu0 %v5247
        %7266 = vmatpush.bf16.msra.mxu0 %v5231
        %7267 = vmatpush.bf16.msra.mxu0 %v5215
        %7268 = vmatpush.bf16.msra.mxu0 %v5199
        %7269 = vmatpush.bf16.msra.mxu0 %v5183
        %7270 = vmatmul.bf16.gmra.mxu0 %v294
        %v7271 = vpop.f32.mrf.mxu0
        %v7272 = vadd.f32 %v7259, %v7271
        %v7273 = vpop.f32.mrf.mxu0
        %7274 = vdwg.mxu0
        %7275 = vmatpush.bf16.msra.mxu0 %v5423
        %7276 = vmatpush.bf16.msra.mxu0 %v5407
        %7277 = vmatpush.bf16.msra.mxu0 %v5391
        %7278 = vmatpush.bf16.msra.mxu0 %v5375
        %7279 = vmatpush.bf16.msra.mxu0 %v5359
        %7280 = vmatpush.bf16.msra.mxu0 %v5343
        %7281 = vmatpush.bf16.msra.mxu0 %v5327
        %7282 = vmatpush.bf16.msra.mxu0 %v5311
        %7283 = vmatmul.bf16.gmra.mxu0 %v295
        %v7284 = vpop.f32.mrf.mxu0
        %v7285 = vadd.f32 %v7272, %v7284
        %v7286 = vpop.f32.mrf.mxu0
        %7287 = vdwg.mxu0
        %7288 = vmatpush.bf16.msra.mxu0 %v4528
        %7289 = vmatpush.bf16.msra.mxu0 %v4512
        %7290 = vmatpush.bf16.msra.mxu0 %v4496
        %7291 = vmatpush.bf16.msra.mxu0 %v4480
        %7292 = vmatpush.bf16.msra.mxu0 %v4464
        %7293 = vmatpush.bf16.msra.mxu0 %v4448
        %7294 = vmatpush.bf16.msra.mxu0 %v4432
        %7295 = vmatpush.bf16.msra.mxu0 %v4416
        %7296 = vmatmul.bf16.gmra.mxu0 %v288
        %v7297 = vpop.f32.mrf.mxu0
        %v7298 = vadd.f32 0.0, %v7297
        %v7299 = vpop.f32.mrf.mxu0
        %7300 = vdwg.mxu0
        %7301 = vmatpush.bf16.msra.mxu0 %v4656
        %7302 = vmatpush.bf16.msra.mxu0 %v4640
        %7303 = vmatpush.bf16.msra.mxu0 %v4624
        %7304 = vmatpush.bf16.msra.mxu0 %v4608
        %7305 = vmatpush.bf16.msra.mxu0 %v4592
        %7306 = vmatpush.bf16.msra.mxu0 %v4576
        %7307 = vmatpush.bf16.msra.mxu0 %v4560
        %7308 = vmatpush.bf16.msra.mxu0 %v4544
        %7309 = vmatmul.bf16.gmra.mxu0 %v289
        %v7310 = vpop.f32.mrf.mxu0
        %v7311 = vadd.f32 %v7298, %v7310
        %v7312 = vpop.f32.mrf.mxu0
        %7313 = vdwg.mxu0
        %7314 = vmatpush.bf16.msra.mxu0 %v4784
        %7315 = vmatpush.bf16.msra.mxu0 %v4768
        %7316 = vmatpush.bf16.msra.mxu0 %v4752
        %7317 = vmatpush.bf16.msra.mxu0 %v4736
        %7318 = vmatpush.bf16.msra.mxu0 %v4720
        %7319 = vmatpush.bf16.msra.mxu0 %v4704
        %7320 = vmatpush.bf16.msra.mxu0 %v4688
        %7321 = vmatpush.bf16.msra.mxu0 %v4672
        %7322 = vmatmul.bf16.gmra.mxu0 %v290
        %v7323 = vpop.f32.mrf.mxu0
        %v7324 = vadd.f32 %v7311, %v7323
        %v7325 = vpop.f32.mrf.mxu0
        %7326 = vdwg.mxu0
        %7327 = vmatpush.bf16.msra.mxu0 %v4912
        %7328 = vmatpush.bf16.msra.mxu0 %v4896
        %7329 = vmatpush.bf16.msra.mxu0 %v4880
        %7330 = vmatpush.bf16.msra.mxu0 %v4864
        %7331 = vmatpush.bf16.msra.mxu0 %v4848
        %7332 = vmatpush.bf16.msra.mxu0 %v4832
        %7333 = vmatpush.bf16.msra.mxu0 %v4816
        %7334 = vmatpush.bf16.msra.mxu0 %v4800
        %7335 = vmatmul.bf16.gmra.mxu0 %v291
        %v7336 = vpop.f32.mrf.mxu0
        %v7337 = vadd.f32 %v7324, %v7336
        %v7338 = vpop.f32.mrf.mxu0
        %7339 = vdwg.mxu0
        %7340 = vmatpush.bf16.msra.mxu0 %v5040
        %7341 = vmatpush.bf16.msra.mxu0 %v5024
        %7342 = vmatpush.bf16.msra.mxu0 %v5008
        %7343 = vmatpush.bf16.msra.mxu0 %v4992
        %7344 = vmatpush.bf16.msra.mxu0 %v4976
        %7345 = vmatpush.bf16.msra.mxu0 %v4960
        %7346 = vmatpush.bf16.msra.mxu0 %v4944
        %7347 = vmatpush.bf16.msra.mxu0 %v4928
        %7348 = vmatmul.bf16.gmra.mxu0 %v292
        %v7349 = vpop.f32.mrf.mxu0
        %v7350 = vadd.f32 %v7337, %v7349
        %v7351 = vpop.f32.mrf.mxu0
        %7352 = vdwg.mxu0
        %7353 = vmatpush.bf16.msra.mxu0 %v5168
        %7354 = vmatpush.bf16.msra.mxu0 %v5152
        %7355 = vmatpush.bf16.msra.mxu0 %v5136
        %7356 = vmatpush.bf16.msra.mxu0 %v5120
        %7357 = vmatpush.bf16.msra.mxu0 %v5104
        %7358 = vmatpush.bf16.msra.mxu0 %v5088
        %7359 = vmatpush.bf16.msra.mxu0 %v5072
        %7360 = vmatpush.bf16.msra.mxu0 %v5056
        %7361 = vmatmul.bf16.gmra.mxu0 %v293
        %v7362 = vpop.f32.mrf.mxu0
        %v7363 = vadd.f32 %v7350, %v7362
        %v7364 = vpop.f32.mrf.mxu0
        %7365 = vdwg.mxu0
        %7366 = vmatpush.bf16.msra.mxu0 %v5296
        %7367 = vmatpush.bf16.msra.mxu0 %v5280
        %7368 = vmatpush.bf16.msra.mxu0 %v5264
        %7369 = vmatpush.bf16.msra.mxu0 %v5248
        %7370 = vmatpush.bf16.msra.mxu0 %v5232
        %7371 = vmatpush.bf16.msra.mxu0 %v5216
        %7372 = vmatpush.bf16.msra.mxu0 %v5200
        %7373 = vmatpush.bf16.msra.mxu0 %v5184
        %7374 = vmatmul.bf16.gmra.mxu0 %v294
        %v7375 = vpop.f32.mrf.mxu0
        %v7376 = vadd.f32 %v7363, %v7375
        %v7377 = vpop.f32.mrf.mxu0
        %7378 = vdwg.mxu0
        %7379 = vmatpush.bf16.msra.mxu0 %v5424
        %7380 = vmatpush.bf16.msra.mxu0 %v5408
        %7381 = vmatpush.bf16.msra.mxu0 %v5392
        %7382 = vmatpush.bf16.msra.mxu0 %v5376
        %7383 = vmatpush.bf16.msra.mxu0 %v5360
        %7384 = vmatpush.bf16.msra.mxu0 %v5344
        %7385 = vmatpush.bf16.msra.mxu0 %v5328
        %7386 = vmatpush.bf16.msra.mxu0 %v5312
        %7387 = vmatmul.bf16.gmra.mxu0 %v295
        %v7388 = vpop.f32.mrf.mxu0
        %v7389 = vadd.f32 %v7376, %v7388
        %v7390 = vpop.f32.mrf.mxu0
        %7391 = vdwg.mxu0
        %7392 = vmatpush.bf16.msra.mxu0 %v4529
        %7393 = vmatpush.bf16.msra.mxu0 %v4513
        %7394 = vmatpush.bf16.msra.mxu0 %v4497
        %7395 = vmatpush.bf16.msra.mxu0 %v4481
        %7396 = vmatpush.bf16.msra.mxu0 %v4465
        %7397 = vmatpush.bf16.msra.mxu0 %v4449
        %7398 = vmatpush.bf16.msra.mxu0 %v4433
        %7399 = vmatpush.bf16.msra.mxu0 %v4417
        %7400 = vmatmul.bf16.gmra.mxu0 %v288
        %v7401 = vpop.f32.mrf.mxu0
        %v7402 = vadd.f32 0.0, %v7401
        %v7403 = vpop.f32.mrf.mxu0
        %7404 = vdwg.mxu0
        %7405 = vmatpush.bf16.msra.mxu0 %v4657
        %7406 = vmatpush.bf16.msra.mxu0 %v4641
        %7407 = vmatpush.bf16.msra.mxu0 %v4625
        %7408 = vmatpush.bf16.msra.mxu0 %v4609
        %7409 = vmatpush.bf16.msra.mxu0 %v4593
        %7410 = vmatpush.bf16.msra.mxu0 %v4577
        %7411 = vmatpush.bf16.msra.mxu0 %v4561
        %7412 = vmatpush.bf16.msra.mxu0 %v4545
        %7413 = vmatmul.bf16.gmra.mxu0 %v289
        %v7414 = vpop.f32.mrf.mxu0
        %v7415 = vadd.f32 %v7402, %v7414
        %v7416 = vpop.f32.mrf.mxu0
        %7417 = vdwg.mxu0
        %7418 = vmatpush.bf16.msra.mxu0 %v4785
        %7419 = vmatpush.bf16.msra.mxu0 %v4769
        %7420 = vmatpush.bf16.msra.mxu0 %v4753
        %7421 = vmatpush.bf16.msra.mxu0 %v4737
        %7422 = vmatpush.bf16.msra.mxu0 %v4721
        %7423 = vmatpush.bf16.msra.mxu0 %v4705
        %7424 = vmatpush.bf16.msra.mxu0 %v4689
        %7425 = vmatpush.bf16.msra.mxu0 %v4673
        %7426 = vmatmul.bf16.gmra.mxu0 %v290
        %v7427 = vpop.f32.mrf.mxu0
        %v7428 = vadd.f32 %v7415, %v7427
        %v7429 = vpop.f32.mrf.mxu0
        %7430 = vdwg.mxu0
        %7431 = vmatpush.bf16.msra.mxu0 %v4913
        %7432 = vmatpush.bf16.msra.mxu0 %v4897
        %7433 = vmatpush.bf16.msra.mxu0 %v4881
        %7434 = vmatpush.bf16.msra.mxu0 %v4865
        %7435 = vmatpush.bf16.msra.mxu0 %v4849
        %7436 = vmatpush.bf16.msra.mxu0 %v4833
        %7437 = vmatpush.bf16.msra.mxu0 %v4817
        %7438 = vmatpush.bf16.msra.mxu0 %v4801
        %7439 = vmatmul.bf16.gmra.mxu0 %v291
        %v7440 = vpop.f32.mrf.mxu0
        %v7441 = vadd.f32 %v7428, %v7440
        %v7442 = vpop.f32.mrf.mxu0
        %7443 = vdwg.mxu0
        %7444 = vmatpush.bf16.msra.mxu0 %v5041
        %7445 = vmatpush.bf16.msra.mxu0 %v5025
        %7446 = vmatpush.bf16.msra.mxu0 %v5009
        %7447 = vmatpush.bf16.msra.mxu0 %v4993
        %7448 = vmatpush.bf16.msra.mxu0 %v4977
        %7449 = vmatpush.bf16.msra.mxu0 %v4961
        %7450 = vmatpush.bf16.msra.mxu0 %v4945
        %7451 = vmatpush.bf16.msra.mxu0 %v4929
        %7452 = vmatmul.bf16.gmra.mxu0 %v292
        %v7453 = vpop.f32.mrf.mxu0
        %v7454 = vadd.f32 %v7441, %v7453
        %v7455 = vpop.f32.mrf.mxu0
        %7456 = vdwg.mxu0
        %7457 = vmatpush.bf16.msra.mxu0 %v5169
        %7458 = vmatpush.bf16.msra.mxu0 %v5153
        %7459 = vmatpush.bf16.msra.mxu0 %v5137
        %7460 = vmatpush.bf16.msra.mxu0 %v5121
        %7461 = vmatpush.bf16.msra.mxu0 %v5105
        %7462 = vmatpush.bf16.msra.mxu0 %v5089
        %7463 = vmatpush.bf16.msra.mxu0 %v5073
        %7464 = vmatpush.bf16.msra.mxu0 %v5057
        %7465 = vmatmul.bf16.gmra.mxu0 %v293
        %v7466 = vpop.f32.mrf.mxu0
        %v7467 = vadd.f32 %v7454, %v7466
        %v7468 = vpop.f32.mrf.mxu0
        %7469 = vdwg.mxu0
        %7470 = vmatpush.bf16.msra.mxu0 %v5297
        %7471 = vmatpush.bf16.msra.mxu0 %v5281
        %7472 = vmatpush.bf16.msra.mxu0 %v5265
        %7473 = vmatpush.bf16.msra.mxu0 %v5249
        %7474 = vmatpush.bf16.msra.mxu0 %v5233
        %7475 = vmatpush.bf16.msra.mxu0 %v5217
        %7476 = vmatpush.bf16.msra.mxu0 %v5201
        %7477 = vmatpush.bf16.msra.mxu0 %v5185
        %7478 = vmatmul.bf16.gmra.mxu0 %v294
        %v7479 = vpop.f32.mrf.mxu0
        %v7480 = vadd.f32 %v7467, %v7479
        %v7481 = vpop.f32.mrf.mxu0
        %7482 = vdwg.mxu0
        %7483 = vmatpush.bf16.msra.mxu0 %v5425
        %7484 = vmatpush.bf16.msra.mxu0 %v5409
        %7485 = vmatpush.bf16.msra.mxu0 %v5393
        %7486 = vmatpush.bf16.msra.mxu0 %v5377
        %7487 = vmatpush.bf16.msra.mxu0 %v5361
        %7488 = vmatpush.bf16.msra.mxu0 %v5345
        %7489 = vmatpush.bf16.msra.mxu0 %v5329
        %7490 = vmatpush.bf16.msra.mxu0 %v5313
        %7491 = vmatmul.bf16.gmra.mxu0 %v295
        %v7492 = vpop.f32.mrf.mxu0
        %v7493 = vadd.f32 %v7480, %v7492
        %v7494 = vpop.f32.mrf.mxu0
        %7495 = vdwg.mxu0
        %7496 = vmatpush.bf16.msra.mxu0 %v4530
        %7497 = vmatpush.bf16.msra.mxu0 %v4514
        %7498 = vmatpush.bf16.msra.mxu0 %v4498
        %7499 = vmatpush.bf16.msra.mxu0 %v4482
        %7500 = vmatpush.bf16.msra.mxu0 %v4466
        %7501 = vmatpush.bf16.msra.mxu0 %v4450
        %7502 = vmatpush.bf16.msra.mxu0 %v4434
        %7503 = vmatpush.bf16.msra.mxu0 %v4418
        %7504 = vmatmul.bf16.gmra.mxu0 %v288
        %v7505 = vpop.f32.mrf.mxu0
        %v7506 = vadd.f32 0.0, %v7505
        %v7507 = vpop.f32.mrf.mxu0
        %7508 = vdwg.mxu0
        %7509 = vmatpush.bf16.msra.mxu0 %v4658
        %7510 = vmatpush.bf16.msra.mxu0 %v4642
        %7511 = vmatpush.bf16.msra.mxu0 %v4626
        %7512 = vmatpush.bf16.msra.mxu0 %v4610
        %7513 = vmatpush.bf16.msra.mxu0 %v4594
        %7514 = vmatpush.bf16.msra.mxu0 %v4578
        %7515 = vmatpush.bf16.msra.mxu0 %v4562
        %7516 = vmatpush.bf16.msra.mxu0 %v4546
        %7517 = vmatmul.bf16.gmra.mxu0 %v289
        %v7518 = vpop.f32.mrf.mxu0
        %v7519 = vadd.f32 %v7506, %v7518
        %v7520 = vpop.f32.mrf.mxu0
        %7521 = vdwg.mxu0
        %7522 = vmatpush.bf16.msra.mxu0 %v4786
        %7523 = vmatpush.bf16.msra.mxu0 %v4770
        %7524 = vmatpush.bf16.msra.mxu0 %v4754
        %7525 = vmatpush.bf16.msra.mxu0 %v4738
        %7526 = vmatpush.bf16.msra.mxu0 %v4722
        %7527 = vmatpush.bf16.msra.mxu0 %v4706
        %7528 = vmatpush.bf16.msra.mxu0 %v4690
        %7529 = vmatpush.bf16.msra.mxu0 %v4674
        %7530 = vmatmul.bf16.gmra.mxu0 %v290
        %v7531 = vpop.f32.mrf.mxu0
        %v7532 = vadd.f32 %v7519, %v7531
        %v7533 = vpop.f32.mrf.mxu0
        %7534 = vdwg.mxu0
        %7535 = vmatpush.bf16.msra.mxu0 %v4914
        %7536 = vmatpush.bf16.msra.mxu0 %v4898
        %7537 = vmatpush.bf16.msra.mxu0 %v4882
        %7538 = vmatpush.bf16.msra.mxu0 %v4866
        %7539 = vmatpush.bf16.msra.mxu0 %v4850
        %7540 = vmatpush.bf16.msra.mxu0 %v4834
        %7541 = vmatpush.bf16.msra.mxu0 %v4818
        %7542 = vmatpush.bf16.msra.mxu0 %v4802
        %7543 = vmatmul.bf16.gmra.mxu0 %v291
        %v7544 = vpop.f32.mrf.mxu0
        %v7545 = vadd.f32 %v7532, %v7544
        %v7546 = vpop.f32.mrf.mxu0
        %7547 = vdwg.mxu0
        %7548 = vmatpush.bf16.msra.mxu0 %v5042
        %7549 = vmatpush.bf16.msra.mxu0 %v5026
        %7550 = vmatpush.bf16.msra.mxu0 %v5010
        %7551 = vmatpush.bf16.msra.mxu0 %v4994
        %7552 = vmatpush.bf16.msra.mxu0 %v4978
        %7553 = vmatpush.bf16.msra.mxu0 %v4962
        %7554 = vmatpush.bf16.msra.mxu0 %v4946
        %7555 = vmatpush.bf16.msra.mxu0 %v4930
        %7556 = vmatmul.bf16.gmra.mxu0 %v292
        %v7557 = vpop.f32.mrf.mxu0
        %v7558 = vadd.f32 %v7545, %v7557
        %v7559 = vpop.f32.mrf.mxu0
        %7560 = vdwg.mxu0
        %7561 = vmatpush.bf16.msra.mxu0 %v5170
        %7562 = vmatpush.bf16.msra.mxu0 %v5154
        %7563 = vmatpush.bf16.msra.mxu0 %v5138
        %7564 = vmatpush.bf16.msra.mxu0 %v5122
        %7565 = vmatpush.bf16.msra.mxu0 %v5106
        %7566 = vmatpush.bf16.msra.mxu0 %v5090
        %7567 = vmatpush.bf16.msra.mxu0 %v5074
        %7568 = vmatpush.bf16.msra.mxu0 %v5058
        %7569 = vmatmul.bf16.gmra.mxu0 %v293
        %v7570 = vpop.f32.mrf.mxu0
        %v7571 = vadd.f32 %v7558, %v7570
        %v7572 = vpop.f32.mrf.mxu0
        %7573 = vdwg.mxu0
        %7574 = vmatpush.bf16.msra.mxu0 %v5298
        %7575 = vmatpush.bf16.msra.mxu0 %v5282
        %7576 = vmatpush.bf16.msra.mxu0 %v5266
        %7577 = vmatpush.bf16.msra.mxu0 %v5250
        %7578 = vmatpush.bf16.msra.mxu0 %v5234
        %7579 = vmatpush.bf16.msra.mxu0 %v5218
        %7580 = vmatpush.bf16.msra.mxu0 %v5202
        %7581 = vmatpush.bf16.msra.mxu0 %v5186
        %7582 = vmatmul.bf16.gmra.mxu0 %v294
        %v7583 = vpop.f32.mrf.mxu0
        %v7584 = vadd.f32 %v7571, %v7583
        %v7585 = vpop.f32.mrf.mxu0
        %7586 = vdwg.mxu0
        %7587 = vmatpush.bf16.msra.mxu0 %v5426
        %7588 = vmatpush.bf16.msra.mxu0 %v5410
        %7589 = vmatpush.bf16.msra.mxu0 %v5394
        %7590 = vmatpush.bf16.msra.mxu0 %v5378
        %7591 = vmatpush.bf16.msra.mxu0 %v5362
        %7592 = vmatpush.bf16.msra.mxu0 %v5346
        %7593 = vmatpush.bf16.msra.mxu0 %v5330
        %7594 = vmatpush.bf16.msra.mxu0 %v5314
        %7595 = vmatmul.bf16.gmra.mxu0 %v295
        %v7596 = vpop.f32.mrf.mxu0
        %v7597 = vadd.f32 %v7584, %v7596
        %v7598 = vpop.f32.mrf.mxu0
        %7599 = vdwg.mxu0
        %7600 = vmatpush.bf16.msra.mxu0 %v4531
        %7601 = vmatpush.bf16.msra.mxu0 %v4515
        %7602 = vmatpush.bf16.msra.mxu0 %v4499
        %7603 = vmatpush.bf16.msra.mxu0 %v4483
        %7604 = vmatpush.bf16.msra.mxu0 %v4467
        %7605 = vmatpush.bf16.msra.mxu0 %v4451
        %7606 = vmatpush.bf16.msra.mxu0 %v4435
        %7607 = vmatpush.bf16.msra.mxu0 %v4419
        %7608 = vmatmul.bf16.gmra.mxu0 %v288
        %v7609 = vpop.f32.mrf.mxu0
        %v7610 = vadd.f32 0.0, %v7609
        %v7611 = vpop.f32.mrf.mxu0
        %7612 = vdwg.mxu0
        %7613 = vmatpush.bf16.msra.mxu0 %v4659
        %7614 = vmatpush.bf16.msra.mxu0 %v4643
        %7615 = vmatpush.bf16.msra.mxu0 %v4627
        %7616 = vmatpush.bf16.msra.mxu0 %v4611
        %7617 = vmatpush.bf16.msra.mxu0 %v4595
        %7618 = vmatpush.bf16.msra.mxu0 %v4579
        %7619 = vmatpush.bf16.msra.mxu0 %v4563
        %7620 = vmatpush.bf16.msra.mxu0 %v4547
        %7621 = vmatmul.bf16.gmra.mxu0 %v289
        %v7622 = vpop.f32.mrf.mxu0
        %v7623 = vadd.f32 %v7610, %v7622
        %v7624 = vpop.f32.mrf.mxu0
        %7625 = vdwg.mxu0
        %7626 = vmatpush.bf16.msra.mxu0 %v4787
        %7627 = vmatpush.bf16.msra.mxu0 %v4771
        %7628 = vmatpush.bf16.msra.mxu0 %v4755
        %7629 = vmatpush.bf16.msra.mxu0 %v4739
        %7630 = vmatpush.bf16.msra.mxu0 %v4723
        %7631 = vmatpush.bf16.msra.mxu0 %v4707
        %7632 = vmatpush.bf16.msra.mxu0 %v4691
        %7633 = vmatpush.bf16.msra.mxu0 %v4675
        %7634 = vmatmul.bf16.gmra.mxu0 %v290
        %v7635 = vpop.f32.mrf.mxu0
        %v7636 = vadd.f32 %v7623, %v7635
        %v7637 = vpop.f32.mrf.mxu0
        %7638 = vdwg.mxu0
        %7639 = vmatpush.bf16.msra.mxu0 %v4915
        %7640 = vmatpush.bf16.msra.mxu0 %v4899
        %7641 = vmatpush.bf16.msra.mxu0 %v4883
        %7642 = vmatpush.bf16.msra.mxu0 %v4867
        %7643 = vmatpush.bf16.msra.mxu0 %v4851
        %7644 = vmatpush.bf16.msra.mxu0 %v4835
        %7645 = vmatpush.bf16.msra.mxu0 %v4819
        %7646 = vmatpush.bf16.msra.mxu0 %v4803
        %7647 = vmatmul.bf16.gmra.mxu0 %v291
        %v7648 = vpop.f32.mrf.mxu0
        %v7649 = vadd.f32 %v7636, %v7648
        %v7650 = vpop.f32.mrf.mxu0
        %7651 = vdwg.mxu0
        %7652 = vmatpush.bf16.msra.mxu0 %v5043
        %7653 = vmatpush.bf16.msra.mxu0 %v5027
        %7654 = vmatpush.bf16.msra.mxu0 %v5011
        %7655 = vmatpush.bf16.msra.mxu0 %v4995
        %7656 = vmatpush.bf16.msra.mxu0 %v4979
        %7657 = vmatpush.bf16.msra.mxu0 %v4963
        %7658 = vmatpush.bf16.msra.mxu0 %v4947
        %7659 = vmatpush.bf16.msra.mxu0 %v4931
        %7660 = vmatmul.bf16.gmra.mxu0 %v292
        %v7661 = vpop.f32.mrf.mxu0
        %v7662 = vadd.f32 %v7649, %v7661
        %v7663 = vpop.f32.mrf.mxu0
        %7664 = vdwg.mxu0
        %7665 = vmatpush.bf16.msra.mxu0 %v5171
        %7666 = vmatpush.bf16.msra.mxu0 %v5155
        %7667 = vmatpush.bf16.msra.mxu0 %v5139
        %7668 = vmatpush.bf16.msra.mxu0 %v5123
        %7669 = vmatpush.bf16.msra.mxu0 %v5107
        %7670 = vmatpush.bf16.msra.mxu0 %v5091
        %7671 = vmatpush.bf16.msra.mxu0 %v5075
        %7672 = vmatpush.bf16.msra.mxu0 %v5059
        %7673 = vmatmul.bf16.gmra.mxu0 %v293
        %v7674 = vpop.f32.mrf.mxu0
        %v7675 = vadd.f32 %v7662, %v7674
        %v7676 = vpop.f32.mrf.mxu0
        %7677 = vdwg.mxu0
        %7678 = vmatpush.bf16.msra.mxu0 %v5299
        %7679 = vmatpush.bf16.msra.mxu0 %v5283
        %7680 = vmatpush.bf16.msra.mxu0 %v5267
        %7681 = vmatpush.bf16.msra.mxu0 %v5251
        %7682 = vmatpush.bf16.msra.mxu0 %v5235
        %7683 = vmatpush.bf16.msra.mxu0 %v5219
        %7684 = vmatpush.bf16.msra.mxu0 %v5203
        %7685 = vmatpush.bf16.msra.mxu0 %v5187
        %7686 = vmatmul.bf16.gmra.mxu0 %v294
        %v7687 = vpop.f32.mrf.mxu0
        %v7688 = vadd.f32 %v7675, %v7687
        %v7689 = vpop.f32.mrf.mxu0
        %7690 = vdwg.mxu0
        %7691 = vmatpush.bf16.msra.mxu0 %v5427
        %7692 = vmatpush.bf16.msra.mxu0 %v5411
        %7693 = vmatpush.bf16.msra.mxu0 %v5395
        %7694 = vmatpush.bf16.msra.mxu0 %v5379
        %7695 = vmatpush.bf16.msra.mxu0 %v5363
        %7696 = vmatpush.bf16.msra.mxu0 %v5347
        %7697 = vmatpush.bf16.msra.mxu0 %v5331
        %7698 = vmatpush.bf16.msra.mxu0 %v5315
        %7699 = vmatmul.bf16.gmra.mxu0 %v295
        %v7700 = vpop.f32.mrf.mxu0
        %v7701 = vadd.f32 %v7688, %v7700
        %v7702 = vpop.f32.mrf.mxu0
        %7703 = vdwg.mxu0
        %7704 = vmatpush.bf16.msra.mxu0 %v4532
        %7705 = vmatpush.bf16.msra.mxu0 %v4516
        %7706 = vmatpush.bf16.msra.mxu0 %v4500
        %7707 = vmatpush.bf16.msra.mxu0 %v4484
        %7708 = vmatpush.bf16.msra.mxu0 %v4468
        %7709 = vmatpush.bf16.msra.mxu0 %v4452
        %7710 = vmatpush.bf16.msra.mxu0 %v4436
        %7711 = vmatpush.bf16.msra.mxu0 %v4420
        %7712 = vmatmul.bf16.gmra.mxu0 %v288
        %v7713 = vpop.f32.mrf.mxu0
        %v7714 = vadd.f32 0.0, %v7713
        %v7715 = vpop.f32.mrf.mxu0
        %7716 = vdwg.mxu0
        %7717 = vmatpush.bf16.msra.mxu0 %v4660
        %7718 = vmatpush.bf16.msra.mxu0 %v4644
        %7719 = vmatpush.bf16.msra.mxu0 %v4628
        %7720 = vmatpush.bf16.msra.mxu0 %v4612
        %7721 = vmatpush.bf16.msra.mxu0 %v4596
        %7722 = vmatpush.bf16.msra.mxu0 %v4580
        %7723 = vmatpush.bf16.msra.mxu0 %v4564
        %7724 = vmatpush.bf16.msra.mxu0 %v4548
        %7725 = vmatmul.bf16.gmra.mxu0 %v289
        %v7726 = vpop.f32.mrf.mxu0
        %v7727 = vadd.f32 %v7714, %v7726
        %v7728 = vpop.f32.mrf.mxu0
        %7729 = vdwg.mxu0
        %7730 = vmatpush.bf16.msra.mxu0 %v4788
        %7731 = vmatpush.bf16.msra.mxu0 %v4772
        %7732 = vmatpush.bf16.msra.mxu0 %v4756
        %7733 = vmatpush.bf16.msra.mxu0 %v4740
        %7734 = vmatpush.bf16.msra.mxu0 %v4724
        %7735 = vmatpush.bf16.msra.mxu0 %v4708
        %7736 = vmatpush.bf16.msra.mxu0 %v4692
        %7737 = vmatpush.bf16.msra.mxu0 %v4676
        %7738 = vmatmul.bf16.gmra.mxu0 %v290
        %v7739 = vpop.f32.mrf.mxu0
        %v7740 = vadd.f32 %v7727, %v7739
        %v7741 = vpop.f32.mrf.mxu0
        %7742 = vdwg.mxu0
        %7743 = vmatpush.bf16.msra.mxu0 %v4916
        %7744 = vmatpush.bf16.msra.mxu0 %v4900
        %7745 = vmatpush.bf16.msra.mxu0 %v4884
        %7746 = vmatpush.bf16.msra.mxu0 %v4868
        %7747 = vmatpush.bf16.msra.mxu0 %v4852
        %7748 = vmatpush.bf16.msra.mxu0 %v4836
        %7749 = vmatpush.bf16.msra.mxu0 %v4820
        %7750 = vmatpush.bf16.msra.mxu0 %v4804
        %7751 = vmatmul.bf16.gmra.mxu0 %v291
        %v7752 = vpop.f32.mrf.mxu0
        %v7753 = vadd.f32 %v7740, %v7752
        %v7754 = vpop.f32.mrf.mxu0
        %7755 = vdwg.mxu0
        %7756 = vmatpush.bf16.msra.mxu0 %v5044
        %7757 = vmatpush.bf16.msra.mxu0 %v5028
        %7758 = vmatpush.bf16.msra.mxu0 %v5012
        %7759 = vmatpush.bf16.msra.mxu0 %v4996
        %7760 = vmatpush.bf16.msra.mxu0 %v4980
        %7761 = vmatpush.bf16.msra.mxu0 %v4964
        %7762 = vmatpush.bf16.msra.mxu0 %v4948
        %7763 = vmatpush.bf16.msra.mxu0 %v4932
        %7764 = vmatmul.bf16.gmra.mxu0 %v292
        %v7765 = vpop.f32.mrf.mxu0
        %v7766 = vadd.f32 %v7753, %v7765
        %v7767 = vpop.f32.mrf.mxu0
        %7768 = vdwg.mxu0
        %7769 = vmatpush.bf16.msra.mxu0 %v5172
        %7770 = vmatpush.bf16.msra.mxu0 %v5156
        %7771 = vmatpush.bf16.msra.mxu0 %v5140
        %7772 = vmatpush.bf16.msra.mxu0 %v5124
        %7773 = vmatpush.bf16.msra.mxu0 %v5108
        %7774 = vmatpush.bf16.msra.mxu0 %v5092
        %7775 = vmatpush.bf16.msra.mxu0 %v5076
        %7776 = vmatpush.bf16.msra.mxu0 %v5060
        %7777 = vmatmul.bf16.gmra.mxu0 %v293
        %v7778 = vpop.f32.mrf.mxu0
        %v7779 = vadd.f32 %v7766, %v7778
        %v7780 = vpop.f32.mrf.mxu0
        %7781 = vdwg.mxu0
        %7782 = vmatpush.bf16.msra.mxu0 %v5300
        %7783 = vmatpush.bf16.msra.mxu0 %v5284
        %7784 = vmatpush.bf16.msra.mxu0 %v5268
        %7785 = vmatpush.bf16.msra.mxu0 %v5252
        %7786 = vmatpush.bf16.msra.mxu0 %v5236
        %7787 = vmatpush.bf16.msra.mxu0 %v5220
        %7788 = vmatpush.bf16.msra.mxu0 %v5204
        %7789 = vmatpush.bf16.msra.mxu0 %v5188
        %7790 = vmatmul.bf16.gmra.mxu0 %v294
        %v7791 = vpop.f32.mrf.mxu0
        %v7792 = vadd.f32 %v7779, %v7791
        %v7793 = vpop.f32.mrf.mxu0
        %7794 = vdwg.mxu0
        %7795 = vmatpush.bf16.msra.mxu0 %v5428
        %7796 = vmatpush.bf16.msra.mxu0 %v5412
        %7797 = vmatpush.bf16.msra.mxu0 %v5396
        %7798 = vmatpush.bf16.msra.mxu0 %v5380
        %7799 = vmatpush.bf16.msra.mxu0 %v5364
        %7800 = vmatpush.bf16.msra.mxu0 %v5348
        %7801 = vmatpush.bf16.msra.mxu0 %v5332
        %7802 = vmatpush.bf16.msra.mxu0 %v5316
        %7803 = vmatmul.bf16.gmra.mxu0 %v295
        %v7804 = vpop.f32.mrf.mxu0
        %v7805 = vadd.f32 %v7792, %v7804
        %v7806 = vpop.f32.mrf.mxu0
        %7807 = vdwg.mxu0
        %7808 = vmatpush.bf16.msra.mxu0 %v4533
        %7809 = vmatpush.bf16.msra.mxu0 %v4517
        %7810 = vmatpush.bf16.msra.mxu0 %v4501
        %7811 = vmatpush.bf16.msra.mxu0 %v4485
        %7812 = vmatpush.bf16.msra.mxu0 %v4469
        %7813 = vmatpush.bf16.msra.mxu0 %v4453
        %7814 = vmatpush.bf16.msra.mxu0 %v4437
        %7815 = vmatpush.bf16.msra.mxu0 %v4421
        %7816 = vmatmul.bf16.gmra.mxu0 %v288
        %v7817 = vpop.f32.mrf.mxu0
        %v7818 = vadd.f32 0.0, %v7817
        %v7819 = vpop.f32.mrf.mxu0
        %7820 = vdwg.mxu0
        %7821 = vmatpush.bf16.msra.mxu0 %v4661
        %7822 = vmatpush.bf16.msra.mxu0 %v4645
        %7823 = vmatpush.bf16.msra.mxu0 %v4629
        %7824 = vmatpush.bf16.msra.mxu0 %v4613
        %7825 = vmatpush.bf16.msra.mxu0 %v4597
        %7826 = vmatpush.bf16.msra.mxu0 %v4581
        %7827 = vmatpush.bf16.msra.mxu0 %v4565
        %7828 = vmatpush.bf16.msra.mxu0 %v4549
        %7829 = vmatmul.bf16.gmra.mxu0 %v289
        %v7830 = vpop.f32.mrf.mxu0
        %v7831 = vadd.f32 %v7818, %v7830
        %v7832 = vpop.f32.mrf.mxu0
        %7833 = vdwg.mxu0
        %7834 = vmatpush.bf16.msra.mxu0 %v4789
        %7835 = vmatpush.bf16.msra.mxu0 %v4773
        %7836 = vmatpush.bf16.msra.mxu0 %v4757
        %7837 = vmatpush.bf16.msra.mxu0 %v4741
        %7838 = vmatpush.bf16.msra.mxu0 %v4725
        %7839 = vmatpush.bf16.msra.mxu0 %v4709
        %7840 = vmatpush.bf16.msra.mxu0 %v4693
        %7841 = vmatpush.bf16.msra.mxu0 %v4677
        %7842 = vmatmul.bf16.gmra.mxu0 %v290
        %v7843 = vpop.f32.mrf.mxu0
        %v7844 = vadd.f32 %v7831, %v7843
        %v7845 = vpop.f32.mrf.mxu0
        %7846 = vdwg.mxu0
        %7847 = vmatpush.bf16.msra.mxu0 %v4917
        %7848 = vmatpush.bf16.msra.mxu0 %v4901
        %7849 = vmatpush.bf16.msra.mxu0 %v4885
        %7850 = vmatpush.bf16.msra.mxu0 %v4869
        %7851 = vmatpush.bf16.msra.mxu0 %v4853
        %7852 = vmatpush.bf16.msra.mxu0 %v4837
        %7853 = vmatpush.bf16.msra.mxu0 %v4821
        %7854 = vmatpush.bf16.msra.mxu0 %v4805
        %7855 = vmatmul.bf16.gmra.mxu0 %v291
        %v7856 = vpop.f32.mrf.mxu0
        %v7857 = vadd.f32 %v7844, %v7856
        %v7858 = vpop.f32.mrf.mxu0
        %7859 = vdwg.mxu0
        %7860 = vmatpush.bf16.msra.mxu0 %v5045
        %7861 = vmatpush.bf16.msra.mxu0 %v5029
        %7862 = vmatpush.bf16.msra.mxu0 %v5013
        %7863 = vmatpush.bf16.msra.mxu0 %v4997
        %7864 = vmatpush.bf16.msra.mxu0 %v4981
        %7865 = vmatpush.bf16.msra.mxu0 %v4965
        %7866 = vmatpush.bf16.msra.mxu0 %v4949
        %7867 = vmatpush.bf16.msra.mxu0 %v4933
        %7868 = vmatmul.bf16.gmra.mxu0 %v292
        %v7869 = vpop.f32.mrf.mxu0
        %v7870 = vadd.f32 %v7857, %v7869
        %v7871 = vpop.f32.mrf.mxu0
        %7872 = vdwg.mxu0
        %7873 = vmatpush.bf16.msra.mxu0 %v5173
        %7874 = vmatpush.bf16.msra.mxu0 %v5157
        %7875 = vmatpush.bf16.msra.mxu0 %v5141
        %7876 = vmatpush.bf16.msra.mxu0 %v5125
        %7877 = vmatpush.bf16.msra.mxu0 %v5109
        %7878 = vmatpush.bf16.msra.mxu0 %v5093
        %7879 = vmatpush.bf16.msra.mxu0 %v5077
        %7880 = vmatpush.bf16.msra.mxu0 %v5061
        %7881 = vmatmul.bf16.gmra.mxu0 %v293
        %v7882 = vpop.f32.mrf.mxu0
        %v7883 = vadd.f32 %v7870, %v7882
        %v7884 = vpop.f32.mrf.mxu0
        %7885 = vdwg.mxu0
        %7886 = vmatpush.bf16.msra.mxu0 %v5301
        %7887 = vmatpush.bf16.msra.mxu0 %v5285
        %7888 = vmatpush.bf16.msra.mxu0 %v5269
        %7889 = vmatpush.bf16.msra.mxu0 %v5253
        %7890 = vmatpush.bf16.msra.mxu0 %v5237
        %7891 = vmatpush.bf16.msra.mxu0 %v5221
        %7892 = vmatpush.bf16.msra.mxu0 %v5205
        %7893 = vmatpush.bf16.msra.mxu0 %v5189
        %7894 = vmatmul.bf16.gmra.mxu0 %v294
        %v7895 = vpop.f32.mrf.mxu0
        %v7896 = vadd.f32 %v7883, %v7895
        %v7897 = vpop.f32.mrf.mxu0
        %7898 = vdwg.mxu0
        %7899 = vmatpush.bf16.msra.mxu0 %v5429
        %7900 = vmatpush.bf16.msra.mxu0 %v5413
        %7901 = vmatpush.bf16.msra.mxu0 %v5397
        %7902 = vmatpush.bf16.msra.mxu0 %v5381
        %7903 = vmatpush.bf16.msra.mxu0 %v5365
        %7904 = vmatpush.bf16.msra.mxu0 %v5349
        %7905 = vmatpush.bf16.msra.mxu0 %v5333
        %7906 = vmatpush.bf16.msra.mxu0 %v5317
        %7907 = vmatmul.bf16.gmra.mxu0 %v295
        %v7908 = vpop.f32.mrf.mxu0
        %v7909 = vadd.f32 %v7896, %v7908
        %v7910 = vpop.f32.mrf.mxu0
        %7911 = vdwg.mxu0
        %7912 = vmatpush.bf16.msra.mxu0 %v4534
        %7913 = vmatpush.bf16.msra.mxu0 %v4518
        %7914 = vmatpush.bf16.msra.mxu0 %v4502
        %7915 = vmatpush.bf16.msra.mxu0 %v4486
        %7916 = vmatpush.bf16.msra.mxu0 %v4470
        %7917 = vmatpush.bf16.msra.mxu0 %v4454
        %7918 = vmatpush.bf16.msra.mxu0 %v4438
        %7919 = vmatpush.bf16.msra.mxu0 %v4422
        %7920 = vmatmul.bf16.gmra.mxu0 %v288
        %v7921 = vpop.f32.mrf.mxu0
        %v7922 = vadd.f32 0.0, %v7921
        %v7923 = vpop.f32.mrf.mxu0
        %7924 = vdwg.mxu0
        %7925 = vmatpush.bf16.msra.mxu0 %v4662
        %7926 = vmatpush.bf16.msra.mxu0 %v4646
        %7927 = vmatpush.bf16.msra.mxu0 %v4630
        %7928 = vmatpush.bf16.msra.mxu0 %v4614
        %7929 = vmatpush.bf16.msra.mxu0 %v4598
        %7930 = vmatpush.bf16.msra.mxu0 %v4582
        %7931 = vmatpush.bf16.msra.mxu0 %v4566
        %7932 = vmatpush.bf16.msra.mxu0 %v4550
        %7933 = vmatmul.bf16.gmra.mxu0 %v289
        %v7934 = vpop.f32.mrf.mxu0
        %v7935 = vadd.f32 %v7922, %v7934
        %v7936 = vpop.f32.mrf.mxu0
        %7937 = vdwg.mxu0
        %7938 = vmatpush.bf16.msra.mxu0 %v4790
        %7939 = vmatpush.bf16.msra.mxu0 %v4774
        %7940 = vmatpush.bf16.msra.mxu0 %v4758
        %7941 = vmatpush.bf16.msra.mxu0 %v4742
        %7942 = vmatpush.bf16.msra.mxu0 %v4726
        %7943 = vmatpush.bf16.msra.mxu0 %v4710
        %7944 = vmatpush.bf16.msra.mxu0 %v4694
        %7945 = vmatpush.bf16.msra.mxu0 %v4678
        %7946 = vmatmul.bf16.gmra.mxu0 %v290
        %v7947 = vpop.f32.mrf.mxu0
        %v7948 = vadd.f32 %v7935, %v7947
        %v7949 = vpop.f32.mrf.mxu0
        %7950 = vdwg.mxu0
        %7951 = vmatpush.bf16.msra.mxu0 %v4918
        %7952 = vmatpush.bf16.msra.mxu0 %v4902
        %7953 = vmatpush.bf16.msra.mxu0 %v4886
        %7954 = vmatpush.bf16.msra.mxu0 %v4870
        %7955 = vmatpush.bf16.msra.mxu0 %v4854
        %7956 = vmatpush.bf16.msra.mxu0 %v4838
        %7957 = vmatpush.bf16.msra.mxu0 %v4822
        %7958 = vmatpush.bf16.msra.mxu0 %v4806
        %7959 = vmatmul.bf16.gmra.mxu0 %v291
        %v7960 = vpop.f32.mrf.mxu0
        %v7961 = vadd.f32 %v7948, %v7960
        %v7962 = vpop.f32.mrf.mxu0
        %7963 = vdwg.mxu0
        %7964 = vmatpush.bf16.msra.mxu0 %v5046
        %7965 = vmatpush.bf16.msra.mxu0 %v5030
        %7966 = vmatpush.bf16.msra.mxu0 %v5014
        %7967 = vmatpush.bf16.msra.mxu0 %v4998
        %7968 = vmatpush.bf16.msra.mxu0 %v4982
        %7969 = vmatpush.bf16.msra.mxu0 %v4966
        %7970 = vmatpush.bf16.msra.mxu0 %v4950
        %7971 = vmatpush.bf16.msra.mxu0 %v4934
        %7972 = vmatmul.bf16.gmra.mxu0 %v292
        %v7973 = vpop.f32.mrf.mxu0
        %v7974 = vadd.f32 %v7961, %v7973
        %v7975 = vpop.f32.mrf.mxu0
        %7976 = vdwg.mxu0
        %7977 = vmatpush.bf16.msra.mxu0 %v5174
        %7978 = vmatpush.bf16.msra.mxu0 %v5158
        %7979 = vmatpush.bf16.msra.mxu0 %v5142
        %7980 = vmatpush.bf16.msra.mxu0 %v5126
        %7981 = vmatpush.bf16.msra.mxu0 %v5110
        %7982 = vmatpush.bf16.msra.mxu0 %v5094
        %7983 = vmatpush.bf16.msra.mxu0 %v5078
        %7984 = vmatpush.bf16.msra.mxu0 %v5062
        %7985 = vmatmul.bf16.gmra.mxu0 %v293
        %v7986 = vpop.f32.mrf.mxu0
        %v7987 = vadd.f32 %v7974, %v7986
        %v7988 = vpop.f32.mrf.mxu0
        %7989 = vdwg.mxu0
        %7990 = vmatpush.bf16.msra.mxu0 %v5302
        %7991 = vmatpush.bf16.msra.mxu0 %v5286
        %7992 = vmatpush.bf16.msra.mxu0 %v5270
        %7993 = vmatpush.bf16.msra.mxu0 %v5254
        %7994 = vmatpush.bf16.msra.mxu0 %v5238
        %7995 = vmatpush.bf16.msra.mxu0 %v5222
        %7996 = vmatpush.bf16.msra.mxu0 %v5206
        %7997 = vmatpush.bf16.msra.mxu0 %v5190
        %7998 = vmatmul.bf16.gmra.mxu0 %v294
        %v7999 = vpop.f32.mrf.mxu0
        %v8000 = vadd.f32 %v7987, %v7999
        %v8001 = vpop.f32.mrf.mxu0
        %8002 = vdwg.mxu0
        %8003 = vmatpush.bf16.msra.mxu0 %v5430
        %8004 = vmatpush.bf16.msra.mxu0 %v5414
        %8005 = vmatpush.bf16.msra.mxu0 %v5398
        %8006 = vmatpush.bf16.msra.mxu0 %v5382
        %8007 = vmatpush.bf16.msra.mxu0 %v5366
        %8008 = vmatpush.bf16.msra.mxu0 %v5350
        %8009 = vmatpush.bf16.msra.mxu0 %v5334
        %8010 = vmatpush.bf16.msra.mxu0 %v5318
        %8011 = vmatmul.bf16.gmra.mxu0 %v295
        %v8012 = vpop.f32.mrf.mxu0
        %v8013 = vadd.f32 %v8000, %v8012
        %v8014 = vpop.f32.mrf.mxu0
        %8015 = vdwg.mxu0
        %8016 = vmatpush.bf16.msra.mxu0 %v4535
        %8017 = vmatpush.bf16.msra.mxu0 %v4519
        %8018 = vmatpush.bf16.msra.mxu0 %v4503
        %8019 = vmatpush.bf16.msra.mxu0 %v4487
        %8020 = vmatpush.bf16.msra.mxu0 %v4471
        %8021 = vmatpush.bf16.msra.mxu0 %v4455
        %8022 = vmatpush.bf16.msra.mxu0 %v4439
        %8023 = vmatpush.bf16.msra.mxu0 %v4423
        %8024 = vmatmul.bf16.gmra.mxu0 %v288
        %v8025 = vpop.f32.mrf.mxu0
        %v8026 = vadd.f32 0.0, %v8025
        %v8027 = vpop.f32.mrf.mxu0
        %8028 = vdwg.mxu0
        %8029 = vmatpush.bf16.msra.mxu0 %v4663
        %8030 = vmatpush.bf16.msra.mxu0 %v4647
        %8031 = vmatpush.bf16.msra.mxu0 %v4631
        %8032 = vmatpush.bf16.msra.mxu0 %v4615
        %8033 = vmatpush.bf16.msra.mxu0 %v4599
        %8034 = vmatpush.bf16.msra.mxu0 %v4583
        %8035 = vmatpush.bf16.msra.mxu0 %v4567
        %8036 = vmatpush.bf16.msra.mxu0 %v4551
        %8037 = vmatmul.bf16.gmra.mxu0 %v289
        %v8038 = vpop.f32.mrf.mxu0
        %v8039 = vadd.f32 %v8026, %v8038
        %v8040 = vpop.f32.mrf.mxu0
        %8041 = vdwg.mxu0
        %8042 = vmatpush.bf16.msra.mxu0 %v4791
        %8043 = vmatpush.bf16.msra.mxu0 %v4775
        %8044 = vmatpush.bf16.msra.mxu0 %v4759
        %8045 = vmatpush.bf16.msra.mxu0 %v4743
        %8046 = vmatpush.bf16.msra.mxu0 %v4727
        %8047 = vmatpush.bf16.msra.mxu0 %v4711
        %8048 = vmatpush.bf16.msra.mxu0 %v4695
        %8049 = vmatpush.bf16.msra.mxu0 %v4679
        %8050 = vmatmul.bf16.gmra.mxu0 %v290
        %v8051 = vpop.f32.mrf.mxu0
        %v8052 = vadd.f32 %v8039, %v8051
        %v8053 = vpop.f32.mrf.mxu0
        %8054 = vdwg.mxu0
        %8055 = vmatpush.bf16.msra.mxu0 %v4919
        %8056 = vmatpush.bf16.msra.mxu0 %v4903
        %8057 = vmatpush.bf16.msra.mxu0 %v4887
        %8058 = vmatpush.bf16.msra.mxu0 %v4871
        %8059 = vmatpush.bf16.msra.mxu0 %v4855
        %8060 = vmatpush.bf16.msra.mxu0 %v4839
        %8061 = vmatpush.bf16.msra.mxu0 %v4823
        %8062 = vmatpush.bf16.msra.mxu0 %v4807
        %8063 = vmatmul.bf16.gmra.mxu0 %v291
        %v8064 = vpop.f32.mrf.mxu0
        %v8065 = vadd.f32 %v8052, %v8064
        %v8066 = vpop.f32.mrf.mxu0
        %8067 = vdwg.mxu0
        %8068 = vmatpush.bf16.msra.mxu0 %v5047
        %8069 = vmatpush.bf16.msra.mxu0 %v5031
        %8070 = vmatpush.bf16.msra.mxu0 %v5015
        %8071 = vmatpush.bf16.msra.mxu0 %v4999
        %8072 = vmatpush.bf16.msra.mxu0 %v4983
        %8073 = vmatpush.bf16.msra.mxu0 %v4967
        %8074 = vmatpush.bf16.msra.mxu0 %v4951
        %8075 = vmatpush.bf16.msra.mxu0 %v4935
        %8076 = vmatmul.bf16.gmra.mxu0 %v292
        %v8077 = vpop.f32.mrf.mxu0
        %v8078 = vadd.f32 %v8065, %v8077
        %v8079 = vpop.f32.mrf.mxu0
        %8080 = vdwg.mxu0
        %8081 = vmatpush.bf16.msra.mxu0 %v5175
        %8082 = vmatpush.bf16.msra.mxu0 %v5159
        %8083 = vmatpush.bf16.msra.mxu0 %v5143
        %8084 = vmatpush.bf16.msra.mxu0 %v5127
        %8085 = vmatpush.bf16.msra.mxu0 %v5111
        %8086 = vmatpush.bf16.msra.mxu0 %v5095
        %8087 = vmatpush.bf16.msra.mxu0 %v5079
        %8088 = vmatpush.bf16.msra.mxu0 %v5063
        %8089 = vmatmul.bf16.gmra.mxu0 %v293
        %v8090 = vpop.f32.mrf.mxu0
        %v8091 = vadd.f32 %v8078, %v8090
        %v8092 = vpop.f32.mrf.mxu0
        %8093 = vdwg.mxu0
        %8094 = vmatpush.bf16.msra.mxu0 %v5303
        %8095 = vmatpush.bf16.msra.mxu0 %v5287
        %8096 = vmatpush.bf16.msra.mxu0 %v5271
        %8097 = vmatpush.bf16.msra.mxu0 %v5255
        %8098 = vmatpush.bf16.msra.mxu0 %v5239
        %8099 = vmatpush.bf16.msra.mxu0 %v5223
        %8100 = vmatpush.bf16.msra.mxu0 %v5207
        %8101 = vmatpush.bf16.msra.mxu0 %v5191
        %8102 = vmatmul.bf16.gmra.mxu0 %v294
        %v8103 = vpop.f32.mrf.mxu0
        %v8104 = vadd.f32 %v8091, %v8103
        %v8105 = vpop.f32.mrf.mxu0
        %8106 = vdwg.mxu0
        %8107 = vmatpush.bf16.msra.mxu0 %v5431
        %8108 = vmatpush.bf16.msra.mxu0 %v5415
        %8109 = vmatpush.bf16.msra.mxu0 %v5399
        %8110 = vmatpush.bf16.msra.mxu0 %v5383
        %8111 = vmatpush.bf16.msra.mxu0 %v5367
        %8112 = vmatpush.bf16.msra.mxu0 %v5351
        %8113 = vmatpush.bf16.msra.mxu0 %v5335
        %8114 = vmatpush.bf16.msra.mxu0 %v5319
        %8115 = vmatmul.bf16.gmra.mxu0 %v295
        %v8116 = vpop.f32.mrf.mxu0
        %v8117 = vadd.f32 %v8104, %v8116
        %v8118 = vpop.f32.mrf.mxu0
        %8119 = vdwg.mxu0
        %v8120 = vadd.f32 %v296, %v6557
        %v8121 = vadd.f32 %v297, %v6661
        %v8122 = vadd.f32 %v298, %v6765
        %v8123 = vadd.f32 %v299, %v6869
        %v8124 = vadd.f32 %v300, %v6973
        %v8125 = vadd.f32 %v301, %v7077
        %v8126 = vadd.f32 %v302, %v7181
        %v8127 = vadd.f32 %v303, %v7285
        %v8128 = vadd.f32 %v304, %v7389
        %v8129 = vadd.f32 %v305, %v7493
        %v8130 = vadd.f32 %v306, %v7597
        %v8131 = vadd.f32 %v307, %v7701
        %v8132 = vadd.f32 %v308, %v7805
        %v8133 = vadd.f32 %v309, %v7909
        %v8134 = vadd.f32 %v310, %v8013
        %v8135 = vadd.f32 %v311, %v8117
        %8136 = vst [vmem:[#allocation2] sm:$0xff] %v8120
        %8137 = vst [vmem:[#allocation2 + $0x8] sm:$0xff] %v8121
        %8138 = vst [vmem:[#allocation2 + $0x10] sm:$0xff] %v8122
        %8139 = vst [vmem:[#allocation2 + $0x18] sm:$0xff] %v8123
        %8140 = vst [vmem:[#allocation2 + $0x20] sm:$0xff] %v8124
        %8141 = vst [vmem:[#allocation2 + $0x28] sm:$0xff] %v8125
        %8142 = vst [vmem:[#allocation2 + $0x30] sm:$0xff] %v8126
        %8143 = vst [vmem:[#allocation2 + $0x38] sm:$0xff] %v8127
        %8144 = vst [vmem:[#allocation2 + $0x40] sm:$0xff] %v8128
        %8145 = vst [vmem:[#allocation2 + $0x48] sm:$0xff] %v8129
        %8146 = vst [vmem:[#allocation2 + $0x50] sm:$0xff] %v8130
        %8147 = vst [vmem:[#allocation2 + $0x58] sm:$0xff] %v8131
        %8148 = vst [vmem:[#allocation2 + $0x60] sm:$0xff] %v8132
        %8149 = vst [vmem:[#allocation2 + $0x68] sm:$0xff] %v8133
        %8150 = vst [vmem:[#allocation2 + $0x70] sm:$0xff] %v8134
        %8151 = vst [vmem:[#allocation2 + $0x78] sm:$0xff] %v8135
        %p8152 = scmp.eq.s32.totalorder %s19, 1
        // Predicated region
        $region53: #{tpu_custom_call.1} parent=35 // pred_check
          %p8153 = pneg %p8152
        $region54: #{tpu_custom_call.1} parent=35 // pred_check_branch
          %8155 = sbr.rel (%p8153) target = $region56
        $region55: #{tpu_custom_call.1} parent=35 // pred_region
          %v8156 = vld [vmem:[#allocation5] sm:$0xff]
          %v8157 = vld [vmem:[#allocation5 + $0x8] sm:$0xff]
          %v8158 = vld [vmem:[#allocation5 + $0x10] sm:$0xff]
          %v8159 = vld [vmem:[#allocation5 + $0x18] sm:$0xff]
          %v8160 = vld [vmem:[#allocation5 + $0x20] sm:$0xff]
          %v8161 = vld [vmem:[#allocation5 + $0x28] sm:$0xff]
          %v8162 = vld [vmem:[#allocation5 + $0x30] sm:$0xff]
          %v8163 = vld [vmem:[#allocation5 + $0x38] sm:$0xff]
          %v8164 = vld [vmem:[#allocation5 + $0x40] sm:$0xff]
          %v8165 = vld [vmem:[#allocation5 + $0x48] sm:$0xff]
          %v8166 = vld [vmem:[#allocation5 + $0x50] sm:$0xff]
          %v8167 = vld [vmem:[#allocation5 + $0x58] sm:$0xff]
          %v8168 = vld [vmem:[#allocation5 + $0x60] sm:$0xff]
          %v8169 = vld [vmem:[#allocation5 + $0x68] sm:$0xff]
          %v8170 = vld [vmem:[#allocation5 + $0x70] sm:$0xff]
          %v8171 = vld [vmem:[#allocation5 + $0x78] sm:$0xff]
          %v8172 = vld [vmem:[%s0] sm:$0xff]
          %8174 = vset.pattern.permute.xlu0 0
          %8175 = vperm.xlu0 %8174, %v8172
          %v8176 = vpop.permute.xlu0 %8175
          %v8178 = vperm.slane %v8156, 0
          %v8179 = vperm.slane %v8157, 0
          %v8180 = vperm.slane %v8158, 0
          %v8181 = vperm.slane %v8159, 0
          %v8182 = vperm.slane %v8160, 0
          %v8183 = vperm.slane %v8161, 0
          %v8184 = vperm.slane %v8162, 0
          %v8185 = vperm.slane %v8163, 0
          %v8186 = vperm.slane %v8164, 0
          %v8187 = vperm.slane %v8165, 0
          %v8188 = vperm.slane %v8166, 0
          %v8189 = vperm.slane %v8167, 0
          %v8190 = vperm.slane %v8168, 0
          %v8191 = vperm.slane %v8169, 0
          %v8192 = vperm.slane %v8170, 0
          %v8193 = vperm.slane %v8171, 0
          %v8194 = vmul.f32 %v8176, %v8178
          %v8195 = vmul.f32 %v8176, %v8179
          %v8196 = vmul.f32 %v8176, %v8180
          %v8197 = vmul.f32 %v8176, %v8181
          %v8198 = vmul.f32 %v8176, %v8182
          %v8199 = vmul.f32 %v8176, %v8183
          %v8200 = vmul.f32 %v8176, %v8184
          %v8201 = vmul.f32 %v8176, %v8185
          %v8202 = vmul.f32 %v8176, %v8186
          %v8203 = vmul.f32 %v8176, %v8187
          %v8204 = vmul.f32 %v8176, %v8188
          %v8205 = vmul.f32 %v8176, %v8189
          %v8206 = vmul.f32 %v8176, %v8190
          %v8207 = vmul.f32 %v8176, %v8191
          %v8208 = vmul.f32 %v8176, %v8192
          %v8209 = vmul.f32 %v8176, %v8193
          %v8210 = vperm.slane %v8156, 1
          %v8211 = vperm.slane %v8157, 1
          %v8212 = vperm.slane %v8158, 1
          %v8213 = vperm.slane %v8159, 1
          %v8214 = vperm.slane %v8160, 1
          %v8215 = vperm.slane %v8161, 1
          %v8216 = vperm.slane %v8162, 1
          %v8217 = vperm.slane %v8163, 1
          %v8218 = vperm.slane %v8164, 1
          %v8219 = vperm.slane %v8165, 1
          %v8220 = vperm.slane %v8166, 1
          %v8221 = vperm.slane %v8167, 1
          %v8222 = vperm.slane %v8168, 1
          %v8223 = vperm.slane %v8169, 1
          %v8224 = vperm.slane %v8170, 1
          %v8225 = vperm.slane %v8171, 1
          %v8226 = vadd.f32 %v8194, %v8210
          %v8227 = vadd.f32 %v8195, %v8211
          %v8228 = vadd.f32 %v8196, %v8212
          %v8229 = vadd.f32 %v8197, %v8213
          %v8230 = vadd.f32 %v8198, %v8214
          %v8231 = vadd.f32 %v8199, %v8215
          %v8232 = vadd.f32 %v8200, %v8216
          %v8233 = vadd.f32 %v8201, %v8217
          %v8234 = vadd.f32 %v8202, %v8218
          %v8235 = vadd.f32 %v8203, %v8219
          %v8236 = vadd.f32 %v8204, %v8220
          %v8237 = vadd.f32 %v8205, %v8221
          %v8238 = vadd.f32 %v8206, %v8222
          %v8239 = vadd.f32 %v8207, %v8223
          %v8240 = vadd.f32 %v8208, %v8224
          %v8241 = vadd.f32 %v8209, %v8225
          %v8242 = vld [vmem:[#allocation2] sm:$0xff]
          %v8243 = vld [vmem:[#allocation2 + $0x8] sm:$0xff]
          %v8244 = vld [vmem:[#allocation2 + $0x10] sm:$0xff]
          %v8245 = vld [vmem:[#allocation2 + $0x18] sm:$0xff]
          %v8246 = vld [vmem:[#allocation2 + $0x20] sm:$0xff]
          %v8247 = vld [vmem:[#allocation2 + $0x28] sm:$0xff]
          %v8248 = vld [vmem:[#allocation2 + $0x30] sm:$0xff]
          %v8249 = vld [vmem:[#allocation2 + $0x38] sm:$0xff]
          %v8250 = vld [vmem:[#allocation2 + $0x40] sm:$0xff]
          %v8251 = vld [vmem:[#allocation2 + $0x48] sm:$0xff]
          %v8252 = vld [vmem:[#allocation2 + $0x50] sm:$0xff]
          %v8253 = vld [vmem:[#allocation2 + $0x58] sm:$0xff]
          %v8254 = vld [vmem:[#allocation2 + $0x60] sm:$0xff]
          %v8255 = vld [vmem:[#allocation2 + $0x68] sm:$0xff]
          %v8256 = vld [vmem:[#allocation2 + $0x70] sm:$0xff]
          %v8257 = vld [vmem:[#allocation2 + $0x78] sm:$0xff]
          %v8258 = vperm.slane %v8156, 2
          %v8259 = vperm.slane %v8157, 2
          %v8260 = vperm.slane %v8158, 2
          %v8261 = vperm.slane %v8159, 2
          %v8262 = vperm.slane %v8160, 2
          %v8263 = vperm.slane %v8161, 2
          %v8264 = vperm.slane %v8162, 2
          %v8265 = vperm.slane %v8163, 2
          %v8266 = vperm.slane %v8164, 2
          %v8267 = vperm.slane %v8165, 2
          %v8268 = vperm.slane %v8166, 2
          %v8269 = vperm.slane %v8167, 2
          %v8270 = vperm.slane %v8168, 2
          %v8271 = vperm.slane %v8169, 2
          %v8272 = vperm.slane %v8170, 2
          %v8273 = vperm.slane %v8171, 2
          %v8274 = vadd.f32 %v8242, %v8258
          %v8275 = vadd.f32 %v8243, %v8259
          %v8276 = vadd.f32 %v8244, %v8260
          %v8277 = vadd.f32 %v8245, %v8261
          %v8278 = vadd.f32 %v8246, %v8262
          %v8279 = vadd.f32 %v8247, %v8263
          %v8280 = vadd.f32 %v8248, %v8264
          %v8281 = vadd.f32 %v8249, %v8265
          %v8282 = vadd.f32 %v8250, %v8266
          %v8283 = vadd.f32 %v8251, %v8267
          %v8284 = vadd.f32 %v8252, %v8268
          %v8285 = vadd.f32 %v8253, %v8269
          %v8286 = vadd.f32 %v8254, %v8270
          %v8287 = vadd.f32 %v8255, %v8271
          %v8288 = vadd.f32 %v8256, %v8272
          %v8289 = vadd.f32 %v8257, %v8273
          %v8290 = vadd.f32 %v8226, %v8227
          %v8291 = vadd.f32 %v8290, %v8228
          %v8292 = vadd.f32 %v8291, %v8229
          %v8293 = vadd.f32 %v8292, %v8230
          %v8294 = vadd.f32 %v8293, %v8231
          %v8295 = vadd.f32 %v8294, %v8232
          %v8296 = vadd.f32 %v8295, %v8233
          %v8297 = vadd.f32 %v8296, %v8234
          %v8298 = vadd.f32 %v8297, %v8235
          %v8299 = vadd.f32 %v8298, %v8236
          %v8300 = vadd.f32 %v8299, %v8237
          %v8301 = vadd.f32 %v8300, %v8238
          %v8302 = vadd.f32 %v8301, %v8239
          %v8303 = vadd.f32 %v8302, %v8240
          %v8304 = vadd.f32 %v8303, %v8241
          %8305 = vadd.xlane.f32.xlu0 %v8304
          %v8306 = vpop.xlane.xlu0 %8305
          %v8307 = vrcp.pop 2048.0
          %v8308 = vmul.f32 2048.0, %v8307
          %v8309 = vsub.f32 1.0, %v8308
          %v8310 = vmul.f32 %v8307, %v8309
          %v8311 = vadd.f32 %v8307, %v8310
          %vm8312 = vweird.f32 %v8307
          %v8313 = vsel %vm8312, %v8307, %v8311
          %v8314 = vmul.f32 %v8306, %v8313
          %v8315 = vsub.f32 %v8226, %v8314
          %v8316 = vsub.f32 %v8227, %v8314
          %v8317 = vsub.f32 %v8228, %v8314
          %v8318 = vsub.f32 %v8229, %v8314
          %v8319 = vsub.f32 %v8230, %v8314
          %v8320 = vsub.f32 %v8231, %v8314
          %v8321 = vsub.f32 %v8232, %v8314
          %v8322 = vsub.f32 %v8233, %v8314
          %v8323 = vsub.f32 %v8234, %v8314
          %v8324 = vsub.f32 %v8235, %v8314
          %v8325 = vsub.f32 %v8236, %v8314
          %v8326 = vsub.f32 %v8237, %v8314
          %v8327 = vsub.f32 %v8238, %v8314
          %v8328 = vsub.f32 %v8239, %v8314
          %v8329 = vsub.f32 %v8240, %v8314
          %v8330 = vsub.f32 %v8241, %v8314
          %v8331 = vmul.f32 %v8315, %v8315
          %v8332 = vmul.f32 %v8316, %v8316
          %v8333 = vmul.f32 %v8317, %v8317
          %v8334 = vmul.f32 %v8318, %v8318
          %v8335 = vmul.f32 %v8319, %v8319
          %v8336 = vmul.f32 %v8320, %v8320
          %v8337 = vmul.f32 %v8321, %v8321
          %v8338 = vmul.f32 %v8322, %v8322
          %v8339 = vmul.f32 %v8323, %v8323
          %v8340 = vmul.f32 %v8324, %v8324
          %v8341 = vmul.f32 %v8325, %v8325
          %v8342 = vmul.f32 %v8326, %v8326
          %v8343 = vmul.f32 %v8327, %v8327
          %v8344 = vmul.f32 %v8328, %v8328
          %v8345 = vmul.f32 %v8329, %v8329
          %v8346 = vmul.f32 %v8330, %v8330
          %v8347 = vadd.f32 %v8331, %v8332
          %v8348 = vadd.f32 %v8347, %v8333
          %v8349 = vadd.f32 %v8348, %v8334
          %v8350 = vadd.f32 %v8349, %v8335
          %v8351 = vadd.f32 %v8350, %v8336
          %v8352 = vadd.f32 %v8351, %v8337
          %v8353 = vadd.f32 %v8352, %v8338
          %v8354 = vadd.f32 %v8353, %v8339
          %v8355 = vadd.f32 %v8354, %v8340
          %v8356 = vadd.f32 %v8355, %v8341
          %v8357 = vadd.f32 %v8356, %v8342
          %v8358 = vadd.f32 %v8357, %v8343
          %v8359 = vadd.f32 %v8358, %v8344
          %v8360 = vadd.f32 %v8359, %v8345
          %v8361 = vadd.f32 %v8360, %v8346
          %8362 = vadd.xlane.f32.xlu0 %v8361
          %v8363 = vpop.xlane.xlu0 %8362
          %v8364 = vmul.f32 %v8363, %v8313
          %v8365 = vadd.f32 %v8364, 1e-05
          %v8366 = vrsqrt.pop %v8365
          %v8367 = vmul.f32 %v8366, %v8365
          %v8368 = vmul.f32 %v8367, %v8366
          %v8369 = vmul.f32 0.5, %v8368
          %v8370 = vsub.f32 1.5, %v8369
          %v8371 = vmul.f32 %v8366, %v8370
          %vm8372 = vweird.f32 %v8365
          %vm8373 = vweird.f32 %v8366
          %vm8374 = vmor %vm8372, %vm8373
          %v8375 = vsel %vm8374, %v8366, %v8371
          %v8376 = vmul.f32 %v8315, %v8375
          %v8377 = vmul.f32 %v8316, %v8375
          %v8378 = vmul.f32 %v8317, %v8375
          %v8379 = vmul.f32 %v8318, %v8375
          %v8380 = vmul.f32 %v8319, %v8375
          %v8381 = vmul.f32 %v8320, %v8375
          %v8382 = vmul.f32 %v8321, %v8375
          %v8383 = vmul.f32 %v8322, %v8375
          %v8384 = vmul.f32 %v8323, %v8375
          %v8385 = vmul.f32 %v8324, %v8375
          %v8386 = vmul.f32 %v8325, %v8375
          %v8387 = vmul.f32 %v8326, %v8375
          %v8388 = vmul.f32 %v8327, %v8375
          %v8389 = vmul.f32 %v8328, %v8375
          %v8390 = vmul.f32 %v8329, %v8375
          %v8391 = vmul.f32 %v8330, %v8375
          %v8392 = vperm.slane %v8156, 3
          %v8393 = vperm.slane %v8157, 3
          %v8394 = vperm.slane %v8158, 3
          %v8395 = vperm.slane %v8159, 3
          %v8396 = vperm.slane %v8160, 3
          %v8397 = vperm.slane %v8161, 3
          %v8398 = vperm.slane %v8162, 3
          %v8399 = vperm.slane %v8163, 3
          %v8400 = vperm.slane %v8164, 3
          %v8401 = vperm.slane %v8165, 3
          %v8402 = vperm.slane %v8166, 3
          %v8403 = vperm.slane %v8167, 3
          %v8404 = vperm.slane %v8168, 3
          %v8405 = vperm.slane %v8169, 3
          %v8406 = vperm.slane %v8170, 3
          %v8407 = vperm.slane %v8171, 3
          %v8408 = vmul.f32 %v8376, %v8392
          %v8409 = vmul.f32 %v8377, %v8393
          %v8410 = vmul.f32 %v8378, %v8394
          %v8411 = vmul.f32 %v8379, %v8395
          %v8412 = vmul.f32 %v8380, %v8396
          %v8413 = vmul.f32 %v8381, %v8397
          %v8414 = vmul.f32 %v8382, %v8398
          %v8415 = vmul.f32 %v8383, %v8399
          %v8416 = vmul.f32 %v8384, %v8400
          %v8417 = vmul.f32 %v8385, %v8401
          %v8418 = vmul.f32 %v8386, %v8402
          %v8419 = vmul.f32 %v8387, %v8403
          %v8420 = vmul.f32 %v8388, %v8404
          %v8421 = vmul.f32 %v8389, %v8405
          %v8422 = vmul.f32 %v8390, %v8406
          %v8423 = vmul.f32 %v8391, %v8407
          %v8424 = vperm.slane %v8156, 4
          %v8425 = vperm.slane %v8157, 4
          %v8426 = vperm.slane %v8158, 4
          %v8427 = vperm.slane %v8159, 4
          %v8428 = vperm.slane %v8160, 4
          %v8429 = vperm.slane %v8161, 4
          %v8430 = vperm.slane %v8162, 4
          %v8431 = vperm.slane %v8163, 4
          %v8432 = vperm.slane %v8164, 4
          %v8433 = vperm.slane %v8165, 4
          %v8434 = vperm.slane %v8166, 4
          %v8435 = vperm.slane %v8167, 4
          %v8436 = vperm.slane %v8168, 4
          %v8437 = vperm.slane %v8169, 4
          %v8438 = vperm.slane %v8170, 4
          %v8439 = vperm.slane %v8171, 4
          %v8440 = vadd.f32 %v8408, %v8424
          %v8441 = vadd.f32 %v8409, %v8425
          %v8442 = vadd.f32 %v8410, %v8426
          %v8443 = vadd.f32 %v8411, %v8427
          %v8444 = vadd.f32 %v8412, %v8428
          %v8445 = vadd.f32 %v8413, %v8429
          %v8446 = vadd.f32 %v8414, %v8430
          %v8447 = vadd.f32 %v8415, %v8431
          %v8448 = vadd.f32 %v8416, %v8432
          %v8449 = vadd.f32 %v8417, %v8433
          %v8450 = vadd.f32 %v8418, %v8434
          %v8451 = vadd.f32 %v8419, %v8435
          %v8452 = vadd.f32 %v8420, %v8436
          %v8453 = vadd.f32 %v8421, %v8437
          %v8454 = vadd.f32 %v8422, %v8438
          %v8455 = vadd.f32 %v8423, %v8439
          %v8456 = vadd.f32 %v8274, %v8275
          %v8457 = vadd.f32 %v8456, %v8276
          %v8458 = vadd.f32 %v8457, %v8277
          %v8459 = vadd.f32 %v8458, %v8278
          %v8460 = vadd.f32 %v8459, %v8279
          %v8461 = vadd.f32 %v8460, %v8280
          %v8462 = vadd.f32 %v8461, %v8281
          %v8463 = vadd.f32 %v8462, %v8282
          %v8464 = vadd.f32 %v8463, %v8283
          %v8465 = vadd.f32 %v8464, %v8284
          %v8466 = vadd.f32 %v8465, %v8285
          %v8467 = vadd.f32 %v8466, %v8286
          %v8468 = vadd.f32 %v8467, %v8287
          %v8469 = vadd.f32 %v8468, %v8288
          %v8470 = vadd.f32 %v8469, %v8289
          %8471 = vadd.xlane.f32.xlu0 %v8470
          %v8472 = vpop.xlane.xlu0 %8471
          %v8473 = vmul.f32 %v8472, %v8313
          %v8474 = vsub.f32 %v8274, %v8473
          %v8475 = vsub.f32 %v8275, %v8473
          %v8476 = vsub.f32 %v8276, %v8473
          %v8477 = vsub.f32 %v8277, %v8473
          %v8478 = vsub.f32 %v8278, %v8473
          %v8479 = vsub.f32 %v8279, %v8473
          %v8480 = vsub.f32 %v8280, %v8473
          %v8481 = vsub.f32 %v8281, %v8473
          %v8482 = vsub.f32 %v8282, %v8473
          %v8483 = vsub.f32 %v8283, %v8473
          %v8484 = vsub.f32 %v8284, %v8473
          %v8485 = vsub.f32 %v8285, %v8473
          %v8486 = vsub.f32 %v8286, %v8473
          %v8487 = vsub.f32 %v8287, %v8473
          %v8488 = vsub.f32 %v8288, %v8473
          %v8489 = vsub.f32 %v8289, %v8473
          %v8490 = vmul.f32 %v8474, %v8474
          %v8491 = vmul.f32 %v8475, %v8475
          %v8492 = vmul.f32 %v8476, %v8476
          %v8493 = vmul.f32 %v8477, %v8477
          %v8494 = vmul.f32 %v8478, %v8478
          %v8495 = vmul.f32 %v8479, %v8479
          %v8496 = vmul.f32 %v8480, %v8480
          %v8497 = vmul.f32 %v8481, %v8481
          %v8498 = vmul.f32 %v8482, %v8482
          %v8499 = vmul.f32 %v8483, %v8483
          %v8500 = vmul.f32 %v8484, %v8484
          %v8501 = vmul.f32 %v8485, %v8485
          %v8502 = vmul.f32 %v8486, %v8486
          %v8503 = vmul.f32 %v8487, %v8487
          %v8504 = vmul.f32 %v8488, %v8488
          %v8505 = vmul.f32 %v8489, %v8489
          %v8506 = vadd.f32 %v8490, %v8491
          %v8507 = vadd.f32 %v8506, %v8492
          %v8508 = vadd.f32 %v8507, %v8493
          %v8509 = vadd.f32 %v8508, %v8494
          %v8510 = vadd.f32 %v8509, %v8495
          %v8511 = vadd.f32 %v8510, %v8496
          %v8512 = vadd.f32 %v8511, %v8497
          %v8513 = vadd.f32 %v8512, %v8498
          %v8514 = vadd.f32 %v8513, %v8499
          %v8515 = vadd.f32 %v8514, %v8500
          %v8516 = vadd.f32 %v8515, %v8501
          %v8517 = vadd.f32 %v8516, %v8502
          %v8518 = vadd.f32 %v8517, %v8503
          %v8519 = vadd.f32 %v8518, %v8504
          %v8520 = vadd.f32 %v8519, %v8505
          %8521 = vadd.xlane.f32.xlu0 %v8520
          %v8522 = vpop.xlane.xlu0 %8521
          %v8523 = vmul.f32 %v8522, %v8313
          %v8524 = vadd.f32 %v8523, 1e-05
          %v8525 = vrsqrt.pop %v8524
          %v8526 = vmul.f32 %v8525, %v8524
          %v8527 = vmul.f32 %v8526, %v8525
          %v8528 = vmul.f32 0.5, %v8527
          %v8529 = vsub.f32 1.5, %v8528
          %v8530 = vmul.f32 %v8525, %v8529
          %vm8531 = vweird.f32 %v8524
          %vm8532 = vweird.f32 %v8525
          %vm8533 = vmor %vm8531, %vm8532
          %v8534 = vsel %vm8533, %v8525, %v8530
          %v8535 = vmul.f32 %v8474, %v8534
          %v8536 = vmul.f32 %v8475, %v8534
          %v8537 = vmul.f32 %v8476, %v8534
          %v8538 = vmul.f32 %v8477, %v8534
          %v8539 = vmul.f32 %v8478, %v8534
          %v8540 = vmul.f32 %v8479, %v8534
          %v8541 = vmul.f32 %v8480, %v8534
          %v8542 = vmul.f32 %v8481, %v8534
          %v8543 = vmul.f32 %v8482, %v8534
          %v8544 = vmul.f32 %v8483, %v8534
          %v8545 = vmul.f32 %v8484, %v8534
          %v8546 = vmul.f32 %v8485, %v8534
          %v8547 = vmul.f32 %v8486, %v8534
          %v8548 = vmul.f32 %v8487, %v8534
          %v8549 = vmul.f32 %v8488, %v8534
          %v8550 = vmul.f32 %v8489, %v8534
          %v8551 = vperm.slane %v8156, 5
          %v8552 = vperm.slane %v8157, 5
          %v8553 = vperm.slane %v8158, 5
          %v8554 = vperm.slane %v8159, 5
          %v8555 = vperm.slane %v8160, 5
          %v8556 = vperm.slane %v8161, 5
          %v8557 = vperm.slane %v8162, 5
          %v8558 = vperm.slane %v8163, 5
          %v8559 = vperm.slane %v8164, 5
          %v8560 = vperm.slane %v8165, 5
          %v8561 = vperm.slane %v8166, 5
          %v8562 = vperm.slane %v8167, 5
          %v8563 = vperm.slane %v8168, 5
          %v8564 = vperm.slane %v8169, 5
          %v8565 = vperm.slane %v8170, 5
          %v8566 = vperm.slane %v8171, 5
          %v8567 = vmul.f32 %v8535, %v8551
          %v8568 = vmul.f32 %v8536, %v8552
          %v8569 = vmul.f32 %v8537, %v8553
          %v8570 = vmul.f32 %v8538, %v8554
          %v8571 = vmul.f32 %v8539, %v8555
          %v8572 = vmul.f32 %v8540, %v8556
          %v8573 = vmul.f32 %v8541, %v8557
          %v8574 = vmul.f32 %v8542, %v8558
          %v8575 = vmul.f32 %v8543, %v8559
          %v8576 = vmul.f32 %v8544, %v8560
          %v8577 = vmul.f32 %v8545, %v8561
          %v8578 = vmul.f32 %v8546, %v8562
          %v8579 = vmul.f32 %v8547, %v8563
          %v8580 = vmul.f32 %v8548, %v8564
          %v8581 = vmul.f32 %v8549, %v8565
          %v8582 = vmul.f32 %v8550, %v8566
          %v8583 = vperm.slane %v8156, 6
          %v8584 = vperm.slane %v8157, 6
          %v8585 = vperm.slane %v8158, 6
          %v8586 = vperm.slane %v8159, 6
          %v8587 = vperm.slane %v8160, 6
          %v8588 = vperm.slane %v8161, 6
          %v8589 = vperm.slane %v8162, 6
          %v8590 = vperm.slane %v8163, 6
          %v8591 = vperm.slane %v8164, 6
          %v8592 = vperm.slane %v8165, 6
          %v8593 = vperm.slane %v8166, 6
          %v8594 = vperm.slane %v8167, 6
          %v8595 = vperm.slane %v8168, 6
          %v8596 = vperm.slane %v8169, 6
          %v8597 = vperm.slane %v8170, 6
          %v8598 = vperm.slane %v8171, 6
          %v8599 = vadd.f32 %v8567, %v8583
          %v8600 = vadd.f32 %v8568, %v8584
          %v8601 = vadd.f32 %v8569, %v8585
          %v8602 = vadd.f32 %v8570, %v8586
          %v8603 = vadd.f32 %v8571, %v8587
          %v8604 = vadd.f32 %v8572, %v8588
          %v8605 = vadd.f32 %v8573, %v8589
          %v8606 = vadd.f32 %v8574, %v8590
          %v8607 = vadd.f32 %v8575, %v8591
          %v8608 = vadd.f32 %v8576, %v8592
          %v8609 = vadd.f32 %v8577, %v8593
          %v8610 = vadd.f32 %v8578, %v8594
          %v8611 = vadd.f32 %v8579, %v8595
          %v8612 = vadd.f32 %v8580, %v8596
          %v8613 = vadd.f32 %v8581, %v8597
          %v8614 = vadd.f32 %v8582, %v8598
          %v8615 = vadd.f32 %v8440, %v8599
          %v8616 = vadd.f32 %v8441, %v8600
          %v8617 = vadd.f32 %v8442, %v8601
          %v8618 = vadd.f32 %v8443, %v8602
          %v8619 = vadd.f32 %v8444, %v8603
          %v8620 = vadd.f32 %v8445, %v8604
          %v8621 = vadd.f32 %v8446, %v8605
          %v8622 = vadd.f32 %v8447, %v8606
          %v8623 = vadd.f32 %v8448, %v8607
          %v8624 = vadd.f32 %v8449, %v8608
          %v8625 = vadd.f32 %v8450, %v8609
          %v8626 = vadd.f32 %v8451, %v8610
          %v8627 = vadd.f32 %v8452, %v8611
          %v8628 = vadd.f32 %v8453, %v8612
          %v8629 = vadd.f32 %v8454, %v8613
          %v8630 = vadd.f32 %v8455, %v8614
          %v8631 = vmul.f32 %v8615, 0.5
          %v8632 = vmul.f32 %v8616, 0.5
          %v8633 = vmul.f32 %v8617, 0.5
          %v8634 = vmul.f32 %v8618, 0.5
          %v8635 = vmul.f32 %v8619, 0.5
          %v8636 = vmul.f32 %v8620, 0.5
          %v8637 = vmul.f32 %v8621, 0.5
          %v8638 = vmul.f32 %v8622, 0.5
          %v8639 = vmul.f32 %v8623, 0.5
          %v8640 = vmul.f32 %v8624, 0.5
          %v8641 = vmul.f32 %v8625, 0.5
          %v8642 = vmul.f32 %v8626, 0.5
          %v8643 = vmul.f32 %v8627, 0.5
          %v8644 = vmul.f32 %v8628, 0.5
          %v8645 = vmul.f32 %v8629, 0.5
          %v8646 = vmul.f32 %v8630, 0.5
          %v8647 = vmul.f32 %v8615, 0.70710677
          %v8648 = vmul.f32 %v8616, 0.70710677
          %v8649 = vmul.f32 %v8617, 0.70710677
          %v8650 = vmul.f32 %v8618, 0.70710677
          %v8651 = vmul.f32 %v8619, 0.70710677
          %v8652 = vmul.f32 %v8620, 0.70710677
          %v8653 = vmul.f32 %v8621, 0.70710677
          %v8654 = vmul.f32 %v8622, 0.70710677
          %v8655 = vmul.f32 %v8623, 0.70710677
          %v8656 = vmul.f32 %v8624, 0.70710677
          %v8657 = vmul.f32 %v8625, 0.70710677
          %v8658 = vmul.f32 %v8626, 0.70710677
          %v8659 = vmul.f32 %v8627, 0.70710677
          %v8660 = vmul.f32 %v8628, 0.70710677
          %v8661 = vmul.f32 %v8629, 0.70710677
          %v8662 = vmul.f32 %v8630, 0.70710677
          %v8663 = vmul.f32 %v8647, %v8647
          %v8664 = vmin.f32 16.0, %v8663
          %v8665 = vmul.f32 %v8664, 2.1237322e-06
          %v8666 = vadd.f32 %v8665, 0.00028619796
          %v8667 = vmul.f32 %v8664, %v8666
          %v8668 = vadd.f32 %v8667, 0.0036580483
          %v8669 = vmul.f32 %v8664, %v8668
          %v8670 = vadd.f32 %v8669, 0.05243302
          %v8671 = vmul.f32 %v8664, %v8670
          %v8672 = vadd.f32 %v8671, 0.18741608
          %v8673 = vmul.f32 %v8664, %v8672
          %v8674 = vadd.f32 %v8673, 1.1283791
          %v8675 = vmul.f32 %v8647, %v8674
          %v8676 = vmul.f32 %v8664, 3.8918573e-05
          %v8677 = vadd.f32 %v8676, 0.001143296
          %v8678 = vmul.f32 %v8664, %v8677
          %v8679 = vadd.f32 %v8678, 0.014752088
          %v8680 = vmul.f32 %v8664, %v8679
          %v8681 = vadd.f32 %v8680, 0.112945676
          %v8682 = vmul.f32 %v8664, %v8681
          %v8683 = vadd.f32 %v8682, 0.4994258
          %v8684 = vmul.f32 %v8664, %v8683
          %v8685 = vadd.f32 %v8684, 1.0
          %v8686 = vrcp.pop %v8685
          %v8687 = vmul.f32 %v8685, %v8686
          %v8688 = vsub.f32 1.0, %v8687
          %v8689 = vmul.f32 %v8686, %v8688
          %v8690 = vadd.f32 %v8686, %v8689
          %vm8691 = vweird.f32 %v8685
          %vm8692 = vweird.f32 %v8686
          %vm8693 = vmor %vm8691, %vm8692
          %v8694 = vsel %vm8693, %v8686, %v8690
          %v8695 = vand.u32 2147483647, %v8685
          %vm8696 = vcmp.eq.f32.partialorder %v8695, 8.507059e+37
          %v8697 = vand.u32 %v8685, 2147483648
          %v8698 = vor.u32 1.1754944e-38, %v8697
          %v8699 = vsel %vm8696, %v8698, %v8694
          %v8700 = vmul.f32 %v8675, %v8699
          %v8701 = vmin.f32 %v8700, 1.0
          %v8702 = vmax.f32 %v8701, -1.0
          %v8703 = vmul.f32 %v8648, %v8648
          %v8704 = vmin.f32 16.0, %v8703
          %v8705 = vmul.f32 %v8704, 2.1237322e-06
          %v8706 = vadd.f32 %v8705, 0.00028619796
          %v8707 = vmul.f32 %v8704, %v8706
          %v8708 = vadd.f32 %v8707, 0.0036580483
          %v8709 = vmul.f32 %v8704, %v8708
          %v8710 = vadd.f32 %v8709, 0.05243302
          %v8711 = vmul.f32 %v8704, %v8710
          %v8712 = vadd.f32 %v8711, 0.18741608
          %v8713 = vmul.f32 %v8704, %v8712
          %v8714 = vadd.f32 %v8713, 1.1283791
          %v8715 = vmul.f32 %v8648, %v8714
          %v8716 = vmul.f32 %v8704, 3.8918573e-05
          %v8717 = vadd.f32 %v8716, 0.001143296
          %v8718 = vmul.f32 %v8704, %v8717
          %v8719 = vadd.f32 %v8718, 0.014752088
          %v8720 = vmul.f32 %v8704, %v8719
          %v8721 = vadd.f32 %v8720, 0.112945676
          %v8722 = vmul.f32 %v8704, %v8721
          %v8723 = vadd.f32 %v8722, 0.4994258
          %v8724 = vmul.f32 %v8704, %v8723
          %v8725 = vadd.f32 %v8724, 1.0
          %v8726 = vrcp.pop %v8725
          %v8727 = vmul.f32 %v8725, %v8726
          %v8728 = vsub.f32 1.0, %v8727
          %v8729 = vmul.f32 %v8726, %v8728
          %v8730 = vadd.f32 %v8726, %v8729
          %vm8731 = vweird.f32 %v8725
          %vm8732 = vweird.f32 %v8726
          %vm8733 = vmor %vm8731, %vm8732
          %v8734 = vsel %vm8733, %v8726, %v8730
          %v8735 = vand.u32 2147483647, %v8725
          %vm8736 = vcmp.eq.f32.partialorder %v8735, 8.507059e+37
          %v8737 = vand.u32 %v8725, 2147483648
          %v8738 = vor.u32 1.1754944e-38, %v8737
          %v8739 = vsel %vm8736, %v8738, %v8734
          %v8740 = vmul.f32 %v8715, %v8739
          %v8741 = vmin.f32 %v8740, 1.0
          %v8742 = vmax.f32 %v8741, -1.0
          %v8743 = vmul.f32 %v8649, %v8649
          %v8744 = vmin.f32 16.0, %v8743
          %v8745 = vmul.f32 %v8744, 2.1237322e-06
          %v8746 = vadd.f32 %v8745, 0.00028619796
          %v8747 = vmul.f32 %v8744, %v8746
          %v8748 = vadd.f32 %v8747, 0.0036580483
          %v8749 = vmul.f32 %v8744, %v8748
          %v8750 = vadd.f32 %v8749, 0.05243302
          %v8751 = vmul.f32 %v8744, %v8750
          %v8752 = vadd.f32 %v8751, 0.18741608
          %v8753 = vmul.f32 %v8744, %v8752
          %v8754 = vadd.f32 %v8753, 1.1283791
          %v8755 = vmul.f32 %v8649, %v8754
          %v8756 = vmul.f32 %v8744, 3.8918573e-05
          %v8757 = vadd.f32 %v8756, 0.001143296
          %v8758 = vmul.f32 %v8744, %v8757
          %v8759 = vadd.f32 %v8758, 0.014752088
          %v8760 = vmul.f32 %v8744, %v8759
          %v8761 = vadd.f32 %v8760, 0.112945676
          %v8762 = vmul.f32 %v8744, %v8761
          %v8763 = vadd.f32 %v8762, 0.4994258
          %v8764 = vmul.f32 %v8744, %v8763
          %v8765 = vadd.f32 %v8764, 1.0
          %v8766 = vrcp.pop %v8765
          %v8767 = vmul.f32 %v8765, %v8766
          %v8768 = vsub.f32 1.0, %v8767
          %v8769 = vmul.f32 %v8766, %v8768
          %v8770 = vadd.f32 %v8766, %v8769
          %vm8771 = vweird.f32 %v8765
          %vm8772 = vweird.f32 %v8766
          %vm8773 = vmor %vm8771, %vm8772
          %v8774 = vsel %vm8773, %v8766, %v8770
          %v8775 = vand.u32 2147483647, %v8765
          %vm8776 = vcmp.eq.f32.partialorder %v8775, 8.507059e+37
          %v8777 = vand.u32 %v8765, 2147483648
          %v8778 = vor.u32 1.1754944e-38, %v8777
          %v8779 = vsel %vm8776, %v8778, %v8774
          %v8780 = vmul.f32 %v8755, %v8779
          %v8781 = vmin.f32 %v8780, 1.0
          %v8782 = vmax.f32 %v8781, -1.0
          %v8783 = vmul.f32 %v8650, %v8650
          %v8784 = vmin.f32 16.0, %v8783
          %v8785 = vmul.f32 %v8784, 2.1237322e-06
          %v8786 = vadd.f32 %v8785, 0.00028619796
          %v8787 = vmul.f32 %v8784, %v8786
          %v8788 = vadd.f32 %v8787, 0.0036580483
          %v8789 = vmul.f32 %v8784, %v8788
          %v8790 = vadd.f32 %v8789, 0.05243302
          %v8791 = vmul.f32 %v8784, %v8790
          %v8792 = vadd.f32 %v8791, 0.18741608
          %v8793 = vmul.f32 %v8784, %v8792
          %v8794 = vadd.f32 %v8793, 1.1283791
          %v8795 = vmul.f32 %v8650, %v8794
          %v8796 = vmul.f32 %v8784, 3.8918573e-05
          %v8797 = vadd.f32 %v8796, 0.001143296
          %v8798 = vmul.f32 %v8784, %v8797
          %v8799 = vadd.f32 %v8798, 0.014752088
          %v8800 = vmul.f32 %v8784, %v8799
          %v8801 = vadd.f32 %v8800, 0.112945676
          %v8802 = vmul.f32 %v8784, %v8801
          %v8803 = vadd.f32 %v8802, 0.4994258
          %v8804 = vmul.f32 %v8784, %v8803
          %v8805 = vadd.f32 %v8804, 1.0
          %v8806 = vrcp.pop %v8805
          %v8807 = vmul.f32 %v8805, %v8806
          %v8808 = vsub.f32 1.0, %v8807
          %v8809 = vmul.f32 %v8806, %v8808
          %v8810 = vadd.f32 %v8806, %v8809
          %vm8811 = vweird.f32 %v8805
          %vm8812 = vweird.f32 %v8806
          %vm8813 = vmor %vm8811, %vm8812
          %v8814 = vsel %vm8813, %v8806, %v8810
          %v8815 = vand.u32 2147483647, %v8805
          %vm8816 = vcmp.eq.f32.partialorder %v8815, 8.507059e+37
          %v8817 = vand.u32 %v8805, 2147483648
          %v8818 = vor.u32 1.1754944e-38, %v8817
          %v8819 = vsel %vm8816, %v8818, %v8814
          %v8820 = vmul.f32 %v8795, %v8819
          %v8821 = vmin.f32 %v8820, 1.0
          %v8822 = vmax.f32 %v8821, -1.0
          %v8823 = vmul.f32 %v8651, %v8651
          %v8824 = vmin.f32 16.0, %v8823
          %v8825 = vmul.f32 %v8824, 2.1237322e-06
          %v8826 = vadd.f32 %v8825, 0.00028619796
          %v8827 = vmul.f32 %v8824, %v8826
          %v8828 = vadd.f32 %v8827, 0.0036580483
          %v8829 = vmul.f32 %v8824, %v8828
          %v8830 = vadd.f32 %v8829, 0.05243302
          %v8831 = vmul.f32 %v8824, %v8830
          %v8832 = vadd.f32 %v8831, 0.18741608
          %v8833 = vmul.f32 %v8824, %v8832
          %v8834 = vadd.f32 %v8833, 1.1283791
          %v8835 = vmul.f32 %v8651, %v8834
          %v8836 = vmul.f32 %v8824, 3.8918573e-05
          %v8837 = vadd.f32 %v8836, 0.001143296
          %v8838 = vmul.f32 %v8824, %v8837
          %v8839 = vadd.f32 %v8838, 0.014752088
          %v8840 = vmul.f32 %v8824, %v8839
          %v8841 = vadd.f32 %v8840, 0.112945676
          %v8842 = vmul.f32 %v8824, %v8841
          %v8843 = vadd.f32 %v8842, 0.4994258
          %v8844 = vmul.f32 %v8824, %v8843
          %v8845 = vadd.f32 %v8844, 1.0
          %v8846 = vrcp.pop %v8845
          %v8847 = vmul.f32 %v8845, %v8846
          %v8848 = vsub.f32 1.0, %v8847
          %v8849 = vmul.f32 %v8846, %v8848
          %v8850 = vadd.f32 %v8846, %v8849
          %vm8851 = vweird.f32 %v8845
          %vm8852 = vweird.f32 %v8846
          %vm8853 = vmor %vm8851, %vm8852
          %v8854 = vsel %vm8853, %v8846, %v8850
          %v8855 = vand.u32 2147483647, %v8845
          %vm8856 = vcmp.eq.f32.partialorder %v8855, 8.507059e+37
          %v8857 = vand.u32 %v8845, 2147483648
          %v8858 = vor.u32 1.1754944e-38, %v8857
          %v8859 = vsel %vm8856, %v8858, %v8854
          %v8860 = vmul.f32 %v8835, %v8859
          %v8861 = vmin.f32 %v8860, 1.0
          %v8862 = vmax.f32 %v8861, -1.0
          %v8863 = vmul.f32 %v8652, %v8652
          %v8864 = vmin.f32 16.0, %v8863
          %v8865 = vmul.f32 %v8864, 2.1237322e-06
          %v8866 = vadd.f32 %v8865, 0.00028619796
          %v8867 = vmul.f32 %v8864, %v8866
          %v8868 = vadd.f32 %v8867, 0.0036580483
          %v8869 = vmul.f32 %v8864, %v8868
          %v8870 = vadd.f32 %v8869, 0.05243302
          %v8871 = vmul.f32 %v8864, %v8870
          %v8872 = vadd.f32 %v8871, 0.18741608
          %v8873 = vmul.f32 %v8864, %v8872
          %v8874 = vadd.f32 %v8873, 1.1283791
          %v8875 = vmul.f32 %v8652, %v8874
          %v8876 = vmul.f32 %v8864, 3.8918573e-05
          %v8877 = vadd.f32 %v8876, 0.001143296
          %v8878 = vmul.f32 %v8864, %v8877
          %v8879 = vadd.f32 %v8878, 0.014752088
          %v8880 = vmul.f32 %v8864, %v8879
          %v8881 = vadd.f32 %v8880, 0.112945676
          %v8882 = vmul.f32 %v8864, %v8881
          %v8883 = vadd.f32 %v8882, 0.4994258
          %v8884 = vmul.f32 %v8864, %v8883
          %v8885 = vadd.f32 %v8884, 1.0
          %v8886 = vrcp.pop %v8885
          %v8887 = vmul.f32 %v8885, %v8886
          %v8888 = vsub.f32 1.0, %v8887
          %v8889 = vmul.f32 %v8886, %v8888
          %v8890 = vadd.f32 %v8886, %v8889
          %vm8891 = vweird.f32 %v8885
          %vm8892 = vweird.f32 %v8886
          %vm8893 = vmor %vm8891, %vm8892
          %v8894 = vsel %vm8893, %v8886, %v8890
          %v8895 = vand.u32 2147483647, %v8885
          %vm8896 = vcmp.eq.f32.partialorder %v8895, 8.507059e+37
          %v8897 = vand.u32 %v8885, 2147483648
          %v8898 = vor.u32 1.1754944e-38, %v8897
          %v8899 = vsel %vm8896, %v8898, %v8894
          %v8900 = vmul.f32 %v8875, %v8899
          %v8901 = vmin.f32 %v8900, 1.0
          %v8902 = vmax.f32 %v8901, -1.0
          %v8903 = vmul.f32 %v8653, %v8653
          %v8904 = vmin.f32 16.0, %v8903
          %v8905 = vmul.f32 %v8904, 2.1237322e-06
          %v8906 = vadd.f32 %v8905, 0.00028619796
          %v8907 = vmul.f32 %v8904, %v8906
          %v8908 = vadd.f32 %v8907, 0.0036580483
          %v8909 = vmul.f32 %v8904, %v8908
          %v8910 = vadd.f32 %v8909, 0.05243302
          %v8911 = vmul.f32 %v8904, %v8910
          %v8912 = vadd.f32 %v8911, 0.18741608
          %v8913 = vmul.f32 %v8904, %v8912
          %v8914 = vadd.f32 %v8913, 1.1283791
          %v8915 = vmul.f32 %v8653, %v8914
          %v8916 = vmul.f32 %v8904, 3.8918573e-05
          %v8917 = vadd.f32 %v8916, 0.001143296
          %v8918 = vmul.f32 %v8904, %v8917
          %v8919 = vadd.f32 %v8918, 0.014752088
          %v8920 = vmul.f32 %v8904, %v8919
          %v8921 = vadd.f32 %v8920, 0.112945676
          %v8922 = vmul.f32 %v8904, %v8921
          %v8923 = vadd.f32 %v8922, 0.4994258
          %v8924 = vmul.f32 %v8904, %v8923
          %v8925 = vadd.f32 %v8924, 1.0
          %v8926 = vrcp.pop %v8925
          %v8927 = vmul.f32 %v8925, %v8926
          %v8928 = vsub.f32 1.0, %v8927
          %v8929 = vmul.f32 %v8926, %v8928
          %v8930 = vadd.f32 %v8926, %v8929
          %vm8931 = vweird.f32 %v8925
          %vm8932 = vweird.f32 %v8926
          %vm8933 = vmor %vm8931, %vm8932
          %v8934 = vsel %vm8933, %v8926, %v8930
          %v8935 = vand.u32 2147483647, %v8925
          %vm8936 = vcmp.eq.f32.partialorder %v8935, 8.507059e+37
          %v8937 = vand.u32 %v8925, 2147483648
          %v8938 = vor.u32 1.1754944e-38, %v8937
          %v8939 = vsel %vm8936, %v8938, %v8934
          %v8940 = vmul.f32 %v8915, %v8939
          %v8941 = vmin.f32 %v8940, 1.0
          %v8942 = vmax.f32 %v8941, -1.0
          %v8943 = vmul.f32 %v8654, %v8654
          %v8944 = vmin.f32 16.0, %v8943
          %v8945 = vmul.f32 %v8944, 2.1237322e-06
          %v8946 = vadd.f32 %v8945, 0.00028619796
          %v8947 = vmul.f32 %v8944, %v8946
          %v8948 = vadd.f32 %v8947, 0.0036580483
          %v8949 = vmul.f32 %v8944, %v8948
          %v8950 = vadd.f32 %v8949, 0.05243302
          %v8951 = vmul.f32 %v8944, %v8950
          %v8952 = vadd.f32 %v8951, 0.18741608
          %v8953 = vmul.f32 %v8944, %v8952
          %v8954 = vadd.f32 %v8953, 1.1283791
          %v8955 = vmul.f32 %v8654, %v8954
          %v8956 = vmul.f32 %v8944, 3.8918573e-05
          %v8957 = vadd.f32 %v8956, 0.001143296
          %v8958 = vmul.f32 %v8944, %v8957
          %v8959 = vadd.f32 %v8958, 0.014752088
          %v8960 = vmul.f32 %v8944, %v8959
          %v8961 = vadd.f32 %v8960, 0.112945676
          %v8962 = vmul.f32 %v8944, %v8961
          %v8963 = vadd.f32 %v8962, 0.4994258
          %v8964 = vmul.f32 %v8944, %v8963
          %v8965 = vadd.f32 %v8964, 1.0
          %v8966 = vrcp.pop %v8965
          %v8967 = vmul.f32 %v8965, %v8966
          %v8968 = vsub.f32 1.0, %v8967
          %v8969 = vmul.f32 %v8966, %v8968
          %v8970 = vadd.f32 %v8966, %v8969
          %vm8971 = vweird.f32 %v8965
          %vm8972 = vweird.f32 %v8966
          %vm8973 = vmor %vm8971, %vm8972
          %v8974 = vsel %vm8973, %v8966, %v8970
          %v8975 = vand.u32 2147483647, %v8965
          %vm8976 = vcmp.eq.f32.partialorder %v8975, 8.507059e+37
          %v8977 = vand.u32 %v8965, 2147483648
          %v8978 = vor.u32 1.1754944e-38, %v8977
          %v8979 = vsel %vm8976, %v8978, %v8974
          %v8980 = vmul.f32 %v8955, %v8979
          %v8981 = vmin.f32 %v8980, 1.0
          %v8982 = vmax.f32 %v8981, -1.0
          %v8983 = vmul.f32 %v8655, %v8655
          %v8984 = vmin.f32 16.0, %v8983
          %v8985 = vmul.f32 %v8984, 2.1237322e-06
          %v8986 = vadd.f32 %v8985, 0.00028619796
          %v8987 = vmul.f32 %v8984, %v8986
          %v8988 = vadd.f32 %v8987, 0.0036580483
          %v8989 = vmul.f32 %v8984, %v8988
          %v8990 = vadd.f32 %v8989, 0.05243302
          %v8991 = vmul.f32 %v8984, %v8990
          %v8992 = vadd.f32 %v8991, 0.18741608
          %v8993 = vmul.f32 %v8984, %v8992
          %v8994 = vadd.f32 %v8993, 1.1283791
          %v8995 = vmul.f32 %v8655, %v8994
          %v8996 = vmul.f32 %v8984, 3.8918573e-05
          %v8997 = vadd.f32 %v8996, 0.001143296
          %v8998 = vmul.f32 %v8984, %v8997
          %v8999 = vadd.f32 %v8998, 0.014752088
          %v9000 = vmul.f32 %v8984, %v8999
          %v9001 = vadd.f32 %v9000, 0.112945676
          %v9002 = vmul.f32 %v8984, %v9001
          %v9003 = vadd.f32 %v9002, 0.4994258
          %v9004 = vmul.f32 %v8984, %v9003
          %v9005 = vadd.f32 %v9004, 1.0
          %v9006 = vrcp.pop %v9005
          %v9007 = vmul.f32 %v9005, %v9006
          %v9008 = vsub.f32 1.0, %v9007
          %v9009 = vmul.f32 %v9006, %v9008
          %v9010 = vadd.f32 %v9006, %v9009
          %vm9011 = vweird.f32 %v9005
          %vm9012 = vweird.f32 %v9006
          %vm9013 = vmor %vm9011, %vm9012
          %v9014 = vsel %vm9013, %v9006, %v9010
          %v9015 = vand.u32 2147483647, %v9005
          %vm9016 = vcmp.eq.f32.partialorder %v9015, 8.507059e+37
          %v9017 = vand.u32 %v9005, 2147483648
          %v9018 = vor.u32 1.1754944e-38, %v9017
          %v9019 = vsel %vm9016, %v9018, %v9014
          %v9020 = vmul.f32 %v8995, %v9019
          %v9021 = vmin.f32 %v9020, 1.0
          %v9022 = vmax.f32 %v9021, -1.0
          %v9023 = vmul.f32 %v8656, %v8656
          %v9024 = vmin.f32 16.0, %v9023
          %v9025 = vmul.f32 %v9024, 2.1237322e-06
          %v9026 = vadd.f32 %v9025, 0.00028619796
          %v9027 = vmul.f32 %v9024, %v9026
          %v9028 = vadd.f32 %v9027, 0.0036580483
          %v9029 = vmul.f32 %v9024, %v9028
          %v9030 = vadd.f32 %v9029, 0.05243302
          %v9031 = vmul.f32 %v9024, %v9030
          %v9032 = vadd.f32 %v9031, 0.18741608
          %v9033 = vmul.f32 %v9024, %v9032
          %v9034 = vadd.f32 %v9033, 1.1283791
          %v9035 = vmul.f32 %v8656, %v9034
          %v9036 = vmul.f32 %v9024, 3.8918573e-05
          %v9037 = vadd.f32 %v9036, 0.001143296
          %v9038 = vmul.f32 %v9024, %v9037
          %v9039 = vadd.f32 %v9038, 0.014752088
          %v9040 = vmul.f32 %v9024, %v9039
          %v9041 = vadd.f32 %v9040, 0.112945676
          %v9042 = vmul.f32 %v9024, %v9041
          %v9043 = vadd.f32 %v9042, 0.4994258
          %v9044 = vmul.f32 %v9024, %v9043
          %v9045 = vadd.f32 %v9044, 1.0
          %v9046 = vrcp.pop %v9045
          %v9047 = vmul.f32 %v9045, %v9046
          %v9048 = vsub.f32 1.0, %v9047
          %v9049 = vmul.f32 %v9046, %v9048
          %v9050 = vadd.f32 %v9046, %v9049
          %vm9051 = vweird.f32 %v9045
          %vm9052 = vweird.f32 %v9046
          %vm9053 = vmor %vm9051, %vm9052
          %v9054 = vsel %vm9053, %v9046, %v9050
          %v9055 = vand.u32 2147483647, %v9045
          %vm9056 = vcmp.eq.f32.partialorder %v9055, 8.507059e+37
          %v9057 = vand.u32 %v9045, 2147483648
          %v9058 = vor.u32 1.1754944e-38, %v9057
          %v9059 = vsel %vm9056, %v9058, %v9054
          %v9060 = vmul.f32 %v9035, %v9059
          %v9061 = vmin.f32 %v9060, 1.0
          %v9062 = vmax.f32 %v9061, -1.0
          %v9063 = vmul.f32 %v8657, %v8657
          %v9064 = vmin.f32 16.0, %v9063
          %v9065 = vmul.f32 %v9064, 2.1237322e-06
          %v9066 = vadd.f32 %v9065, 0.00028619796
          %v9067 = vmul.f32 %v9064, %v9066
          %v9068 = vadd.f32 %v9067, 0.0036580483
          %v9069 = vmul.f32 %v9064, %v9068
          %v9070 = vadd.f32 %v9069, 0.05243302
          %v9071 = vmul.f32 %v9064, %v9070
          %v9072 = vadd.f32 %v9071, 0.18741608
          %v9073 = vmul.f32 %v9064, %v9072
          %v9074 = vadd.f32 %v9073, 1.1283791
          %v9075 = vmul.f32 %v8657, %v9074
          %v9076 = vmul.f32 %v9064, 3.8918573e-05
          %v9077 = vadd.f32 %v9076, 0.001143296
          %v9078 = vmul.f32 %v9064, %v9077
          %v9079 = vadd.f32 %v9078, 0.014752088
          %v9080 = vmul.f32 %v9064, %v9079
          %v9081 = vadd.f32 %v9080, 0.112945676
          %v9082 = vmul.f32 %v9064, %v9081
          %v9083 = vadd.f32 %v9082, 0.4994258
          %v9084 = vmul.f32 %v9064, %v9083
          %v9085 = vadd.f32 %v9084, 1.0
          %v9086 = vrcp.pop %v9085
          %v9087 = vmul.f32 %v9085, %v9086
          %v9088 = vsub.f32 1.0, %v9087
          %v9089 = vmul.f32 %v9086, %v9088
          %v9090 = vadd.f32 %v9086, %v9089
          %vm9091 = vweird.f32 %v9085
          %vm9092 = vweird.f32 %v9086
          %vm9093 = vmor %vm9091, %vm9092
          %v9094 = vsel %vm9093, %v9086, %v9090
          %v9095 = vand.u32 2147483647, %v9085
          %vm9096 = vcmp.eq.f32.partialorder %v9095, 8.507059e+37
          %v9097 = vand.u32 %v9085, 2147483648
          %v9098 = vor.u32 1.1754944e-38, %v9097
          %v9099 = vsel %vm9096, %v9098, %v9094
          %v9100 = vmul.f32 %v9075, %v9099
          %v9101 = vmin.f32 %v9100, 1.0
          %v9102 = vmax.f32 %v9101, -1.0
          %v9103 = vmul.f32 %v8658, %v8658
          %v9104 = vmin.f32 16.0, %v9103
          %v9105 = vmul.f32 %v9104, 2.1237322e-06
          %v9106 = vadd.f32 %v9105, 0.00028619796
          %v9107 = vmul.f32 %v9104, %v9106
          %v9108 = vadd.f32 %v9107, 0.0036580483
          %v9109 = vmul.f32 %v9104, %v9108
          %v9110 = vadd.f32 %v9109, 0.05243302
          %v9111 = vmul.f32 %v9104, %v9110
          %v9112 = vadd.f32 %v9111, 0.18741608
          %v9113 = vmul.f32 %v9104, %v9112
          %v9114 = vadd.f32 %v9113, 1.1283791
          %v9115 = vmul.f32 %v8658, %v9114
          %v9116 = vmul.f32 %v9104, 3.8918573e-05
          %v9117 = vadd.f32 %v9116, 0.001143296
          %v9118 = vmul.f32 %v9104, %v9117
          %v9119 = vadd.f32 %v9118, 0.014752088
          %v9120 = vmul.f32 %v9104, %v9119
          %v9121 = vadd.f32 %v9120, 0.112945676
          %v9122 = vmul.f32 %v9104, %v9121
          %v9123 = vadd.f32 %v9122, 0.4994258
          %v9124 = vmul.f32 %v9104, %v9123
          %v9125 = vadd.f32 %v9124, 1.0
          %v9126 = vrcp.pop %v9125
          %v9127 = vmul.f32 %v9125, %v9126
          %v9128 = vsub.f32 1.0, %v9127
          %v9129 = vmul.f32 %v9126, %v9128
          %v9130 = vadd.f32 %v9126, %v9129
          %vm9131 = vweird.f32 %v9125
          %vm9132 = vweird.f32 %v9126
          %vm9133 = vmor %vm9131, %vm9132
          %v9134 = vsel %vm9133, %v9126, %v9130
          %v9135 = vand.u32 2147483647, %v9125
          %vm9136 = vcmp.eq.f32.partialorder %v9135, 8.507059e+37
          %v9137 = vand.u32 %v9125, 2147483648
          %v9138 = vor.u32 1.1754944e-38, %v9137
          %v9139 = vsel %vm9136, %v9138, %v9134
          %v9140 = vmul.f32 %v9115, %v9139
          %v9141 = vmin.f32 %v9140, 1.0
          %v9142 = vmax.f32 %v9141, -1.0
          %v9143 = vmul.f32 %v8659, %v8659
          %v9144 = vmin.f32 16.0, %v9143
          %v9145 = vmul.f32 %v9144, 2.1237322e-06
          %v9146 = vadd.f32 %v9145, 0.00028619796
          %v9147 = vmul.f32 %v9144, %v9146
          %v9148 = vadd.f32 %v9147, 0.0036580483
          %v9149 = vmul.f32 %v9144, %v9148
          %v9150 = vadd.f32 %v9149, 0.05243302
          %v9151 = vmul.f32 %v9144, %v9150
          %v9152 = vadd.f32 %v9151, 0.18741608
          %v9153 = vmul.f32 %v9144, %v9152
          %v9154 = vadd.f32 %v9153, 1.1283791
          %v9155 = vmul.f32 %v8659, %v9154
          %v9156 = vmul.f32 %v9144, 3.8918573e-05
          %v9157 = vadd.f32 %v9156, 0.001143296
          %v9158 = vmul.f32 %v9144, %v9157
          %v9159 = vadd.f32 %v9158, 0.014752088
          %v9160 = vmul.f32 %v9144, %v9159
          %v9161 = vadd.f32 %v9160, 0.112945676
          %v9162 = vmul.f32 %v9144, %v9161
          %v9163 = vadd.f32 %v9162, 0.4994258
          %v9164 = vmul.f32 %v9144, %v9163
          %v9165 = vadd.f32 %v9164, 1.0
          %v9166 = vrcp.pop %v9165
          %v9167 = vmul.f32 %v9165, %v9166
          %v9168 = vsub.f32 1.0, %v9167
          %v9169 = vmul.f32 %v9166, %v9168
          %v9170 = vadd.f32 %v9166, %v9169
          %vm9171 = vweird.f32 %v9165
          %vm9172 = vweird.f32 %v9166
          %vm9173 = vmor %vm9171, %vm9172
          %v9174 = vsel %vm9173, %v9166, %v9170
          %v9175 = vand.u32 2147483647, %v9165
          %vm9176 = vcmp.eq.f32.partialorder %v9175, 8.507059e+37
          %v9177 = vand.u32 %v9165, 2147483648
          %v9178 = vor.u32 1.1754944e-38, %v9177
          %v9179 = vsel %vm9176, %v9178, %v9174
          %v9180 = vmul.f32 %v9155, %v9179
          %v9181 = vmin.f32 %v9180, 1.0
          %v9182 = vmax.f32 %v9181, -1.0
          %v9183 = vmul.f32 %v8660, %v8660
          %v9184 = vmin.f32 16.0, %v9183
          %v9185 = vmul.f32 %v9184, 2.1237322e-06
          %v9186 = vadd.f32 %v9185, 0.00028619796
          %v9187 = vmul.f32 %v9184, %v9186
          %v9188 = vadd.f32 %v9187, 0.0036580483
          %v9189 = vmul.f32 %v9184, %v9188
          %v9190 = vadd.f32 %v9189, 0.05243302
          %v9191 = vmul.f32 %v9184, %v9190
          %v9192 = vadd.f32 %v9191, 0.18741608
          %v9193 = vmul.f32 %v9184, %v9192
          %v9194 = vadd.f32 %v9193, 1.1283791
          %v9195 = vmul.f32 %v8660, %v9194
          %v9196 = vmul.f32 %v9184, 3.8918573e-05
          %v9197 = vadd.f32 %v9196, 0.001143296
          %v9198 = vmul.f32 %v9184, %v9197
          %v9199 = vadd.f32 %v9198, 0.014752088
          %v9200 = vmul.f32 %v9184, %v9199
          %v9201 = vadd.f32 %v9200, 0.112945676
          %v9202 = vmul.f32 %v9184, %v9201
          %v9203 = vadd.f32 %v9202, 0.4994258
          %v9204 = vmul.f32 %v9184, %v9203
          %v9205 = vadd.f32 %v9204, 1.0
          %v9206 = vrcp.pop %v9205
          %v9207 = vmul.f32 %v9205, %v9206
          %v9208 = vsub.f32 1.0, %v9207
          %v9209 = vmul.f32 %v9206, %v9208
          %v9210 = vadd.f32 %v9206, %v9209
          %vm9211 = vweird.f32 %v9205
          %vm9212 = vweird.f32 %v9206
          %vm9213 = vmor %vm9211, %vm9212
          %v9214 = vsel %vm9213, %v9206, %v9210
          %v9215 = vand.u32 2147483647, %v9205
          %vm9216 = vcmp.eq.f32.partialorder %v9215, 8.507059e+37
          %v9217 = vand.u32 %v9205, 2147483648
          %v9218 = vor.u32 1.1754944e-38, %v9217
          %v9219 = vsel %vm9216, %v9218, %v9214
          %v9220 = vmul.f32 %v9195, %v9219
          %v9221 = vmin.f32 %v9220, 1.0
          %v9222 = vmax.f32 %v9221, -1.0
          %v9223 = vmul.f32 %v8661, %v8661
          %v9224 = vmin.f32 16.0, %v9223
          %v9225 = vmul.f32 %v9224, 2.1237322e-06
          %v9226 = vadd.f32 %v9225, 0.00028619796
          %v9227 = vmul.f32 %v9224, %v9226
          %v9228 = vadd.f32 %v9227, 0.0036580483
          %v9229 = vmul.f32 %v9224, %v9228
          %v9230 = vadd.f32 %v9229, 0.05243302
          %v9231 = vmul.f32 %v9224, %v9230
          %v9232 = vadd.f32 %v9231, 0.18741608
          %v9233 = vmul.f32 %v9224, %v9232
          %v9234 = vadd.f32 %v9233, 1.1283791
          %v9235 = vmul.f32 %v8661, %v9234
          %v9236 = vmul.f32 %v9224, 3.8918573e-05
          %v9237 = vadd.f32 %v9236, 0.001143296
          %v9238 = vmul.f32 %v9224, %v9237
          %v9239 = vadd.f32 %v9238, 0.014752088
          %v9240 = vmul.f32 %v9224, %v9239
          %v9241 = vadd.f32 %v9240, 0.112945676
          %v9242 = vmul.f32 %v9224, %v9241
          %v9243 = vadd.f32 %v9242, 0.4994258
          %v9244 = vmul.f32 %v9224, %v9243
          %v9245 = vadd.f32 %v9244, 1.0
          %v9246 = vrcp.pop %v9245
          %v9247 = vmul.f32 %v9245, %v9246
          %v9248 = vsub.f32 1.0, %v9247
          %v9249 = vmul.f32 %v9246, %v9248
          %v9250 = vadd.f32 %v9246, %v9249
          %vm9251 = vweird.f32 %v9245
          %vm9252 = vweird.f32 %v9246
          %vm9253 = vmor %vm9251, %vm9252
          %v9254 = vsel %vm9253, %v9246, %v9250
          %v9255 = vand.u32 2147483647, %v9245
          %vm9256 = vcmp.eq.f32.partialorder %v9255, 8.507059e+37
          %v9257 = vand.u32 %v9245, 2147483648
          %v9258 = vor.u32 1.1754944e-38, %v9257
          %v9259 = vsel %vm9256, %v9258, %v9254
          %v9260 = vmul.f32 %v9235, %v9259
          %v9261 = vmin.f32 %v9260, 1.0
          %v9262 = vmax.f32 %v9261, -1.0
          %v9263 = vmul.f32 %v8662, %v8662
          %v9264 = vmin.f32 16.0, %v9263
          %v9265 = vmul.f32 %v9264, 2.1237322e-06
          %v9266 = vadd.f32 %v9265, 0.00028619796
          %v9267 = vmul.f32 %v9264, %v9266
          %v9268 = vadd.f32 %v9267, 0.0036580483
          %v9269 = vmul.f32 %v9264, %v9268
          %v9270 = vadd.f32 %v9269, 0.05243302
          %v9271 = vmul.f32 %v9264, %v9270
          %v9272 = vadd.f32 %v9271, 0.18741608
          %v9273 = vmul.f32 %v9264, %v9272
          %v9274 = vadd.f32 %v9273, 1.1283791
          %v9275 = vmul.f32 %v8662, %v9274
          %v9276 = vmul.f32 %v9264, 3.8918573e-05
          %v9277 = vadd.f32 %v9276, 0.001143296
          %v9278 = vmul.f32 %v9264, %v9277
          %v9279 = vadd.f32 %v9278, 0.014752088
          %v9280 = vmul.f32 %v9264, %v9279
          %v9281 = vadd.f32 %v9280, 0.112945676
          %v9282 = vmul.f32 %v9264, %v9281
          %v9283 = vadd.f32 %v9282, 0.4994258
          %v9284 = vmul.f32 %v9264, %v9283
          %v9285 = vadd.f32 %v9284, 1.0
          %v9286 = vrcp.pop %v9285
          %v9287 = vmul.f32 %v9285, %v9286
          %v9288 = vsub.f32 1.0, %v9287
          %v9289 = vmul.f32 %v9286, %v9288
          %v9290 = vadd.f32 %v9286, %v9289
          %vm9291 = vweird.f32 %v9285
          %vm9292 = vweird.f32 %v9286
          %vm9293 = vmor %vm9291, %vm9292
          %v9294 = vsel %vm9293, %v9286, %v9290
          %v9295 = vand.u32 2147483647, %v9285
          %vm9296 = vcmp.eq.f32.partialorder %v9295, 8.507059e+37
          %v9297 = vand.u32 %v9285, 2147483648
          %v9298 = vor.u32 1.1754944e-38, %v9297
          %v9299 = vsel %vm9296, %v9298, %v9294
          %v9300 = vmul.f32 %v9275, %v9299
          %v9301 = vmin.f32 %v9300, 1.0
          %v9302 = vmax.f32 %v9301, -1.0
          %v9303 = vadd.f32 %v8702, 1.0
          %v9304 = vadd.f32 %v8742, 1.0
          %v9305 = vadd.f32 %v8782, 1.0
          %v9306 = vadd.f32 %v8822, 1.0
          %v9307 = vadd.f32 %v8862, 1.0
          %v9308 = vadd.f32 %v8902, 1.0
          %v9309 = vadd.f32 %v8942, 1.0
          %v9310 = vadd.f32 %v8982, 1.0
          %v9311 = vadd.f32 %v9022, 1.0
          %v9312 = vadd.f32 %v9062, 1.0
          %v9313 = vadd.f32 %v9102, 1.0
          %v9314 = vadd.f32 %v9142, 1.0
          %v9315 = vadd.f32 %v9182, 1.0
          %v9316 = vadd.f32 %v9222, 1.0
          %v9317 = vadd.f32 %v9262, 1.0
          %v9318 = vadd.f32 %v9302, 1.0
          %v9319 = vmul.f32 %v8631, %v9303
          %v9320 = vmul.f32 %v8632, %v9304
          %v9321 = vmul.f32 %v8633, %v9305
          %v9322 = vmul.f32 %v8634, %v9306
          %v9323 = vmul.f32 %v8635, %v9307
          %v9324 = vmul.f32 %v8636, %v9308
          %v9325 = vmul.f32 %v8637, %v9309
          %v9326 = vmul.f32 %v8638, %v9310
          %v9327 = vmul.f32 %v8639, %v9311
          %v9328 = vmul.f32 %v8640, %v9312
          %v9329 = vmul.f32 %v8641, %v9313
          %v9330 = vmul.f32 %v8642, %v9314
          %v9331 = vmul.f32 %v8643, %v9315
          %v9332 = vmul.f32 %v8644, %v9316
          %v9333 = vmul.f32 %v8645, %v9317
          %v9334 = vmul.f32 %v8646, %v9318
          %v9335 = vperm.slane %v8156, 7
          %v9336 = vperm.slane %v8157, 7
          %v9337 = vperm.slane %v8158, 7
          %v9338 = vperm.slane %v8159, 7
          %v9339 = vperm.slane %v8160, 7
          %v9340 = vperm.slane %v8161, 7
          %v9341 = vperm.slane %v8162, 7
          %v9342 = vperm.slane %v8163, 7
          %v9343 = vperm.slane %v8164, 7
          %v9344 = vperm.slane %v8165, 7
          %v9345 = vperm.slane %v8166, 7
          %v9346 = vperm.slane %v8167, 7
          %v9347 = vperm.slane %v8168, 7
          %v9348 = vperm.slane %v8169, 7
          %v9349 = vperm.slane %v8170, 7
          %v9350 = vperm.slane %v8171, 7
          %v9351 = vmul.f32 %v9319, %v9335
          %v9352 = vmul.f32 %v9320, %v9336
          %v9353 = vmul.f32 %v9321, %v9337
          %v9354 = vmul.f32 %v9322, %v9338
          %v9355 = vmul.f32 %v9323, %v9339
          %v9356 = vmul.f32 %v9324, %v9340
          %v9357 = vmul.f32 %v9325, %v9341
          %v9358 = vmul.f32 %v9326, %v9342
          %v9359 = vmul.f32 %v9327, %v9343
          %v9360 = vmul.f32 %v9328, %v9344
          %v9361 = vmul.f32 %v9329, %v9345
          %v9362 = vmul.f32 %v9330, %v9346
          %v9363 = vmul.f32 %v9331, %v9347
          %v9364 = vmul.f32 %v9332, %v9348
          %v9365 = vmul.f32 %v9333, %v9349
          %v9366 = vmul.f32 %v9334, %v9350
          %v9367 = vadd.f32 %v9351, %v9352
          %v9368 = vadd.f32 %v9367, %v9353
          %v9369 = vadd.f32 %v9368, %v9354
          %v9370 = vadd.f32 %v9369, %v9355
          %v9371 = vadd.f32 %v9370, %v9356
          %v9372 = vadd.f32 %v9371, %v9357
          %v9373 = vadd.f32 %v9372, %v9358
          %v9374 = vadd.f32 %v9373, %v9359
          %v9375 = vadd.f32 %v9374, %v9360
          %v9376 = vadd.f32 %v9375, %v9361
          %v9377 = vadd.f32 %v9376, %v9362
          %v9378 = vadd.f32 %v9377, %v9363
          %v9379 = vadd.f32 %v9378, %v9364
          %v9380 = vadd.f32 %v9379, %v9365
          %v9381 = vadd.f32 %v9380, %v9366
          %9382 = vadd.xlane.f32.xlu0 %v9381
          %v9383 = vpop.xlane.xlu0 %9382
          %vm9384 = vcmask 7168
          %9385 = vst.msk [vmem:[%s4] sm:$0xff] %vm9384, %v9383
        $region56: #{tpu_custom_call.1} parent=35 // pred_fallthru
          _
        // Predicated region
        $region57: #{tpu_custom_call.1} parent=35 // pred_check
          %p9386 = pneg %p126
        $region58: #{tpu_custom_call.1} parent=35 // pred_check_branch
          %9388 = sbr.rel (%p9386) target = $region60
        $region59: #{tpu_custom_call.1} parent=35 // pred_region
          _
        $region60: #{tpu_custom_call.1} parent=35 // pred_fallthru
          _
        // Predicated region
        $region61: #{tpu_custom_call.1} parent=35 // pred_check
          %p9389 = pneg %p126
        $region62: #{tpu_custom_call.1} parent=35 // pred_check_branch
          %9391 = sbr.rel (%p9389) target = $region64
        $region63: #{tpu_custom_call.1} parent=35 // pred_region
          _
        $region64: #{tpu_custom_call.1} parent=35 // pred_fallthru
          _
      $region36: #{tpu_custom_call.1} parent=5 // pred_fallthru
        _
      %p9392 = scmp.le.s32.totalorder 2, %s14
      // Predicated region
      $region65: #{tpu_custom_call.1} parent=5 // pred_check
        %p9393 = pneg %p9392
      $region66: #{tpu_custom_call.1} parent=5 // pred_check_branch
        %9395 = sbr.rel (%p9393) target = $region68
      $region67: #{tpu_custom_call.1} parent=5 // pred_region
        %s9396 = ssub.s32 %s14, 2
      $region68: #{tpu_custom_call.1} parent=5 // pred_fallthru
        _
    $region6: #{tpu_custom_call.1} parent=1 // loop_footer
      %s18 = sadd.s32 1, %s14
    $region7: #{tpu_custom_call.1} parent=1 // loop_footer_branch
      %13 = sbr.rel target = $region3
    $region8: #{tpu_custom_call.1} parent=1 // loop_exit
      _
    %9397 = vsyncpa [#allocation4], 1
    %s9398 = scalar_lea.sflag [#allocation4], 1
    %9399 = vsyncpa %s9398, 1
    %9400 = vsyncpa [#allocation6], 1

</llo_original>
